<compile_context>
chip_gen: v6e
topology: v6e:2x2x1
jax: 0.10.0
libtpu: 0.0.40
codegen_flags: <defaults>
</compile_context>

<pallas_src>
import jax
import jax.numpy as jnp
from jax.experimental import pallas as pl
from jax.experimental.pallas import tpu as pltpu


# ----------------------------------------------------------------------------
# Kernel 1: matmul + bias + ReLU (conv1 after im2col).
# ----------------------------------------------------------------------------
def _matmul_bias_relu_kernel(x_ref, w_ref, b_ref, o_ref):
    acc = jnp.dot(x_ref[...], w_ref[...], preferred_element_type=jnp.float32)
    o_ref[...] = jnp.maximum(acc + b_ref[...], 0.0).astype(o_ref.dtype)


def conv_matmul(x, w, b2d, *, block_m=None, out_dtype=jnp.bfloat16):
    """relu(x @ w + b).  x:(M,K) bf16, w:(K,N) bf16, b2d:(1,N) f32."""
    M, K = x.shape
    K2, N = w.shape
    assert K == K2, (K, K2)
    if block_m is None or block_m <= 0 or M % block_m != 0 or block_m % 8 != 0:
        block_m = M
    grid_m = M // block_m
    cost = pl.CostEstimate(
        flops=2 * M * K * N,
        transcendentals=0,
        bytes_accessed=2 * M * K + 2 * K * N + 4 * N + 2 * M * N,
    )
    return pl.pallas_call(
        _matmul_bias_relu_kernel,
        out_shape=jax.ShapeDtypeStruct((M, N), out_dtype),
        grid=(grid_m,),
        in_specs=[
            pl.BlockSpec((block_m, K), lambda i: (i, 0)),
            pl.BlockSpec((K, N), lambda i: (0, 0)),
            pl.BlockSpec((1, N), lambda i: (0, 0)),
        ],
        out_specs=pl.BlockSpec((block_m, N), lambda i: (i, 0)),
        compiler_params=pltpu.CompilerParams(
            dimension_semantics=("parallel",),
            allow_input_fusion=[True, False, False],
        ),
        cost_estimate=cost,
    )(x, w, b2d)


# ----------------------------------------------------------------------------
# Kernel 2: conv2 (im2col'd matmul) + conv3 (in-kernel tap matmuls), fused.
# Grid is over batch; the conv2 activation never leaves VMEM.
# ----------------------------------------------------------------------------
def _conv23_kernel(cols_ref, w2_ref, b2_ref, w3_ref, b3_ref, o_ref, s2_ref):
    # conv2: (88, 512) @ (512, 64) on the MXU; bias+relu in f32; keep in VMEM.
    h2 = jnp.dot(cols_ref[...], w2_ref[...], preferred_element_type=jnp.float32)
    s2_ref[...] = jnp.maximum(h2 + b2_ref[...], 0.0)          # rows = oh2*9+ow2

    b3 = b3_ref[...]                                          # (1, 64) f32
    w3 = [w3_ref[t] for t in range(4)]                        # 4 x (64, 64) bf16
    # conv3 (2x2, stride 1): output spatial (8, 8).  For output row `oh`, tap
    # (di, dj) reads 8 contiguous conv2 rows starting at (oh+di)*9 + dj.
    for oh in range(8):
        acc = b3
        for t, (di, dj) in enumerate(((0, 0), (0, 1), (1, 0), (1, 1))):
            start = (oh + di) * 9 + dj
            tap = s2_ref[pl.ds(start, 8), :].astype(jnp.bfloat16)   # (8, 64)
            acc = acc + jnp.dot(tap, w3[t], preferred_element_type=jnp.float32)
        o_ref[pl.ds(oh * 8, 8), :] = jnp.maximum(acc, 0.0).astype(o_ref.dtype)


def conv23_fused(cols2, w2, b2, w3_taps, b3, *, out_dtype=jnp.bfloat16):
    """cols2:(B,88,512) bf16 -> (B,64,64) bf16 (= (B,8,8,64) NHWC flattened)."""
    B, Mp, K = cols2.shape
    N2 = w2.shape[1]
    assert Mp == 88 and K == 512 and N2 == 64 and w3_taps.shape == (4, 64, 64)
    cost = pl.CostEstimate(
        flops=2 * B * Mp * K * N2 + 2 * B * 64 * 256 * 64,
        transcendentals=0,
        bytes_accessed=2 * B * Mp * K + 2 * K * N2 + 2 * 4 * 64 * 64
        + 4 * 2 * N2 + 2 * B * 64 * 64,
    )
    return pl.pallas_call(
        _conv23_kernel,
        out_shape=jax.ShapeDtypeStruct((B, 64, N2), out_dtype),
        grid=(B,),
        in_specs=[
            pl.BlockSpec((None, Mp, K), lambda b: (b, 0, 0)),
            pl.BlockSpec((K, N2), lambda b: (0, 0)),
            pl.BlockSpec((1, N2), lambda b: (0, 0)),
            pl.BlockSpec((4, 64, N2), lambda b: (0, 0, 0)),
            pl.BlockSpec((1, N2), lambda b: (0, 0)),
        ],
        out_specs=pl.BlockSpec((None, 64, N2), lambda b: (b, 0, 0)),
        scratch_shapes=[pltpu.VMEM((Mp, N2), jnp.float32)],
        compiler_params=pltpu.CompilerParams(
            dimension_semantics=("parallel",),
            allow_input_fusion=[True, False, False, False, False],
        ),
        cost_estimate=cost,
    )(cols2, w2, b2, w3_taps, b3)


# ----------------------------------------------------------------------------
# Kernel 3: fused fc1 -> ReLU -> fc2 -> ReLU -> fc3 in ONE call.
# ----------------------------------------------------------------------------
def _fc_fused_kernel(x_ref, w1_ref, b1_ref, w2_ref, b2_ref, w3_ref, b3_ref, o_ref):
    h = jnp.dot(x_ref[...], w1_ref[...], preferred_element_type=jnp.float32)
    h = jnp.maximum(h + b1_ref[...], 0.0)
    h = jnp.dot(h.astype(jnp.bfloat16), w2_ref[...], preferred_element_type=jnp.float32)
    h = jnp.maximum(h + b2_ref[...], 0.0)
    if b3_ref.shape[1] == 1:
        # output_size == 1: elementwise multiply + lane reduction (VPU/XLU).
        o = jnp.sum(h * w3_ref[...], axis=-1, keepdims=True) + b3_ref[...]
    else:
        # general head: h @ w3.T on the MXU (w3 stored (O, H) torch-style).
        o = jax.lax.dot_general(h, w3_ref[...], (((1,), (1,)), ((), ())),
                                preferred_element_type=jnp.float32) + b3_ref[...]
    o_ref[...] = o.astype(o_ref.dtype)


def fc_fused(x, w1, b1, w2, b2, w3, b3):
    B, K = x.shape
    H = w1.shape[1]
    O = b3.shape[1]
    assert w3.shape == (O, H)
    cost = pl.CostEstimate(
        flops=2 * B * K * H + 2 * B * H * H + 2 * B * H * O,
        transcendentals=0,
        bytes_accessed=2 * (B * K + K * H + H * H) + 4 * (2 * H + O * H + O + B * O),
    )
    return pl.pallas_call(
        _fc_fused_kernel,
        out_shape=jax.ShapeDtypeStruct((B, O), jnp.float32),
        grid=(1,),
        in_specs=[
            pl.BlockSpec((B, K), lambda i: (0, 0)),
            pl.BlockSpec((K, H), lambda i: (0, 0)),
            pl.BlockSpec((1, H), lambda i: (0, 0)),
            pl.BlockSpec((H, H), lambda i: (0, 0)),
            pl.BlockSpec((1, H), lambda i: (0, 0)),
            pl.BlockSpec((O, H), lambda i: (0, 0)),
            pl.BlockSpec((1, O), lambda i: (0, 0)),
        ],
        out_specs=pl.BlockSpec((B, O), lambda i: (0, 0)),
        compiler_params=pltpu.CompilerParams(
            dimension_semantics=("arbitrary",),
            allow_input_fusion=[True, False, False, False, False, False, False],
        ),
        cost_estimate=cost,
    )(x, w1, b1, w2, b2, w3, b3)


# ----------------------------------------------------------------------------
# Glue: NHWC im2col (contiguous/strided slicing + stack/reshape, no transposes).
# Feature order per output position = (kh, kw, cin), matched by the weights.
# ----------------------------------------------------------------------------
def _im2col_nhwc(x, kh, kw, stride):
    B, H, W, C = x.shape
    OH = (H - kh) // stride + 1
    OW = (W - kw) // stride + 1
    taps = []
    for i in range(kh):
        for j in range(kw):
            taps.append(
                x[:, i: i + stride * (OH - 1) + 1: stride,
                     j: j + stride * (OW - 1) + 1: stride, :]
            )
    p = jnp.stack(taps, axis=3)                       # (B, OH, OW, kh*kw, C)
    return p.reshape(B, OH * OW, kh * kw * C), OH, OW


# ----------------------------------------------------------------------------
# Parameters: init in PyTorch layouts, fold all layout changes + bf16 casts
# into the weights ONCE so the forward pass needs zero per-call permutes.
# ----------------------------------------------------------------------------
def init_torch_style_params(key, input_size, hidden_size, output_size):
    ks = jax.random.split(key, 12)

    def u(k, shape, fan_in):
        bound = 1.0 / jnp.sqrt(jnp.float32(fan_in))
        return jax.random.uniform(k, shape, jnp.float32, -bound, bound)

    return {
        "conv1_w": u(ks[0], (32, input_size, 8, 8), input_size * 8 * 8),
        "conv1_b": u(ks[1], (32,), input_size * 8 * 8),
        "conv2_w": u(ks[2], (64, 32, 4, 4), 32 * 4 * 4),
        "conv2_b": u(ks[3], (64,), 32 * 4 * 4),
        "conv3_w": u(ks[4], (64, 64, 2, 2), 64 * 2 * 2),
        "conv3_b": u(ks[5], (64,), 64 * 2 * 2),
        "fc1_w": u(ks[6], (hidden_size, 4096), 4096),          # torch: (out, in)
        "fc1_b": u(ks[7], (hidden_size,), 4096),
        "fc2_w": u(ks[8], (hidden_size, hidden_size), hidden_size),
        "fc2_b": u(ks[9], (hidden_size,), hidden_size),
        "fc3_w": u(ks[10], (output_size, hidden_size), hidden_size),
        "fc3_b": u(ks[11], (output_size,), hidden_size),
    }


def prepare_params(tp):
    bf = jnp.bfloat16

    def conv_w(w):
        # (Cout, Cin, KH, KW) -> (KH*KW*Cin, Cout), matching im2col (kh, kw, cin).
        Cout, Cin, KH, KW = w.shape
        return jnp.transpose(w, (2, 3, 1, 0)).reshape(KH * KW * Cin, Cout).astype(bf)

    hidden = tp["fc1_w"].shape[0]
    # fc1 rows: torch flattens NCHW (c*64 + h*8 + w); our conv3 output flattens
    # NHWC (h*512 + w*64 + c).  Permute the rows once here -> identical math.
    fc1_w = jnp.transpose(
        tp["fc1_w"].reshape(hidden, 64, 8, 8), (2, 3, 1, 0)
    ).reshape(4096, hidden).astype(bf)
    # conv3 weights as per-tap (cin, cout) matrices, tap index = kh*2 + kw.
    conv3_w = jnp.transpose(tp["conv3_w"], (2, 3, 1, 0)).reshape(4, 64, 64).astype(bf)

    return {
        "conv1_w": conv_w(tp["conv1_w"]), "conv1_b": tp["conv1_b"].reshape(1, -1),
        "conv2_w": conv_w(tp["conv2_w"]), "conv2_b": tp["conv2_b"].reshape(1, -1),
        "conv3_w": conv3_w,               "conv3_b": tp["conv3_b"].reshape(1, -1),
        "fc1_w": fc1_w,                   "fc1_b": tp["fc1_b"].reshape(1, -1),
        "fc2_w": jnp.transpose(tp["fc2_w"]).astype(bf),
        "fc2_b": tp["fc2_b"].reshape(1, -1),
        "fc3_w": tp["fc3_w"],             # (O, H) f32, used on the VPU path
        "fc3_b": tp["fc3_b"].reshape(1, -1),
    }


# ----------------------------------------------------------------------------
# Forward pass == ValueNetwork.forward (NCHW input, like PyTorch).
# ----------------------------------------------------------------------------
@jax.jit
def value_network_forward(params, x_nchw):
    B = x_nchw.shape[0]
    # One small NCHW->NHWC transpose + bf16 cast (fuses into the im2col glue).
    x = jnp.transpose(x_nchw, (0, 2, 3, 1)).astype(jnp.bfloat16)      # (B,84,84,4)

    # conv1: 8x8 stride 4 -> (B,20,20,32).  Two M-blocks, "parallel".
    cols1, OH, OW = _im2col_nhwc(x, 8, 8, 4)                          # (B,400,256)
    M1 = B * OH * OW
    y1 = conv_matmul(cols1.reshape(M1, -1), params["conv1_w"],
                     params["conv1_b"], block_m=M1 // 2)              # (M1,32) bf16
    x1 = y1.reshape(B, OH, OW, 32)                                    # pure reshape

    # conv2 (4x4 s2) + conv3 (2x2 s1) fused in ONE kernel -> (B,64,64).
    cols2, OH2, OW2 = _im2col_nhwc(x1, 4, 4, 2)                       # (B,81,512)
    assert OH2 == 9 and OW2 == 9
    cols2 = jnp.pad(cols2, ((0, 0), (0, 88 - OH2 * OW2), (0, 0)))     # 8-aligned rows
    y3 = conv23_fused(cols2, params["conv2_w"], params["conv2_b"],
                      params["conv3_w"], params["conv3_b"])           # (B,64,64) bf16

    # NHWC flatten is a free XLA reshape; fc1 rows were permuted to match.
    x_flat = y3.reshape(B, 4096)

    # fc1 -> relu -> fc2 -> relu -> fc3, all in ONE pallas_call.
    return fc_fused(x_flat, params["fc1_w"], params["fc1_b"],
                    params["fc2_w"], params["fc2_b"],
                    params["fc3_w"], params["fc3_b"])


if __name__ == "__main__":
    input_size = 4      # stacked Atari frames (in_channels)
    hidden_size = 32
    output_size = 1     # state-value head

    key = jax.random.PRNGKey(0)
    pkey, xkey = jax.random.split(key)
    params = prepare_params(
        init_torch_style_params(pkey, input_size, hidden_size, output_size))

    # NCHW input; 84x84 is forced by fc1's 4096 = 64*8*8 flatten size.
    x = jax.random.normal(xkey, (2, input_size, 84, 84), dtype=jnp.float32)

    out = value_network_forward(params, x)
    out = jax.block_until_ready(out)
    assert out.shape == (2, output_size), out.shape
    print("KERNEL_OK")
</pallas_src>

<mosaic_0001>
module attributes {stable_mosaic.version = 11 : i64} {
  func.func @_matmul_bias_relu_kernel(%arg0: i32, %arg1: memref<400x256xbf16, #tpu.memory_space<vmem>>, %arg2: memref<256x32xbf16, #tpu.memory_space<vmem>>, %arg3: memref<1x32xf32, #tpu.memory_space<vmem>>, %arg4: memref<400x32xbf16, #tpu.memory_space<vmem>>) attributes {dimension_semantics = [#tpu.dimension_semantics<parallel>], iteration_bounds = array<i64: 2>, scalar_prefetch = 0 : i64, scratch_operands = 0 : i64, tpu.core_type = #tpu.core_type<tc>, window_params = [{transform_indices = @transform_0, window_bounds = array<i64: 400, 256>}, {pipeline_mode = #tpu.pipeline_mode<synchronous>, transform_indices = @transform_1, window_bounds = array<i64: 256, 32>}, {pipeline_mode = #tpu.pipeline_mode<synchronous>, transform_indices = @transform_2, window_bounds = array<i64: 1, 32>}, {transform_indices = @transform_3, window_bounds = array<i64: 400, 32>}]} {
    %c0 = arith.constant 0 : index
    %c0_0 = arith.constant 0 : index
    %0 = vector.load %arg1[%c0, %c0_0] : memref<400x256xbf16, #tpu.memory_space<vmem>>, vector<400x256xbf16>
    %c0_1 = arith.constant 0 : index
    %c0_2 = arith.constant 0 : index
    %1 = vector.load %arg2[%c0_1, %c0_2] : memref<256x32xbf16, #tpu.memory_space<vmem>>, vector<256x32xbf16>
    %cst = arith.constant dense<0.000000e+00> : vector<400x32xf32>
    %2 = tpu.matmul %0, %1, %cst {dimension_numbers = #tpu.dot_dimension_numbers<[1], [0], [0], [1], [0, 0, 1, 1], [], []>} : vector<400x256xbf16>, vector<256x32xbf16>, vector<400x32xf32> -> vector<400x32xf32>
    %c0_3 = arith.constant 0 : index
    %c0_4 = arith.constant 0 : index
    %3 = vector.load %arg3[%c0_3, %c0_4] : memref<1x32xf32, #tpu.memory_space<vmem>>, vector<1x32xf32>
    %4 = vector.broadcast %3 : vector<1x32xf32> to vector<400x32xf32>
    %5 = arith.addf %2, %4 : vector<400x32xf32>
    %cst_5 = arith.constant 0.000000e+00 : f32
    %6 = vector.broadcast %cst_5 : f32 to vector<400x32xf32>
    %7 = arith.maximumf %5, %6 : vector<400x32xf32>
    %8 = arith.truncf %7 : vector<400x32xf32> to vector<400x32xbf16>
    %c0_6 = arith.constant 0 : index
    %c0_7 = arith.constant 0 : index
    %9 = vector.load %arg4[%c0_6, %c0_7] : memref<400x32xbf16, #tpu.memory_space<vmem>>, vector<400x32xbf16>
    tpu.vector_store %arg4[%c0_6, %c0_7], %8 {strides = array<i32>} : memref<400x32xbf16, #tpu.memory_space<vmem>>, vector<400x32xbf16>,
    return
  }
  func.func @transform_0(%arg0: i32) -> (i32, i32) {
    %c0_i32 = arith.constant 0 : i32
    %c0_i32_0 = arith.constant 0 : i32
    return %arg0, %c0_i32 : i32, i32
  }
  func.func @transform_1(%arg0: i32) -> (i32, i32) {
    %c0_i32 = arith.constant 0 : i32
    %c0_i32_0 = arith.constant 0 : i32
    %c0_i32_1 = arith.constant 0 : i32
    return %c0_i32, %c0_i32_0 : i32, i32
  }
  func.func @transform_2(%arg0: i32) -> (i32, i32) {
    %c0_i32 = arith.constant 0 : i32
    %c0_i32_0 = arith.constant 0 : i32
    %c0_i32_1 = arith.constant 0 : i32
    return %c0_i32, %c0_i32_0 : i32, i32
  }
  func.func @transform_3(%arg0: i32) -> (i32, i32) {
    %c0_i32 = arith.constant 0 : i32
    %c0_i32_0 = arith.constant 0 : i32
    return %arg0, %c0_i32 : i32, i32
  }
}

module attributes {stable_mosaic.version = 11 : i64} {
  func.func @_conv23_kernel(%arg0: i32, %arg1: memref<1x88x512xbf16, #tpu.memory_space<vmem>>, %arg2: memref<512x64xbf16, #tpu.memory_space<vmem>>, %arg3: memref<1x64xf32, #tpu.memory_space<vmem>>, %arg4: memref<4x64x64xbf16, #tpu.memory_space<vmem>>, %arg5: memref<1x64xf32, #tpu.memory_space<vmem>>, %arg6: memref<1x64x64xbf16, #tpu.memory_space<vmem>>, %arg7: memref<88x64xf32, #tpu.memory_space<vmem>>) attributes {dimension_semantics = [#tpu.dimension_semantics<parallel>], iteration_bounds = array<i64: 2>, scalar_prefetch = 0 : i64, scratch_operands = 1 : i64, tpu.core_type = #tpu.core_type<tc>, window_params = [{transform_indices = @transform_0, window_bounds = array<i64: 1, 88, 512>}, {pipeline_mode = #tpu.pipeline_mode<synchronous>, transform_indices = @transform_1, window_bounds = array<i64: 512, 64>}, {pipeline_mode = #tpu.pipeline_mode<synchronous>, transform_indices = @transform_2, window_bounds = array<i64: 1, 64>}, {pipeline_mode = #tpu.pipeline_mode<synchronous>, transform_indices = @transform_3, window_bounds = array<i64: 4, 64, 64>}, {pipeline_mode = #tpu.pipeline_mode<synchronous>, transform_indices = @transform_4, window_bounds = array<i64: 1, 64>}, {transform_indices = @transform_5, window_bounds = array<i64: 1, 64, 64>}]} {
    %c0 = arith.constant 0 : index
    %c0_0 = arith.constant 0 : index
    %c0_1 = arith.constant 0 : index
    %0 = vector.load %arg1[%c0, %c0_0, %c0_1] : memref<1x88x512xbf16, #tpu.memory_space<vmem>>, vector<1x88x512xbf16>
    %1 = vector.shape_cast %0 : vector<1x88x512xbf16> to vector<88x512xbf16>
    %c0_2 = arith.constant 0 : index
    %c0_3 = arith.constant 0 : index
    %2 = vector.load %arg2[%c0_2, %c0_3] : memref<512x64xbf16, #tpu.memory_space<vmem>>, vector<512x64xbf16>
    %cst = arith.constant dense<0.000000e+00> : vector<88x64xf32>
    %3 = tpu.matmul %1, %2, %cst {dimension_numbers = #tpu.dot_dimension_numbers<[1], [0], [0], [1], [0, 0, 1, 1], [], []>} : vector<88x512xbf16>, vector<512x64xbf16>, vector<88x64xf32> -> vector<88x64xf32>
    %c0_4 = arith.constant 0 : index
    %c0_5 = arith.constant 0 : index
    %4 = vector.load %arg3[%c0_4, %c0_5] : memref<1x64xf32, #tpu.memory_space<vmem>>, vector<1x64xf32>
    %5 = vector.broadcast %4 : vector<1x64xf32> to vector<88x64xf32>
    %6 = arith.addf %3, %5 : vector<88x64xf32>
    %cst_6 = arith.constant 0.000000e+00 : f32
    %7 = vector.broadcast %cst_6 : f32 to vector<88x64xf32>
    %8 = arith.maximumf %6, %7 : vector<88x64xf32>
    %c0_7 = arith.constant 0 : index
    %c0_8 = arith.constant 0 : index
    %9 = vector.load %arg7[%c0_7, %c0_8] : memref<88x64xf32, #tpu.memory_space<vmem>>, vector<88x64xf32>
    tpu.vector_store %arg7[%c0_7, %c0_8], %8 {strides = array<i32>} : memref<88x64xf32, #tpu.memory_space<vmem>>, vector<88x64xf32>,
    %c0_9 = arith.constant 0 : index
    %c0_10 = arith.constant 0 : index
    %10 = vector.load %arg5[%c0_9, %c0_10] : memref<1x64xf32, #tpu.memory_space<vmem>>, vector<1x64xf32>
    %c0_11 = arith.constant 0 : index
    %c0_12 = arith.constant 0 : index
    %c0_13 = arith.constant 0 : index
    %11 = vector.load %arg4[%c0_11, %c0_12, %c0_13] : memref<4x64x64xbf16, #tpu.memory_space<vmem>>, vector<1x64x64xbf16>
    %12 = vector.shape_cast %11 : vector<1x64x64xbf16> to vector<64x64xbf16>
    %c1 = arith.constant 1 : index
    %c0_14 = arith.constant 0 : index
    %c0_15 = arith.constant 0 : index
    %13 = vector.load %arg4[%c1, %c0_14, %c0_15] : memref<4x64x64xbf16, #tpu.memory_space<vmem>>, vector<1x64x64xbf16>
    %14 = vector.shape_cast %13 : vector<1x64x64xbf16> to vector<64x64xbf16>
    %c2 = arith.constant 2 : index
    %c0_16 = arith.constant 0 : index
    %c0_17 = arith.constant 0 : index
    %15 = vector.load %arg4[%c2, %c0_16, %c0_17] : memref<4x64x64xbf16, #tpu.memory_space<vmem>>, vector<1x64x64xbf16>
    %16 = vector.shape_cast %15 : vector<1x64x64xbf16> to vector<64x64xbf16>
    %c3 = arith.constant 3 : index
    %c0_18 = arith.constant 0 : index
    %c0_19 = arith.constant 0 : index
    %17 = vector.load %arg4[%c3, %c0_18, %c0_19] : memref<4x64x64xbf16, #tpu.memory_space<vmem>>, vector<1x64x64xbf16>
    %18 = vector.shape_cast %17 : vector<1x64x64xbf16> to vector<64x64xbf16>
    %c0_20 = arith.constant 0 : index
    %c0_21 = arith.constant 0 : index
    %19 = vector.load %arg7[%c0_20, %c0_21] : memref<88x64xf32, #tpu.memory_space<vmem>>, vector<8x64xf32>
    %20 = arith.truncf %19 : vector<8x64xf32> to vector<8x64xbf16>
    %cst_22 = arith.constant dense<0.000000e+00> : vector<8x64xf32>
    %21 = tpu.matmul %20, %12, %cst_22 {dimension_numbers = #tpu.dot_dimension_numbers<[1], [0], [0], [1], [0, 0, 1, 1], [], []>} : vector<8x64xbf16>, vector<64x64xbf16>, vector<8x64xf32> -> vector<8x64xf32>
    %22 = vector.broadcast %10 : vector<1x64xf32> to vector<8x64xf32>
    %23 = arith.addf %22, %21 : vector<8x64xf32>
    %c1_23 = arith.constant 1 : index
    %c0_24 = arith.constant 0 : index
    %24 = vector.load %arg7[%c1_23, %c0_24] : memref<88x64xf32, #tpu.memory_space<vmem>>, vector<8x64xf32>
    %25 = arith.truncf %24 : vector<8x64xf32> to vector<8x64xbf16>
    %cst_25 = arith.constant dense<0.000000e+00> : vector<8x64xf32>
    %26 = tpu.matmul %25, %14, %cst_25 {dimension_numbers = #tpu.dot_dimension_numbers<[1], [0], [0], [1], [0, 0, 1, 1], [], []>} : vector<8x64xbf16>, vector<64x64xbf16>, vector<8x64xf32> -> vector<8x64xf32>
    %27 = arith.addf %23, %26 : vector<8x64xf32>
    %c9 = arith.constant 9 : index
    %c0_26 = arith.constant 0 : index
    %28 = vector.load %arg7[%c9, %c0_26] : memref<88x64xf32, #tpu.memory_space<vmem>>, vector<8x64xf32>
    %29 = arith.truncf %28 : vector<8x64xf32> to vector<8x64xbf16>
    %cst_27 = arith.constant dense<0.000000e+00> : vector<8x64xf32>
    %30 = tpu.matmul %29, %16, %cst_27 {dimension_numbers = #tpu.dot_dimension_numbers<[1], [0], [0], [1], [0, 0, 1, 1], [], []>} : vector<8x64xbf16>, vector<64x64xbf16>, vector<8x64xf32> -> vector<8x64xf32>
    %31 = arith.addf %27, %30 : vector<8x64xf32>
    %c10 = arith.constant 10 : index
    %c0_28 = arith.constant 0 : index
    %32 = vector.load %arg7[%c10, %c0_28] : memref<88x64xf32, #tpu.memory_space<vmem>>, vector<8x64xf32>
    %33 = arith.truncf %32 : vector<8x64xf32> to vector<8x64xbf16>
    %cst_29 = arith.constant dense<0.000000e+00> : vector<8x64xf32>
    %34 = tpu.matmul %33, %18, %cst_29 {dimension_numbers = #tpu.dot_dimension_numbers<[1], [0], [0], [1], [0, 0, 1, 1], [], []>} : vector<8x64xbf16>, vector<64x64xbf16>, vector<8x64xf32> -> vector<8x64xf32>
    %35 = arith.addf %31, %34 : vector<8x64xf32>
    %cst_30 = arith.constant 0.000000e+00 : f32
    %36 = vector.broadcast %cst_30 : f32 to vector<8x64xf32>
    %37 = arith.maximumf %35, %36 : vector<8x64xf32>
    %38 = arith.truncf %37 : vector<8x64xf32> to vector<8x64xbf16>
    %c0_31 = arith.constant 0 : index
    %c0_32 = arith.constant 0 : index
    %c0_33 = arith.constant 0 : index
    %39 = vector.load %arg6[%c0_31, %c0_32, %c0_33] : memref<1x64x64xbf16, #tpu.memory_space<vmem>>, vector<1x8x64xbf16>
    %40 = vector.shape_cast %39 : vector<1x8x64xbf16> to vector<8x64xbf16>
    %41 = vector.shape_cast %38 : vector<8x64xbf16> to vector<1x8x64xbf16>
    tpu.vector_store %arg6[%c0_31, %c0_32, %c0_33], %41 {strides = array<i32>} : memref<1x64x64xbf16, #tpu.memory_space<vmem>>, vector<1x8x64xbf16>,
    %c9_34 = arith.constant 9 : index
    %c0_35 = arith.constant 0 : index
    %42 = vector.load %arg7[%c9_34, %c0_35] : memref<88x64xf32, #tpu.memory_space<vmem>>, vector<8x64xf32>
    %43 = arith.truncf %42 : vector<8x64xf32> to vector<8x64xbf16>
    %cst_36 = arith.constant dense<0.000000e+00> : vector<8x64xf32>
    %44 = tpu.matmul %43, %12, %cst_36 {dimension_numbers = #tpu.dot_dimension_numbers<[1], [0], [0], [1], [0, 0, 1, 1], [], []>} : vector<8x64xbf16>, vector<64x64xbf16>, vector<8x64xf32> -> vector<8x64xf32>
    %45 = vector.broadcast %10 : vector<1x64xf32> to vector<8x64xf32>
    %46 = arith.addf %45, %44 : vector<8x64xf32>
    %c10_37 = arith.constant 10 : index
    %c0_38 = arith.constant 0 : index
    %47 = vector.load %arg7[%c10_37, %c0_38] : memref<88x64xf32, #tpu.memory_space<vmem>>, vector<8x64xf32>
    %48 = arith.truncf %47 : vector<8x64xf32> to vector<8x64xbf16>
    %cst_39 = arith.constant dense<0.000000e+00> : vector<8x64xf32>
    %49 = tpu.matmul %48, %14, %cst_39 {dimension_numbers = #tpu.dot_dimension_numbers<[1], [0], [0], [1], [0, 0, 1, 1], [], []>} : vector<8x64xbf16>, vector<64x64xbf16>, vector<8x64xf32> -> vector<8x64xf32>
    %50 = arith.addf %46, %49 : vector<8x64xf32>
    %c18 = arith.constant 18 : index
    %c0_40 = arith.constant 0 : index
    %51 = vector.load %arg7[%c18, %c0_40] : memref<88x64xf32, #tpu.memory_space<vmem>>, vector<8x64xf32>
    %52 = arith.truncf %51 : vector<8x64xf32> to vector<8x64xbf16>
    %cst_41 = arith.constant dense<0.000000e+00> : vector<8x64xf32>
    %53 = tpu.matmul %52, %16, %cst_41 {dimension_numbers = #tpu.dot_dimension_numbers<[1], [0], [0], [1], [0, 0, 1, 1], [], []>} : vector<8x64xbf16>, vector<64x64xbf16>, vector<8x64xf32> -> vector<8x64xf32>
    %54 = arith.addf %50, %53 : vector<8x64xf32>
    %c19 = arith.constant 19 : index
    %c0_42 = arith.constant 0 : index
    %55 = vector.load %arg7[%c19, %c0_42] : memref<88x64xf32, #tpu.memory_space<vmem>>, vector<8x64xf32>
    %56 = arith.truncf %55 : vector<8x64xf32> to vector<8x64xbf16>
    %cst_43 = arith.constant dense<0.000000e+00> : vector<8x64xf32>
    %57 = tpu.matmul %56, %18, %cst_43 {dimension_numbers = #tpu.dot_dimension_numbers<[1], [0], [0], [1], [0, 0, 1, 1], [], []>} : vector<8x64xbf16>, vector<64x64xbf16>, vector<8x64xf32> -> vector<8x64xf32>
    %58 = arith.addf %54, %57 : vector<8x64xf32>
    %cst_44 = arith.constant 0.000000e+00 : f32
    %59 = vector.broadcast %cst_44 : f32 to vector<8x64xf32>
    %60 = arith.maximumf %58, %59 : vector<8x64xf32>
    %61 = arith.truncf %60 : vector<8x64xf32> to vector<8x64xbf16>
    %c0_45 = arith.constant 0 : index
    %c8 = arith.constant 8 : index
    %c0_46 = arith.constant 0 : index
    %62 = vector.load %arg6[%c0_45, %c8, %c0_46] : memref<1x64x64xbf16, #tpu.memory_space<vmem>>, vector<1x8x64xbf16>
    %63 = vector.shape_cast %62 : vector<1x8x64xbf16> to vector<8x64xbf16>
    %64 = vector.shape_cast %61 : vector<8x64xbf16> to vector<1x8x64xbf16>
    tpu.vector_store %arg6[%c0_45, %c8, %c0_46], %64 {strides = array<i32>} : memref<1x64x64xbf16, #tpu.memory_space<vmem>>, vector<1x8x64xbf16>,
    %c18_47 = arith.constant 18 : index
    %c0_48 = arith.constant 0 : index
    %65 = vector.load %arg7[%c18_47, %c0_48] : memref<88x64xf32, #tpu.memory_space<vmem>>, vector<8x64xf32>
    %66 = arith.truncf %65 : vector<8x64xf32> to vector<8x64xbf16>
    %cst_49 = arith.constant dense<0.000000e+00> : vector<8x64xf32>
    %67 = tpu.matmul %66, %12, %cst_49 {dimension_numbers = #tpu.dot_dimension_numbers<[1], [0], [0], [1], [0, 0, 1, 1], [], []>} : vector<8x64xbf16>, vector<64x64xbf16>, vector<8x64xf32> -> vector<8x64xf32>
    %68 = vector.broadcast %10 : vector<1x64xf32> to vector<8x64xf32>
    %69 = arith.addf %68, %67 : vector<8x64xf32>
    %c19_50 = arith.constant 19 : index
    %c0_51 = arith.constant 0 : index
    %70 = vector.load %arg7[%c19_50, %c0_51] : memref<88x64xf32, #tpu.memory_space<vmem>>, vector<8x64xf32>
    %71 = arith.truncf %70 : vector<8x64xf32> to vector<8x64xbf16>
    %cst_52 = arith.constant dense<0.000000e+00> : vector<8x64xf32>
    %72 = tpu.matmul %71, %14, %cst_52 {dimension_numbers = #tpu.dot_dimension_numbers<[1], [0], [0], [1], [0, 0, 1, 1], [], []>} : vector<8x64xbf16>, vector<64x64xbf16>, vector<8x64xf32> -> vector<8x64xf32>
    %73 = arith.addf %69, %72 : vector<8x64xf32>
    %c27 = arith.constant 27 : index
    %c0_53 = arith.constant 0 : index
    %74 = vector.load %arg7[%c27, %c0_53] : memref<88x64xf32, #tpu.memory_space<vmem>>, vector<8x64xf32>
    %75 = arith.truncf %74 : vector<8x64xf32> to vector<8x64xbf16>
    %cst_54 = arith.constant dense<0.000000e+00> : vector<8x64xf32>
    %76 = tpu.matmul %75, %16, %cst_54 {dimension_numbers = #tpu.dot_dimension_numbers<[1], [0], [0], [1], [0, 0, 1, 1], [], []>} : vector<8x64xbf16>, vector<64x64xbf16>, vector<8x64xf32> -> vector<8x64xf32>
    %77 = arith.addf %73, %76 : vector<8x64xf32>
    %c28 = arith.constant 28 : index
    %c0_55 = arith.constant 0 : index
    %78 = vector.load %arg7[%c28, %c0_55] : memref<88x64xf32, #tpu.memory_space<vmem>>, vector<8x64xf32>
    %79 = arith.truncf %78 : vector<8x64xf32> to vector<8x64xbf16>
    %cst_56 = arith.constant dense<0.000000e+00> : vector<8x64xf32>
    %80 = tpu.matmul %79, %18, %cst_56 {dimension_numbers = #tpu.dot_dimension_numbers<[1], [0], [0], [1], [0, 0, 1, 1], [], []>} : vector<8x64xbf16>, vector<64x64xbf16>, vector<8x64xf32> -> vector<8x64xf32>
    %81 = arith.addf %77, %80 : vector<8x64xf32>
    %cst_57 = arith.constant 0.000000e+00 : f32
    %82 = vector.broadcast %cst_57 : f32 to vector<8x64xf32>
    %83 = arith.maximumf %81, %82 : vector<8x64xf32>
    %84 = arith.truncf %83 : vector<8x64xf32> to vector<8x64xbf16>
    %c0_58 = arith.constant 0 : index
    %c16 = arith.constant 16 : index
    %c0_59 = arith.constant 0 : index
    %85 = vector.load %arg6[%c0_58, %c16, %c0_59] : memref<1x64x64xbf16, #tpu.memory_space<vmem>>, vector<1x8x64xbf16>
    %86 = vector.shape_cast %85 : vector<1x8x64xbf16> to vector<8x64xbf16>
    %87 = vector.shape_cast %84 : vector<8x64xbf16> to vector<1x8x64xbf16>
    tpu.vector_store %arg6[%c0_58, %c16, %c0_59], %87 {strides = array<i32>} : memref<1x64x64xbf16, #tpu.memory_space<vmem>>, vector<1x8x64xbf16>,
    %c27_60 = arith.constant 27 : index
    %c0_61 = arith.constant 0 : index
    %88 = vector.load %arg7[%c27_60, %c0_61] : memref<88x64xf32, #tpu.memory_space<vmem>>, vector<8x64xf32>
    %89 = arith.truncf %88 : vector<8x64xf32> to vector<8x64xbf16>
    %cst_62 = arith.constant dense<0.000000e+00> : vector<8x64xf32>
    %90 = tpu.matmul %89, %12, %cst_62 {dimension_numbers = #tpu.dot_dimension_numbers<[1], [0], [0], [1], [0, 0, 1, 1], [], []>} : vector<8x64xbf16>, vector<64x64xbf16>, vector<8x64xf32> -> vector<8x64xf32>
    %91 = vector.broadcast %10 : vector<1x64xf32> to vector<8x64xf32>
    %92 = arith.addf %91, %90 : vector<8x64xf32>
    %c28_63 = arith.constant 28 : index
    %c0_64 = arith.constant 0 : index
    %93 = vector.load %arg7[%c28_63, %c0_64] : memref<88x64xf32, #tpu.memory_space<vmem>>, vector<8x64xf32>
    %94 = arith.truncf %93 : vector<8x64xf32> to vector<8x64xbf16>
    %cst_65 = arith.constant dense<0.000000e+00> : vector<8x64xf32>
    %95 = tpu.matmul %94, %14, %cst_65 {dimension_numbers = #tpu.dot_dimension_numbers<[1], [0], [0], [1], [0, 0, 1, 1], [], []>} : vector<8x64xbf16>, vector<64x64xbf16>, vector<8x64xf32> -> vector<8x64xf32>
    %96 = arith.addf %92, %95 : vector<8x64xf32>
    %c36 = arith.constant 36 : index
    %c0_66 = arith.constant 0 : index
    %97 = vector.load %arg7[%c36, %c0_66] : memref<88x64xf32, #tpu.memory_space<vmem>>, vector<8x64xf32>
    %98 = arith.truncf %97 : vector<8x64xf32> to vector<8x64xbf16>
    %cst_67 = arith.constant dense<0.000000e+00> : vector<8x64xf32>
    %99 = tpu.matmul %98, %16, %cst_67 {dimension_numbers = #tpu.dot_dimension_numbers<[1], [0], [0], [1], [0, 0, 1, 1], [], []>} : vector<8x64xbf16>, vector<64x64xbf16>, vector<8x64xf32> -> vector<8x64xf32>
    %100 = arith.addf %96, %99 : vector<8x64xf32>
    %c37 = arith.constant 37 : index
    %c0_68 = arith.constant 0 : index
    %101 = vector.load %arg7[%c37, %c0_68] : memref<88x64xf32, #tpu.memory_space<vmem>>, vector<8x64xf32>
    %102 = arith.truncf %101 : vector<8x64xf32> to vector<8x64xbf16>
    %cst_69 = arith.constant dense<0.000000e+00> : vector<8x64xf32>
    %103 = tpu.matmul %102, %18, %cst_69 {dimension_numbers = #tpu.dot_dimension_numbers<[1], [0], [0], [1], [0, 0, 1, 1], [], []>} : vector<8x64xbf16>, vector<64x64xbf16>, vector<8x64xf32> -> vector<8x64xf32>
    %104 = arith.addf %100, %103 : vector<8x64xf32>
    %cst_70 = arith.constant 0.000000e+00 : f32
    %105 = vector.broadcast %cst_70 : f32 to vector<8x64xf32>
    %106 = arith.maximumf %104, %105 : vector<8x64xf32>
    %107 = arith.truncf %106 : vector<8x64xf32> to vector<8x64xbf16>
    %c0_71 = arith.constant 0 : index
    %c24 = arith.constant 24 : index
    %c0_72 = arith.constant 0 : index
    %108 = vector.load %arg6[%c0_71, %c24, %c0_72] : memref<1x64x64xbf16, #tpu.memory_space<vmem>>, vector<1x8x64xbf16>
    %109 = vector.shape_cast %108 : vector<1x8x64xbf16> to vector<8x64xbf16>
    %110 = vector.shape_cast %107 : vector<8x64xbf16> to vector<1x8x64xbf16>
    tpu.vector_store %arg6[%c0_71, %c24, %c0_72], %110 {strides = array<i32>} : memref<1x64x64xbf16, #tpu.memory_space<vmem>>, vector<1x8x64xbf16>,
    %c36_73 = arith.constant 36 : index
    %c0_74 = arith.constant 0 : index
    %111 = vector.load %arg7[%c36_73, %c0_74] : memref<88x64xf32, #tpu.memory_space<vmem>>, vector<8x64xf32>
    %112 = arith.truncf %111 : vector<8x64xf32> to vector<8x64xbf16>
    %cst_75 = arith.constant dense<0.000000e+00> : vector<8x64xf32>
    %113 = tpu.matmul %112, %12, %cst_75 {dimension_numbers = #tpu.dot_dimension_numbers<[1], [0], [0], [1], [0, 0, 1, 1], [], []>} : vector<8x64xbf16>, vector<64x64xbf16>, vector<8x64xf32> -> vector<8x64xf32>
    %114 = vector.broadcast %10 : vector<1x64xf32> to vector<8x64xf32>
    %115 = arith.addf %114, %113 : vector<8x64xf32>
    %c37_76 = arith.constant 37 : index
    %c0_77 = arith.constant 0 : index
    %116 = vector.load %arg7[%c37_76, %c0_77] : memref<88x64xf32, #tpu.memory_space<vmem>>, vector<8x64xf32>
    %117 = arith.truncf %116 : vector<8x64xf32> to vector<8x64xbf16>
    %cst_78 = arith.constant dense<0.000000e+00> : vector<8x64xf32>
    %118 = tpu.matmul %117, %14, %cst_78 {dimension_numbers = #tpu.dot_dimension_numbers<[1], [0], [0], [1], [0, 0, 1, 1], [], []>} : vector<8x64xbf16>, vector<64x64xbf16>, vector<8x64xf32> -> vector<8x64xf32>
    %119 = arith.addf %115, %118 : vector<8x64xf32>
    %c45 = arith.constant 45 : index
    %c0_79 = arith.constant 0 : index
    %120 = vector.load %arg7[%c45, %c0_79] : memref<88x64xf32, #tpu.memory_space<vmem>>, vector<8x64xf32>
    %121 = arith.truncf %120 : vector<8x64xf32> to vector<8x64xbf16>
    %cst_80 = arith.constant dense<0.000000e+00> : vector<8x64xf32>
    %122 = tpu.matmul %121, %16, %cst_80 {dimension_numbers = #tpu.dot_dimension_numbers<[1], [0], [0], [1], [0, 0, 1, 1], [], []>} : vector<8x64xbf16>, vector<64x64xbf16>, vector<8x64xf32> -> vector<8x64xf32>
    %123 = arith.addf %119, %122 : vector<8x64xf32>
    %c46 = arith.constant 46 : index
    %c0_81 = arith.constant 0 : index
    %124 = vector.load %arg7[%c46, %c0_81] : memref<88x64xf32, #tpu.memory_space<vmem>>, vector<8x64xf32>
    %125 = arith.truncf %124 : vector<8x64xf32> to vector<8x64xbf16>
    %cst_82 = arith.constant dense<0.000000e+00> : vector<8x64xf32>
    %126 = tpu.matmul %125, %18, %cst_82 {dimension_numbers = #tpu.dot_dimension_numbers<[1], [0], [0], [1], [0, 0, 1, 1], [], []>} : vector<8x64xbf16>, vector<64x64xbf16>, vector<8x64xf32> -> vector<8x64xf32>
    %127 = arith.addf %123, %126 : vector<8x64xf32>
    %cst_83 = arith.constant 0.000000e+00 : f32
    %128 = vector.broadcast %cst_83 : f32 to vector<8x64xf32>
    %129 = arith.maximumf %127, %128 : vector<8x64xf32>
    %130 = arith.truncf %129 : vector<8x64xf32> to vector<8x64xbf16>
    %c0_84 = arith.constant 0 : index
    %c32 = arith.constant 32 : index
    %c0_85 = arith.constant 0 : index
    %131 = vector.load %arg6[%c0_84, %c32, %c0_85] : memref<1x64x64xbf16, #tpu.memory_space<vmem>>, vector<1x8x64xbf16>
    %132 = vector.shape_cast %131 : vector<1x8x64xbf16> to vector<8x64xbf16>
    %133 = vector.shape_cast %130 : vector<8x64xbf16> to vector<1x8x64xbf16>
    tpu.vector_store %arg6[%c0_84, %c32, %c0_85], %133 {strides = array<i32>} : memref<1x64x64xbf16, #tpu.memory_space<vmem>>, vector<1x8x64xbf16>,
    %c45_86 = arith.constant 45 : index
    %c0_87 = arith.constant 0 : index
    %134 = vector.load %arg7[%c45_86, %c0_87] : memref<88x64xf32, #tpu.memory_space<vmem>>, vector<8x64xf32>
    %135 = arith.truncf %134 : vector<8x64xf32> to vector<8x64xbf16>
    %cst_88 = arith.constant dense<0.000000e+00> : vector<8x64xf32>
    %136 = tpu.matmul %135, %12, %cst_88 {dimension_numbers = #tpu.dot_dimension_numbers<[1], [0], [0], [1], [0, 0, 1, 1], [], []>} : vector<8x64xbf16>, vector<64x64xbf16>, vector<8x64xf32> -> vector<8x64xf32>
    %137 = vector.broadcast %10 : vector<1x64xf32> to vector<8x64xf32>
    %138 = arith.addf %137, %136 : vector<8x64xf32>
    %c46_89 = arith.constant 46 : index
    %c0_90 = arith.constant 0 : index
    %139 = vector.load %arg7[%c46_89, %c0_90] : memref<88x64xf32, #tpu.memory_space<vmem>>, vector<8x64xf32>
    %140 = arith.truncf %139 : vector<8x64xf32> to vector<8x64xbf16>
    %cst_91 = arith.constant dense<0.000000e+00> : vector<8x64xf32>
    %141 = tpu.matmul %140, %14, %cst_91 {dimension_numbers = #tpu.dot_dimension_numbers<[1], [0], [0], [1], [0, 0, 1, 1], [], []>} : vector<8x64xbf16>, vector<64x64xbf16>, vector<8x64xf32> -> vector<8x64xf32>
    %142 = arith.addf %138, %141 : vector<8x64xf32>
    %c54 = arith.constant 54 : index
    %c0_92 = arith.constant 0 : index
    %143 = vector.load %arg7[%c54, %c0_92] : memref<88x64xf32, #tpu.memory_space<vmem>>, vector<8x64xf32>
    %144 = arith.truncf %143 : vector<8x64xf32> to vector<8x64xbf16>
    %cst_93 = arith.constant dense<0.000000e+00> : vector<8x64xf32>
    %145 = tpu.matmul %144, %16, %cst_93 {dimension_numbers = #tpu.dot_dimension_numbers<[1], [0], [0], [1], [0, 0, 1, 1], [], []>} : vector<8x64xbf16>, vector<64x64xbf16>, vector<8x64xf32> -> vector<8x64xf32>
    %146 = arith.addf %142, %145 : vector<8x64xf32>
    %c55 = arith.constant 55 : index
    %c0_94 = arith.constant 0 : index
    %147 = vector.load %arg7[%c55, %c0_94] : memref<88x64xf32, #tpu.memory_space<vmem>>, vector<8x64xf32>
    %148 = arith.truncf %147 : vector<8x64xf32> to vector<8x64xbf16>
    %cst_95 = arith.constant dense<0.000000e+00> : vector<8x64xf32>
    %149 = tpu.matmul %148, %18, %cst_95 {dimension_numbers = #tpu.dot_dimension_numbers<[1], [0], [0], [1], [0, 0, 1, 1], [], []>} : vector<8x64xbf16>, vector<64x64xbf16>, vector<8x64xf32> -> vector<8x64xf32>
    %150 = arith.addf %146, %149 : vector<8x64xf32>
    %cst_96 = arith.constant 0.000000e+00 : f32
    %151 = vector.broadcast %cst_96 : f32 to vector<8x64xf32>
    %152 = arith.maximumf %150, %151 : vector<8x64xf32>
    %153 = arith.truncf %152 : vector<8x64xf32> to vector<8x64xbf16>
    %c0_97 = arith.constant 0 : index
    %c40 = arith.constant 40 : index
    %c0_98 = arith.constant 0 : index
    %154 = vector.load %arg6[%c0_97, %c40, %c0_98] : memref<1x64x64xbf16, #tpu.memory_space<vmem>>, vector<1x8x64xbf16>
    %155 = vector.shape_cast %154 : vector<1x8x64xbf16> to vector<8x64xbf16>
    %156 = vector.shape_cast %153 : vector<8x64xbf16> to vector<1x8x64xbf16>
    tpu.vector_store %arg6[%c0_97, %c40, %c0_98], %156 {strides = array<i32>} : memref<1x64x64xbf16, #tpu.memory_space<vmem>>, vector<1x8x64xbf16>,
    %c54_99 = arith.constant 54 : index
    %c0_100 = arith.constant 0 : index
    %157 = vector.load %arg7[%c54_99, %c0_100] : memref<88x64xf32, #tpu.memory_space<vmem>>, vector<8x64xf32>
    %158 = arith.truncf %157 : vector<8x64xf32> to vector<8x64xbf16>
    %cst_101 = arith.constant dense<0.000000e+00> : vector<8x64xf32>
    %159 = tpu.matmul %158, %12, %cst_101 {dimension_numbers = #tpu.dot_dimension_numbers<[1], [0], [0], [1], [0, 0, 1, 1], [], []>} : vector<8x64xbf16>, vector<64x64xbf16>, vector<8x64xf32> -> vector<8x64xf32>
    %160 = vector.broadcast %10 : vector<1x64xf32> to vector<8x64xf32>
    %161 = arith.addf %160, %159 : vector<8x64xf32>
    %c55_102 = arith.constant 55 : index
    %c0_103 = arith.constant 0 : index
    %162 = vector.load %arg7[%c55_102, %c0_103] : memref<88x64xf32, #tpu.memory_space<vmem>>, vector<8x64xf32>
    %163 = arith.truncf %162 : vector<8x64xf32> to vector<8x64xbf16>
    %cst_104 = arith.constant dense<0.000000e+00> : vector<8x64xf32>
    %164 = tpu.matmul %163, %14, %cst_104 {dimension_numbers = #tpu.dot_dimension_numbers<[1], [0], [0], [1], [0, 0, 1, 1], [], []>} : vector<8x64xbf16>, vector<64x64xbf16>, vector<8x64xf32> -> vector<8x64xf32>
    %165 = arith.addf %161, %164 : vector<8x64xf32>
    %c63 = arith.constant 63 : index
    %c0_105 = arith.constant 0 : index
    %166 = vector.load %arg7[%c63, %c0_105] : memref<88x64xf32, #tpu.memory_space<vmem>>, vector<8x64xf32>
    %167 = arith.truncf %166 : vector<8x64xf32> to vector<8x64xbf16>
    %cst_106 = arith.constant dense<0.000000e+00> : vector<8x64xf32>
    %168 = tpu.matmul %167, %16, %cst_106 {dimension_numbers = #tpu.dot_dimension_numbers<[1], [0], [0], [1], [0, 0, 1, 1], [], []>} : vector<8x64xbf16>, vector<64x64xbf16>, vector<8x64xf32> -> vector<8x64xf32>
    %169 = arith.addf %165, %168 : vector<8x64xf32>
    %c64 = arith.constant 64 : index
    %c0_107 = arith.constant 0 : index
    %170 = vector.load %arg7[%c64, %c0_107] : memref<88x64xf32, #tpu.memory_space<vmem>>, vector<8x64xf32>
    %171 = arith.truncf %170 : vector<8x64xf32> to vector<8x64xbf16>
    %cst_108 = arith.constant dense<0.000000e+00> : vector<8x64xf32>
    %172 = tpu.matmul %171, %18, %cst_108 {dimension_numbers = #tpu.dot_dimension_numbers<[1], [0], [0], [1], [0, 0, 1, 1], [], []>} : vector<8x64xbf16>, vector<64x64xbf16>, vector<8x64xf32> -> vector<8x64xf32>
    %173 = arith.addf %169, %172 : vector<8x64xf32>
    %cst_109 = arith.constant 0.000000e+00 : f32
    %174 = vector.broadcast %cst_109 : f32 to vector<8x64xf32>
    %175 = arith.maximumf %173, %174 : vector<8x64xf32>
    %176 = arith.truncf %175 : vector<8x64xf32> to vector<8x64xbf16>
    %c0_110 = arith.constant 0 : index
    %c48 = arith.constant 48 : index
    %c0_111 = arith.constant 0 : index
    %177 = vector.load %arg6[%c0_110, %c48, %c0_111] : memref<1x64x64xbf16, #tpu.memory_space<vmem>>, vector<1x8x64xbf16>
    %178 = vector.shape_cast %177 : vector<1x8x64xbf16> to vector<8x64xbf16>
    %179 = vector.shape_cast %176 : vector<8x64xbf16> to vector<1x8x64xbf16>
    tpu.vector_store %arg6[%c0_110, %c48, %c0_111], %179 {strides = array<i32>} : memref<1x64x64xbf16, #tpu.memory_space<vmem>>, vector<1x8x64xbf16>,
    %c63_112 = arith.constant 63 : index
    %c0_113 = arith.constant 0 : index
    %180 = vector.load %arg7[%c63_112, %c0_113] : memref<88x64xf32, #tpu.memory_space<vmem>>, vector<8x64xf32>
    %181 = arith.truncf %180 : vector<8x64xf32> to vector<8x64xbf16>
    %cst_114 = arith.constant dense<0.000000e+00> : vector<8x64xf32>
    %182 = tpu.matmul %181, %12, %cst_114 {dimension_numbers = #tpu.dot_dimension_numbers<[1], [0], [0], [1], [0, 0, 1, 1], [], []>} : vector<8x64xbf16>, vector<64x64xbf16>, vector<8x64xf32> -> vector<8x64xf32>
    %183 = vector.broadcast %10 : vector<1x64xf32> to vector<8x64xf32>
    %184 = arith.addf %183, %182 : vector<8x64xf32>
    %c64_115 = arith.constant 64 : index
    %c0_116 = arith.constant 0 : index
    %185 = vector.load %arg7[%c64_115, %c0_116] : memref<88x64xf32, #tpu.memory_space<vmem>>, vector<8x64xf32>
    %186 = arith.truncf %185 : vector<8x64xf32> to vector<8x64xbf16>
    %cst_117 = arith.constant dense<0.000000e+00> : vector<8x64xf32>
    %187 = tpu.matmul %186, %14, %cst_117 {dimension_numbers = #tpu.dot_dimension_numbers<[1], [0], [0], [1], [0, 0, 1, 1], [], []>} : vector<8x64xbf16>, vector<64x64xbf16>, vector<8x64xf32> -> vector<8x64xf32>
    %188 = arith.addf %184, %187 : vector<8x64xf32>
    %c72 = arith.constant 72 : index
    %c0_118 = arith.constant 0 : index
    %189 = vector.load %arg7[%c72, %c0_118] : memref<88x64xf32, #tpu.memory_space<vmem>>, vector<8x64xf32>
    %190 = arith.truncf %189 : vector<8x64xf32> to vector<8x64xbf16>
    %cst_119 = arith.constant dense<0.000000e+00> : vector<8x64xf32>
    %191 = tpu.matmul %190, %16, %cst_119 {dimension_numbers = #tpu.dot_dimension_numbers<[1], [0], [0], [1], [0, 0, 1, 1], [], []>} : vector<8x64xbf16>, vector<64x64xbf16>, vector<8x64xf32> -> vector<8x64xf32>
    %192 = arith.addf %188, %191 : vector<8x64xf32>
    %c73 = arith.constant 73 : index
    %c0_120 = arith.constant 0 : index
    %193 = vector.load %arg7[%c73, %c0_120] : memref<88x64xf32, #tpu.memory_space<vmem>>, vector<8x64xf32>
    %194 = arith.truncf %193 : vector<8x64xf32> to vector<8x64xbf16>
    %cst_121 = arith.constant dense<0.000000e+00> : vector<8x64xf32>
    %195 = tpu.matmul %194, %18, %cst_121 {dimension_numbers = #tpu.dot_dimension_numbers<[1], [0], [0], [1], [0, 0, 1, 1], [], []>} : vector<8x64xbf16>, vector<64x64xbf16>, vector<8x64xf32> -> vector<8x64xf32>
    %196 = arith.addf %192, %195 : vector<8x64xf32>
    %cst_122 = arith.constant 0.000000e+00 : f32
    %197 = vector.broadcast %cst_122 : f32 to vector<8x64xf32>
    %198 = arith.maximumf %196, %197 : vector<8x64xf32>
    %199 = arith.truncf %198 : vector<8x64xf32> to vector<8x64xbf16>
    %c0_123 = arith.constant 0 : index
    %c56 = arith.constant 56 : index
    %c0_124 = arith.constant 0 : index
    %200 = vector.load %arg6[%c0_123, %c56, %c0_124] : memref<1x64x64xbf16, #tpu.memory_space<vmem>>, vector<1x8x64xbf16>
    %201 = vector.shape_cast %200 : vector<1x8x64xbf16> to vector<8x64xbf16>
    %202 = vector.shape_cast %199 : vector<8x64xbf16> to vector<1x8x64xbf16>
    tpu.vector_store %arg6[%c0_123, %c56, %c0_124], %202 {strides = array<i32>} : memref<1x64x64xbf16, #tpu.memory_space<vmem>>, vector<1x8x64xbf16>,
    return
  }
  func.func @transform_0(%arg0: i32) -> (i32, i32, i32) {
    %c0_i32 = arith.constant 0 : i32
    %c0_i32_0 = arith.constant 0 : i32
    %c0_i32_1 = arith.constant 0 : i32
    return %arg0, %c0_i32, %c0_i32_0 : i32, i32, i32
  }
  func.func @transform_1(%arg0: i32) -> (i32, i32) {
    %c0_i32 = arith.constant 0 : i32
    %c0_i32_0 = arith.constant 0 : i32
    %c0_i32_1 = arith.constant 0 : i32
    return %c0_i32, %c0_i32_0 : i32, i32
  }
  func.func @transform_2(%arg0: i32) -> (i32, i32) {
    %c0_i32 = arith.constant 0 : i32
    %c0_i32_0 = arith.constant 0 : i32
    %c0_i32_1 = arith.constant 0 : i32
    return %c0_i32, %c0_i32_0 : i32, i32
  }
  func.func @transform_3(%arg0: i32) -> (i32, i32, i32) {
    %c0_i32 = arith.constant 0 : i32
    %c0_i32_0 = arith.constant 0 : i32
    %c0_i32_1 = arith.constant 0 : i32
    %c0_i32_2 = arith.constant 0 : i32
    return %c0_i32, %c0_i32_0, %c0_i32_1 : i32, i32, i32
  }
  func.func @transform_4(%arg0: i32) -> (i32, i32) {
    %c0_i32 = arith.constant 0 : i32
    %c0_i32_0 = arith.constant 0 : i32
    %c0_i32_1 = arith.constant 0 : i32
    return %c0_i32, %c0_i32_0 : i32, i32
  }
  func.func @transform_5(%arg0: i32) -> (i32, i32, i32) {
    %c0_i32 = arith.constant 0 : i32
    %c0_i32_0 = arith.constant 0 : i32
    %c0_i32_1 = arith.constant 0 : i32
    return %arg0, %c0_i32, %c0_i32_0 : i32, i32, i32
  }
}

module attributes {stable_mosaic.version = 11 : i64} {
  func.func @_fc_fused_kernel(%arg0: i32, %arg1: memref<2x4096xbf16, #tpu.memory_space<vmem>>, %arg2: memref<4096x32xbf16, #tpu.memory_space<vmem>>, %arg3: memref<1x32xf32, #tpu.memory_space<vmem>>, %arg4: memref<32x32xbf16, #tpu.memory_space<vmem>>, %arg5: memref<1x32xf32, #tpu.memory_space<vmem>>, %arg6: memref<1x32xf32, #tpu.memory_space<vmem>>, %arg7: memref<1x1xf32, #tpu.memory_space<vmem>>, %arg8: memref<2x1xf32, #tpu.memory_space<vmem>>) attributes {dimension_semantics = [#tpu.dimension_semantics<arbitrary>], iteration_bounds = array<i64: 1>, scalar_prefetch = 0 : i64, scratch_operands = 0 : i64, tpu.core_type = #tpu.core_type<tc>, window_params = [{pipeline_mode = #tpu.pipeline_mode<synchronous>, transform_indices = @transform_0, window_bounds = array<i64: 2, 4096>}, {pipeline_mode = #tpu.pipeline_mode<synchronous>, transform_indices = @transform_1, window_bounds = array<i64: 4096, 32>}, {pipeline_mode = #tpu.pipeline_mode<synchronous>, transform_indices = @transform_2, window_bounds = array<i64: 1, 32>}, {pipeline_mode = #tpu.pipeline_mode<synchronous>, transform_indices = @transform_3, window_bounds = array<i64: 32, 32>}, {pipeline_mode = #tpu.pipeline_mode<synchronous>, transform_indices = @transform_4, window_bounds = array<i64: 1, 32>}, {pipeline_mode = #tpu.pipeline_mode<synchronous>, transform_indices = @transform_5, window_bounds = array<i64: 1, 32>}, {pipeline_mode = #tpu.pipeline_mode<synchronous>, transform_indices = @transform_6, window_bounds = array<i64: 1, 1>}, {pipeline_mode = #tpu.pipeline_mode<synchronous>, transform_indices = @transform_7, window_bounds = array<i64: 2, 1>}]} {
    %c0 = arith.constant 0 : index
    %c0_0 = arith.constant 0 : index
    %0 = vector.load %arg1[%c0, %c0_0] : memref<2x4096xbf16, #tpu.memory_space<vmem>>, vector<2x4096xbf16>
    %c0_1 = arith.constant 0 : index
    %c0_2 = arith.constant 0 : index
    %1 = vector.load %arg2[%c0_1, %c0_2] : memref<4096x32xbf16, #tpu.memory_space<vmem>>, vector<4096x32xbf16>
    %cst = arith.constant dense<0.000000e+00> : vector<2x32xf32>
    %2 = tpu.matmul %0, %1, %cst {dimension_numbers = #tpu.dot_dimension_numbers<[1], [0], [0], [1], [0, 0, 1, 1], [], []>} : vector<2x4096xbf16>, vector<4096x32xbf16>, vector<2x32xf32> -> vector<2x32xf32>
    %c0_3 = arith.constant 0 : index
    %c0_4 = arith.constant 0 : index
    %3 = vector.load %arg3[%c0_3, %c0_4] : memref<1x32xf32, #tpu.memory_space<vmem>>, vector<1x32xf32>
    %4 = vector.broadcast %3 : vector<1x32xf32> to vector<2x32xf32>
    %5 = arith.addf %2, %4 : vector<2x32xf32>
    %cst_5 = arith.constant 0.000000e+00 : f32
    %6 = vector.broadcast %cst_5 : f32 to vector<2x32xf32>
    %7 = arith.maximumf %5, %6 : vector<2x32xf32>
    %8 = arith.truncf %7 : vector<2x32xf32> to vector<2x32xbf16>
    %c0_6 = arith.constant 0 : index
    %c0_7 = arith.constant 0 : index
    %9 = vector.load %arg4[%c0_6, %c0_7] : memref<32x32xbf16, #tpu.memory_space<vmem>>, vector<32x32xbf16>
    %cst_8 = arith.constant dense<0.000000e+00> : vector<2x32xf32>
    %10 = tpu.matmul %8, %9, %cst_8 {dimension_numbers = #tpu.dot_dimension_numbers<[1], [0], [0], [1], [0, 0, 1, 1], [], []>} : vector<2x32xbf16>, vector<32x32xbf16>, vector<2x32xf32> -> vector<2x32xf32>
    %c0_9 = arith.constant 0 : index
    %c0_10 = arith.constant 0 : index
    %11 = vector.load %arg5[%c0_9, %c0_10] : memref<1x32xf32, #tpu.memory_space<vmem>>, vector<1x32xf32>
    %12 = vector.broadcast %11 : vector<1x32xf32> to vector<2x32xf32>
    %13 = arith.addf %10, %12 : vector<2x32xf32>
    %cst_11 = arith.constant 0.000000e+00 : f32
    %14 = vector.broadcast %cst_11 : f32 to vector<2x32xf32>
    %15 = arith.maximumf %13, %14 : vector<2x32xf32>
    %c0_12 = arith.constant 0 : index
    %c0_13 = arith.constant 0 : index
    %16 = vector.load %arg6[%c0_12, %c0_13] : memref<1x32xf32, #tpu.memory_space<vmem>>, vector<1x32xf32>
    %17 = vector.broadcast %16 : vector<1x32xf32> to vector<2x32xf32>
    %18 = arith.mulf %15, %17 : vector<2x32xf32>
    %cst_14 = arith.constant dense<0.000000e+00> : vector<2xf32>
    %19 = vector.multi_reduction <add>, %18, %cst_14 [1] : vector<2x32xf32> to vector<2xf32>
    %20 = vector.shape_cast %19 : vector<2xf32> to vector<2x1xf32>
    %c0_15 = arith.constant 0 : index
    %c0_16 = arith.constant 0 : index
    %21 = vector.load %arg7[%c0_15, %c0_16] : memref<1x1xf32, #tpu.memory_space<vmem>>, vector<1x1xf32>
    %22 = vector.broadcast %21 : vector<1x1xf32> to vector<2x1xf32>
    %23 = arith.addf %20, %22 : vector<2x1xf32>
    %c0_17 = arith.constant 0 : index
    %c0_18 = arith.constant 0 : index
    %24 = vector.load %arg8[%c0_17, %c0_18] : memref<2x1xf32, #tpu.memory_space<vmem>>, vector<2x1xf32>
    tpu.vector_store %arg8[%c0_17, %c0_18], %23 {strides = array<i32>} : memref<2x1xf32, #tpu.memory_space<vmem>>, vector<2x1xf32>,
    return
  }
  func.func @transform_0(%arg0: i32) -> (i32, i32) {
    %c0_i32 = arith.constant 0 : i32
    %c0_i32_0 = arith.constant 0 : i32
    %c0_i32_1 = arith.constant 0 : i32
    return %c0_i32, %c0_i32_0 : i32, i32
  }
  func.func @transform_1(%arg0: i32) -> (i32, i32) {
    %c0_i32 = arith.constant 0 : i32
    %c0_i32_0 = arith.constant 0 : i32
    %c0_i32_1 = arith.constant 0 : i32
    return %c0_i32, %c0_i32_0 : i32, i32
  }
  func.func @transform_2(%arg0: i32) -> (i32, i32) {
    %c0_i32 = arith.constant 0 : i32
    %c0_i32_0 = arith.constant 0 : i32
    %c0_i32_1 = arith.constant 0 : i32
    return %c0_i32, %c0_i32_0 : i32, i32
  }
  func.func @transform_3(%arg0: i32) -> (i32, i32) {
    %c0_i32 = arith.constant 0 : i32
    %c0_i32_0 = arith.constant 0 : i32
    %c0_i32_1 = arith.constant 0 : i32
    return %c0_i32, %c0_i32_0 : i32, i32
  }
  func.func @transform_4(%arg0: i32) -> (i32, i32) {
    %c0_i32 = arith.constant 0 : i32
    %c0_i32_0 = arith.constant 0 : i32
    %c0_i32_1 = arith.constant 0 : i32
    return %c0_i32, %c0_i32_0 : i32, i32
  }
  func.func @transform_5(%arg0: i32) -> (i32, i32) {
    %c0_i32 = arith.constant 0 : i32
    %c0_i32_0 = arith.constant 0 : i32
    %c0_i32_1 = arith.constant 0 : i32
    return %c0_i32, %c0_i32_0 : i32, i32
  }
  func.func @transform_6(%arg0: i32) -> (i32, i32) {
    %c0_i32 = arith.constant 0 : i32
    %c0_i32_0 = arith.constant 0 : i32
    %c0_i32_1 = arith.constant 0 : i32
    return %c0_i32, %c0_i32_0 : i32, i32
  }
  func.func @transform_7(%arg0: i32) -> (i32, i32) {
    %c0_i32 = arith.constant 0 : i32
    %c0_i32_0 = arith.constant 0 : i32
    %c0_i32_1 = arith.constant 0 : i32
    return %c0_i32, %c0_i32_0 : i32, i32
  }
}

</mosaic_0001>

<llo_original>
// kernel: value_network_forward.4
$region0: #{value_network_forward.4}
  #allocation0 [shape = 'u32[]', space=smem, size = 0x4, offset = 0x4, fixed_abs, tag = 'smem constant byte address 0x4 - core index']
  #allocation1 [shape = 'u32[144,128]{1,0:T(1,128)}', space=vmem, size = 0x12000, scoped, tag = 'internal scratch']
  %s0 = inlined_call_operand.vmem [shape: bf16[800,256], index: 0, kind: input, shape index: {}]
  %s1 = inlined_call_operand.vmem [shape: bf16[256,32], index: 1, kind: input, shape index: {}]
  %s2 = inlined_call_operand.vmem [shape: f32[1,32], index: 2, kind: input, shape index: {}]
  %s3 = inlined_call_operand.vmem [shape: bf16[800,32], index: 3, kind: output, shape index: {}]
  %s4 = sld [smem:[#allocation0]]
  $region45: #{value_network_forward.4} parent=0
    _
  %s6 = ssub.s32 1, %s4
  %s7 = scalar_select 0, %s6, %s4
  loop: start=0, step=1, limit=4
  $region2: #{value_network_forward.4} parent=0 // loop_pre_header
    _
  $region3: #{value_network_forward.4} parent=0 // loop_header
    %s9 = sphi 0, %s13
    %p10 = scmp.ge.s32.totalorder %s9, 4
    %s19 = sphi 0, %s21
    %s22 = sphi 0, %s19
    %s23 = sphi 0, %s22
    %s39 = sphi 0, %s23
    %s43 = sphi 0, %s43
    %s45 = sphi 0, %s43
    %s46 = sphi 0, %s45
    %s60 = sphi 0, %s46
    %s64 = sphi 0, %s64
    %s66 = sphi 0, %s64
    %s67 = sphi 0, %s66
    %s81 = sphi 0, %s67
    %s87 = sphi 0, %s89
    %s90 = sphi 0, %s87
    %s91 = sphi 0, %s90
    %s107 = sphi 0, %s91
  $region4: #{value_network_forward.4} parent=0 // loop_header_branch
    %12 = sbr.rel (%p10) target = $region8
  $region5: #{value_network_forward.4} parent=0 // loop_body
    %s14 = ssub.s32 %s9, 1
    %s15 = ssub.s32 %s9, 2
    %s16 = sadd.s32 %s9, 1
    %s17 = ssub.s32 %s9, %s16
    %p18 = scmp.eq.s32.totalorder %s17, 0
    %s20 = sadd.s32 %s19, 1
    %s21 = scalar_select %p18, %s19, %s20
    %p24 = pneg %p18
    %p25 = scmp.eq.s32.totalorder %s9, 1
    %p26 = por %p24, %p25
    %p27 = scmp.ne.s32.totalorder %s19, %s22
    %p28 = scmp.eq.s32.totalorder %s9, 0
    %p29 = por %p27, %p28
    %p30 = scmp.ne.s32.totalorder %s19, %s22
    %p31 = scmp.eq.s32.totalorder %s14, 1
    %p32 = por %p30, %p31
    %p33 = scmp.ne.s32.totalorder %s22, %s23
    %p34 = scmp.eq.s32.totalorder %s14, 0
    %p35 = por %p33, %p34
    %p36 = scmp.ne.s32.totalorder %s22, %s23
    %p37 = scmp.eq.s32.totalorder %s15, 1
    %p38 = por %p36, %p37
    %p40 = scmp.ne.s32.totalorder %s23, %s39
    %p41 = scmp.eq.s32.totalorder %s15, 0
    %p42 = por %p40, %p41
    %s44 = sadd.s32 %s43, 1
    %p47 = scmp.eq.s32.totalorder %s9, 1
    %p48 = scmp.ne.s32.totalorder %s43, %s45
    %p49 = scmp.eq.s32.totalorder %s9, 0
    %p50 = por %p48, %p49
    %p51 = scmp.ne.s32.totalorder %s43, %s45
    %p52 = scmp.eq.s32.totalorder %s14, 1
    %p53 = por %p51, %p52
    %p54 = scmp.ne.s32.totalorder %s45, %s46
    %p55 = scmp.eq.s32.totalorder %s14, 0
    %p56 = por %p54, %p55
    %p57 = scmp.ne.s32.totalorder %s45, %s46
    %p58 = scmp.eq.s32.totalorder %s15, 1
    %p59 = por %p57, %p58
    %p61 = scmp.ne.s32.totalorder %s46, %s60
    %p62 = scmp.eq.s32.totalorder %s15, 0
    %p63 = por %p61, %p62
    %s65 = sadd.s32 %s64, 1
    %p68 = scmp.eq.s32.totalorder %s9, 1
    %p69 = scmp.ne.s32.totalorder %s64, %s66
    %p70 = scmp.eq.s32.totalorder %s9, 0
    %p71 = por %p69, %p70
    %p72 = scmp.ne.s32.totalorder %s64, %s66
    %p73 = scmp.eq.s32.totalorder %s14, 1
    %p74 = por %p72, %p73
    %p75 = scmp.ne.s32.totalorder %s66, %s67
    %p76 = scmp.eq.s32.totalorder %s14, 0
    %p77 = por %p75, %p76
    %p78 = scmp.ne.s32.totalorder %s66, %s67
    %p79 = scmp.eq.s32.totalorder %s15, 1
    %p80 = por %p78, %p79
    %p82 = scmp.ne.s32.totalorder %s67, %s81
    %p83 = scmp.eq.s32.totalorder %s15, 0
    %p84 = por %p82, %p83
    %s85 = ssub.s32 %s9, %s16
    %p86 = scmp.eq.s32.totalorder %s85, 0
    %s88 = sadd.s32 %s87, 1
    %s89 = scalar_select %p86, %s87, %s88
    %p92 = pneg %p86
    %p93 = scmp.eq.s32.totalorder %s9, 1
    %p94 = por %p92, %p93
    %p95 = scmp.ne.s32.totalorder %s87, %s90
    %p96 = scmp.eq.s32.totalorder %s9, 0
    %p97 = por %p95, %p96
    %p98 = scmp.ne.s32.totalorder %s87, %s90
    %p99 = scmp.eq.s32.totalorder %s14, 1
    %p100 = por %p98, %p99
    %p101 = scmp.ne.s32.totalorder %s90, %s91
    %p102 = scmp.eq.s32.totalorder %s14, 0
    %p103 = por %p101, %p102
    %p104 = scmp.ne.s32.totalorder %s90, %s91
    %p105 = scmp.eq.s32.totalorder %s15, 1
    %p106 = por %p104, %p105
    %p108 = scmp.ne.s32.totalorder %s91, %s107
    %p109 = scmp.eq.s32.totalorder %s15, 0
    %p110 = por %p108, %p109
    %p111 = scmp.le.s32.totalorder 1, %s9
    %p112 = scmp.lt.s32.totalorder %s9, 3
    %p113 = pnand %p111, %p112
    %p114 = pneg %p113
    // Predicated region
    $region9: #{value_network_forward.4} parent=5 // pred_check
      _
    $region10: #{value_network_forward.4} parent=5 // pred_check_branch
      %116 = sbr.rel (%p113) target = $region12
    $region11: #{value_network_forward.4} parent=5 // pred_region
      %s117 = ssub.s32 %s9, 1
      // Predicated region
      $region13: #{value_network_forward.4} parent=11 // pred_check
        %p118 = pneg %p56
      $region14: #{value_network_forward.4} parent=11 // pred_check_branch
        %120 = sbr.rel (%p118) target = $region16
      $region15: #{value_network_forward.4} parent=11 // pred_region
        _
      $region16: #{value_network_forward.4} parent=11 // pred_fallthru
        _
      // Predicated region
      $region17: #{value_network_forward.4} parent=11 // pred_check
        %p121 = pneg %p77
      $region18: #{value_network_forward.4} parent=11 // pred_check_branch
        %123 = sbr.rel (%p121) target = $region20
      $region19: #{value_network_forward.4} parent=11 // pred_region
        _
      $region20: #{value_network_forward.4} parent=11 // pred_fallthru
        _
    $region12: #{value_network_forward.4} parent=5 // pred_fallthru
      _
    %p124 = scmp.lt.s32.totalorder %s9, 2
    // Predicated region
    $region21: #{value_network_forward.4} parent=5 // pred_check
      %p125 = pneg %p124
    $region22: #{value_network_forward.4} parent=5 // pred_check_branch
      %127 = sbr.rel (%p125) target = $region24
    $region23: #{value_network_forward.4} parent=5 // pred_region
      // Predicated region
      $region25: #{value_network_forward.4} parent=23 // pred_check
        %p128 = pneg %p29
      $region26: #{value_network_forward.4} parent=23 // pred_check_branch
        %130 = sbr.rel (%p128) target = $region28
      $region27: #{value_network_forward.4} parent=23 // pred_region
        %s131 = smul.u32 50, %s9
        %p132 = scmp.lt.s32.totalorder %s131, 99
        %s133 = scalar_select %p132, %s131, 99
        %s134 = smul.addr %s133, 2
        %s135 = smul.addr %s134, 4
        %s136 = scalar_lea.vmem %s0, %s135
        %s137 = smul.u32 50, %s9
      $region28: #{value_network_forward.4} parent=23 // pred_fallthru
        _
    $region24: #{value_network_forward.4} parent=5 // pred_fallthru
      _
    %p138 = scmp.le.s32.totalorder 1, %s9
    %p139 = scmp.lt.s32.totalorder %s9, 3
    %p140 = pnand %p138, %p139
    %p141 = pneg %p140
    // Predicated region
    $region29: #{value_network_forward.4} parent=5 // pred_check
      _
    $region30: #{value_network_forward.4} parent=5 // pred_check_branch
      %143 = sbr.rel (%p140) target = $region32
    $region31: #{value_network_forward.4} parent=5 // pred_region
      %s144 = ssub.s32 %s9, 1
      %s145 = smul.u32 50, %s14
      %p146 = scmp.lt.s32.totalorder %s145, 99
      %s147 = scalar_select %p146, %s145, 99
      %s148 = smul.addr %s147, 2
      %s149 = smul.addr %s148, 4
      %s150 = scalar_lea.vmem %s0, %s149
      %p151 = pneg %p35
      %p152 = pneg %p32
      %p153 = pneg %p56
      %p154 = pneg %p53
      %p155 = pneg %p77
      %p156 = pneg %p74
      %p157 = pneg %p103
      %p158 = pneg %p100
      %s159 = smul.u32 50, %s14
      %p160 = scmp.lt.s32.totalorder %s159, 99
      %s161 = scalar_select %p160, %s159, 99
      %s162 = smul.addr %s161, 4
      %s163 = scalar_lea.vmem %s3, %s162
      %s164 = smul.u32 50, %s14
      %p165 = scmp.lt.s32.totalorder %s164, 99
      %s166 = scalar_select %p165, %s164, 99
      %s167 = smul.addr %s166, 2
      %s168 = smul.addr %s167, 4
      %s169 = scalar_lea.vmem %s0, %s168
      %s170 = smul.u32 50, %s14
      %s171 = smul.u32 50, %s14
      %p172 = scmp.lt.s32.totalorder %s171, 99
      %s173 = scalar_select %p172, %s171, 99
      %s174 = smul.addr %s173, 4
      %s175 = scalar_lea.vmem %s3, %s174
      %s176 = smul.u32 50, %s14
      %v178 = vld [vmem:[%s169] sm:$0xff]
      %v179 = vld [vmem:[%s169 + $0x8] sm:$0xff]
      %v180 = vld [vmem:[%s169 + $0x10] sm:$0xff]
      %v181 = vld [vmem:[%s169 + $0x18] sm:$0xff]
      %v182 = vld [vmem:[%s169 + $0x20] sm:$0xff]
      %v183 = vld [vmem:[%s169 + $0x28] sm:$0xff]
      %v184 = vld [vmem:[%s169 + $0x30] sm:$0xff]
      %v185 = vld [vmem:[%s169 + $0x38] sm:$0xff]
      %v186 = vld [vmem:[%s169 + $0x40] sm:$0xff]
      %v187 = vld [vmem:[%s169 + $0x48] sm:$0xff]
      %v188 = vld [vmem:[%s169 + $0x50] sm:$0xff]
      %v189 = vld [vmem:[%s169 + $0x58] sm:$0xff]
      %v190 = vld [vmem:[%s169 + $0x60] sm:$0xff]
      %v191 = vld [vmem:[%s169 + $0x68] sm:$0xff]
      %v192 = vld [vmem:[%s169 + $0x70] sm:$0xff]
      %v193 = vld [vmem:[%s169 + $0x78] sm:$0xff]
      %v194 = vld [vmem:[%s169 + $0x80] sm:$0xff]
      %v195 = vld [vmem:[%s169 + $0x88] sm:$0xff]
      %v196 = vld [vmem:[%s169 + $0x90] sm:$0xff]
      %v197 = vld [vmem:[%s169 + $0x98] sm:$0xff]
      %v198 = vld [vmem:[%s169 + $0xa0] sm:$0xff]
      %v199 = vld [vmem:[%s169 + $0xa8] sm:$0xff]
      %v200 = vld [vmem:[%s169 + $0xb0] sm:$0xff]
      %v201 = vld [vmem:[%s169 + $0xb8] sm:$0xff]
      %v202 = vld [vmem:[%s169 + $0xc0] sm:$0xff]
      %v203 = vld [vmem:[%s169 + $0xc8] sm:$0xff]
      %v204 = vld [vmem:[%s169 + $0xd0] sm:$0xff]
      %v205 = vld [vmem:[%s169 + $0xd8] sm:$0xff]
      %v206 = vld [vmem:[%s169 + $0xe0] sm:$0xff]
      %v207 = vld [vmem:[%s169 + $0xe8] sm:$0xff]
      %v208 = vld [vmem:[%s169 + $0xf0] sm:$0xff]
      %v209 = vld [vmem:[%s169 + $0xf8] sm:$0xff]
      %v210 = vld [vmem:[%s169 + $0x100] sm:$0xff]
      %v211 = vld [vmem:[%s169 + $0x108] sm:$0xff]
      %v212 = vld [vmem:[%s169 + $0x110] sm:$0xff]
      %v213 = vld [vmem:[%s169 + $0x118] sm:$0xff]
      %v214 = vld [vmem:[%s169 + $0x120] sm:$0xff]
      %v215 = vld [vmem:[%s169 + $0x128] sm:$0xff]
      %v216 = vld [vmem:[%s169 + $0x130] sm:$0xff]
      %v217 = vld [vmem:[%s169 + $0x138] sm:$0xff]
      %v218 = vld [vmem:[%s169 + $0x140] sm:$0xff]
      %v219 = vld [vmem:[%s169 + $0x148] sm:$0xff]
      %v220 = vld [vmem:[%s169 + $0x150] sm:$0xff]
      %v221 = vld [vmem:[%s169 + $0x158] sm:$0xff]
      %v222 = vld [vmem:[%s169 + $0x160] sm:$0xff]
      %v223 = vld [vmem:[%s169 + $0x168] sm:$0xff]
      %v224 = vld [vmem:[%s169 + $0x170] sm:$0xff]
      %v225 = vld [vmem:[%s169 + $0x178] sm:$0xff]
      %v226 = vld [vmem:[%s169 + $0x180] sm:$0xff]
      %v227 = vld [vmem:[%s169 + $0x188] sm:$0xff]
      %v228 = vld [vmem:[%s1] sm:$0xf]
      %v229 = vld [vmem:[%s1 + $0x4] sm:$0xf]
      %v230 = vld [vmem:[%s1 + $0x8] sm:$0xf]
      %v231 = vld [vmem:[%s1 + $0xc] sm:$0xf]
      %v232 = vld [vmem:[%s1 + $0x10] sm:$0xf]
      %v233 = vld [vmem:[%s1 + $0x14] sm:$0xf]
      %v234 = vld [vmem:[%s1 + $0x18] sm:$0xf]
      %v235 = vld [vmem:[%s1 + $0x1c] sm:$0xf]
      %v236 = vld [vmem:[%s1 + $0x20] sm:$0xf]
      %v237 = vld [vmem:[%s1 + $0x24] sm:$0xf]
      %v238 = vld [vmem:[%s1 + $0x28] sm:$0xf]
      %v239 = vld [vmem:[%s1 + $0x2c] sm:$0xf]
      %v240 = vld [vmem:[%s1 + $0x30] sm:$0xf]
      %v241 = vld [vmem:[%s1 + $0x34] sm:$0xf]
      %v242 = vld [vmem:[%s1 + $0x38] sm:$0xf]
      %v243 = vld [vmem:[%s1 + $0x3c] sm:$0xf]
      %v244 = vld [vmem:[%s1 + $0x40] sm:$0xf]
      %v245 = vld [vmem:[%s1 + $0x44] sm:$0xf]
      %v246 = vld [vmem:[%s1 + $0x48] sm:$0xf]
      %v247 = vld [vmem:[%s1 + $0x4c] sm:$0xf]
      %v248 = vld [vmem:[%s1 + $0x50] sm:$0xf]
      %v249 = vld [vmem:[%s1 + $0x54] sm:$0xf]
      %v250 = vld [vmem:[%s1 + $0x58] sm:$0xf]
      %v251 = vld [vmem:[%s1 + $0x5c] sm:$0xf]
      %v252 = vld [vmem:[%s1 + $0x60] sm:$0xf]
      %v253 = vld [vmem:[%s1 + $0x64] sm:$0xf]
      %v254 = vld [vmem:[%s1 + $0x68] sm:$0xf]
      %v255 = vld [vmem:[%s1 + $0x6c] sm:$0xf]
      %v256 = vld [vmem:[%s1 + $0x70] sm:$0xf]
      %v257 = vld [vmem:[%s1 + $0x74] sm:$0xf]
      %v258 = vld [vmem:[%s1 + $0x78] sm:$0xf]
      %v259 = vld [vmem:[%s1 + $0x7c] sm:$0xf]
      %v260 = vld [vmem:[%s2] sm:$0x1]
      %v262 = vlaneseq
      %v263 = vshrl.u32 %v262, 7
      %v264 = vsub.s32 0, %v263
      %v265 = vrot.slane %v260, %v264
      %v317 = vunpack.c.l.b16 %v178
      %v318 = vunpack.c.h.b16 %v178
      %v319 = vunpack.c.l.b16 %v179
      %v320 = vunpack.c.h.b16 %v179
      %v321 = vunpack.c.l.b16 %v180
      %v322 = vunpack.c.h.b16 %v180
      %v323 = vunpack.c.l.b16 %v181
      %v324 = vunpack.c.h.b16 %v181
      %v325 = vunpack.c.l.b16 %v182
      %v326 = vunpack.c.h.b16 %v182
      %v327 = vunpack.c.l.b16 %v183
      %v328 = vunpack.c.h.b16 %v183
      %v329 = vunpack.c.l.b16 %v184
      %v330 = vunpack.c.h.b16 %v184
      %v331 = vunpack.c.l.b16 %v185
      %v332 = vunpack.c.h.b16 %v185
      %v333 = vunpack.c.l.b16 %v186
      %v334 = vunpack.c.h.b16 %v186
      %v335 = vunpack.c.l.b16 %v187
      %v336 = vunpack.c.h.b16 %v187
      %v337 = vunpack.c.l.b16 %v188
      %v338 = vunpack.c.h.b16 %v188
      %v339 = vunpack.c.l.b16 %v189
      %v340 = vunpack.c.h.b16 %v189
      %v341 = vunpack.c.l.b16 %v190
      %v342 = vunpack.c.h.b16 %v190
      %v343 = vunpack.c.l.b16 %v191
      %v344 = vunpack.c.h.b16 %v191
      %v345 = vunpack.c.l.b16 %v192
      %v346 = vunpack.c.h.b16 %v192
      %v347 = vunpack.c.l.b16 %v193
      %v348 = vunpack.c.h.b16 %v193
      %v349 = vunpack.c.l.b16 %v194
      %v350 = vunpack.c.h.b16 %v194
      %v351 = vunpack.c.l.b16 %v195
      %v352 = vunpack.c.h.b16 %v195
      %v353 = vunpack.c.l.b16 %v196
      %v354 = vunpack.c.h.b16 %v196
      %v355 = vunpack.c.l.b16 %v197
      %v356 = vunpack.c.h.b16 %v197
      %v357 = vunpack.c.l.b16 %v198
      %v358 = vunpack.c.h.b16 %v198
      %v359 = vunpack.c.l.b16 %v199
      %v360 = vunpack.c.h.b16 %v199
      %v361 = vunpack.c.l.b16 %v200
      %v362 = vunpack.c.h.b16 %v200
      %v363 = vunpack.c.l.b16 %v201
      %v364 = vunpack.c.h.b16 %v201
      %v365 = vunpack.c.l.b16 %v202
      %v366 = vunpack.c.h.b16 %v202
      %v367 = vunpack.c.l.b16 %v203
      %v368 = vunpack.c.h.b16 %v203
      %v369 = vunpack.c.l.b16 %v204
      %v370 = vunpack.c.h.b16 %v204
      %v371 = vunpack.c.l.b16 %v205
      %v372 = vunpack.c.h.b16 %v205
      %v373 = vunpack.c.l.b16 %v206
      %v374 = vunpack.c.h.b16 %v206
      %v375 = vunpack.c.l.b16 %v207
      %v376 = vunpack.c.h.b16 %v207
      %v377 = vunpack.c.l.b16 %v208
      %v378 = vunpack.c.h.b16 %v208
      %v379 = vunpack.c.l.b16 %v209
      %v380 = vunpack.c.h.b16 %v209
      %v381 = vunpack.c.l.b16 %v210
      %v382 = vunpack.c.h.b16 %v210
      %v383 = vunpack.c.l.b16 %v211
      %v384 = vunpack.c.h.b16 %v211
      %v385 = vunpack.c.l.b16 %v212
      %v386 = vunpack.c.h.b16 %v212
      %v387 = vunpack.c.l.b16 %v213
      %v388 = vunpack.c.h.b16 %v213
      %v389 = vunpack.c.l.b16 %v214
      %v390 = vunpack.c.h.b16 %v214
      %v391 = vunpack.c.l.b16 %v215
      %v392 = vunpack.c.h.b16 %v215
      %v393 = vunpack.c.l.b16 %v216
      %v394 = vunpack.c.h.b16 %v216
      %v395 = vunpack.c.l.b16 %v217
      %v396 = vunpack.c.h.b16 %v217
      %v397 = vunpack.c.l.b16 %v218
      %v398 = vunpack.c.h.b16 %v218
      %v399 = vunpack.c.l.b16 %v219
      %v400 = vunpack.c.h.b16 %v219
      %v401 = vunpack.c.l.b16 %v220
      %v402 = vunpack.c.h.b16 %v220
      %v403 = vunpack.c.l.b16 %v221
      %v404 = vunpack.c.h.b16 %v221
      %v405 = vunpack.c.l.b16 %v222
      %v406 = vunpack.c.h.b16 %v222
      %v407 = vunpack.c.l.b16 %v223
      %v408 = vunpack.c.h.b16 %v223
      %v409 = vunpack.c.l.b16 %v224
      %v410 = vunpack.c.h.b16 %v224
      %v411 = vunpack.c.l.b16 %v225
      %v412 = vunpack.c.h.b16 %v225
      %v413 = vunpack.c.l.b16 %v226
      %v414 = vunpack.c.h.b16 %v226
      %v415 = vunpack.c.l.b16 %v227
      %v416 = vunpack.c.h.b16 %v227
      %v417 = vpack.c.b16 %v319, %v317
      %v418 = vpack.c.b16 %v320, %v318
      %v419 = vpack.c.b16 %v323, %v321
      %v420 = vpack.c.b16 %v324, %v322
      %v421 = vpack.c.b16 %v327, %v325
      %v422 = vpack.c.b16 %v328, %v326
      %v423 = vpack.c.b16 %v331, %v329
      %v424 = vpack.c.b16 %v332, %v330
      %v425 = vpack.c.b16 %v335, %v333
      %v426 = vpack.c.b16 %v336, %v334
      %v427 = vpack.c.b16 %v339, %v337
      %v428 = vpack.c.b16 %v340, %v338
      %v429 = vpack.c.b16 %v343, %v341
      %v430 = vpack.c.b16 %v344, %v342
      %v431 = vpack.c.b16 %v347, %v345
      %v432 = vpack.c.b16 %v348, %v346
      %v433 = vpack.c.b16 %v351, %v349
      %v434 = vpack.c.b16 %v352, %v350
      %v435 = vpack.c.b16 %v355, %v353
      %v436 = vpack.c.b16 %v356, %v354
      %v437 = vpack.c.b16 %v359, %v357
      %v438 = vpack.c.b16 %v360, %v358
      %v439 = vpack.c.b16 %v363, %v361
      %v440 = vpack.c.b16 %v364, %v362
      %v441 = vpack.c.b16 %v367, %v365
      %v442 = vpack.c.b16 %v368, %v366
      %v443 = vpack.c.b16 %v371, %v369
      %v444 = vpack.c.b16 %v372, %v370
      %v445 = vpack.c.b16 %v375, %v373
      %v446 = vpack.c.b16 %v376, %v374
      %v447 = vpack.c.b16 %v379, %v377
      %v448 = vpack.c.b16 %v380, %v378
      %v449 = vpack.c.b16 %v383, %v381
      %v450 = vpack.c.b16 %v384, %v382
      %v451 = vpack.c.b16 %v387, %v385
      %v452 = vpack.c.b16 %v388, %v386
      %v453 = vpack.c.b16 %v391, %v389
      %v454 = vpack.c.b16 %v392, %v390
      %v455 = vpack.c.b16 %v395, %v393
      %v456 = vpack.c.b16 %v396, %v394
      %v457 = vpack.c.b16 %v399, %v397
      %v458 = vpack.c.b16 %v400, %v398
      %v459 = vpack.c.b16 %v403, %v401
      %v460 = vpack.c.b16 %v404, %v402
      %v461 = vpack.c.b16 %v407, %v405
      %v462 = vpack.c.b16 %v408, %v406
      %v463 = vpack.c.b16 %v411, %v409
      %v464 = vpack.c.b16 %v412, %v410
      %v465 = vpack.c.b16 %v415, %v413
      %v466 = vpack.c.b16 %v416, %v414
      %v549 = vunpack.c.l.b16 %v228
      %v550 = vunpack.c.l.b16 %v229
      %v551 = vunpack.c.l.b16 %v230
      %v552 = vunpack.c.l.b16 %v231
      %v553 = vunpack.c.l.b16 %v232
      %v554 = vunpack.c.l.b16 %v233
      %v555 = vunpack.c.l.b16 %v234
      %v556 = vunpack.c.l.b16 %v235
      %v557 = vunpack.c.l.b16 %v236
      %v558 = vunpack.c.l.b16 %v237
      %v559 = vunpack.c.l.b16 %v238
      %v560 = vunpack.c.l.b16 %v239
      %v561 = vunpack.c.l.b16 %v240
      %v562 = vunpack.c.l.b16 %v241
      %v563 = vunpack.c.l.b16 %v242
      %v564 = vunpack.c.l.b16 %v243
      %v565 = vunpack.c.l.b16 %v244
      %v566 = vunpack.c.l.b16 %v245
      %v567 = vunpack.c.l.b16 %v246
      %v568 = vunpack.c.l.b16 %v247
      %v569 = vunpack.c.l.b16 %v248
      %v570 = vunpack.c.l.b16 %v249
      %v571 = vunpack.c.l.b16 %v250
      %v572 = vunpack.c.l.b16 %v251
      %v573 = vunpack.c.l.b16 %v252
      %v574 = vunpack.c.l.b16 %v253
      %v575 = vunpack.c.l.b16 %v254
      %v576 = vunpack.c.l.b16 %v255
      %v577 = vunpack.c.l.b16 %v256
      %v578 = vunpack.c.l.b16 %v257
      %v579 = vunpack.c.l.b16 %v258
      %v580 = vunpack.c.l.b16 %v259
      %v581 = vpack.c.b16 %v550, %v549
      %v582 = vpack.c.b16 %v552, %v551
      %v583 = vpack.c.b16 %v554, %v553
      %v584 = vpack.c.b16 %v556, %v555
      %v585 = vpack.c.b16 %v558, %v557
      %v586 = vpack.c.b16 %v560, %v559
      %v587 = vpack.c.b16 %v562, %v561
      %v588 = vpack.c.b16 %v564, %v563
      %v589 = vpack.c.b16 %v566, %v565
      %v590 = vpack.c.b16 %v568, %v567
      %v591 = vpack.c.b16 %v570, %v569
      %v592 = vpack.c.b16 %v572, %v571
      %v593 = vpack.c.b16 %v574, %v573
      %v594 = vpack.c.b16 %v576, %v575
      %v595 = vpack.c.b16 %v578, %v577
      %v596 = vpack.c.b16 %v580, %v579
      %613 = vmatprep.subr.bf16.mxu0 0
      %614 = vmatpush1.bf16.msra.mxu0 %v588
      %615 = vmatprep.subr.bf16.mxu0 0
      %616 = vmatpush1.bf16.msra.mxu0 %v587
      %617 = vmatprep.subr.bf16.mxu0 0
      %618 = vmatpush1.bf16.msra.mxu0 %v586
      %619 = vmatprep.subr.bf16.mxu0 0
      %620 = vmatpush1.bf16.msra.mxu0 %v585
      %621 = vmatprep.subr.bf16.mxu0 0
      %622 = vmatpush1.bf16.msra.mxu0 %v584
      %623 = vmatprep.subr.bf16.mxu0 0
      %624 = vmatpush1.bf16.msra.mxu0 %v583
      %625 = vmatprep.subr.bf16.mxu0 0
      %626 = vmatpush1.bf16.msra.mxu0 %v582
      %627 = vmatprep.subr.bf16.mxu0 0
      %628 = vmatpush1.bf16.msra.mxu0 %v581
      %629 = vmatprep.subr.bf16.mxu0 0
      %630 = vmatpush2.bf16.msra.mxu0 %v596
      %631 = vmatprep.subr.bf16.mxu0 0
      %632 = vmatpush2.bf16.msra.mxu0 %v595
      %633 = vmatprep.subr.bf16.mxu0 0
      %634 = vmatpush2.bf16.msra.mxu0 %v594
      %635 = vmatprep.subr.bf16.mxu0 0
      %636 = vmatpush2.bf16.msra.mxu0 %v593
      %637 = vmatprep.subr.bf16.mxu0 0
      %638 = vmatpush2.bf16.msra.mxu0 %v592
      %639 = vmatprep.subr.bf16.mxu0 0
      %640 = vmatpush2.bf16.msra.mxu0 %v591
      %641 = vmatprep.subr.bf16.mxu0 0
      %642 = vmatpush2.bf16.msra.mxu0 %v590
      %643 = vmatprep.subr.bf16.mxu0 0
      %644 = vmatpush2.bf16.msra.mxu0 %v589
      %645 = vmatprep.mubr.bf16.mxu0 %v418
      %646 = vmatmul.mubr.bf16.gmra.mxu0 %v417
      %v647 = vpop.f32.mrf.mxu0
      %v648 = vadd.f32 %v265, %v647
      %v649 = vpop.f32.mrf.mxu0
      %v650 = vpop.f32.mrf.mxu0
      %v651 = vadd.f32 %v265, %v650
      %v652 = vpop.f32.mrf.mxu0
      %653 = vmatprep.mubr.bf16.mxu0 %v420
      %654 = vmatmul.mubr.bf16.gmra.mxu0 %v419
      %v655 = vpop.f32.mrf.mxu0
      %v656 = vadd.f32 %v265, %v655
      %v657 = vpop.f32.mrf.mxu0
      %v658 = vpop.f32.mrf.mxu0
      %v659 = vadd.f32 %v265, %v658
      %v660 = vpop.f32.mrf.mxu0
      %661 = vmatprep.mubr.bf16.mxu0 %v422
      %662 = vmatmul.mubr.bf16.gmra.mxu0 %v421
      %v663 = vpop.f32.mrf.mxu0
      %v664 = vadd.f32 %v265, %v663
      %v665 = vpop.f32.mrf.mxu0
      %v666 = vpop.f32.mrf.mxu0
      %v667 = vadd.f32 %v265, %v666
      %v668 = vpop.f32.mrf.mxu0
      %669 = vmatprep.mubr.bf16.mxu0 %v424
      %670 = vmatmul.mubr.bf16.gmra.mxu0 %v423
      %v671 = vpop.f32.mrf.mxu0
      %v672 = vadd.f32 %v265, %v671
      %v673 = vpop.f32.mrf.mxu0
      %v674 = vpop.f32.mrf.mxu0
      %v675 = vadd.f32 %v265, %v674
      %v676 = vpop.f32.mrf.mxu0
      %677 = vmatprep.mubr.bf16.mxu0 %v426
      %678 = vmatmul.mubr.bf16.gmra.mxu0 %v425
      %v679 = vpop.f32.mrf.mxu0
      %v680 = vadd.f32 %v265, %v679
      %v681 = vpop.f32.mrf.mxu0
      %v682 = vpop.f32.mrf.mxu0
      %v683 = vadd.f32 %v265, %v682
      %v684 = vpop.f32.mrf.mxu0
      %685 = vmatprep.mubr.bf16.mxu0 %v428
      %686 = vmatmul.mubr.bf16.gmra.mxu0 %v427
      %v687 = vpop.f32.mrf.mxu0
      %v688 = vadd.f32 %v265, %v687
      %v689 = vpop.f32.mrf.mxu0
      %v690 = vpop.f32.mrf.mxu0
      %v691 = vadd.f32 %v265, %v690
      %v692 = vpop.f32.mrf.mxu0
      %693 = vmatprep.mubr.bf16.mxu0 %v430
      %694 = vmatmul.mubr.bf16.gmra.mxu0 %v429
      %v695 = vpop.f32.mrf.mxu0
      %v696 = vadd.f32 %v265, %v695
      %v697 = vpop.f32.mrf.mxu0
      %v698 = vpop.f32.mrf.mxu0
      %v699 = vadd.f32 %v265, %v698
      %v700 = vpop.f32.mrf.mxu0
      %701 = vmatprep.mubr.bf16.mxu0 %v432
      %702 = vmatmul.mubr.bf16.gmra.mxu0 %v431
      %v703 = vpop.f32.mrf.mxu0
      %v704 = vadd.f32 %v265, %v703
      %v705 = vpop.f32.mrf.mxu0
      %v706 = vpop.f32.mrf.mxu0
      %v707 = vadd.f32 %v265, %v706
      %v708 = vpop.f32.mrf.mxu0
      %709 = vmatprep.mubr.bf16.mxu0 %v434
      %710 = vmatmul.mubr.bf16.gmra.mxu0 %v433
      %v711 = vpop.f32.mrf.mxu0
      %v712 = vadd.f32 %v265, %v711
      %v713 = vpop.f32.mrf.mxu0
      %v714 = vpop.f32.mrf.mxu0
      %v715 = vadd.f32 %v265, %v714
      %v716 = vpop.f32.mrf.mxu0
      %717 = vmatprep.mubr.bf16.mxu0 %v436
      %718 = vmatmul.mubr.bf16.gmra.mxu0 %v435
      %v719 = vpop.f32.mrf.mxu0
      %v720 = vadd.f32 %v265, %v719
      %v721 = vpop.f32.mrf.mxu0
      %v722 = vpop.f32.mrf.mxu0
      %v723 = vadd.f32 %v265, %v722
      %v724 = vpop.f32.mrf.mxu0
      %725 = vmatprep.mubr.bf16.mxu0 %v438
      %726 = vmatmul.mubr.bf16.gmra.mxu0 %v437
      %v727 = vpop.f32.mrf.mxu0
      %v728 = vadd.f32 %v265, %v727
      %v729 = vpop.f32.mrf.mxu0
      %v730 = vpop.f32.mrf.mxu0
      %v731 = vadd.f32 %v265, %v730
      %v732 = vpop.f32.mrf.mxu0
      %733 = vmatprep.mubr.bf16.mxu0 %v440
      %734 = vmatmul.mubr.bf16.gmra.mxu0 %v439
      %v735 = vpop.f32.mrf.mxu0
      %v736 = vadd.f32 %v265, %v735
      %v737 = vpop.f32.mrf.mxu0
      %v738 = vpop.f32.mrf.mxu0
      %v739 = vadd.f32 %v265, %v738
      %v740 = vpop.f32.mrf.mxu0
      %741 = vmatprep.mubr.bf16.mxu0 %v442
      %742 = vmatmul.mubr.bf16.gmra.mxu0 %v441
      %v743 = vpop.f32.mrf.mxu0
      %v744 = vadd.f32 %v265, %v743
      %v745 = vpop.f32.mrf.mxu0
      %v746 = vpop.f32.mrf.mxu0
      %v747 = vadd.f32 %v265, %v746
      %v748 = vpop.f32.mrf.mxu0
      %749 = vmatprep.mubr.bf16.mxu0 %v444
      %750 = vmatmul.mubr.bf16.gmra.mxu0 %v443
      %v751 = vpop.f32.mrf.mxu0
      %v752 = vadd.f32 %v265, %v751
      %v753 = vpop.f32.mrf.mxu0
      %v754 = vpop.f32.mrf.mxu0
      %v755 = vadd.f32 %v265, %v754
      %v756 = vpop.f32.mrf.mxu0
      %757 = vmatprep.mubr.bf16.mxu0 %v446
      %758 = vmatmul.mubr.bf16.gmra.mxu0 %v445
      %v759 = vpop.f32.mrf.mxu0
      %v760 = vadd.f32 %v265, %v759
      %v761 = vpop.f32.mrf.mxu0
      %v762 = vpop.f32.mrf.mxu0
      %v763 = vadd.f32 %v265, %v762
      %v764 = vpop.f32.mrf.mxu0
      %765 = vmatprep.mubr.bf16.mxu0 %v448
      %766 = vmatmul.mubr.bf16.gmra.mxu0 %v447
      %v767 = vpop.f32.mrf.mxu0
      %v768 = vadd.f32 %v265, %v767
      %v769 = vpop.f32.mrf.mxu0
      %v770 = vpop.f32.mrf.mxu0
      %v771 = vadd.f32 %v265, %v770
      %v772 = vpop.f32.mrf.mxu0
      %773 = vmatprep.mubr.bf16.mxu0 %v450
      %774 = vmatmul.mubr.bf16.gmra.mxu0 %v449
      %v775 = vpop.f32.mrf.mxu0
      %v776 = vadd.f32 %v265, %v775
      %v777 = vpop.f32.mrf.mxu0
      %v778 = vpop.f32.mrf.mxu0
      %v779 = vadd.f32 %v265, %v778
      %v780 = vpop.f32.mrf.mxu0
      %781 = vmatprep.mubr.bf16.mxu0 %v452
      %782 = vmatmul.mubr.bf16.gmra.mxu0 %v451
      %v783 = vpop.f32.mrf.mxu0
      %v784 = vadd.f32 %v265, %v783
      %v785 = vpop.f32.mrf.mxu0
      %v786 = vpop.f32.mrf.mxu0
      %v787 = vadd.f32 %v265, %v786
      %v788 = vpop.f32.mrf.mxu0
      %789 = vmatprep.mubr.bf16.mxu0 %v454
      %790 = vmatmul.mubr.bf16.gmra.mxu0 %v453
      %v791 = vpop.f32.mrf.mxu0
      %v792 = vadd.f32 %v265, %v791
      %v793 = vpop.f32.mrf.mxu0
      %v794 = vpop.f32.mrf.mxu0
      %v795 = vadd.f32 %v265, %v794
      %v796 = vpop.f32.mrf.mxu0
      %797 = vmatprep.mubr.bf16.mxu0 %v456
      %798 = vmatmul.mubr.bf16.gmra.mxu0 %v455
      %v799 = vpop.f32.mrf.mxu0
      %v800 = vadd.f32 %v265, %v799
      %v801 = vpop.f32.mrf.mxu0
      %v802 = vpop.f32.mrf.mxu0
      %v803 = vadd.f32 %v265, %v802
      %v804 = vpop.f32.mrf.mxu0
      %805 = vmatprep.mubr.bf16.mxu0 %v458
      %806 = vmatmul.mubr.bf16.gmra.mxu0 %v457
      %v807 = vpop.f32.mrf.mxu0
      %v808 = vadd.f32 %v265, %v807
      %v809 = vpop.f32.mrf.mxu0
      %v810 = vpop.f32.mrf.mxu0
      %v811 = vadd.f32 %v265, %v810
      %v812 = vpop.f32.mrf.mxu0
      %813 = vmatprep.mubr.bf16.mxu0 %v460
      %814 = vmatmul.mubr.bf16.gmra.mxu0 %v459
      %v815 = vpop.f32.mrf.mxu0
      %v816 = vadd.f32 %v265, %v815
      %v817 = vpop.f32.mrf.mxu0
      %v818 = vpop.f32.mrf.mxu0
      %v819 = vadd.f32 %v265, %v818
      %v820 = vpop.f32.mrf.mxu0
      %821 = vmatprep.mubr.bf16.mxu0 %v462
      %822 = vmatmul.mubr.bf16.gmra.mxu0 %v461
      %v823 = vpop.f32.mrf.mxu0
      %v824 = vadd.f32 %v265, %v823
      %v825 = vpop.f32.mrf.mxu0
      %v826 = vpop.f32.mrf.mxu0
      %v827 = vadd.f32 %v265, %v826
      %v828 = vpop.f32.mrf.mxu0
      %829 = vmatprep.mubr.bf16.mxu0 %v464
      %830 = vmatmul.mubr.bf16.gmra.mxu0 %v463
      %v831 = vpop.f32.mrf.mxu0
      %v832 = vadd.f32 %v265, %v831
      %v833 = vpop.f32.mrf.mxu0
      %v834 = vpop.f32.mrf.mxu0
      %v835 = vadd.f32 %v265, %v834
      %v836 = vpop.f32.mrf.mxu0
      %837 = vmatprep.mubr.bf16.mxu0 %v466
      %838 = vmatmul.mubr.bf16.gmra.mxu0 %v465
      %v839 = vpop.f32.mrf.mxu0
      %v840 = vadd.f32 %v265, %v839
      %v841 = vpop.f32.mrf.mxu0
      %v842 = vpop.f32.mrf.mxu0
      %v843 = vadd.f32 %v265, %v842
      %v844 = vpop.f32.mrf.mxu0
      %845 = vdwg.mxu0
      %v846 = vmax.f32 %v648, 0.0
      %v847 = vmax.f32 %v651, 0.0
      %v848 = vmax.f32 %v656, 0.0
      %v849 = vmax.f32 %v659, 0.0
      %v850 = vmax.f32 %v664, 0.0
      %v851 = vmax.f32 %v667, 0.0
      %v852 = vmax.f32 %v672, 0.0
      %v853 = vmax.f32 %v675, 0.0
      %v854 = vmax.f32 %v680, 0.0
      %v855 = vmax.f32 %v683, 0.0
      %v856 = vmax.f32 %v688, 0.0
      %v857 = vmax.f32 %v691, 0.0
      %v858 = vmax.f32 %v696, 0.0
      %v859 = vmax.f32 %v699, 0.0
      %v860 = vmax.f32 %v704, 0.0
      %v861 = vmax.f32 %v707, 0.0
      %v862 = vmax.f32 %v712, 0.0
      %v863 = vmax.f32 %v715, 0.0
      %v864 = vmax.f32 %v720, 0.0
      %v865 = vmax.f32 %v723, 0.0
      %v866 = vmax.f32 %v728, 0.0
      %v867 = vmax.f32 %v731, 0.0
      %v868 = vmax.f32 %v736, 0.0
      %v869 = vmax.f32 %v739, 0.0
      %v870 = vmax.f32 %v744, 0.0
      %v871 = vmax.f32 %v747, 0.0
      %v872 = vmax.f32 %v752, 0.0
      %v873 = vmax.f32 %v755, 0.0
      %v874 = vmax.f32 %v760, 0.0
      %v875 = vmax.f32 %v763, 0.0
      %v876 = vmax.f32 %v768, 0.0
      %v877 = vmax.f32 %v771, 0.0
      %v878 = vmax.f32 %v776, 0.0
      %v879 = vmax.f32 %v779, 0.0
      %v880 = vmax.f32 %v784, 0.0
      %v881 = vmax.f32 %v787, 0.0
      %v882 = vmax.f32 %v792, 0.0
      %v883 = vmax.f32 %v795, 0.0
      %v884 = vmax.f32 %v800, 0.0
      %v885 = vmax.f32 %v803, 0.0
      %v886 = vmax.f32 %v808, 0.0
      %v887 = vmax.f32 %v811, 0.0
      %v888 = vmax.f32 %v816, 0.0
      %v889 = vmax.f32 %v819, 0.0
      %v890 = vmax.f32 %v824, 0.0
      %v891 = vmax.f32 %v827, 0.0
      %v892 = vmax.f32 %v832, 0.0
      %v893 = vmax.f32 %v835, 0.0
      %v894 = vmax.f32 %v840, 0.0
      %v895 = vmax.f32 %v843, 0.0
      %v896 = vpack.c.bf16 %v847, %v846
      %v897 = vpack.c.bf16 %v849, %v848
      %v898 = vpack.c.bf16 %v851, %v850
      %v899 = vpack.c.bf16 %v853, %v852
      %v900 = vpack.c.bf16 %v855, %v854
      %v901 = vpack.c.bf16 %v857, %v856
      %v902 = vpack.c.bf16 %v859, %v858
      %v903 = vpack.c.bf16 %v861, %v860
      %v904 = vpack.c.bf16 %v863, %v862
      %v905 = vpack.c.bf16 %v865, %v864
      %v906 = vpack.c.bf16 %v867, %v866
      %v907 = vpack.c.bf16 %v869, %v868
      %v908 = vpack.c.bf16 %v871, %v870
      %v909 = vpack.c.bf16 %v873, %v872
      %v910 = vpack.c.bf16 %v875, %v874
      %v911 = vpack.c.bf16 %v877, %v876
      %v912 = vpack.c.bf16 %v879, %v878
      %v913 = vpack.c.bf16 %v881, %v880
      %v914 = vpack.c.bf16 %v883, %v882
      %v915 = vpack.c.bf16 %v885, %v884
      %v916 = vpack.c.bf16 %v887, %v886
      %v917 = vpack.c.bf16 %v889, %v888
      %v918 = vpack.c.bf16 %v891, %v890
      %v919 = vpack.c.bf16 %v893, %v892
      %v920 = vpack.c.bf16 %v895, %v894
      %v946 = vunpack.c.l.b16 %v896
      %v947 = vunpack.c.h.b16 %v896
      %v948 = vunpack.c.l.b16 %v897
      %v949 = vunpack.c.h.b16 %v897
      %v950 = vunpack.c.l.b16 %v898
      %v951 = vunpack.c.h.b16 %v898
      %v952 = vunpack.c.l.b16 %v899
      %v953 = vunpack.c.h.b16 %v899
      %v954 = vunpack.c.l.b16 %v900
      %v955 = vunpack.c.h.b16 %v900
      %v956 = vunpack.c.l.b16 %v901
      %v957 = vunpack.c.h.b16 %v901
      %v958 = vunpack.c.l.b16 %v902
      %v959 = vunpack.c.h.b16 %v902
      %v960 = vunpack.c.l.b16 %v903
      %v961 = vunpack.c.h.b16 %v903
      %v962 = vunpack.c.l.b16 %v904
      %v963 = vunpack.c.h.b16 %v904
      %v964 = vunpack.c.l.b16 %v905
      %v965 = vunpack.c.h.b16 %v905
      %v966 = vunpack.c.l.b16 %v906
      %v967 = vunpack.c.h.b16 %v906
      %v968 = vunpack.c.l.b16 %v907
      %v969 = vunpack.c.h.b16 %v907
      %v970 = vunpack.c.l.b16 %v908
      %v971 = vunpack.c.h.b16 %v908
      %v972 = vunpack.c.l.b16 %v909
      %v973 = vunpack.c.h.b16 %v909
      %v974 = vunpack.c.l.b16 %v910
      %v975 = vunpack.c.h.b16 %v910
      %v976 = vunpack.c.l.b16 %v911
      %v977 = vunpack.c.h.b16 %v911
      %v978 = vunpack.c.l.b16 %v912
      %v979 = vunpack.c.h.b16 %v912
      %v980 = vunpack.c.l.b16 %v913
      %v981 = vunpack.c.h.b16 %v913
      %v982 = vunpack.c.l.b16 %v914
      %v983 = vunpack.c.h.b16 %v914
      %v984 = vunpack.c.l.b16 %v915
      %v985 = vunpack.c.h.b16 %v915
      %v986 = vunpack.c.l.b16 %v916
      %v987 = vunpack.c.h.b16 %v916
      %v988 = vunpack.c.l.b16 %v917
      %v989 = vunpack.c.h.b16 %v917
      %v990 = vunpack.c.l.b16 %v918
      %v991 = vunpack.c.h.b16 %v918
      %v992 = vunpack.c.l.b16 %v919
      %v993 = vunpack.c.h.b16 %v919
      %v994 = vunpack.c.l.b16 %v920
      %v995 = vunpack.c.h.b16 %v920
      %v996 = vpack.c.b16 %v946, %v946
      %v997 = vpack.c.b16 %v947, %v947
      %v998 = vpack.c.b16 %v948, %v948
      %v999 = vpack.c.b16 %v949, %v949
      %v1000 = vpack.c.b16 %v950, %v950
      %v1001 = vpack.c.b16 %v951, %v951
      %v1002 = vpack.c.b16 %v952, %v952
      %v1003 = vpack.c.b16 %v953, %v953
      %v1004 = vpack.c.b16 %v954, %v954
      %v1005 = vpack.c.b16 %v955, %v955
      %v1006 = vpack.c.b16 %v956, %v956
      %v1007 = vpack.c.b16 %v957, %v957
      %v1008 = vpack.c.b16 %v958, %v958
      %v1009 = vpack.c.b16 %v959, %v959
      %v1010 = vpack.c.b16 %v960, %v960
      %v1011 = vpack.c.b16 %v961, %v961
      %v1012 = vpack.c.b16 %v962, %v962
      %v1013 = vpack.c.b16 %v963, %v963
      %v1014 = vpack.c.b16 %v964, %v964
      %v1015 = vpack.c.b16 %v965, %v965
      %v1016 = vpack.c.b16 %v966, %v966
      %v1017 = vpack.c.b16 %v967, %v967
      %v1018 = vpack.c.b16 %v968, %v968
      %v1019 = vpack.c.b16 %v969, %v969
      %v1020 = vpack.c.b16 %v970, %v970
      %v1021 = vpack.c.b16 %v971, %v971
      %v1022 = vpack.c.b16 %v972, %v972
      %v1023 = vpack.c.b16 %v973, %v973
      %v1024 = vpack.c.b16 %v974, %v974
      %v1025 = vpack.c.b16 %v975, %v975
      %v1026 = vpack.c.b16 %v976, %v976
      %v1027 = vpack.c.b16 %v977, %v977
      %v1028 = vpack.c.b16 %v978, %v978
      %v1029 = vpack.c.b16 %v979, %v979
      %v1030 = vpack.c.b16 %v980, %v980
      %v1031 = vpack.c.b16 %v981, %v981
      %v1032 = vpack.c.b16 %v982, %v982
      %v1033 = vpack.c.b16 %v983, %v983
      %v1034 = vpack.c.b16 %v984, %v984
      %v1035 = vpack.c.b16 %v985, %v985
      %v1036 = vpack.c.b16 %v986, %v986
      %v1037 = vpack.c.b16 %v987, %v987
      %v1038 = vpack.c.b16 %v988, %v988
      %v1039 = vpack.c.b16 %v989, %v989
      %v1040 = vpack.c.b16 %v990, %v990
      %v1041 = vpack.c.b16 %v991, %v991
      %v1042 = vpack.c.b16 %v992, %v992
      %v1043 = vpack.c.b16 %v993, %v993
      %v1044 = vpack.c.b16 %v994, %v994
      %v1045 = vpack.c.b16 %v995, %v995
      %vm1096 = vcmask 257024
      %1097 = vst.msk [vmem:[%s175] sm:$0xf] %vm1096, %v996
      %1098 = vst.msk [vmem:[%s175 + $0x4] sm:$0xf] %vm1096, %v997
      %1099 = vst.msk [vmem:[%s175 + $0x8] sm:$0xf] %vm1096, %v998
      %1100 = vst.msk [vmem:[%s175 + $0xc] sm:$0xf] %vm1096, %v999
      %1101 = vst.msk [vmem:[%s175 + $0x10] sm:$0xf] %vm1096, %v1000
      %1102 = vst.msk [vmem:[%s175 + $0x14] sm:$0xf] %vm1096, %v1001
      %1103 = vst.msk [vmem:[%s175 + $0x18] sm:$0xf] %vm1096, %v1002
      %1104 = vst.msk [vmem:[%s175 + $0x1c] sm:$0xf] %vm1096, %v1003
      %1105 = vst.msk [vmem:[%s175 + $0x20] sm:$0xf] %vm1096, %v1004
      %1106 = vst.msk [vmem:[%s175 + $0x24] sm:$0xf] %vm1096, %v1005
      %1107 = vst.msk [vmem:[%s175 + $0x28] sm:$0xf] %vm1096, %v1006
      %1108 = vst.msk [vmem:[%s175 + $0x2c] sm:$0xf] %vm1096, %v1007
      %1109 = vst.msk [vmem:[%s175 + $0x30] sm:$0xf] %vm1096, %v1008
      %1110 = vst.msk [vmem:[%s175 + $0x34] sm:$0xf] %vm1096, %v1009
      %1111 = vst.msk [vmem:[%s175 + $0x38] sm:$0xf] %vm1096, %v1010
      %1112 = vst.msk [vmem:[%s175 + $0x3c] sm:$0xf] %vm1096, %v1011
      %1113 = vst.msk [vmem:[%s175 + $0x40] sm:$0xf] %vm1096, %v1012
      %1114 = vst.msk [vmem:[%s175 + $0x44] sm:$0xf] %vm1096, %v1013
      %1115 = vst.msk [vmem:[%s175 + $0x48] sm:$0xf] %vm1096, %v1014
      %1116 = vst.msk [vmem:[%s175 + $0x4c] sm:$0xf] %vm1096, %v1015
      %1117 = vst.msk [vmem:[%s175 + $0x50] sm:$0xf] %vm1096, %v1016
      %1118 = vst.msk [vmem:[%s175 + $0x54] sm:$0xf] %vm1096, %v1017
      %1119 = vst.msk [vmem:[%s175 + $0x58] sm:$0xf] %vm1096, %v1018
      %1120 = vst.msk [vmem:[%s175 + $0x5c] sm:$0xf] %vm1096, %v1019
      %1121 = vst.msk [vmem:[%s175 + $0x60] sm:$0xf] %vm1096, %v1020
      %1122 = vst.msk [vmem:[%s175 + $0x64] sm:$0xf] %vm1096, %v1021
      %1123 = vst.msk [vmem:[%s175 + $0x68] sm:$0xf] %vm1096, %v1022
      %1124 = vst.msk [vmem:[%s175 + $0x6c] sm:$0xf] %vm1096, %v1023
      %1125 = vst.msk [vmem:[%s175 + $0x70] sm:$0xf] %vm1096, %v1024
      %1126 = vst.msk [vmem:[%s175 + $0x74] sm:$0xf] %vm1096, %v1025
      %1127 = vst.msk [vmem:[%s175 + $0x78] sm:$0xf] %vm1096, %v1026
      %1128 = vst.msk [vmem:[%s175 + $0x7c] sm:$0xf] %vm1096, %v1027
      %1129 = vst.msk [vmem:[%s175 + $0x80] sm:$0xf] %vm1096, %v1028
      %1130 = vst.msk [vmem:[%s175 + $0x84] sm:$0xf] %vm1096, %v1029
      %1131 = vst.msk [vmem:[%s175 + $0x88] sm:$0xf] %vm1096, %v1030
      %1132 = vst.msk [vmem:[%s175 + $0x8c] sm:$0xf] %vm1096, %v1031
      %1133 = vst.msk [vmem:[%s175 + $0x90] sm:$0xf] %vm1096, %v1032
      %1134 = vst.msk [vmem:[%s175 + $0x94] sm:$0xf] %vm1096, %v1033
      %1135 = vst.msk [vmem:[%s175 + $0x98] sm:$0xf] %vm1096, %v1034
      %1136 = vst.msk [vmem:[%s175 + $0x9c] sm:$0xf] %vm1096, %v1035
      %1137 = vst.msk [vmem:[%s175 + $0xa0] sm:$0xf] %vm1096, %v1036
      %1138 = vst.msk [vmem:[%s175 + $0xa4] sm:$0xf] %vm1096, %v1037
      %1139 = vst.msk [vmem:[%s175 + $0xa8] sm:$0xf] %vm1096, %v1038
      %1140 = vst.msk [vmem:[%s175 + $0xac] sm:$0xf] %vm1096, %v1039
      %1141 = vst.msk [vmem:[%s175 + $0xb0] sm:$0xf] %vm1096, %v1040
      %1142 = vst.msk [vmem:[%s175 + $0xb4] sm:$0xf] %vm1096, %v1041
      %1143 = vst.msk [vmem:[%s175 + $0xb8] sm:$0xf] %vm1096, %v1042
      %1144 = vst.msk [vmem:[%s175 + $0xbc] sm:$0xf] %vm1096, %v1043
      %1145 = vst.msk [vmem:[%s175 + $0xc0] sm:$0xf] %vm1096, %v1044
      %1146 = vst.msk [vmem:[%s175 + $0xc4] sm:$0xf] %vm1096, %v1045
      %s1147 = smul.u32 50, %s14
      %p1148 = scmp.lt.s32.totalorder %s1147, 99
      %s1149 = scalar_select %p1148, %s1147, 99
      %s1150 = smul.addr %s1149, 4
      %s1151 = scalar_lea.vmem %s3, %s1150
      // Predicated region
      $region33: #{value_network_forward.4} parent=31 // pred_check
        %p1152 = pneg %p100
      $region34: #{value_network_forward.4} parent=31 // pred_check_branch
        %1154 = sbr.rel (%p1152) target = $region36
      $region35: #{value_network_forward.4} parent=31 // pred_region
        %s1155 = smul.u32 50, %s14
      $region36: #{value_network_forward.4} parent=31 // pred_fallthru
        _
    $region32: #{value_network_forward.4} parent=5 // pred_fallthru
      _
    %p1156 = scmp.le.s32.totalorder 2, %s9
    // Predicated region
    $region37: #{value_network_forward.4} parent=5 // pred_check
      %p1157 = pneg %p1156
    $region38: #{value_network_forward.4} parent=5 // pred_check_branch
      %1159 = sbr.rel (%p1157) target = $region40
    $region39: #{value_network_forward.4} parent=5 // pred_region
      %s1160 = ssub.s32 %s9, 2
      // Predicated region
      $region41: #{value_network_forward.4} parent=39 // pred_check
        %p1161 = pneg %p106
      $region42: #{value_network_forward.4} parent=39 // pred_check_branch
        %1163 = sbr.rel (%p1161) target = $region44
      $region43: #{value_network_forward.4} parent=39 // pred_region
        %s1164 = smul.u32 50, %s15
        %p1165 = scmp.lt.s32.totalorder %s1164, 99
        %s1166 = scalar_select %p1165, %s1164, 99
        %s1167 = smul.addr %s1166, 4
        %s1168 = scalar_lea.vmem %s3, %s1167
      $region44: #{value_network_forward.4} parent=39 // pred_fallthru
        _
    $region40: #{value_network_forward.4} parent=5 // pred_fallthru
      _
  $region6: #{value_network_forward.4} parent=0 // loop_footer
    %s13 = sadd.s32 1, %s9
  $region7: #{value_network_forward.4} parent=0 // loop_footer_branch
    %8 = sbr.rel target = $region3
  $region8: #{value_network_forward.4} parent=0 // loop_exit
    _

// kernel: value_network_forward.6
$region0: #{value_network_forward.6}
  #allocation0 [shape = 'u32[]', space=smem, size = 0x4, offset = 0x4, fixed_abs, tag = 'smem constant byte address 0x4 - core index']
  #allocation1 [shape = 'u32[144,128]{1,0:T(1,128)}', space=vmem, size = 0x12000, scoped, tag = 'internal scratch']
  #allocation2 [shape = 'f32[88,64]{1,0:T(8,128)}', space=vmem, size = 0xb000, scoped, tag = 'scratch operand']
  #allocation3 [shape = 'u32[2048]{0}', space=vmem, size = 0x2000, scoped, tag = 'scoped memory for value_network_forward.6']
  #allocation4 [shape = 'u32[2048]{0}', space=vmem, size = 0x2000, scoped, tag = 'scoped memory for value_network_forward.6']
  #allocation5 [shape = 'u32[2048]{0}', space=vmem, size = 0x2000, scoped, tag = 'scoped memory for value_network_forward.6']
  #allocation6 [shape = 'u32[2048]{0}', space=vmem, size = 0x2000, scoped, tag = 'scoped memory for value_network_forward.6']
  #allocation7 [shape = 'u32[2048]{0}', space=vmem, size = 0x2000, scoped, tag = 'scoped memory for value_network_forward.6']
  %s0 = inlined_call_operand.vmem [shape: bf16[512,64], index: 0, kind: input, shape index: {}]
  %s1 = inlined_call_operand.vmem [shape: f32[1,64], index: 1, kind: input, shape index: {}]
  %s2 = inlined_call_operand.vmem [shape: bf16[4,64,64], index: 2, kind: input, shape index: {}]
  %s3 = inlined_call_operand.vmem [shape: f32[1,64], index: 3, kind: input, shape index: {}]
  %s4 = inlined_call_operand.vmem [shape: bf16[2,81,512], index: 4, kind: input, shape index: {}]
  %s5 = inlined_call_operand.<no memory space> [shape: bf16[], index: 5, kind: input, shape index: {}]
  %s6 = inlined_call_operand.vmem [shape: bf16[2,64,64], index: 6, kind: output, shape index: {}]
  %s7 = sld [smem:[#allocation0]]
  $region53: #{value_network_forward.6} parent=0
    _
  %s9 = ssub.s32 1, %s7
  %s10 = scalar_select 0, %s9, %s7
  %v11 = vstv %s5
  %v12 = vunpack.i.l.bf16 %v11
  %v14 = vunpack.i.h.bf16 %v11
  loop: start=0, step=1, limit=4
  $region2: #{value_network_forward.6} parent=0 // loop_pre_header
    _
  $region3: #{value_network_forward.6} parent=0 // loop_header
    %s17 = sphi 0, %s21
    %p18 = scmp.ge.s32.totalorder %s17, 4
    %s27 = sphi 0, %s29
    %s30 = sphi 0, %s27
    %s31 = sphi 0, %s30
    %s47 = sphi 0, %s31
    %s51 = sphi 0, %s51
    %s53 = sphi 0, %s51
    %s54 = sphi 0, %s53
    %s68 = sphi 0, %s54
    %s72 = sphi 0, %s72
    %s74 = sphi 0, %s72
    %s75 = sphi 0, %s74
    %s89 = sphi 0, %s75
    %s93 = sphi 0, %s93
    %s95 = sphi 0, %s93
    %s96 = sphi 0, %s95
    %s110 = sphi 0, %s96
    %s114 = sphi 0, %s114
    %s116 = sphi 0, %s114
    %s117 = sphi 0, %s116
    %s131 = sphi 0, %s117
    %s137 = sphi 0, %s139
    %s140 = sphi 0, %s137
    %s141 = sphi 0, %s140
    %s157 = sphi 0, %s141
  $region4: #{value_network_forward.6} parent=0 // loop_header_branch
    %20 = sbr.rel (%p18) target = $region8
  $region5: #{value_network_forward.6} parent=0 // loop_body
    %s22 = ssub.s32 %s17, 1
    %s23 = ssub.s32 %s17, 2
    %s24 = sadd.s32 %s17, 1
    %s25 = ssub.s32 %s17, %s24
    %p26 = scmp.eq.s32.totalorder %s25, 0
    %s28 = sadd.s32 %s27, 1
    %s29 = scalar_select %p26, %s27, %s28
    %p32 = pneg %p26
    %p33 = scmp.eq.s32.totalorder %s17, 1
    %p34 = por %p32, %p33
    %p35 = scmp.ne.s32.totalorder %s27, %s30
    %p36 = scmp.eq.s32.totalorder %s17, 0
    %p37 = por %p35, %p36
    %p38 = scmp.ne.s32.totalorder %s27, %s30
    %p39 = scmp.eq.s32.totalorder %s22, 1
    %p40 = por %p38, %p39
    %p41 = scmp.ne.s32.totalorder %s30, %s31
    %p42 = scmp.eq.s32.totalorder %s22, 0
    %p43 = por %p41, %p42
    %p44 = scmp.ne.s32.totalorder %s30, %s31
    %p45 = scmp.eq.s32.totalorder %s23, 1
    %p46 = por %p44, %p45
    %p48 = scmp.ne.s32.totalorder %s31, %s47
    %p49 = scmp.eq.s32.totalorder %s23, 0
    %p50 = por %p48, %p49
    %s52 = sadd.s32 %s51, 1
    %p55 = scmp.eq.s32.totalorder %s17, 1
    %p56 = scmp.ne.s32.totalorder %s51, %s53
    %p57 = scmp.eq.s32.totalorder %s17, 0
    %p58 = por %p56, %p57
    %p59 = scmp.ne.s32.totalorder %s51, %s53
    %p60 = scmp.eq.s32.totalorder %s22, 1
    %p61 = por %p59, %p60
    %p62 = scmp.ne.s32.totalorder %s53, %s54
    %p63 = scmp.eq.s32.totalorder %s22, 0
    %p64 = por %p62, %p63
    %p65 = scmp.ne.s32.totalorder %s53, %s54
    %p66 = scmp.eq.s32.totalorder %s23, 1
    %p67 = por %p65, %p66
    %p69 = scmp.ne.s32.totalorder %s54, %s68
    %p70 = scmp.eq.s32.totalorder %s23, 0
    %p71 = por %p69, %p70
    %s73 = sadd.s32 %s72, 1
    %p76 = scmp.eq.s32.totalorder %s17, 1
    %p77 = scmp.ne.s32.totalorder %s72, %s74
    %p78 = scmp.eq.s32.totalorder %s17, 0
    %p79 = por %p77, %p78
    %p80 = scmp.ne.s32.totalorder %s72, %s74
    %p81 = scmp.eq.s32.totalorder %s22, 1
    %p82 = por %p80, %p81
    %p83 = scmp.ne.s32.totalorder %s74, %s75
    %p84 = scmp.eq.s32.totalorder %s22, 0
    %p85 = por %p83, %p84
    %p86 = scmp.ne.s32.totalorder %s74, %s75
    %p87 = scmp.eq.s32.totalorder %s23, 1
    %p88 = por %p86, %p87
    %p90 = scmp.ne.s32.totalorder %s75, %s89
    %p91 = scmp.eq.s32.totalorder %s23, 0
    %p92 = por %p90, %p91
    %s94 = sadd.s32 %s93, 1
    %p97 = scmp.eq.s32.totalorder %s17, 1
    %p98 = scmp.ne.s32.totalorder %s93, %s95
    %p99 = scmp.eq.s32.totalorder %s17, 0
    %p100 = por %p98, %p99
    %p101 = scmp.ne.s32.totalorder %s93, %s95
    %p102 = scmp.eq.s32.totalorder %s22, 1
    %p103 = por %p101, %p102
    %p104 = scmp.ne.s32.totalorder %s95, %s96
    %p105 = scmp.eq.s32.totalorder %s22, 0
    %p106 = por %p104, %p105
    %p107 = scmp.ne.s32.totalorder %s95, %s96
    %p108 = scmp.eq.s32.totalorder %s23, 1
    %p109 = por %p107, %p108
    %p111 = scmp.ne.s32.totalorder %s96, %s110
    %p112 = scmp.eq.s32.totalorder %s23, 0
    %p113 = por %p111, %p112
    %s115 = sadd.s32 %s114, 1
    %p118 = scmp.eq.s32.totalorder %s17, 1
    %p119 = scmp.ne.s32.totalorder %s114, %s116
    %p120 = scmp.eq.s32.totalorder %s17, 0
    %p121 = por %p119, %p120
    %p122 = scmp.ne.s32.totalorder %s114, %s116
    %p123 = scmp.eq.s32.totalorder %s22, 1
    %p124 = por %p122, %p123
    %p125 = scmp.ne.s32.totalorder %s116, %s117
    %p126 = scmp.eq.s32.totalorder %s22, 0
    %p127 = por %p125, %p126
    %p128 = scmp.ne.s32.totalorder %s116, %s117
    %p129 = scmp.eq.s32.totalorder %s23, 1
    %p130 = por %p128, %p129
    %p132 = scmp.ne.s32.totalorder %s117, %s131
    %p133 = scmp.eq.s32.totalorder %s23, 0
    %p134 = por %p132, %p133
    %s135 = ssub.s32 %s17, %s24
    %p136 = scmp.eq.s32.totalorder %s135, 0
    %s138 = sadd.s32 %s137, 1
    %s139 = scalar_select %p136, %s137, %s138
    %p142 = pneg %p136
    %p143 = scmp.eq.s32.totalorder %s17, 1
    %p144 = por %p142, %p143
    %p145 = scmp.ne.s32.totalorder %s137, %s140
    %p146 = scmp.eq.s32.totalorder %s17, 0
    %p147 = por %p145, %p146
    %p148 = scmp.ne.s32.totalorder %s137, %s140
    %p149 = scmp.eq.s32.totalorder %s22, 1
    %p150 = por %p148, %p149
    %p151 = scmp.ne.s32.totalorder %s140, %s141
    %p152 = scmp.eq.s32.totalorder %s22, 0
    %p153 = por %p151, %p152
    %p154 = scmp.ne.s32.totalorder %s140, %s141
    %p155 = scmp.eq.s32.totalorder %s23, 1
    %p156 = por %p154, %p155
    %p158 = scmp.ne.s32.totalorder %s141, %s157
    %p159 = scmp.eq.s32.totalorder %s23, 0
    %p160 = por %p158, %p159
    %p161 = scmp.le.s32.totalorder 1, %s17
    %p162 = scmp.lt.s32.totalorder %s17, 3
    %p163 = pnand %p161, %p162
    %p164 = pneg %p163
    // Predicated region
    $region9: #{value_network_forward.6} parent=5 // pred_check
      _
    $region10: #{value_network_forward.6} parent=5 // pred_check_branch
      %166 = sbr.rel (%p163) target = $region12
    $region11: #{value_network_forward.6} parent=5 // pred_region
      %s167 = ssub.s32 %s17, 1
      // Predicated region
      $region13: #{value_network_forward.6} parent=11 // pred_check
        %p168 = pneg %p64
      $region14: #{value_network_forward.6} parent=11 // pred_check_branch
        %170 = sbr.rel (%p168) target = $region16
      $region15: #{value_network_forward.6} parent=11 // pred_region
        _
      $region16: #{value_network_forward.6} parent=11 // pred_fallthru
        _
      // Predicated region
      $region17: #{value_network_forward.6} parent=11 // pred_check
        %p171 = pneg %p85
      $region18: #{value_network_forward.6} parent=11 // pred_check_branch
        %173 = sbr.rel (%p171) target = $region20
      $region19: #{value_network_forward.6} parent=11 // pred_region
        _
      $region20: #{value_network_forward.6} parent=11 // pred_fallthru
        _
      // Predicated region
      $region21: #{value_network_forward.6} parent=11 // pred_check
        %p174 = pneg %p106
      $region22: #{value_network_forward.6} parent=11 // pred_check_branch
        %176 = sbr.rel (%p174) target = $region24
      $region23: #{value_network_forward.6} parent=11 // pred_region
        _
      $region24: #{value_network_forward.6} parent=11 // pred_fallthru
        _
      // Predicated region
      $region25: #{value_network_forward.6} parent=11 // pred_check
        %p177 = pneg %p127
      $region26: #{value_network_forward.6} parent=11 // pred_check_branch
        %179 = sbr.rel (%p177) target = $region28
      $region27: #{value_network_forward.6} parent=11 // pred_region
        _
      $region28: #{value_network_forward.6} parent=11 // pred_fallthru
        _
    $region12: #{value_network_forward.6} parent=5 // pred_fallthru
      _
    %p180 = scmp.lt.s32.totalorder %s17, 2
    // Predicated region
    $region29: #{value_network_forward.6} parent=5 // pred_check
      %p181 = pneg %p180
    $region30: #{value_network_forward.6} parent=5 // pred_check_branch
      %183 = sbr.rel (%p181) target = $region32
    $region31: #{value_network_forward.6} parent=5 // pred_region
      // Predicated region
      $region33: #{value_network_forward.6} parent=31 // pred_check
        %p184 = pneg %p37
      $region34: #{value_network_forward.6} parent=31 // pred_check_branch
        %186 = sbr.rel (%p184) target = $region36
      $region35: #{value_network_forward.6} parent=31 // pred_region
        %p187 = scmp.lt.s32.totalorder %s17, 1
        %s188 = scalar_select %p187, %s17, 1
        %s189 = smul.addr %s188, 44
        %s190 = smul.addr %s189, 4
        %s191 = scalar_lea.vmem %s4, %s190
      $region36: #{value_network_forward.6} parent=31 // pred_fallthru
        _
    $region32: #{value_network_forward.6} parent=5 // pred_fallthru
      _
    %p192 = scmp.le.s32.totalorder 1, %s17
    %p193 = scmp.lt.s32.totalorder %s17, 3
    %p194 = pnand %p192, %p193
    %p195 = pneg %p194
    // Predicated region
    $region37: #{value_network_forward.6} parent=5 // pred_check
      _
    $region38: #{value_network_forward.6} parent=5 // pred_check_branch
      %197 = sbr.rel (%p194) target = $region40
    $region39: #{value_network_forward.6} parent=5 // pred_region
      #allocation8 [shape = 'u8[90112]{0}', space=vmem, size = 0x16000, dematerialized = true, scoped, tag = 'FusionAdapter Buffer %fusion.1 = bf16[2,88,512]{2,1,0:T(8,128)(2,1)} fusion(%param_4.1, %param_5), kind=kLoop, calls=%fused_computation.1.clone, metadata={op_name="jit(value_network_forward)/jit(_pad)/pad" stack_frame_id=19}']
      %s198 = ssub.s32 %s17, 1
      %p199 = scmp.lt.s32.totalorder %s22, 1
      %s200 = scalar_select %p199, %s22, 1
      %s201 = smul.addr %s200, 44
      %s202 = smul.addr %s201, 4
      %s203 = scalar_lea.vmem %s4, %s202
      %p204 = pneg %p43
      %p205 = pneg %p40
      %p206 = pneg %p64
      %p207 = pneg %p61
      %p208 = pneg %p85
      %p209 = pneg %p82
      %p210 = pneg %p106
      %p211 = pneg %p103
      %p212 = pneg %p127
      %p213 = pneg %p124
      %p214 = pneg %p153
      %p215 = pneg %p150
      %p216 = scmp.lt.s32.totalorder %s22, 1
      %s217 = scalar_select %p216, %s22, 1
      %s218 = smul.addr %s217, 8
      %s219 = smul.addr %s218, 4
      %s220 = scalar_lea.vmem %s6, %s219
      %p221 = scmp.lt.s32.totalorder %s22, 1
      %s222 = scalar_select %p221, %s22, 1
      %s223 = smul.addr %s222, 44
      %s224 = smul.addr %s223, 4
      %s225 = scalar_lea.vmem %s4, %s224
      %p226 = scmp.lt.s32.totalorder %s22, 1
      %s227 = scalar_select %p226, %s22, 1
      %s228 = smul.addr %s227, 8
      %s229 = smul.addr %s228, 4
      %s230 = scalar_lea.vmem %s6, %s229
      %v231 = vld [vmem:[%s225] sm:$0xf]
      %v232 = vunpack.c.l.bf16 %v231
      %v233 = vunpack.c.h.bf16 %v231
      %v234 = vlaneseq
      %v235 = vshrl.u32 %v234, 7
      %vm237 = vcmp.lt.s32.totalorder %v235, 81
      %v238 = vsel %vm237, %v232, %v12
      %v239 = vpack.c.bf16 0.0, %v238
      %s241 = ssub.s32 16, 1
      %242 = vst [vmem:[#allocation8] sm:%s241] %v239
      %s243 = scalar_lea.vmem %s225, 4
      %v244 = vld [vmem:[%s243] sm:$0xf]
      %v245 = vunpack.c.l.bf16 %v244
      %v246 = vunpack.c.h.bf16 %v244
      %v247 = vlaneseq
      %v248 = vshrl.u32 %v247, 7
      %vm250 = vcmp.lt.s32.totalorder %v248, 81
      %v251 = vsel %vm250, %v245, %v12
      %s252 = scalar_lea.vmem [#allocation8], 4
      %v253 = vpack.c.bf16 0.0, %v251
      %s255 = ssub.s32 16, 1
      %256 = vst [vmem:[%s252] sm:%s255] %v253
      %s257 = scalar_lea.vmem %s225, 8
      %v258 = vld [vmem:[%s257] sm:$0xf]
      %v259 = vunpack.c.l.bf16 %v258
      %v260 = vunpack.c.h.bf16 %v258
      %v261 = vlaneseq
      %v262 = vshrl.u32 %v261, 7
      %vm264 = vcmp.lt.s32.totalorder %v262, 81
      %v265 = vsel %vm264, %v259, %v12
      %s266 = scalar_lea.vmem [#allocation8], 8
      %v267 = vpack.c.bf16 0.0, %v265
      %s269 = ssub.s32 16, 1
      %270 = vst [vmem:[%s266] sm:%s269] %v267
      %s271 = scalar_lea.vmem %s225, 12
      %v272 = vld [vmem:[%s271] sm:$0xf]
      %v273 = vunpack.c.l.bf16 %v272
      %v274 = vunpack.c.h.bf16 %v272
      %v275 = vlaneseq
      %v276 = vshrl.u32 %v275, 7
      %vm278 = vcmp.lt.s32.totalorder %v276, 81
      %v279 = vsel %vm278, %v273, %v12
      %s280 = scalar_lea.vmem [#allocation8], 12
      %v281 = vpack.c.bf16 0.0, %v279
      %s283 = ssub.s32 16, 1
      %284 = vst [vmem:[%s280] sm:%s283] %v281
      %s285 = scalar_lea.vmem %s225, 16
      %v286 = vld [vmem:[%s285] sm:$0xf]
      %v287 = vunpack.c.l.bf16 %v286
      %v288 = vunpack.c.h.bf16 %v286
      %v289 = vlaneseq
      %v290 = vshrl.u32 %v289, 7
      %v291 = vadd.s32 %v290, 8
      %vm292 = vcmp.lt.s32.totalorder %v291, 81
      %v293 = vsel %vm292, %v287, %v12
      %s294 = scalar_lea.vmem [#allocation8], 16
      %v295 = vpack.c.bf16 0.0, %v293
      %s297 = ssub.s32 16, 1
      %298 = vst [vmem:[%s294] sm:%s297] %v295
      %s299 = scalar_lea.vmem %s225, 20
      %v300 = vld [vmem:[%s299] sm:$0xf]
      %v301 = vunpack.c.l.bf16 %v300
      %v302 = vunpack.c.h.bf16 %v300
      %v303 = vlaneseq
      %v304 = vshrl.u32 %v303, 7
      %v305 = vadd.s32 %v304, 8
      %vm306 = vcmp.lt.s32.totalorder %v305, 81
      %v307 = vsel %vm306, %v301, %v12
      %s308 = scalar_lea.vmem [#allocation8], 20
      %v309 = vpack.c.bf16 0.0, %v307
      %s311 = ssub.s32 16, 1
      %312 = vst [vmem:[%s308] sm:%s311] %v309
      %s313 = scalar_lea.vmem %s225, 24
      %v314 = vld [vmem:[%s313] sm:$0xf]
      %v315 = vunpack.c.l.bf16 %v314
      %v316 = vunpack.c.h.bf16 %v314
      %v317 = vlaneseq
      %v318 = vshrl.u32 %v317, 7
      %v319 = vadd.s32 %v318, 8
      %vm320 = vcmp.lt.s32.totalorder %v319, 81
      %v321 = vsel %vm320, %v315, %v12
      %s322 = scalar_lea.vmem [#allocation8], 24
      %v323 = vpack.c.bf16 0.0, %v321
      %s325 = ssub.s32 16, 1
      %326 = vst [vmem:[%s322] sm:%s325] %v323
      %s327 = scalar_lea.vmem %s225, 28
      %v328 = vld [vmem:[%s327] sm:$0xf]
      %v329 = vunpack.c.l.bf16 %v328
      %v330 = vunpack.c.h.bf16 %v328
      %v331 = vlaneseq
      %v332 = vshrl.u32 %v331, 7
      %v333 = vadd.s32 %v332, 8
      %vm334 = vcmp.lt.s32.totalorder %v333, 81
      %v335 = vsel %vm334, %v329, %v12
      %s336 = scalar_lea.vmem [#allocation8], 28
      %v337 = vpack.c.bf16 0.0, %v335
      %s339 = ssub.s32 16, 1
      %340 = vst [vmem:[%s336] sm:%s339] %v337
      %s341 = scalar_lea.vmem %s225, 32
      %v342 = vld [vmem:[%s341] sm:$0xf]
      %v343 = vunpack.c.l.bf16 %v342
      %v344 = vunpack.c.h.bf16 %v342
      %v345 = vlaneseq
      %v346 = vshrl.u32 %v345, 7
      %v347 = vadd.s32 %v346, 16
      %vm348 = vcmp.lt.s32.totalorder %v347, 81
      %v349 = vsel %vm348, %v343, %v12
      %s350 = scalar_lea.vmem [#allocation8], 32
      %v351 = vpack.c.bf16 0.0, %v349
      %s353 = ssub.s32 16, 1
      %354 = vst [vmem:[%s350] sm:%s353] %v351
      %s355 = scalar_lea.vmem %s225, 36
      %v356 = vld [vmem:[%s355] sm:$0xf]
      %v357 = vunpack.c.l.bf16 %v356
      %v358 = vunpack.c.h.bf16 %v356
      %v359 = vlaneseq
      %v360 = vshrl.u32 %v359, 7
      %v361 = vadd.s32 %v360, 16
      %vm362 = vcmp.lt.s32.totalorder %v361, 81
      %v363 = vsel %vm362, %v357, %v12
      %s364 = scalar_lea.vmem [#allocation8], 36
      %v365 = vpack.c.bf16 0.0, %v363
      %s367 = ssub.s32 16, 1
      %368 = vst [vmem:[%s364] sm:%s367] %v365
      %s369 = scalar_lea.vmem %s225, 40
      %v370 = vld [vmem:[%s369] sm:$0xf]
      %v371 = vunpack.c.l.bf16 %v370
      %v372 = vunpack.c.h.bf16 %v370
      %v373 = vlaneseq
      %v374 = vshrl.u32 %v373, 7
      %v375 = vadd.s32 %v374, 16
      %vm376 = vcmp.lt.s32.totalorder %v375, 81
      %v377 = vsel %vm376, %v371, %v12
      %s378 = scalar_lea.vmem [#allocation8], 40
      %v379 = vpack.c.bf16 0.0, %v377
      %s381 = ssub.s32 16, 1
      %382 = vst [vmem:[%s378] sm:%s381] %v379
      %s383 = scalar_lea.vmem %s225, 44
      %v384 = vld [vmem:[%s383] sm:$0xf]
      %v385 = vunpack.c.l.bf16 %v384
      %v386 = vunpack.c.h.bf16 %v384
      %v387 = vlaneseq
      %v388 = vshrl.u32 %v387, 7
      %v389 = vadd.s32 %v388, 16
      %vm390 = vcmp.lt.s32.totalorder %v389, 81
      %v391 = vsel %vm390, %v385, %v12
      %s392 = scalar_lea.vmem [#allocation8], 44
      %v393 = vpack.c.bf16 0.0, %v391
      %s395 = ssub.s32 16, 1
      %396 = vst [vmem:[%s392] sm:%s395] %v393
      %s397 = scalar_lea.vmem %s225, 48
      %v398 = vld [vmem:[%s397] sm:$0xf]
      %v399 = vunpack.c.l.bf16 %v398
      %v400 = vunpack.c.h.bf16 %v398
      %v401 = vlaneseq
      %v402 = vshrl.u32 %v401, 7
      %v403 = vadd.s32 %v402, 24
      %vm404 = vcmp.lt.s32.totalorder %v403, 81
      %v405 = vsel %vm404, %v399, %v12
      %s406 = scalar_lea.vmem [#allocation8], 48
      %v407 = vpack.c.bf16 0.0, %v405
      %s409 = ssub.s32 16, 1
      %410 = vst [vmem:[%s406] sm:%s409] %v407
      %s411 = scalar_lea.vmem %s225, 52
      %v412 = vld [vmem:[%s411] sm:$0xf]
      %v413 = vunpack.c.l.bf16 %v412
      %v414 = vunpack.c.h.bf16 %v412
      %v415 = vlaneseq
      %v416 = vshrl.u32 %v415, 7
      %v417 = vadd.s32 %v416, 24
      %vm418 = vcmp.lt.s32.totalorder %v417, 81
      %v419 = vsel %vm418, %v413, %v12
      %s420 = scalar_lea.vmem [#allocation8], 52
      %v421 = vpack.c.bf16 0.0, %v419
      %s423 = ssub.s32 16, 1
      %424 = vst [vmem:[%s420] sm:%s423] %v421
      %s425 = scalar_lea.vmem %s225, 56
      %v426 = vld [vmem:[%s425] sm:$0xf]
      %v427 = vunpack.c.l.bf16 %v426
      %v428 = vunpack.c.h.bf16 %v426
      %v429 = vlaneseq
      %v430 = vshrl.u32 %v429, 7
      %v431 = vadd.s32 %v430, 24
      %vm432 = vcmp.lt.s32.totalorder %v431, 81
      %v433 = vsel %vm432, %v427, %v12
      %s434 = scalar_lea.vmem [#allocation8], 56
      %v435 = vpack.c.bf16 0.0, %v433
      %s437 = ssub.s32 16, 1
      %438 = vst [vmem:[%s434] sm:%s437] %v435
      %s439 = scalar_lea.vmem %s225, 60
      %v440 = vld [vmem:[%s439] sm:$0xf]
      %v441 = vunpack.c.l.bf16 %v440
      %v442 = vunpack.c.h.bf16 %v440
      %v443 = vlaneseq
      %v444 = vshrl.u32 %v443, 7
      %v445 = vadd.s32 %v444, 24
      %vm446 = vcmp.lt.s32.totalorder %v445, 81
      %v447 = vsel %vm446, %v441, %v12
      %s448 = scalar_lea.vmem [#allocation8], 60
      %v449 = vpack.c.bf16 0.0, %v447
      %s451 = ssub.s32 16, 1
      %452 = vst [vmem:[%s448] sm:%s451] %v449
      %s453 = scalar_lea.vmem %s225, 64
      %v454 = vld [vmem:[%s453] sm:$0xf]
      %v455 = vunpack.c.l.bf16 %v454
      %v456 = vunpack.c.h.bf16 %v454
      %v457 = vlaneseq
      %v458 = vshrl.u32 %v457, 7
      %v459 = vadd.s32 %v458, 32
      %vm460 = vcmp.lt.s32.totalorder %v459, 81
      %v461 = vsel %vm460, %v455, %v12
      %s462 = scalar_lea.vmem [#allocation8], 64
      %v463 = vpack.c.bf16 0.0, %v461
      %s465 = ssub.s32 16, 1
      %466 = vst [vmem:[%s462] sm:%s465] %v463
      %s467 = scalar_lea.vmem %s225, 68
      %v468 = vld [vmem:[%s467] sm:$0xf]
      %v469 = vunpack.c.l.bf16 %v468
      %v470 = vunpack.c.h.bf16 %v468
      %v471 = vlaneseq
      %v472 = vshrl.u32 %v471, 7
      %v473 = vadd.s32 %v472, 32
      %vm474 = vcmp.lt.s32.totalorder %v473, 81
      %v475 = vsel %vm474, %v469, %v12
      %s476 = scalar_lea.vmem [#allocation8], 68
      %v477 = vpack.c.bf16 0.0, %v475
      %s479 = ssub.s32 16, 1
      %480 = vst [vmem:[%s476] sm:%s479] %v477
      %s481 = scalar_lea.vmem %s225, 72
      %v482 = vld [vmem:[%s481] sm:$0xf]
      %v483 = vunpack.c.l.bf16 %v482
      %v484 = vunpack.c.h.bf16 %v482
      %v485 = vlaneseq
      %v486 = vshrl.u32 %v485, 7
      %v487 = vadd.s32 %v486, 32
      %vm488 = vcmp.lt.s32.totalorder %v487, 81
      %v489 = vsel %vm488, %v483, %v12
      %s490 = scalar_lea.vmem [#allocation8], 72
      %v491 = vpack.c.bf16 0.0, %v489
      %s493 = ssub.s32 16, 1
      %494 = vst [vmem:[%s490] sm:%s493] %v491
      %s495 = scalar_lea.vmem %s225, 76
      %v496 = vld [vmem:[%s495] sm:$0xf]
      %v497 = vunpack.c.l.bf16 %v496
      %v498 = vunpack.c.h.bf16 %v496
      %v499 = vlaneseq
      %v500 = vshrl.u32 %v499, 7
      %v501 = vadd.s32 %v500, 32
      %vm502 = vcmp.lt.s32.totalorder %v501, 81
      %v503 = vsel %vm502, %v497, %v12
      %s504 = scalar_lea.vmem [#allocation8], 76
      %v505 = vpack.c.bf16 0.0, %v503
      %s507 = ssub.s32 16, 1
      %508 = vst [vmem:[%s504] sm:%s507] %v505
      %s509 = scalar_lea.vmem %s225, 80
      %v510 = vld [vmem:[%s509] sm:$0xf]
      %v511 = vunpack.c.l.bf16 %v510
      %v512 = vunpack.c.h.bf16 %v510
      %v513 = vlaneseq
      %v514 = vshrl.u32 %v513, 7
      %v515 = vadd.s32 %v514, 40
      %vm516 = vcmp.lt.s32.totalorder %v515, 81
      %v517 = vsel %vm516, %v511, %v12
      %s518 = scalar_lea.vmem [#allocation8], 80
      %v519 = vpack.c.bf16 0.0, %v517
      %s521 = ssub.s32 16, 1
      %522 = vst [vmem:[%s518] sm:%s521] %v519
      %s523 = scalar_lea.vmem %s225, 84
      %v524 = vld [vmem:[%s523] sm:$0xf]
      %v525 = vunpack.c.l.bf16 %v524
      %v526 = vunpack.c.h.bf16 %v524
      %v527 = vlaneseq
      %v528 = vshrl.u32 %v527, 7
      %v529 = vadd.s32 %v528, 40
      %vm530 = vcmp.lt.s32.totalorder %v529, 81
      %v531 = vsel %vm530, %v525, %v12
      %s532 = scalar_lea.vmem [#allocation8], 84
      %v533 = vpack.c.bf16 0.0, %v531
      %s535 = ssub.s32 16, 1
      %536 = vst [vmem:[%s532] sm:%s535] %v533
      %s537 = scalar_lea.vmem %s225, 88
      %v538 = vld [vmem:[%s537] sm:$0xf]
      %v539 = vunpack.c.l.bf16 %v538
      %v540 = vunpack.c.h.bf16 %v538
      %v541 = vlaneseq
      %v542 = vshrl.u32 %v541, 7
      %v543 = vadd.s32 %v542, 40
      %vm544 = vcmp.lt.s32.totalorder %v543, 81
      %v545 = vsel %vm544, %v539, %v12
      %s546 = scalar_lea.vmem [#allocation8], 88
      %v547 = vpack.c.bf16 0.0, %v545
      %s549 = ssub.s32 16, 1
      %550 = vst [vmem:[%s546] sm:%s549] %v547
      %s551 = scalar_lea.vmem %s225, 92
      %v552 = vld [vmem:[%s551] sm:$0xf]
      %v553 = vunpack.c.l.bf16 %v552
      %v554 = vunpack.c.h.bf16 %v552
      %v555 = vlaneseq
      %v556 = vshrl.u32 %v555, 7
      %v557 = vadd.s32 %v556, 40
      %vm558 = vcmp.lt.s32.totalorder %v557, 81
      %v559 = vsel %vm558, %v553, %v12
      %s560 = scalar_lea.vmem [#allocation8], 92
      %v561 = vpack.c.bf16 0.0, %v559
      %s563 = ssub.s32 16, 1
      %564 = vst [vmem:[%s560] sm:%s563] %v561
      %s565 = scalar_lea.vmem %s225, 96
      %v566 = vld [vmem:[%s565] sm:$0xf]
      %v567 = vunpack.c.l.bf16 %v566
      %v568 = vunpack.c.h.bf16 %v566
      %v569 = vlaneseq
      %v570 = vshrl.u32 %v569, 7
      %v571 = vadd.s32 %v570, 48
      %vm572 = vcmp.lt.s32.totalorder %v571, 81
      %v573 = vsel %vm572, %v567, %v12
      %s574 = scalar_lea.vmem [#allocation8], 96
      %v575 = vpack.c.bf16 0.0, %v573
      %s577 = ssub.s32 16, 1
      %578 = vst [vmem:[%s574] sm:%s577] %v575
      %s579 = scalar_lea.vmem %s225, 100
      %v580 = vld [vmem:[%s579] sm:$0xf]
      %v581 = vunpack.c.l.bf16 %v580
      %v582 = vunpack.c.h.bf16 %v580
      %v583 = vlaneseq
      %v584 = vshrl.u32 %v583, 7
      %v585 = vadd.s32 %v584, 48
      %vm586 = vcmp.lt.s32.totalorder %v585, 81
      %v587 = vsel %vm586, %v581, %v12
      %s588 = scalar_lea.vmem [#allocation8], 100
      %v589 = vpack.c.bf16 0.0, %v587
      %s591 = ssub.s32 16, 1
      %592 = vst [vmem:[%s588] sm:%s591] %v589
      %s593 = scalar_lea.vmem %s225, 104
      %v594 = vld [vmem:[%s593] sm:$0xf]
      %v595 = vunpack.c.l.bf16 %v594
      %v596 = vunpack.c.h.bf16 %v594
      %v597 = vlaneseq
      %v598 = vshrl.u32 %v597, 7
      %v599 = vadd.s32 %v598, 48
      %vm600 = vcmp.lt.s32.totalorder %v599, 81
      %v601 = vsel %vm600, %v595, %v12
      %s602 = scalar_lea.vmem [#allocation8], 104
      %v603 = vpack.c.bf16 0.0, %v601
      %s605 = ssub.s32 16, 1
      %606 = vst [vmem:[%s602] sm:%s605] %v603
      %s607 = scalar_lea.vmem %s225, 108
      %v608 = vld [vmem:[%s607] sm:$0xf]
      %v609 = vunpack.c.l.bf16 %v608
      %v610 = vunpack.c.h.bf16 %v608
      %v611 = vlaneseq
      %v612 = vshrl.u32 %v611, 7
      %v613 = vadd.s32 %v612, 48
      %vm614 = vcmp.lt.s32.totalorder %v613, 81
      %v615 = vsel %vm614, %v609, %v12
      %s616 = scalar_lea.vmem [#allocation8], 108
      %v617 = vpack.c.bf16 0.0, %v615
      %s619 = ssub.s32 16, 1
      %620 = vst [vmem:[%s616] sm:%s619] %v617
      %s621 = scalar_lea.vmem %s225, 112
      %v622 = vld [vmem:[%s621] sm:$0xf]
      %v623 = vunpack.c.l.bf16 %v622
      %v624 = vunpack.c.h.bf16 %v622
      %v625 = vlaneseq
      %v626 = vshrl.u32 %v625, 7
      %v627 = vadd.s32 %v626, 56
      %vm628 = vcmp.lt.s32.totalorder %v627, 81
      %v629 = vsel %vm628, %v623, %v12
      %s630 = scalar_lea.vmem [#allocation8], 112
      %v631 = vpack.c.bf16 0.0, %v629
      %s633 = ssub.s32 16, 1
      %634 = vst [vmem:[%s630] sm:%s633] %v631
      %s635 = scalar_lea.vmem %s225, 116
      %v636 = vld [vmem:[%s635] sm:$0xf]
      %v637 = vunpack.c.l.bf16 %v636
      %v638 = vunpack.c.h.bf16 %v636
      %v639 = vlaneseq
      %v640 = vshrl.u32 %v639, 7
      %v641 = vadd.s32 %v640, 56
      %vm642 = vcmp.lt.s32.totalorder %v641, 81
      %v643 = vsel %vm642, %v637, %v12
      %s644 = scalar_lea.vmem [#allocation8], 116
      %v645 = vpack.c.bf16 0.0, %v643
      %s647 = ssub.s32 16, 1
      %648 = vst [vmem:[%s644] sm:%s647] %v645
      %s649 = scalar_lea.vmem %s225, 120
      %v650 = vld [vmem:[%s649] sm:$0xf]
      %v651 = vunpack.c.l.bf16 %v650
      %v652 = vunpack.c.h.bf16 %v650
      %v653 = vlaneseq
      %v654 = vshrl.u32 %v653, 7
      %v655 = vadd.s32 %v654, 56
      %vm656 = vcmp.lt.s32.totalorder %v655, 81
      %v657 = vsel %vm656, %v651, %v12
      %s658 = scalar_lea.vmem [#allocation8], 120
      %v659 = vpack.c.bf16 0.0, %v657
      %s661 = ssub.s32 16, 1
      %662 = vst [vmem:[%s658] sm:%s661] %v659
      %s663 = scalar_lea.vmem %s225, 124
      %v664 = vld [vmem:[%s663] sm:$0xf]
      %v665 = vunpack.c.l.bf16 %v664
      %v666 = vunpack.c.h.bf16 %v664
      %v667 = vlaneseq
      %v668 = vshrl.u32 %v667, 7
      %v669 = vadd.s32 %v668, 56
      %vm670 = vcmp.lt.s32.totalorder %v669, 81
      %v671 = vsel %vm670, %v665, %v12
      %s672 = scalar_lea.vmem [#allocation8], 124
      %v673 = vpack.c.bf16 0.0, %v671
      %s675 = ssub.s32 16, 1
      %676 = vst [vmem:[%s672] sm:%s675] %v673
      %s677 = scalar_lea.vmem %s225, 128
      %v678 = vld [vmem:[%s677] sm:$0xf]
      %v679 = vunpack.c.l.bf16 %v678
      %v680 = vunpack.c.h.bf16 %v678
      %v681 = vlaneseq
      %v682 = vshrl.u32 %v681, 7
      %v683 = vadd.s32 %v682, 64
      %vm684 = vcmp.lt.s32.totalorder %v683, 81
      %v685 = vsel %vm684, %v679, %v12
      %s686 = scalar_lea.vmem [#allocation8], 128
      %v687 = vpack.c.bf16 0.0, %v685
      %s689 = ssub.s32 16, 1
      %690 = vst [vmem:[%s686] sm:%s689] %v687
      %s691 = scalar_lea.vmem %s225, 132
      %v692 = vld [vmem:[%s691] sm:$0xf]
      %v693 = vunpack.c.l.bf16 %v692
      %v694 = vunpack.c.h.bf16 %v692
      %v695 = vlaneseq
      %v696 = vshrl.u32 %v695, 7
      %v697 = vadd.s32 %v696, 64
      %vm698 = vcmp.lt.s32.totalorder %v697, 81
      %v699 = vsel %vm698, %v693, %v12
      %s700 = scalar_lea.vmem [#allocation8], 132
      %v701 = vpack.c.bf16 0.0, %v699
      %s703 = ssub.s32 16, 1
      %704 = vst [vmem:[%s700] sm:%s703] %v701
      %s705 = scalar_lea.vmem %s225, 136
      %v706 = vld [vmem:[%s705] sm:$0xf]
      %v707 = vunpack.c.l.bf16 %v706
      %v708 = vunpack.c.h.bf16 %v706
      %v709 = vlaneseq
      %v710 = vshrl.u32 %v709, 7
      %v711 = vadd.s32 %v710, 64
      %vm712 = vcmp.lt.s32.totalorder %v711, 81
      %v713 = vsel %vm712, %v707, %v12
      %s714 = scalar_lea.vmem [#allocation8], 136
      %v715 = vpack.c.bf16 0.0, %v713
      %s717 = ssub.s32 16, 1
      %718 = vst [vmem:[%s714] sm:%s717] %v715
      %s719 = scalar_lea.vmem %s225, 140
      %v720 = vld [vmem:[%s719] sm:$0xf]
      %v721 = vunpack.c.l.bf16 %v720
      %v722 = vunpack.c.h.bf16 %v720
      %v723 = vlaneseq
      %v724 = vshrl.u32 %v723, 7
      %v725 = vadd.s32 %v724, 64
      %vm726 = vcmp.lt.s32.totalorder %v725, 81
      %v727 = vsel %vm726, %v721, %v12
      %s728 = scalar_lea.vmem [#allocation8], 140
      %v729 = vpack.c.bf16 0.0, %v727
      %s731 = ssub.s32 16, 1
      %732 = vst [vmem:[%s728] sm:%s731] %v729
      %s733 = scalar_lea.vmem %s225, 144
      %v734 = vld [vmem:[%s733] sm:$0xf]
      %v735 = vunpack.c.l.bf16 %v734
      %v736 = vunpack.c.h.bf16 %v734
      %v737 = vlaneseq
      %v738 = vshrl.u32 %v737, 7
      %v739 = vadd.s32 %v738, 72
      %vm740 = vcmp.lt.s32.totalorder %v739, 81
      %v741 = vsel %vm740, %v735, %v12
      %s742 = scalar_lea.vmem [#allocation8], 144
      %v743 = vpack.c.bf16 0.0, %v741
      %s745 = ssub.s32 16, 1
      %746 = vst [vmem:[%s742] sm:%s745] %v743
      %s747 = scalar_lea.vmem %s225, 148
      %v748 = vld [vmem:[%s747] sm:$0xf]
      %v749 = vunpack.c.l.bf16 %v748
      %v750 = vunpack.c.h.bf16 %v748
      %v751 = vlaneseq
      %v752 = vshrl.u32 %v751, 7
      %v753 = vadd.s32 %v752, 72
      %vm754 = vcmp.lt.s32.totalorder %v753, 81
      %v755 = vsel %vm754, %v749, %v12
      %s756 = scalar_lea.vmem [#allocation8], 148
      %v757 = vpack.c.bf16 0.0, %v755
      %s759 = ssub.s32 16, 1
      %760 = vst [vmem:[%s756] sm:%s759] %v757
      %s761 = scalar_lea.vmem %s225, 152
      %v762 = vld [vmem:[%s761] sm:$0xf]
      %v763 = vunpack.c.l.bf16 %v762
      %v764 = vunpack.c.h.bf16 %v762
      %v765 = vlaneseq
      %v766 = vshrl.u32 %v765, 7
      %v767 = vadd.s32 %v766, 72
      %vm768 = vcmp.lt.s32.totalorder %v767, 81
      %v769 = vsel %vm768, %v763, %v12
      %s770 = scalar_lea.vmem [#allocation8], 152
      %v771 = vpack.c.bf16 0.0, %v769
      %s773 = ssub.s32 16, 1
      %774 = vst [vmem:[%s770] sm:%s773] %v771
      %s775 = scalar_lea.vmem %s225, 156
      %v776 = vld [vmem:[%s775] sm:$0xf]
      %v777 = vunpack.c.l.bf16 %v776
      %v778 = vunpack.c.h.bf16 %v776
      %v779 = vlaneseq
      %v780 = vshrl.u32 %v779, 7
      %v781 = vadd.s32 %v780, 72
      %vm782 = vcmp.lt.s32.totalorder %v781, 81
      %v783 = vsel %vm782, %v777, %v12
      %s784 = scalar_lea.vmem [#allocation8], 156
      %v785 = vpack.c.bf16 0.0, %v783
      %s787 = ssub.s32 16, 1
      %788 = vst [vmem:[%s784] sm:%s787] %v785
      %s789 = scalar_lea.vmem %s225, 160
      %s791 = sor.u32 255, 127
      %s792 = sand.u32 %s791, 85
      %s793 = sshrl.u32 %s792, 1
      %s794 = sor.u32 %s792, %s793
      %s795 = sand.u32 51, %s794
      %s796 = sshrl.u32 %s795, 2
      %s797 = sor.u32 %s795, %s796
      %s798 = sand.u32 15, %s797
      %v799 = vld [vmem:[%s789] sm:%s798]
      %v800 = vunpack.c.l.bf16 %v799
      %v801 = vunpack.c.h.bf16 %v799
      %v802 = vlaneseq
      %v803 = vshrl.u32 %v802, 7
      %v804 = vadd.s32 %v803, 80
      %vm805 = vcmp.lt.s32.totalorder %v804, 81
      %v806 = vsel %vm805, %v800, %v12
      %s807 = scalar_lea.vmem [#allocation8], 160
      %v808 = vpack.c.bf16 0.0, %v806
      %s810 = ssub.s32 16, 1
      %811 = vst [vmem:[%s807] sm:%s810] %v808
      %s812 = scalar_lea.vmem %s225, 164
      %s814 = sor.u32 255, 127
      %s815 = sand.u32 %s814, 85
      %s816 = sshrl.u32 %s815, 1
      %s817 = sor.u32 %s815, %s816
      %s818 = sand.u32 51, %s817
      %s819 = sshrl.u32 %s818, 2
      %s820 = sor.u32 %s818, %s819
      %s821 = sand.u32 15, %s820
      %v822 = vld [vmem:[%s812] sm:%s821]
      %v823 = vunpack.c.l.bf16 %v822
      %v824 = vunpack.c.h.bf16 %v822
      %v825 = vlaneseq
      %v826 = vshrl.u32 %v825, 7
      %v827 = vadd.s32 %v826, 80
      %vm828 = vcmp.lt.s32.totalorder %v827, 81
      %v829 = vsel %vm828, %v823, %v12
      %s830 = scalar_lea.vmem [#allocation8], 164
      %v831 = vpack.c.bf16 0.0, %v829
      %s833 = ssub.s32 16, 1
      %834 = vst [vmem:[%s830] sm:%s833] %v831
      %s835 = scalar_lea.vmem %s225, 168
      %s837 = sor.u32 255, 127
      %s838 = sand.u32 %s837, 85
      %s839 = sshrl.u32 %s838, 1
      %s840 = sor.u32 %s838, %s839
      %s841 = sand.u32 51, %s840
      %s842 = sshrl.u32 %s841, 2
      %s843 = sor.u32 %s841, %s842
      %s844 = sand.u32 15, %s843
      %v845 = vld [vmem:[%s835] sm:%s844]
      %v846 = vunpack.c.l.bf16 %v845
      %v847 = vunpack.c.h.bf16 %v845
      %v848 = vlaneseq
      %v849 = vshrl.u32 %v848, 7
      %v850 = vadd.s32 %v849, 80
      %vm851 = vcmp.lt.s32.totalorder %v850, 81
      %v852 = vsel %vm851, %v846, %v12
      %s853 = scalar_lea.vmem [#allocation8], 168
      %v854 = vpack.c.bf16 0.0, %v852
      %s856 = ssub.s32 16, 1
      %857 = vst [vmem:[%s853] sm:%s856] %v854
      %s858 = scalar_lea.vmem %s225, 172
      %s860 = sor.u32 255, 127
      %s861 = sand.u32 %s860, 85
      %s862 = sshrl.u32 %s861, 1
      %s863 = sor.u32 %s861, %s862
      %s864 = sand.u32 51, %s863
      %s865 = sshrl.u32 %s864, 2
      %s866 = sor.u32 %s864, %s865
      %s867 = sand.u32 15, %s866
      %v868 = vld [vmem:[%s858] sm:%s867]
      %v869 = vunpack.c.l.bf16 %v868
      %v870 = vunpack.c.h.bf16 %v868
      %v871 = vlaneseq
      %v872 = vshrl.u32 %v871, 7
      %v873 = vadd.s32 %v872, 80
      %vm874 = vcmp.lt.s32.totalorder %v873, 81
      %v875 = vsel %vm874, %v869, %v12
      %s876 = scalar_lea.vmem [#allocation8], 172
      %v877 = vpack.c.bf16 0.0, %v875
      %s879 = ssub.s32 16, 1
      %880 = vst [vmem:[%s876] sm:%s879] %v877
      %v882 = vld [vmem:[#allocation8] sm:$0xff]
      %v883 = vld [vmem:[#allocation8 + $0x8] sm:$0xff]
      %v884 = vld [vmem:[#allocation8 + $0x10] sm:$0xff]
      %v885 = vld [vmem:[#allocation8 + $0x18] sm:$0xff]
      %v886 = vld [vmem:[#allocation8 + $0x20] sm:$0xff]
      %v887 = vld [vmem:[#allocation8 + $0x28] sm:$0xff]
      %v888 = vld [vmem:[#allocation8 + $0x30] sm:$0xff]
      %v889 = vld [vmem:[#allocation8 + $0x38] sm:$0xff]
      %v890 = vld [vmem:[#allocation8 + $0x40] sm:$0xff]
      %v891 = vld [vmem:[#allocation8 + $0x48] sm:$0xff]
      %v892 = vld [vmem:[#allocation8 + $0x50] sm:$0xff]
      %v893 = vld [vmem:[#allocation8 + $0x58] sm:$0xff]
      %v894 = vld [vmem:[#allocation8 + $0x60] sm:$0xff]
      %v895 = vld [vmem:[#allocation8 + $0x68] sm:$0xff]
      %v896 = vld [vmem:[#allocation8 + $0x70] sm:$0xff]
      %v897 = vld [vmem:[#allocation8 + $0x78] sm:$0xff]
      %v898 = vld [vmem:[#allocation8 + $0x80] sm:$0xff]
      %v899 = vld [vmem:[#allocation8 + $0x88] sm:$0xff]
      %v900 = vld [vmem:[#allocation8 + $0x90] sm:$0xff]
      %v901 = vld [vmem:[#allocation8 + $0x98] sm:$0xff]
      %v902 = vld [vmem:[#allocation8 + $0xa0] sm:$0xff]
      %v903 = vld [vmem:[#allocation8 + $0xa8] sm:$0xff]
      %v904 = vld [vmem:[%s0] sm:$0xf]
      %v905 = vld [vmem:[%s0 + $0x4] sm:$0xf]
      %v906 = vld [vmem:[%s0 + $0x8] sm:$0xf]
      %v907 = vld [vmem:[%s0 + $0xc] sm:$0xf]
      %v908 = vld [vmem:[%s0 + $0x10] sm:$0xf]
      %v909 = vld [vmem:[%s0 + $0x14] sm:$0xf]
      %v910 = vld [vmem:[%s0 + $0x18] sm:$0xf]
      %v911 = vld [vmem:[%s0 + $0x1c] sm:$0xf]
      %v912 = vld [vmem:[%s0 + $0x20] sm:$0xf]
      %v913 = vld [vmem:[%s0 + $0x24] sm:$0xf]
      %v914 = vld [vmem:[%s0 + $0x28] sm:$0xf]
      %v915 = vld [vmem:[%s0 + $0x2c] sm:$0xf]
      %v916 = vld [vmem:[%s0 + $0x30] sm:$0xf]
      %v917 = vld [vmem:[%s0 + $0x34] sm:$0xf]
      %v918 = vld [vmem:[%s0 + $0x38] sm:$0xf]
      %v919 = vld [vmem:[%s0 + $0x3c] sm:$0xf]
      %v920 = vld [vmem:[%s0 + $0x40] sm:$0xf]
      %v921 = vld [vmem:[%s0 + $0x44] sm:$0xf]
      %v922 = vld [vmem:[%s0 + $0x48] sm:$0xf]
      %v923 = vld [vmem:[%s0 + $0x4c] sm:$0xf]
      %v924 = vld [vmem:[%s0 + $0x50] sm:$0xf]
      %v925 = vld [vmem:[%s0 + $0x54] sm:$0xf]
      %v926 = vld [vmem:[%s0 + $0x58] sm:$0xf]
      %v927 = vld [vmem:[%s0 + $0x5c] sm:$0xf]
      %v928 = vld [vmem:[%s0 + $0x60] sm:$0xf]
      %v929 = vld [vmem:[%s0 + $0x64] sm:$0xf]
      %v930 = vld [vmem:[%s0 + $0x68] sm:$0xf]
      %v931 = vld [vmem:[%s0 + $0x6c] sm:$0xf]
      %v932 = vld [vmem:[%s0 + $0x70] sm:$0xf]
      %v933 = vld [vmem:[%s0 + $0x74] sm:$0xf]
      %v934 = vld [vmem:[%s0 + $0x78] sm:$0xf]
      %v935 = vld [vmem:[%s0 + $0x7c] sm:$0xf]
      %v936 = vld [vmem:[%s0 + $0x80] sm:$0xf]
      %v937 = vld [vmem:[%s0 + $0x84] sm:$0xf]
      %v938 = vld [vmem:[%s0 + $0x88] sm:$0xf]
      %v939 = vld [vmem:[%s0 + $0x8c] sm:$0xf]
      %v940 = vld [vmem:[%s0 + $0x90] sm:$0xf]
      %v941 = vld [vmem:[%s0 + $0x94] sm:$0xf]
      %v942 = vld [vmem:[%s0 + $0x98] sm:$0xf]
      %v943 = vld [vmem:[%s0 + $0x9c] sm:$0xf]
      %v944 = vld [vmem:[%s0 + $0xa0] sm:$0xf]
      %v945 = vld [vmem:[%s0 + $0xa4] sm:$0xf]
      %v946 = vld [vmem:[%s0 + $0xa8] sm:$0xf]
      %v947 = vld [vmem:[%s0 + $0xac] sm:$0xf]
      %v948 = vld [vmem:[%s0 + $0xb0] sm:$0xf]
      %v949 = vld [vmem:[%s0 + $0xb4] sm:$0xf]
      %v950 = vld [vmem:[%s0 + $0xb8] sm:$0xf]
      %v951 = vld [vmem:[%s0 + $0xbc] sm:$0xf]
      %v952 = vld [vmem:[%s0 + $0xc0] sm:$0xf]
      %v953 = vld [vmem:[%s0 + $0xc4] sm:$0xf]
      %v954 = vld [vmem:[%s0 + $0xc8] sm:$0xf]
      %v955 = vld [vmem:[%s0 + $0xcc] sm:$0xf]
      %v956 = vld [vmem:[%s0 + $0xd0] sm:$0xf]
      %v957 = vld [vmem:[%s0 + $0xd4] sm:$0xf]
      %v958 = vld [vmem:[%s0 + $0xd8] sm:$0xf]
      %v959 = vld [vmem:[%s0 + $0xdc] sm:$0xf]
      %v960 = vld [vmem:[%s0 + $0xe0] sm:$0xf]
      %v961 = vld [vmem:[%s0 + $0xe4] sm:$0xf]
      %v962 = vld [vmem:[%s0 + $0xe8] sm:$0xf]
      %v963 = vld [vmem:[%s0 + $0xec] sm:$0xf]
      %v964 = vld [vmem:[%s0 + $0xf0] sm:$0xf]
      %v965 = vld [vmem:[%s0 + $0xf4] sm:$0xf]
      %v966 = vld [vmem:[%s0 + $0xf8] sm:$0xf]
      %v967 = vld [vmem:[%s0 + $0xfc] sm:$0xf]
      %v968 = vld [vmem:[%s1] sm:$0x1]
      %v970 = vlaneseq
      %v971 = vshrl.u32 %v970, 7
      %v972 = vsub.s32 0, %v971
      %v973 = vrot.slane %v968, %v972
      %v997 = vunpack.c.l.b16 %v882
      %v998 = vunpack.c.h.b16 %v882
      %v999 = vunpack.c.l.b16 %v883
      %v1000 = vunpack.c.h.b16 %v883
      %v1001 = vunpack.c.l.b16 %v884
      %v1002 = vunpack.c.h.b16 %v884
      %v1003 = vunpack.c.l.b16 %v885
      %v1004 = vunpack.c.h.b16 %v885
      %v1005 = vunpack.c.l.b16 %v886
      %v1006 = vunpack.c.h.b16 %v886
      %v1007 = vunpack.c.l.b16 %v887
      %v1008 = vunpack.c.h.b16 %v887
      %v1009 = vunpack.c.l.b16 %v888
      %v1010 = vunpack.c.h.b16 %v888
      %v1011 = vunpack.c.l.b16 %v889
      %v1012 = vunpack.c.h.b16 %v889
      %v1013 = vunpack.c.l.b16 %v890
      %v1014 = vunpack.c.h.b16 %v890
      %v1015 = vunpack.c.l.b16 %v891
      %v1016 = vunpack.c.h.b16 %v891
      %v1017 = vunpack.c.l.b16 %v892
      %v1018 = vunpack.c.h.b16 %v892
      %v1019 = vunpack.c.l.b16 %v893
      %v1020 = vunpack.c.h.b16 %v893
      %v1021 = vunpack.c.l.b16 %v894
      %v1022 = vunpack.c.h.b16 %v894
      %v1023 = vunpack.c.l.b16 %v895
      %v1024 = vunpack.c.h.b16 %v895
      %v1025 = vunpack.c.l.b16 %v896
      %v1026 = vunpack.c.h.b16 %v896
      %v1027 = vunpack.c.l.b16 %v897
      %v1028 = vunpack.c.h.b16 %v897
      %v1029 = vunpack.c.l.b16 %v898
      %v1030 = vunpack.c.h.b16 %v898
      %v1031 = vunpack.c.l.b16 %v899
      %v1032 = vunpack.c.h.b16 %v899
      %v1033 = vunpack.c.l.b16 %v900
      %v1034 = vunpack.c.h.b16 %v900
      %v1035 = vunpack.c.l.b16 %v901
      %v1036 = vunpack.c.h.b16 %v901
      %v1037 = vunpack.c.l.b16 %v902
      %v1038 = vunpack.c.h.b16 %v902
      %v1039 = vunpack.c.l.b16 %v903
      %v1040 = vunpack.c.h.b16 %v903
      %v1041 = vpack.c.b16 %v1001, %v997
      %v1042 = vpack.c.b16 %v1002, %v998
      %v1043 = vpack.c.b16 %v1003, %v999
      %v1044 = vpack.c.b16 %v1004, %v1000
      %v1045 = vpack.c.b16 %v1009, %v1005
      %v1046 = vpack.c.b16 %v1010, %v1006
      %v1047 = vpack.c.b16 %v1011, %v1007
      %v1048 = vpack.c.b16 %v1012, %v1008
      %v1049 = vpack.c.b16 %v1017, %v1013
      %v1050 = vpack.c.b16 %v1018, %v1014
      %v1051 = vpack.c.b16 %v1019, %v1015
      %v1052 = vpack.c.b16 %v1020, %v1016
      %v1053 = vpack.c.b16 %v1025, %v1021
      %v1054 = vpack.c.b16 %v1026, %v1022
      %v1055 = vpack.c.b16 %v1027, %v1023
      %v1056 = vpack.c.b16 %v1028, %v1024
      %v1057 = vpack.c.b16 %v1033, %v1029
      %v1058 = vpack.c.b16 %v1034, %v1030
      %v1059 = vpack.c.b16 %v1035, %v1031
      %v1060 = vpack.c.b16 %v1036, %v1032
      %v1061 = vpack.c.b16 %v1037, %v1037
      %v1062 = vpack.c.b16 %v1038, %v1038
      %v1063 = vpack.c.b16 %v1039, %v1039
      %v1064 = vpack.c.b16 %v1040, %v1040
      %v1153 = vunpack.c.l.b16 %v904
      %v1154 = vunpack.c.l.b16 %v905
      %v1155 = vunpack.c.l.b16 %v906
      %v1156 = vunpack.c.l.b16 %v907
      %v1157 = vunpack.c.l.b16 %v908
      %v1158 = vunpack.c.l.b16 %v909
      %v1159 = vunpack.c.l.b16 %v910
      %v1160 = vunpack.c.l.b16 %v911
      %v1161 = vunpack.c.l.b16 %v912
      %v1162 = vunpack.c.l.b16 %v913
      %v1163 = vunpack.c.l.b16 %v914
      %v1164 = vunpack.c.l.b16 %v915
      %v1165 = vunpack.c.l.b16 %v916
      %v1166 = vunpack.c.l.b16 %v917
      %v1167 = vunpack.c.l.b16 %v918
      %v1168 = vunpack.c.l.b16 %v919
      %v1169 = vunpack.c.l.b16 %v920
      %v1170 = vunpack.c.l.b16 %v921
      %v1171 = vunpack.c.l.b16 %v922
      %v1172 = vunpack.c.l.b16 %v923
      %v1173 = vunpack.c.l.b16 %v924
      %v1174 = vunpack.c.l.b16 %v925
      %v1175 = vunpack.c.l.b16 %v926
      %v1176 = vunpack.c.l.b16 %v927
      %v1177 = vunpack.c.l.b16 %v928
      %v1178 = vunpack.c.l.b16 %v929
      %v1179 = vunpack.c.l.b16 %v930
      %v1180 = vunpack.c.l.b16 %v931
      %v1181 = vunpack.c.l.b16 %v932
      %v1182 = vunpack.c.l.b16 %v933
      %v1183 = vunpack.c.l.b16 %v934
      %v1184 = vunpack.c.l.b16 %v935
      %v1185 = vunpack.c.l.b16 %v936
      %v1186 = vunpack.c.l.b16 %v937
      %v1187 = vunpack.c.l.b16 %v938
      %v1188 = vunpack.c.l.b16 %v939
      %v1189 = vunpack.c.l.b16 %v940
      %v1190 = vunpack.c.l.b16 %v941
      %v1191 = vunpack.c.l.b16 %v942
      %v1192 = vunpack.c.l.b16 %v943
      %v1193 = vunpack.c.l.b16 %v944
      %v1194 = vunpack.c.l.b16 %v945
      %v1195 = vunpack.c.l.b16 %v946
      %v1196 = vunpack.c.l.b16 %v947
      %v1197 = vunpack.c.l.b16 %v948
      %v1198 = vunpack.c.l.b16 %v949
      %v1199 = vunpack.c.l.b16 %v950
      %v1200 = vunpack.c.l.b16 %v951
      %v1201 = vunpack.c.l.b16 %v952
      %v1202 = vunpack.c.l.b16 %v953
      %v1203 = vunpack.c.l.b16 %v954
      %v1204 = vunpack.c.l.b16 %v955
      %v1205 = vunpack.c.l.b16 %v956
      %v1206 = vunpack.c.l.b16 %v957
      %v1207 = vunpack.c.l.b16 %v958
      %v1208 = vunpack.c.l.b16 %v959
      %v1209 = vunpack.c.l.b16 %v960
      %v1210 = vunpack.c.l.b16 %v961
      %v1211 = vunpack.c.l.b16 %v962
      %v1212 = vunpack.c.l.b16 %v963
      %v1213 = vunpack.c.l.b16 %v964
      %v1214 = vunpack.c.l.b16 %v965
      %v1215 = vunpack.c.l.b16 %v966
      %v1216 = vunpack.c.l.b16 %v967
      %v1217 = vpack.c.b16 %v1154, %v1153
      %v1218 = vpack.c.b16 %v1156, %v1155
      %v1219 = vpack.c.b16 %v1158, %v1157
      %v1220 = vpack.c.b16 %v1160, %v1159
      %v1221 = vpack.c.b16 %v1162, %v1161
      %v1222 = vpack.c.b16 %v1164, %v1163
      %v1223 = vpack.c.b16 %v1166, %v1165
      %v1224 = vpack.c.b16 %v1168, %v1167
      %v1225 = vpack.c.b16 %v1170, %v1169
      %v1226 = vpack.c.b16 %v1172, %v1171
      %v1227 = vpack.c.b16 %v1174, %v1173
      %v1228 = vpack.c.b16 %v1176, %v1175
      %v1229 = vpack.c.b16 %v1178, %v1177
      %v1230 = vpack.c.b16 %v1180, %v1179
      %v1231 = vpack.c.b16 %v1182, %v1181
      %v1232 = vpack.c.b16 %v1184, %v1183
      %v1233 = vpack.c.b16 %v1186, %v1185
      %v1234 = vpack.c.b16 %v1188, %v1187
      %v1235 = vpack.c.b16 %v1190, %v1189
      %v1236 = vpack.c.b16 %v1192, %v1191
      %v1237 = vpack.c.b16 %v1194, %v1193
      %v1238 = vpack.c.b16 %v1196, %v1195
      %v1239 = vpack.c.b16 %v1198, %v1197
      %v1240 = vpack.c.b16 %v1200, %v1199
      %v1241 = vpack.c.b16 %v1202, %v1201
      %v1242 = vpack.c.b16 %v1204, %v1203
      %v1243 = vpack.c.b16 %v1206, %v1205
      %v1244 = vpack.c.b16 %v1208, %v1207
      %v1245 = vpack.c.b16 %v1210, %v1209
      %v1246 = vpack.c.b16 %v1212, %v1211
      %v1247 = vpack.c.b16 %v1214, %v1213
      %v1248 = vpack.c.b16 %v1216, %v1215
      %1281 = vmatprep.subr.bf16.mxu0 0
      %1282 = vmatpush1.bf16.msra.mxu0 %v1224
      %1283 = vmatprep.subr.bf16.mxu0 0
      %1284 = vmatpush1.bf16.msra.mxu0 %v1223
      %1285 = vmatprep.subr.bf16.mxu0 0
      %1286 = vmatpush1.bf16.msra.mxu0 %v1222
      %1287 = vmatprep.subr.bf16.mxu0 0
      %1288 = vmatpush1.bf16.msra.mxu0 %v1221
      %1289 = vmatprep.subr.bf16.mxu0 0
      %1290 = vmatpush1.bf16.msra.mxu0 %v1220
      %1291 = vmatprep.subr.bf16.mxu0 0
      %1292 = vmatpush1.bf16.msra.mxu0 %v1219
      %1293 = vmatprep.subr.bf16.mxu0 0
      %1294 = vmatpush1.bf16.msra.mxu0 %v1218
      %1295 = vmatprep.subr.bf16.mxu0 0
      %1296 = vmatpush1.bf16.msra.mxu0 %v1217
      %1297 = vmatprep.subr.bf16.mxu0 0
      %1298 = vmatpush2.bf16.msra.mxu0 %v1232
      %1299 = vmatprep.subr.bf16.mxu0 0
      %1300 = vmatpush2.bf16.msra.mxu0 %v1231
      %1301 = vmatprep.subr.bf16.mxu0 0
      %1302 = vmatpush2.bf16.msra.mxu0 %v1230
      %1303 = vmatprep.subr.bf16.mxu0 0
      %1304 = vmatpush2.bf16.msra.mxu0 %v1229
      %1305 = vmatprep.subr.bf16.mxu0 0
      %1306 = vmatpush2.bf16.msra.mxu0 %v1228
      %1307 = vmatprep.subr.bf16.mxu0 0
      %1308 = vmatpush2.bf16.msra.mxu0 %v1227
      %1309 = vmatprep.subr.bf16.mxu0 0
      %1310 = vmatpush2.bf16.msra.mxu0 %v1226
      %1311 = vmatprep.subr.bf16.mxu0 0
      %1312 = vmatpush2.bf16.msra.mxu0 %v1225
      %1313 = vmatprep.mubr.bf16.mxu0 %v1042
      %1314 = vmatmul.mubr.bf16.gmra.mxu0 %v1041
      %v1315 = vpop.f32.mrf.mxu0
      %v1316 = vadd.f32 %v973, %v1315
      %v1317 = vpop.f32.mrf.mxu0
      %v1318 = vpop.f32.mrf.mxu0
      %v1319 = vadd.f32 %v973, %v1318
      %v1320 = vpop.f32.mrf.mxu0
      %1321 = vmatprep.mubr.bf16.mxu0 %v1046
      %1322 = vmatmul.mubr.bf16.gmra.mxu0 %v1045
      %v1323 = vpop.f32.mrf.mxu0
      %v1324 = vadd.f32 %v973, %v1323
      %v1325 = vpop.f32.mrf.mxu0
      %v1326 = vpop.f32.mrf.mxu0
      %v1327 = vadd.f32 %v973, %v1326
      %v1328 = vpop.f32.mrf.mxu0
      %1329 = vmatprep.mubr.bf16.mxu0 %v1050
      %1330 = vmatmul.mubr.bf16.gmra.mxu0 %v1049
      %v1331 = vpop.f32.mrf.mxu0
      %v1332 = vadd.f32 %v973, %v1331
      %v1333 = vpop.f32.mrf.mxu0
      %v1334 = vpop.f32.mrf.mxu0
      %v1335 = vadd.f32 %v973, %v1334
      %v1336 = vpop.f32.mrf.mxu0
      %1337 = vmatprep.mubr.bf16.mxu0 %v1054
      %1338 = vmatmul.mubr.bf16.gmra.mxu0 %v1053
      %v1339 = vpop.f32.mrf.mxu0
      %v1340 = vadd.f32 %v973, %v1339
      %v1341 = vpop.f32.mrf.mxu0
      %v1342 = vpop.f32.mrf.mxu0
      %v1343 = vadd.f32 %v973, %v1342
      %v1344 = vpop.f32.mrf.mxu0
      %1345 = vmatprep.mubr.bf16.mxu0 %v1058
      %1346 = vmatmul.mubr.bf16.gmra.mxu0 %v1057
      %v1347 = vpop.f32.mrf.mxu0
      %v1348 = vadd.f32 %v973, %v1347
      %v1349 = vpop.f32.mrf.mxu0
      %v1350 = vpop.f32.mrf.mxu0
      %v1351 = vadd.f32 %v973, %v1350
      %v1352 = vpop.f32.mrf.mxu0
      %1353 = vmatprep.mubr.bf16.mxu0 %v1062
      %1354 = vmatmul.mubr.bf16.gmra.mxu0 %v1061
      %v1355 = vpop.f32.mrf.mxu0
      %v1356 = vadd.f32 %v973, %v1355
      %v1357 = vpop.f32.mrf.mxu0
      %v1358 = vpop.f32.mrf.mxu0
      %v1359 = vpop.f32.mrf.mxu0
      %1360 = vdwg.mxu0
      %1361 = vmatprep.subr.bf16.mxu0 0
      %1362 = vmatpush1.bf16.msra.mxu0 %v1240
      %1363 = vmatprep.subr.bf16.mxu0 0
      %1364 = vmatpush1.bf16.msra.mxu0 %v1239
      %1365 = vmatprep.subr.bf16.mxu0 0
      %1366 = vmatpush1.bf16.msra.mxu0 %v1238
      %1367 = vmatprep.subr.bf16.mxu0 0
      %1368 = vmatpush1.bf16.msra.mxu0 %v1237
      %1369 = vmatprep.subr.bf16.mxu0 0
      %1370 = vmatpush1.bf16.msra.mxu0 %v1236
      %1371 = vmatprep.subr.bf16.mxu0 0
      %1372 = vmatpush1.bf16.msra.mxu0 %v1235
      %1373 = vmatprep.subr.bf16.mxu0 0
      %1374 = vmatpush1.bf16.msra.mxu0 %v1234
      %1375 = vmatprep.subr.bf16.mxu0 0
      %1376 = vmatpush1.bf16.msra.mxu0 %v1233
      %1377 = vmatprep.subr.bf16.mxu0 0
      %1378 = vmatpush2.bf16.msra.mxu0 %v1248
      %1379 = vmatprep.subr.bf16.mxu0 0
      %1380 = vmatpush2.bf16.msra.mxu0 %v1247
      %1381 = vmatprep.subr.bf16.mxu0 0
      %1382 = vmatpush2.bf16.msra.mxu0 %v1246
      %1383 = vmatprep.subr.bf16.mxu0 0
      %1384 = vmatpush2.bf16.msra.mxu0 %v1245
      %1385 = vmatprep.subr.bf16.mxu0 0
      %1386 = vmatpush2.bf16.msra.mxu0 %v1244
      %1387 = vmatprep.subr.bf16.mxu0 0
      %1388 = vmatpush2.bf16.msra.mxu0 %v1243
      %1389 = vmatprep.subr.bf16.mxu0 0
      %1390 = vmatpush2.bf16.msra.mxu0 %v1242
      %1391 = vmatprep.subr.bf16.mxu0 0
      %1392 = vmatpush2.bf16.msra.mxu0 %v1241
      %1393 = vmatprep.mubr.bf16.mxu0 %v1044
      %1394 = vmatmul.mubr.bf16.gmra.mxu0 %v1043
      %v1395 = vpop.f32.mrf.mxu0
      %v1396 = vadd.f32 %v1316, %v1395
      %v1397 = vpop.f32.mrf.mxu0
      %v1398 = vpop.f32.mrf.mxu0
      %v1399 = vadd.f32 %v1319, %v1398
      %v1400 = vpop.f32.mrf.mxu0
      %1401 = vmatprep.mubr.bf16.mxu0 %v1048
      %1402 = vmatmul.mubr.bf16.gmra.mxu0 %v1047
      %v1403 = vpop.f32.mrf.mxu0
      %v1404 = vadd.f32 %v1324, %v1403
      %v1405 = vpop.f32.mrf.mxu0
      %v1406 = vpop.f32.mrf.mxu0
      %v1407 = vadd.f32 %v1327, %v1406
      %v1408 = vpop.f32.mrf.mxu0
      %1409 = vmatprep.mubr.bf16.mxu0 %v1052
      %1410 = vmatmul.mubr.bf16.gmra.mxu0 %v1051
      %v1411 = vpop.f32.mrf.mxu0
      %v1412 = vadd.f32 %v1332, %v1411
      %v1413 = vpop.f32.mrf.mxu0
      %v1414 = vpop.f32.mrf.mxu0
      %v1415 = vadd.f32 %v1335, %v1414
      %v1416 = vpop.f32.mrf.mxu0
      %1417 = vmatprep.mubr.bf16.mxu0 %v1056
      %1418 = vmatmul.mubr.bf16.gmra.mxu0 %v1055
      %v1419 = vpop.f32.mrf.mxu0
      %v1420 = vadd.f32 %v1340, %v1419
      %v1421 = vpop.f32.mrf.mxu0
      %v1422 = vpop.f32.mrf.mxu0
      %v1423 = vadd.f32 %v1343, %v1422
      %v1424 = vpop.f32.mrf.mxu0
      %1425 = vmatprep.mubr.bf16.mxu0 %v1060
      %1426 = vmatmul.mubr.bf16.gmra.mxu0 %v1059
      %v1427 = vpop.f32.mrf.mxu0
      %v1428 = vadd.f32 %v1348, %v1427
      %v1429 = vpop.f32.mrf.mxu0
      %v1430 = vpop.f32.mrf.mxu0
      %v1431 = vadd.f32 %v1351, %v1430
      %v1432 = vpop.f32.mrf.mxu0
      %1433 = vmatprep.mubr.bf16.mxu0 %v1064
      %1434 = vmatmul.mubr.bf16.gmra.mxu0 %v1063
      %v1435 = vpop.f32.mrf.mxu0
      %v1436 = vadd.f32 %v1356, %v1435
      %v1437 = vpop.f32.mrf.mxu0
      %v1438 = vpop.f32.mrf.mxu0
      %v1439 = vpop.f32.mrf.mxu0
      %1440 = vdwg.mxu0
      %v1441 = vmax.f32 %v1396, 0.0
      %v1442 = vmax.f32 %v1399, 0.0
      %v1443 = vmax.f32 %v1404, 0.0
      %v1444 = vmax.f32 %v1407, 0.0
      %v1445 = vmax.f32 %v1412, 0.0
      %v1446 = vmax.f32 %v1415, 0.0
      %v1447 = vmax.f32 %v1420, 0.0
      %v1448 = vmax.f32 %v1423, 0.0
      %v1449 = vmax.f32 %v1428, 0.0
      %v1450 = vmax.f32 %v1431, 0.0
      %v1451 = vmax.f32 %v1436, 0.0
      %vm1452 = vcmask 523264
      %1453 = vst.msk [vmem:[#allocation2] sm:$0xff] %vm1452, %v1441
      %1454 = vst.msk [vmem:[#allocation2 + $0x8] sm:$0xff] %vm1452, %v1442
      %1455 = vst.msk [vmem:[#allocation2 + $0x10] sm:$0xff] %vm1452, %v1443
      %1456 = vst.msk [vmem:[#allocation2 + $0x18] sm:$0xff] %vm1452, %v1444
      %1457 = vst.msk [vmem:[#allocation2 + $0x20] sm:$0xff] %vm1452, %v1445
      %1458 = vst.msk [vmem:[#allocation2 + $0x28] sm:$0xff] %vm1452, %v1446
      %1459 = vst.msk [vmem:[#allocation2 + $0x30] sm:$0xff] %vm1452, %v1447
      %1460 = vst.msk [vmem:[#allocation2 + $0x38] sm:$0xff] %vm1452, %v1448
      %1461 = vst.msk [vmem:[#allocation2 + $0x40] sm:$0xff] %vm1452, %v1449
      %1462 = vst.msk [vmem:[#allocation2 + $0x48] sm:$0xff] %vm1452, %v1450
      %1463 = vst.msk [vmem:[#allocation2 + $0x50] sm:$0xff] %vm1452, %v1451
      %v1464 = vld [vmem:[%s3] sm:$0x1]
      %v1465 = vld [vmem:[%s2] sm:$0xf]
      %v1466 = vld [vmem:[%s2 + $0x4] sm:$0xf]
      %v1467 = vld [vmem:[%s2 + $0x8] sm:$0xf]
      %v1468 = vld [vmem:[%s2 + $0xc] sm:$0xf]
      %v1469 = vld [vmem:[%s2 + $0x10] sm:$0xf]
      %v1470 = vld [vmem:[%s2 + $0x14] sm:$0xf]
      %v1471 = vld [vmem:[%s2 + $0x18] sm:$0xf]
      %v1472 = vld [vmem:[%s2 + $0x1c] sm:$0xf]
      %s1473 = scalar_lea.vmem %s2, 32
      %v1474 = vld [vmem:[%s1473] sm:$0xf]
      %v1475 = vld [vmem:[%s1473 + $0x4] sm:$0xf]
      %v1476 = vld [vmem:[%s1473 + $0x8] sm:$0xf]
      %v1477 = vld [vmem:[%s1473 + $0xc] sm:$0xf]
      %v1478 = vld [vmem:[%s1473 + $0x10] sm:$0xf]
      %v1479 = vld [vmem:[%s1473 + $0x14] sm:$0xf]
      %v1480 = vld [vmem:[%s1473 + $0x18] sm:$0xf]
      %v1481 = vld [vmem:[%s1473 + $0x1c] sm:$0xf]
      %s1482 = scalar_lea.vmem %s2, 64
      %v1483 = vld [vmem:[%s1482] sm:$0xf]
      %v1484 = vld [vmem:[%s1482 + $0x4] sm:$0xf]
      %v1485 = vld [vmem:[%s1482 + $0x8] sm:$0xf]
      %v1486 = vld [vmem:[%s1482 + $0xc] sm:$0xf]
      %v1487 = vld [vmem:[%s1482 + $0x10] sm:$0xf]
      %v1488 = vld [vmem:[%s1482 + $0x14] sm:$0xf]
      %v1489 = vld [vmem:[%s1482 + $0x18] sm:$0xf]
      %v1490 = vld [vmem:[%s1482 + $0x1c] sm:$0xf]
      %s1491 = scalar_lea.vmem %s2, 96
      %v1492 = vld [vmem:[%s1491] sm:$0xf]
      %v1493 = vld [vmem:[%s1491 + $0x4] sm:$0xf]
      %v1494 = vld [vmem:[%s1491 + $0x8] sm:$0xf]
      %v1495 = vld [vmem:[%s1491 + $0xc] sm:$0xf]
      %v1496 = vld [vmem:[%s1491 + $0x10] sm:$0xf]
      %v1497 = vld [vmem:[%s1491 + $0x14] sm:$0xf]
      %v1498 = vld [vmem:[%s1491 + $0x18] sm:$0xf]
      %v1499 = vld [vmem:[%s1491 + $0x1c] sm:$0xf]
      %v1500 = vld [vmem:[#allocation2] sm:$0xff]
      %v1501 = vpack.c.bf16 %v1500, %v1500
      %v1510 = vunpack.c.l.b16 %v1465
      %v1511 = vunpack.c.l.b16 %v1466
      %v1512 = vunpack.c.l.b16 %v1467
      %v1513 = vunpack.c.l.b16 %v1468
      %v1514 = vunpack.c.l.b16 %v1469
      %v1515 = vunpack.c.l.b16 %v1470
      %v1516 = vunpack.c.l.b16 %v1471
      %v1517 = vunpack.c.l.b16 %v1472
      %v1518 = vpack.c.b16 %v1511, %v1510
      %v1519 = vpack.c.b16 %v1513, %v1512
      %v1520 = vpack.c.b16 %v1515, %v1514
      %v1521 = vpack.c.b16 %v1517, %v1516
      %v1527 = vsel %vm1452, %v1501, 0
      %1529 = vmatprep.subr.bf16.mxu0 0
      %1530 = vmatpush1.bf16.msra.mxu0 0
      %1531 = vmatprep.subr.bf16.mxu0 0
      %1532 = vmatpush1.bf16.msra.mxu0 0
      %1533 = vmatprep.subr.bf16.mxu0 0
      %1534 = vmatpush1.bf16.msra.mxu0 0
      %1535 = vmatprep.subr.bf16.mxu0 0
      %1536 = vmatpush1.bf16.msra.mxu0 0
      %1537 = vmatprep.subr.bf16.mxu0 0
      %1538 = vmatpush1.bf16.msra.mxu0 %v1521
      %1539 = vmatprep.subr.bf16.mxu0 0
      %1540 = vmatpush1.bf16.msra.mxu0 %v1520
      %1541 = vmatprep.subr.bf16.mxu0 0
      %1542 = vmatpush1.bf16.msra.mxu0 %v1519
      %1543 = vmatprep.subr.bf16.mxu0 0
      %1544 = vmatpush1.bf16.msra.mxu0 %v1518
      %1545 = vmatprep.subr.bf16.mxu0 0
      %1546 = vmatpush2.bf16.msra.mxu0 0
      %1547 = vmatprep.subr.bf16.mxu0 0
      %1548 = vmatpush2.bf16.msra.mxu0 0
      %1549 = vmatprep.subr.bf16.mxu0 0
      %1550 = vmatpush2.bf16.msra.mxu0 0
      %1551 = vmatprep.subr.bf16.mxu0 0
      %1552 = vmatpush2.bf16.msra.mxu0 0
      %1553 = vmatprep.subr.bf16.mxu0 0
      %1554 = vmatpush2.bf16.msra.mxu0 0
      %1555 = vmatprep.subr.bf16.mxu0 0
      %1556 = vmatpush2.bf16.msra.mxu0 0
      %1557 = vmatprep.subr.bf16.mxu0 0
      %1558 = vmatpush2.bf16.msra.mxu0 0
      %1559 = vmatprep.subr.bf16.mxu0 0
      %1560 = vmatpush2.bf16.msra.mxu0 0
      %1561 = vmatprep.mubr.bf16.mxu0 0
      %1562 = vmatmul.mubr.bf16.gmra.mxu0 %v1527
      %v1563 = vpop.f32.mrf.mxu0
      %v1564 = vadd.f32 0.0, %v1563
      %v1565 = vpop.f32.mrf.mxu0
      %v1566 = vpop.f32.mrf.mxu0
      %v1567 = vpop.f32.mrf.mxu0
      %1568 = vdwg.mxu0
      %v1570 = vlaneseq
      %v1571 = vshrl.u32 %v1570, 7
      %v1572 = vsub.s32 0, %v1571
      %v1573 = vrot.slane %v1464, %v1572
      %v1575 = vadd.f32 %v1573, %v1564
      %v1576 = vld [vmem:[#allocation2 + $0x1] sm:$0xff]
      %v1577 = vpack.c.bf16 %v1576, %v1576
      %v1586 = vunpack.c.l.b16 %v1474
      %v1587 = vunpack.c.l.b16 %v1475
      %v1588 = vunpack.c.l.b16 %v1476
      %v1589 = vunpack.c.l.b16 %v1477
      %v1590 = vunpack.c.l.b16 %v1478
      %v1591 = vunpack.c.l.b16 %v1479
      %v1592 = vunpack.c.l.b16 %v1480
      %v1593 = vunpack.c.l.b16 %v1481
      %v1594 = vpack.c.b16 %v1587, %v1586
      %v1595 = vpack.c.b16 %v1589, %v1588
      %v1596 = vpack.c.b16 %v1591, %v1590
      %v1597 = vpack.c.b16 %v1593, %v1592
      %v1603 = vsel %vm1452, %v1577, 0
      %1605 = vmatprep.subr.bf16.mxu0 0
      %1606 = vmatpush1.bf16.msra.mxu0 0
      %1607 = vmatprep.subr.bf16.mxu0 0
      %1608 = vmatpush1.bf16.msra.mxu0 0
      %1609 = vmatprep.subr.bf16.mxu0 0
      %1610 = vmatpush1.bf16.msra.mxu0 0
      %1611 = vmatprep.subr.bf16.mxu0 0
      %1612 = vmatpush1.bf16.msra.mxu0 0
      %1613 = vmatprep.subr.bf16.mxu0 0
      %1614 = vmatpush1.bf16.msra.mxu0 %v1597
      %1615 = vmatprep.subr.bf16.mxu0 0
      %1616 = vmatpush1.bf16.msra.mxu0 %v1596
      %1617 = vmatprep.subr.bf16.mxu0 0
      %1618 = vmatpush1.bf16.msra.mxu0 %v1595
      %1619 = vmatprep.subr.bf16.mxu0 0
      %1620 = vmatpush1.bf16.msra.mxu0 %v1594
      %1621 = vmatprep.subr.bf16.mxu0 0
      %1622 = vmatpush2.bf16.msra.mxu0 0
      %1623 = vmatprep.subr.bf16.mxu0 0
      %1624 = vmatpush2.bf16.msra.mxu0 0
      %1625 = vmatprep.subr.bf16.mxu0 0
      %1626 = vmatpush2.bf16.msra.mxu0 0
      %1627 = vmatprep.subr.bf16.mxu0 0
      %1628 = vmatpush2.bf16.msra.mxu0 0
      %1629 = vmatprep.subr.bf16.mxu0 0
      %1630 = vmatpush2.bf16.msra.mxu0 0
      %1631 = vmatprep.subr.bf16.mxu0 0
      %1632 = vmatpush2.bf16.msra.mxu0 0
      %1633 = vmatprep.subr.bf16.mxu0 0
      %1634 = vmatpush2.bf16.msra.mxu0 0
      %1635 = vmatprep.subr.bf16.mxu0 0
      %1636 = vmatpush2.bf16.msra.mxu0 0
      %1637 = vmatprep.mubr.bf16.mxu0 0
      %1638 = vmatmul.mubr.bf16.gmra.mxu0 %v1603
      %v1639 = vpop.f32.mrf.mxu0
      %v1640 = vadd.f32 0.0, %v1639
      %v1641 = vpop.f32.mrf.mxu0
      %v1642 = vpop.f32.mrf.mxu0
      %v1643 = vpop.f32.mrf.mxu0
      %1644 = vdwg.mxu0
      %v1645 = vadd.f32 %v1575, %v1640
      %v1646 = vld [vmem:[#allocation2 + $0x9] sm:$0xff]
      %v1647 = vpack.c.bf16 %v1646, %v1646
      %v1656 = vunpack.c.l.b16 %v1483
      %v1657 = vunpack.c.l.b16 %v1484
      %v1658 = vunpack.c.l.b16 %v1485
      %v1659 = vunpack.c.l.b16 %v1486
      %v1660 = vunpack.c.l.b16 %v1487
      %v1661 = vunpack.c.l.b16 %v1488
      %v1662 = vunpack.c.l.b16 %v1489
      %v1663 = vunpack.c.l.b16 %v1490
      %v1664 = vpack.c.b16 %v1657, %v1656
      %v1665 = vpack.c.b16 %v1659, %v1658
      %v1666 = vpack.c.b16 %v1661, %v1660
      %v1667 = vpack.c.b16 %v1663, %v1662
      %v1673 = vsel %vm1452, %v1647, 0
      %1675 = vmatprep.subr.bf16.mxu0 0
      %1676 = vmatpush1.bf16.msra.mxu0 0
      %1677 = vmatprep.subr.bf16.mxu0 0
      %1678 = vmatpush1.bf16.msra.mxu0 0
      %1679 = vmatprep.subr.bf16.mxu0 0
      %1680 = vmatpush1.bf16.msra.mxu0 0
      %1681 = vmatprep.subr.bf16.mxu0 0
      %1682 = vmatpush1.bf16.msra.mxu0 0
      %1683 = vmatprep.subr.bf16.mxu0 0
      %1684 = vmatpush1.bf16.msra.mxu0 %v1667
      %1685 = vmatprep.subr.bf16.mxu0 0
      %1686 = vmatpush1.bf16.msra.mxu0 %v1666
      %1687 = vmatprep.subr.bf16.mxu0 0
      %1688 = vmatpush1.bf16.msra.mxu0 %v1665
      %1689 = vmatprep.subr.bf16.mxu0 0
      %1690 = vmatpush1.bf16.msra.mxu0 %v1664
      %1691 = vmatprep.subr.bf16.mxu0 0
      %1692 = vmatpush2.bf16.msra.mxu0 0
      %1693 = vmatprep.subr.bf16.mxu0 0
      %1694 = vmatpush2.bf16.msra.mxu0 0
      %1695 = vmatprep.subr.bf16.mxu0 0
      %1696 = vmatpush2.bf16.msra.mxu0 0
      %1697 = vmatprep.subr.bf16.mxu0 0
      %1698 = vmatpush2.bf16.msra.mxu0 0
      %1699 = vmatprep.subr.bf16.mxu0 0
      %1700 = vmatpush2.bf16.msra.mxu0 0
      %1701 = vmatprep.subr.bf16.mxu0 0
      %1702 = vmatpush2.bf16.msra.mxu0 0
      %1703 = vmatprep.subr.bf16.mxu0 0
      %1704 = vmatpush2.bf16.msra.mxu0 0
      %1705 = vmatprep.subr.bf16.mxu0 0
      %1706 = vmatpush2.bf16.msra.mxu0 0
      %1707 = vmatprep.mubr.bf16.mxu0 0
      %1708 = vmatmul.mubr.bf16.gmra.mxu0 %v1673
      %v1709 = vpop.f32.mrf.mxu0
      %v1710 = vadd.f32 0.0, %v1709
      %v1711 = vpop.f32.mrf.mxu0
      %v1712 = vpop.f32.mrf.mxu0
      %v1713 = vpop.f32.mrf.mxu0
      %1714 = vdwg.mxu0
      %v1715 = vadd.f32 %v1645, %v1710
      %v1716 = vld [vmem:[#allocation2 + $0xa] sm:$0xff]
      %v1717 = vpack.c.bf16 %v1716, %v1716
      %v1726 = vunpack.c.l.b16 %v1492
      %v1727 = vunpack.c.l.b16 %v1493
      %v1728 = vunpack.c.l.b16 %v1494
      %v1729 = vunpack.c.l.b16 %v1495
      %v1730 = vunpack.c.l.b16 %v1496
      %v1731 = vunpack.c.l.b16 %v1497
      %v1732 = vunpack.c.l.b16 %v1498
      %v1733 = vunpack.c.l.b16 %v1499
      %v1734 = vpack.c.b16 %v1727, %v1726
      %v1735 = vpack.c.b16 %v1729, %v1728
      %v1736 = vpack.c.b16 %v1731, %v1730
      %v1737 = vpack.c.b16 %v1733, %v1732
      %v1743 = vsel %vm1452, %v1717, 0
      %1745 = vmatprep.subr.bf16.mxu0 0
      %1746 = vmatpush1.bf16.msra.mxu0 0
      %1747 = vmatprep.subr.bf16.mxu0 0
      %1748 = vmatpush1.bf16.msra.mxu0 0
      %1749 = vmatprep.subr.bf16.mxu0 0
      %1750 = vmatpush1.bf16.msra.mxu0 0
      %1751 = vmatprep.subr.bf16.mxu0 0
      %1752 = vmatpush1.bf16.msra.mxu0 0
      %1753 = vmatprep.subr.bf16.mxu0 0
      %1754 = vmatpush1.bf16.msra.mxu0 %v1737
      %1755 = vmatprep.subr.bf16.mxu0 0
      %1756 = vmatpush1.bf16.msra.mxu0 %v1736
      %1757 = vmatprep.subr.bf16.mxu0 0
      %1758 = vmatpush1.bf16.msra.mxu0 %v1735
      %1759 = vmatprep.subr.bf16.mxu0 0
      %1760 = vmatpush1.bf16.msra.mxu0 %v1734
      %1761 = vmatprep.subr.bf16.mxu0 0
      %1762 = vmatpush2.bf16.msra.mxu0 0
      %1763 = vmatprep.subr.bf16.mxu0 0
      %1764 = vmatpush2.bf16.msra.mxu0 0
      %1765 = vmatprep.subr.bf16.mxu0 0
      %1766 = vmatpush2.bf16.msra.mxu0 0
      %1767 = vmatprep.subr.bf16.mxu0 0
      %1768 = vmatpush2.bf16.msra.mxu0 0
      %1769 = vmatprep.subr.bf16.mxu0 0
      %1770 = vmatpush2.bf16.msra.mxu0 0
      %1771 = vmatprep.subr.bf16.mxu0 0
      %1772 = vmatpush2.bf16.msra.mxu0 0
      %1773 = vmatprep.subr.bf16.mxu0 0
      %1774 = vmatpush2.bf16.msra.mxu0 0
      %1775 = vmatprep.subr.bf16.mxu0 0
      %1776 = vmatpush2.bf16.msra.mxu0 0
      %1777 = vmatprep.mubr.bf16.mxu0 0
      %1778 = vmatmul.mubr.bf16.gmra.mxu0 %v1743
      %v1779 = vpop.f32.mrf.mxu0
      %v1780 = vadd.f32 0.0, %v1779
      %v1781 = vpop.f32.mrf.mxu0
      %v1782 = vpop.f32.mrf.mxu0
      %v1783 = vpop.f32.mrf.mxu0
      %1784 = vdwg.mxu0
      %v1785 = vadd.f32 %v1715, %v1780
      %v1786 = vmax.f32 %v1785, 0.0
      %v1787 = vpack.c.bf16 %v1786, %v1786
      %vm1788 = vcmask 519168
      %1789 = vst.msk [vmem:[%s230] sm:$0xf] %vm1788, %v1787
      %v1790 = vld [vmem:[#allocation2 + $0x9] sm:$0xff]
      %v1791 = vpack.c.bf16 %v1790, %v1790
      %v1793 = vsel %vm1452, %v1791, 0
      %1795 = vmatprep.subr.bf16.mxu0 0
      %1796 = vmatpush1.bf16.msra.mxu0 0
      %1797 = vmatprep.subr.bf16.mxu0 0
      %1798 = vmatpush1.bf16.msra.mxu0 0
      %1799 = vmatprep.subr.bf16.mxu0 0
      %1800 = vmatpush1.bf16.msra.mxu0 0
      %1801 = vmatprep.subr.bf16.mxu0 0
      %1802 = vmatpush1.bf16.msra.mxu0 0
      %1803 = vmatprep.subr.bf16.mxu0 0
      %1804 = vmatpush1.bf16.msra.mxu0 %v1521
      %1805 = vmatprep.subr.bf16.mxu0 0
      %1806 = vmatpush1.bf16.msra.mxu0 %v1520
      %1807 = vmatprep.subr.bf16.mxu0 0
      %1808 = vmatpush1.bf16.msra.mxu0 %v1519
      %1809 = vmatprep.subr.bf16.mxu0 0
      %1810 = vmatpush1.bf16.msra.mxu0 %v1518
      %1811 = vmatprep.subr.bf16.mxu0 0
      %1812 = vmatpush2.bf16.msra.mxu0 0
      %1813 = vmatprep.subr.bf16.mxu0 0
      %1814 = vmatpush2.bf16.msra.mxu0 0
      %1815 = vmatprep.subr.bf16.mxu0 0
      %1816 = vmatpush2.bf16.msra.mxu0 0
      %1817 = vmatprep.subr.bf16.mxu0 0
      %1818 = vmatpush2.bf16.msra.mxu0 0
      %1819 = vmatprep.subr.bf16.mxu0 0
      %1820 = vmatpush2.bf16.msra.mxu0 0
      %1821 = vmatprep.subr.bf16.mxu0 0
      %1822 = vmatpush2.bf16.msra.mxu0 0
      %1823 = vmatprep.subr.bf16.mxu0 0
      %1824 = vmatpush2.bf16.msra.mxu0 0
      %1825 = vmatprep.subr.bf16.mxu0 0
      %1826 = vmatpush2.bf16.msra.mxu0 0
      %1827 = vmatprep.mubr.bf16.mxu0 0
      %1828 = vmatmul.mubr.bf16.gmra.mxu0 %v1793
      %v1829 = vpop.f32.mrf.mxu0
      %v1830 = vadd.f32 0.0, %v1829
      %v1831 = vpop.f32.mrf.mxu0
      %v1832 = vpop.f32.mrf.mxu0
      %v1833 = vpop.f32.mrf.mxu0
      %1834 = vdwg.mxu0
      %v1835 = vadd.f32 %v1573, %v1830
      %v1836 = vld [vmem:[#allocation2 + $0xa] sm:$0xff]
      %v1837 = vpack.c.bf16 %v1836, %v1836
      %v1839 = vsel %vm1452, %v1837, 0
      %1841 = vmatprep.subr.bf16.mxu0 0
      %1842 = vmatpush1.bf16.msra.mxu0 0
      %1843 = vmatprep.subr.bf16.mxu0 0
      %1844 = vmatpush1.bf16.msra.mxu0 0
      %1845 = vmatprep.subr.bf16.mxu0 0
      %1846 = vmatpush1.bf16.msra.mxu0 0
      %1847 = vmatprep.subr.bf16.mxu0 0
      %1848 = vmatpush1.bf16.msra.mxu0 0
      %1849 = vmatprep.subr.bf16.mxu0 0
      %1850 = vmatpush1.bf16.msra.mxu0 %v1597
      %1851 = vmatprep.subr.bf16.mxu0 0
      %1852 = vmatpush1.bf16.msra.mxu0 %v1596
      %1853 = vmatprep.subr.bf16.mxu0 0
      %1854 = vmatpush1.bf16.msra.mxu0 %v1595
      %1855 = vmatprep.subr.bf16.mxu0 0
      %1856 = vmatpush1.bf16.msra.mxu0 %v1594
      %1857 = vmatprep.subr.bf16.mxu0 0
      %1858 = vmatpush2.bf16.msra.mxu0 0
      %1859 = vmatprep.subr.bf16.mxu0 0
      %1860 = vmatpush2.bf16.msra.mxu0 0
      %1861 = vmatprep.subr.bf16.mxu0 0
      %1862 = vmatpush2.bf16.msra.mxu0 0
      %1863 = vmatprep.subr.bf16.mxu0 0
      %1864 = vmatpush2.bf16.msra.mxu0 0
      %1865 = vmatprep.subr.bf16.mxu0 0
      %1866 = vmatpush2.bf16.msra.mxu0 0
      %1867 = vmatprep.subr.bf16.mxu0 0
      %1868 = vmatpush2.bf16.msra.mxu0 0
      %1869 = vmatprep.subr.bf16.mxu0 0
      %1870 = vmatpush2.bf16.msra.mxu0 0
      %1871 = vmatprep.subr.bf16.mxu0 0
      %1872 = vmatpush2.bf16.msra.mxu0 0
      %1873 = vmatprep.mubr.bf16.mxu0 0
      %1874 = vmatmul.mubr.bf16.gmra.mxu0 %v1839
      %v1875 = vpop.f32.mrf.mxu0
      %v1876 = vadd.f32 0.0, %v1875
      %v1877 = vpop.f32.mrf.mxu0
      %v1878 = vpop.f32.mrf.mxu0
      %v1879 = vpop.f32.mrf.mxu0
      %1880 = vdwg.mxu0
      %v1881 = vadd.f32 %v1835, %v1876
      %v1882 = vld [vmem:[#allocation2 + $0x12] sm:$0xff]
      %v1883 = vpack.c.bf16 %v1882, %v1882
      %v1885 = vsel %vm1452, %v1883, 0
      %1887 = vmatprep.subr.bf16.mxu0 0
      %1888 = vmatpush1.bf16.msra.mxu0 0
      %1889 = vmatprep.subr.bf16.mxu0 0
      %1890 = vmatpush1.bf16.msra.mxu0 0
      %1891 = vmatprep.subr.bf16.mxu0 0
      %1892 = vmatpush1.bf16.msra.mxu0 0
      %1893 = vmatprep.subr.bf16.mxu0 0
      %1894 = vmatpush1.bf16.msra.mxu0 0
      %1895 = vmatprep.subr.bf16.mxu0 0
      %1896 = vmatpush1.bf16.msra.mxu0 %v1667
      %1897 = vmatprep.subr.bf16.mxu0 0
      %1898 = vmatpush1.bf16.msra.mxu0 %v1666
      %1899 = vmatprep.subr.bf16.mxu0 0
      %1900 = vmatpush1.bf16.msra.mxu0 %v1665
      %1901 = vmatprep.subr.bf16.mxu0 0
      %1902 = vmatpush1.bf16.msra.mxu0 %v1664
      %1903 = vmatprep.subr.bf16.mxu0 0
      %1904 = vmatpush2.bf16.msra.mxu0 0
      %1905 = vmatprep.subr.bf16.mxu0 0
      %1906 = vmatpush2.bf16.msra.mxu0 0
      %1907 = vmatprep.subr.bf16.mxu0 0
      %1908 = vmatpush2.bf16.msra.mxu0 0
      %1909 = vmatprep.subr.bf16.mxu0 0
      %1910 = vmatpush2.bf16.msra.mxu0 0
      %1911 = vmatprep.subr.bf16.mxu0 0
      %1912 = vmatpush2.bf16.msra.mxu0 0
      %1913 = vmatprep.subr.bf16.mxu0 0
      %1914 = vmatpush2.bf16.msra.mxu0 0
      %1915 = vmatprep.subr.bf16.mxu0 0
      %1916 = vmatpush2.bf16.msra.mxu0 0
      %1917 = vmatprep.subr.bf16.mxu0 0
      %1918 = vmatpush2.bf16.msra.mxu0 0
      %1919 = vmatprep.mubr.bf16.mxu0 0
      %1920 = vmatmul.mubr.bf16.gmra.mxu0 %v1885
      %v1921 = vpop.f32.mrf.mxu0
      %v1922 = vadd.f32 0.0, %v1921
      %v1923 = vpop.f32.mrf.mxu0
      %v1924 = vpop.f32.mrf.mxu0
      %v1925 = vpop.f32.mrf.mxu0
      %1926 = vdwg.mxu0
      %v1927 = vadd.f32 %v1881, %v1922
      %v1928 = vld [vmem:[#allocation2 + $0x13] sm:$0xff]
      %v1929 = vpack.c.bf16 %v1928, %v1928
      %v1931 = vsel %vm1452, %v1929, 0
      %1933 = vmatprep.subr.bf16.mxu0 0
      %1934 = vmatpush1.bf16.msra.mxu0 0
      %1935 = vmatprep.subr.bf16.mxu0 0
      %1936 = vmatpush1.bf16.msra.mxu0 0
      %1937 = vmatprep.subr.bf16.mxu0 0
      %1938 = vmatpush1.bf16.msra.mxu0 0
      %1939 = vmatprep.subr.bf16.mxu0 0
      %1940 = vmatpush1.bf16.msra.mxu0 0
      %1941 = vmatprep.subr.bf16.mxu0 0
      %1942 = vmatpush1.bf16.msra.mxu0 %v1737
      %1943 = vmatprep.subr.bf16.mxu0 0
      %1944 = vmatpush1.bf16.msra.mxu0 %v1736
      %1945 = vmatprep.subr.bf16.mxu0 0
      %1946 = vmatpush1.bf16.msra.mxu0 %v1735
      %1947 = vmatprep.subr.bf16.mxu0 0
      %1948 = vmatpush1.bf16.msra.mxu0 %v1734
      %1949 = vmatprep.subr.bf16.mxu0 0
      %1950 = vmatpush2.bf16.msra.mxu0 0
      %1951 = vmatprep.subr.bf16.mxu0 0
      %1952 = vmatpush2.bf16.msra.mxu0 0
      %1953 = vmatprep.subr.bf16.mxu0 0
      %1954 = vmatpush2.bf16.msra.mxu0 0
      %1955 = vmatprep.subr.bf16.mxu0 0
      %1956 = vmatpush2.bf16.msra.mxu0 0
      %1957 = vmatprep.subr.bf16.mxu0 0
      %1958 = vmatpush2.bf16.msra.mxu0 0
      %1959 = vmatprep.subr.bf16.mxu0 0
      %1960 = vmatpush2.bf16.msra.mxu0 0
      %1961 = vmatprep.subr.bf16.mxu0 0
      %1962 = vmatpush2.bf16.msra.mxu0 0
      %1963 = vmatprep.subr.bf16.mxu0 0
      %1964 = vmatpush2.bf16.msra.mxu0 0
      %1965 = vmatprep.mubr.bf16.mxu0 0
      %1966 = vmatmul.mubr.bf16.gmra.mxu0 %v1931
      %v1967 = vpop.f32.mrf.mxu0
      %v1968 = vadd.f32 0.0, %v1967
      %v1969 = vpop.f32.mrf.mxu0
      %v1970 = vpop.f32.mrf.mxu0
      %v1971 = vpop.f32.mrf.mxu0
      %1972 = vdwg.mxu0
      %v1973 = vadd.f32 %v1927, %v1968
      %v1974 = vmax.f32 %v1973, 0.0
      %v1975 = vpack.c.bf16 %v1974, %v1974
      %1976 = vst.msk [vmem:[%s230 + $0x4] sm:$0xf] %vm1788, %v1975
      %v1977 = vld [vmem:[#allocation2 + $0x12] sm:$0xff]
      %v1978 = vpack.c.bf16 %v1977, %v1977
      %v1980 = vsel %vm1452, %v1978, 0
      %1982 = vmatprep.subr.bf16.mxu0 0
      %1983 = vmatpush1.bf16.msra.mxu0 0
      %1984 = vmatprep.subr.bf16.mxu0 0
      %1985 = vmatpush1.bf16.msra.mxu0 0
      %1986 = vmatprep.subr.bf16.mxu0 0
      %1987 = vmatpush1.bf16.msra.mxu0 0
      %1988 = vmatprep.subr.bf16.mxu0 0
      %1989 = vmatpush1.bf16.msra.mxu0 0
      %1990 = vmatprep.subr.bf16.mxu0 0
      %1991 = vmatpush1.bf16.msra.mxu0 %v1521
      %1992 = vmatprep.subr.bf16.mxu0 0
      %1993 = vmatpush1.bf16.msra.mxu0 %v1520
      %1994 = vmatprep.subr.bf16.mxu0 0
      %1995 = vmatpush1.bf16.msra.mxu0 %v1519
      %1996 = vmatprep.subr.bf16.mxu0 0
      %1997 = vmatpush1.bf16.msra.mxu0 %v1518
      %1998 = vmatprep.subr.bf16.mxu0 0
      %1999 = vmatpush2.bf16.msra.mxu0 0
      %2000 = vmatprep.subr.bf16.mxu0 0
      %2001 = vmatpush2.bf16.msra.mxu0 0
      %2002 = vmatprep.subr.bf16.mxu0 0
      %2003 = vmatpush2.bf16.msra.mxu0 0
      %2004 = vmatprep.subr.bf16.mxu0 0
      %2005 = vmatpush2.bf16.msra.mxu0 0
      %2006 = vmatprep.subr.bf16.mxu0 0
      %2007 = vmatpush2.bf16.msra.mxu0 0
      %2008 = vmatprep.subr.bf16.mxu0 0
      %2009 = vmatpush2.bf16.msra.mxu0 0
      %2010 = vmatprep.subr.bf16.mxu0 0
      %2011 = vmatpush2.bf16.msra.mxu0 0
      %2012 = vmatprep.subr.bf16.mxu0 0
      %2013 = vmatpush2.bf16.msra.mxu0 0
      %2014 = vmatprep.mubr.bf16.mxu0 0
      %2015 = vmatmul.mubr.bf16.gmra.mxu0 %v1980
      %v2016 = vpop.f32.mrf.mxu0
      %v2017 = vadd.f32 0.0, %v2016
      %v2018 = vpop.f32.mrf.mxu0
      %v2019 = vpop.f32.mrf.mxu0
      %v2020 = vpop.f32.mrf.mxu0
      %2021 = vdwg.mxu0
      %v2022 = vadd.f32 %v1573, %v2017
      %v2023 = vld [vmem:[#allocation2 + $0x13] sm:$0xff]
      %v2024 = vpack.c.bf16 %v2023, %v2023
      %v2026 = vsel %vm1452, %v2024, 0
      %2028 = vmatprep.subr.bf16.mxu0 0
      %2029 = vmatpush1.bf16.msra.mxu0 0
      %2030 = vmatprep.subr.bf16.mxu0 0
      %2031 = vmatpush1.bf16.msra.mxu0 0
      %2032 = vmatprep.subr.bf16.mxu0 0
      %2033 = vmatpush1.bf16.msra.mxu0 0
      %2034 = vmatprep.subr.bf16.mxu0 0
      %2035 = vmatpush1.bf16.msra.mxu0 0
      %2036 = vmatprep.subr.bf16.mxu0 0
      %2037 = vmatpush1.bf16.msra.mxu0 %v1597
      %2038 = vmatprep.subr.bf16.mxu0 0
      %2039 = vmatpush1.bf16.msra.mxu0 %v1596
      %2040 = vmatprep.subr.bf16.mxu0 0
      %2041 = vmatpush1.bf16.msra.mxu0 %v1595
      %2042 = vmatprep.subr.bf16.mxu0 0
      %2043 = vmatpush1.bf16.msra.mxu0 %v1594
      %2044 = vmatprep.subr.bf16.mxu0 0
      %2045 = vmatpush2.bf16.msra.mxu0 0
      %2046 = vmatprep.subr.bf16.mxu0 0
      %2047 = vmatpush2.bf16.msra.mxu0 0
      %2048 = vmatprep.subr.bf16.mxu0 0
      %2049 = vmatpush2.bf16.msra.mxu0 0
      %2050 = vmatprep.subr.bf16.mxu0 0
      %2051 = vmatpush2.bf16.msra.mxu0 0
      %2052 = vmatprep.subr.bf16.mxu0 0
      %2053 = vmatpush2.bf16.msra.mxu0 0
      %2054 = vmatprep.subr.bf16.mxu0 0
      %2055 = vmatpush2.bf16.msra.mxu0 0
      %2056 = vmatprep.subr.bf16.mxu0 0
      %2057 = vmatpush2.bf16.msra.mxu0 0
      %2058 = vmatprep.subr.bf16.mxu0 0
      %2059 = vmatpush2.bf16.msra.mxu0 0
      %2060 = vmatprep.mubr.bf16.mxu0 0
      %2061 = vmatmul.mubr.bf16.gmra.mxu0 %v2026
      %v2062 = vpop.f32.mrf.mxu0
      %v2063 = vadd.f32 0.0, %v2062
      %v2064 = vpop.f32.mrf.mxu0
      %v2065 = vpop.f32.mrf.mxu0
      %v2066 = vpop.f32.mrf.mxu0
      %2067 = vdwg.mxu0
      %v2068 = vadd.f32 %v2022, %v2063
      %v2069 = vld [vmem:[#allocation2 + $0x1b] sm:$0xff]
      %v2070 = vpack.c.bf16 %v2069, %v2069
      %v2072 = vsel %vm1452, %v2070, 0
      %2074 = vmatprep.subr.bf16.mxu0 0
      %2075 = vmatpush1.bf16.msra.mxu0 0
      %2076 = vmatprep.subr.bf16.mxu0 0
      %2077 = vmatpush1.bf16.msra.mxu0 0
      %2078 = vmatprep.subr.bf16.mxu0 0
      %2079 = vmatpush1.bf16.msra.mxu0 0
      %2080 = vmatprep.subr.bf16.mxu0 0
      %2081 = vmatpush1.bf16.msra.mxu0 0
      %2082 = vmatprep.subr.bf16.mxu0 0
      %2083 = vmatpush1.bf16.msra.mxu0 %v1667
      %2084 = vmatprep.subr.bf16.mxu0 0
      %2085 = vmatpush1.bf16.msra.mxu0 %v1666
      %2086 = vmatprep.subr.bf16.mxu0 0
      %2087 = vmatpush1.bf16.msra.mxu0 %v1665
      %2088 = vmatprep.subr.bf16.mxu0 0
      %2089 = vmatpush1.bf16.msra.mxu0 %v1664
      %2090 = vmatprep.subr.bf16.mxu0 0
      %2091 = vmatpush2.bf16.msra.mxu0 0
      %2092 = vmatprep.subr.bf16.mxu0 0
      %2093 = vmatpush2.bf16.msra.mxu0 0
      %2094 = vmatprep.subr.bf16.mxu0 0
      %2095 = vmatpush2.bf16.msra.mxu0 0
      %2096 = vmatprep.subr.bf16.mxu0 0
      %2097 = vmatpush2.bf16.msra.mxu0 0
      %2098 = vmatprep.subr.bf16.mxu0 0
      %2099 = vmatpush2.bf16.msra.mxu0 0
      %2100 = vmatprep.subr.bf16.mxu0 0
      %2101 = vmatpush2.bf16.msra.mxu0 0
      %2102 = vmatprep.subr.bf16.mxu0 0
      %2103 = vmatpush2.bf16.msra.mxu0 0
      %2104 = vmatprep.subr.bf16.mxu0 0
      %2105 = vmatpush2.bf16.msra.mxu0 0
      %2106 = vmatprep.mubr.bf16.mxu0 0
      %2107 = vmatmul.mubr.bf16.gmra.mxu0 %v2072
      %v2108 = vpop.f32.mrf.mxu0
      %v2109 = vadd.f32 0.0, %v2108
      %v2110 = vpop.f32.mrf.mxu0
      %v2111 = vpop.f32.mrf.mxu0
      %v2112 = vpop.f32.mrf.mxu0
      %2113 = vdwg.mxu0
      %v2114 = vadd.f32 %v2068, %v2109
      %v2115 = vld [vmem:[#allocation2 + $0x1c] sm:$0xff]
      %v2116 = vpack.c.bf16 %v2115, %v2115
      %v2118 = vsel %vm1452, %v2116, 0
      %2120 = vmatprep.subr.bf16.mxu0 0
      %2121 = vmatpush1.bf16.msra.mxu0 0
      %2122 = vmatprep.subr.bf16.mxu0 0
      %2123 = vmatpush1.bf16.msra.mxu0 0
      %2124 = vmatprep.subr.bf16.mxu0 0
      %2125 = vmatpush1.bf16.msra.mxu0 0
      %2126 = vmatprep.subr.bf16.mxu0 0
      %2127 = vmatpush1.bf16.msra.mxu0 0
      %2128 = vmatprep.subr.bf16.mxu0 0
      %2129 = vmatpush1.bf16.msra.mxu0 %v1737
      %2130 = vmatprep.subr.bf16.mxu0 0
      %2131 = vmatpush1.bf16.msra.mxu0 %v1736
      %2132 = vmatprep.subr.bf16.mxu0 0
      %2133 = vmatpush1.bf16.msra.mxu0 %v1735
      %2134 = vmatprep.subr.bf16.mxu0 0
      %2135 = vmatpush1.bf16.msra.mxu0 %v1734
      %2136 = vmatprep.subr.bf16.mxu0 0
      %2137 = vmatpush2.bf16.msra.mxu0 0
      %2138 = vmatprep.subr.bf16.mxu0 0
      %2139 = vmatpush2.bf16.msra.mxu0 0
      %2140 = vmatprep.subr.bf16.mxu0 0
      %2141 = vmatpush2.bf16.msra.mxu0 0
      %2142 = vmatprep.subr.bf16.mxu0 0
      %2143 = vmatpush2.bf16.msra.mxu0 0
      %2144 = vmatprep.subr.bf16.mxu0 0
      %2145 = vmatpush2.bf16.msra.mxu0 0
      %2146 = vmatprep.subr.bf16.mxu0 0
      %2147 = vmatpush2.bf16.msra.mxu0 0
      %2148 = vmatprep.subr.bf16.mxu0 0
      %2149 = vmatpush2.bf16.msra.mxu0 0
      %2150 = vmatprep.subr.bf16.mxu0 0
      %2151 = vmatpush2.bf16.msra.mxu0 0
      %2152 = vmatprep.mubr.bf16.mxu0 0
      %2153 = vmatmul.mubr.bf16.gmra.mxu0 %v2118
      %v2154 = vpop.f32.mrf.mxu0
      %v2155 = vadd.f32 0.0, %v2154
      %v2156 = vpop.f32.mrf.mxu0
      %v2157 = vpop.f32.mrf.mxu0
      %v2158 = vpop.f32.mrf.mxu0
      %2159 = vdwg.mxu0
      %v2160 = vadd.f32 %v2114, %v2155
      %v2161 = vmax.f32 %v2160, 0.0
      %v2162 = vpack.c.bf16 %v2161, %v2161
      %2163 = vst.msk [vmem:[%s230 + $0x8] sm:$0xf] %vm1788, %v2162
      %v2164 = vld [vmem:[#allocation2 + $0x1b] sm:$0xff]
      %v2165 = vpack.c.bf16 %v2164, %v2164
      %v2167 = vsel %vm1452, %v2165, 0
      %2169 = vmatprep.subr.bf16.mxu0 0
      %2170 = vmatpush1.bf16.msra.mxu0 0
      %2171 = vmatprep.subr.bf16.mxu0 0
      %2172 = vmatpush1.bf16.msra.mxu0 0
      %2173 = vmatprep.subr.bf16.mxu0 0
      %2174 = vmatpush1.bf16.msra.mxu0 0
      %2175 = vmatprep.subr.bf16.mxu0 0
      %2176 = vmatpush1.bf16.msra.mxu0 0
      %2177 = vmatprep.subr.bf16.mxu0 0
      %2178 = vmatpush1.bf16.msra.mxu0 %v1521
      %2179 = vmatprep.subr.bf16.mxu0 0
      %2180 = vmatpush1.bf16.msra.mxu0 %v1520
      %2181 = vmatprep.subr.bf16.mxu0 0
      %2182 = vmatpush1.bf16.msra.mxu0 %v1519
      %2183 = vmatprep.subr.bf16.mxu0 0
      %2184 = vmatpush1.bf16.msra.mxu0 %v1518
      %2185 = vmatprep.subr.bf16.mxu0 0
      %2186 = vmatpush2.bf16.msra.mxu0 0
      %2187 = vmatprep.subr.bf16.mxu0 0
      %2188 = vmatpush2.bf16.msra.mxu0 0
      %2189 = vmatprep.subr.bf16.mxu0 0
      %2190 = vmatpush2.bf16.msra.mxu0 0
      %2191 = vmatprep.subr.bf16.mxu0 0
      %2192 = vmatpush2.bf16.msra.mxu0 0
      %2193 = vmatprep.subr.bf16.mxu0 0
      %2194 = vmatpush2.bf16.msra.mxu0 0
      %2195 = vmatprep.subr.bf16.mxu0 0
      %2196 = vmatpush2.bf16.msra.mxu0 0
      %2197 = vmatprep.subr.bf16.mxu0 0
      %2198 = vmatpush2.bf16.msra.mxu0 0
      %2199 = vmatprep.subr.bf16.mxu0 0
      %2200 = vmatpush2.bf16.msra.mxu0 0
      %2201 = vmatprep.mubr.bf16.mxu0 0
      %2202 = vmatmul.mubr.bf16.gmra.mxu0 %v2167
      %v2203 = vpop.f32.mrf.mxu0
      %v2204 = vadd.f32 0.0, %v2203
      %v2205 = vpop.f32.mrf.mxu0
      %v2206 = vpop.f32.mrf.mxu0
      %v2207 = vpop.f32.mrf.mxu0
      %2208 = vdwg.mxu0
      %v2209 = vadd.f32 %v1573, %v2204
      %v2210 = vld [vmem:[#allocation2 + $0x1c] sm:$0xff]
      %v2211 = vpack.c.bf16 %v2210, %v2210
      %v2213 = vsel %vm1452, %v2211, 0
      %2215 = vmatprep.subr.bf16.mxu0 0
      %2216 = vmatpush1.bf16.msra.mxu0 0
      %2217 = vmatprep.subr.bf16.mxu0 0
      %2218 = vmatpush1.bf16.msra.mxu0 0
      %2219 = vmatprep.subr.bf16.mxu0 0
      %2220 = vmatpush1.bf16.msra.mxu0 0
      %2221 = vmatprep.subr.bf16.mxu0 0
      %2222 = vmatpush1.bf16.msra.mxu0 0
      %2223 = vmatprep.subr.bf16.mxu0 0
      %2224 = vmatpush1.bf16.msra.mxu0 %v1597
      %2225 = vmatprep.subr.bf16.mxu0 0
      %2226 = vmatpush1.bf16.msra.mxu0 %v1596
      %2227 = vmatprep.subr.bf16.mxu0 0
      %2228 = vmatpush1.bf16.msra.mxu0 %v1595
      %2229 = vmatprep.subr.bf16.mxu0 0
      %2230 = vmatpush1.bf16.msra.mxu0 %v1594
      %2231 = vmatprep.subr.bf16.mxu0 0
      %2232 = vmatpush2.bf16.msra.mxu0 0
      %2233 = vmatprep.subr.bf16.mxu0 0
      %2234 = vmatpush2.bf16.msra.mxu0 0
      %2235 = vmatprep.subr.bf16.mxu0 0
      %2236 = vmatpush2.bf16.msra.mxu0 0
      %2237 = vmatprep.subr.bf16.mxu0 0
      %2238 = vmatpush2.bf16.msra.mxu0 0
      %2239 = vmatprep.subr.bf16.mxu0 0
      %2240 = vmatpush2.bf16.msra.mxu0 0
      %2241 = vmatprep.subr.bf16.mxu0 0
      %2242 = vmatpush2.bf16.msra.mxu0 0
      %2243 = vmatprep.subr.bf16.mxu0 0
      %2244 = vmatpush2.bf16.msra.mxu0 0
      %2245 = vmatprep.subr.bf16.mxu0 0
      %2246 = vmatpush2.bf16.msra.mxu0 0
      %2247 = vmatprep.mubr.bf16.mxu0 0
      %2248 = vmatmul.mubr.bf16.gmra.mxu0 %v2213
      %v2249 = vpop.f32.mrf.mxu0
      %v2250 = vadd.f32 0.0, %v2249
      %v2251 = vpop.f32.mrf.mxu0
      %v2252 = vpop.f32.mrf.mxu0
      %v2253 = vpop.f32.mrf.mxu0
      %2254 = vdwg.mxu0
      %v2255 = vadd.f32 %v2209, %v2250
      %v2256 = vld [vmem:[#allocation2 + $0x24] sm:$0xff]
      %v2257 = vpack.c.bf16 %v2256, %v2256
      %v2259 = vsel %vm1452, %v2257, 0
      %2261 = vmatprep.subr.bf16.mxu0 0
      %2262 = vmatpush1.bf16.msra.mxu0 0
      %2263 = vmatprep.subr.bf16.mxu0 0
      %2264 = vmatpush1.bf16.msra.mxu0 0
      %2265 = vmatprep.subr.bf16.mxu0 0
      %2266 = vmatpush1.bf16.msra.mxu0 0
      %2267 = vmatprep.subr.bf16.mxu0 0
      %2268 = vmatpush1.bf16.msra.mxu0 0
      %2269 = vmatprep.subr.bf16.mxu0 0
      %2270 = vmatpush1.bf16.msra.mxu0 %v1667
      %2271 = vmatprep.subr.bf16.mxu0 0
      %2272 = vmatpush1.bf16.msra.mxu0 %v1666
      %2273 = vmatprep.subr.bf16.mxu0 0
      %2274 = vmatpush1.bf16.msra.mxu0 %v1665
      %2275 = vmatprep.subr.bf16.mxu0 0
      %2276 = vmatpush1.bf16.msra.mxu0 %v1664
      %2277 = vmatprep.subr.bf16.mxu0 0
      %2278 = vmatpush2.bf16.msra.mxu0 0
      %2279 = vmatprep.subr.bf16.mxu0 0
      %2280 = vmatpush2.bf16.msra.mxu0 0
      %2281 = vmatprep.subr.bf16.mxu0 0
      %2282 = vmatpush2.bf16.msra.mxu0 0
      %2283 = vmatprep.subr.bf16.mxu0 0
      %2284 = vmatpush2.bf16.msra.mxu0 0
      %2285 = vmatprep.subr.bf16.mxu0 0
      %2286 = vmatpush2.bf16.msra.mxu0 0
      %2287 = vmatprep.subr.bf16.mxu0 0
      %2288 = vmatpush2.bf16.msra.mxu0 0
      %2289 = vmatprep.subr.bf16.mxu0 0
      %2290 = vmatpush2.bf16.msra.mxu0 0
      %2291 = vmatprep.subr.bf16.mxu0 0
      %2292 = vmatpush2.bf16.msra.mxu0 0
      %2293 = vmatprep.mubr.bf16.mxu0 0
      %2294 = vmatmul.mubr.bf16.gmra.mxu0 %v2259
      %v2295 = vpop.f32.mrf.mxu0
      %v2296 = vadd.f32 0.0, %v2295
      %v2297 = vpop.f32.mrf.mxu0
      %v2298 = vpop.f32.mrf.mxu0
      %v2299 = vpop.f32.mrf.mxu0
      %2300 = vdwg.mxu0
      %v2301 = vadd.f32 %v2255, %v2296
      %v2302 = vld [vmem:[#allocation2 + $0x25] sm:$0xff]
      %v2303 = vpack.c.bf16 %v2302, %v2302
      %v2305 = vsel %vm1452, %v2303, 0
      %2307 = vmatprep.subr.bf16.mxu0 0
      %2308 = vmatpush1.bf16.msra.mxu0 0
      %2309 = vmatprep.subr.bf16.mxu0 0
      %2310 = vmatpush1.bf16.msra.mxu0 0
      %2311 = vmatprep.subr.bf16.mxu0 0
      %2312 = vmatpush1.bf16.msra.mxu0 0
      %2313 = vmatprep.subr.bf16.mxu0 0
      %2314 = vmatpush1.bf16.msra.mxu0 0
      %2315 = vmatprep.subr.bf16.mxu0 0
      %2316 = vmatpush1.bf16.msra.mxu0 %v1737
      %2317 = vmatprep.subr.bf16.mxu0 0
      %2318 = vmatpush1.bf16.msra.mxu0 %v1736
      %2319 = vmatprep.subr.bf16.mxu0 0
      %2320 = vmatpush1.bf16.msra.mxu0 %v1735
      %2321 = vmatprep.subr.bf16.mxu0 0
      %2322 = vmatpush1.bf16.msra.mxu0 %v1734
      %2323 = vmatprep.subr.bf16.mxu0 0
      %2324 = vmatpush2.bf16.msra.mxu0 0
      %2325 = vmatprep.subr.bf16.mxu0 0
      %2326 = vmatpush2.bf16.msra.mxu0 0
      %2327 = vmatprep.subr.bf16.mxu0 0
      %2328 = vmatpush2.bf16.msra.mxu0 0
      %2329 = vmatprep.subr.bf16.mxu0 0
      %2330 = vmatpush2.bf16.msra.mxu0 0
      %2331 = vmatprep.subr.bf16.mxu0 0
      %2332 = vmatpush2.bf16.msra.mxu0 0
      %2333 = vmatprep.subr.bf16.mxu0 0
      %2334 = vmatpush2.bf16.msra.mxu0 0
      %2335 = vmatprep.subr.bf16.mxu0 0
      %2336 = vmatpush2.bf16.msra.mxu0 0
      %2337 = vmatprep.subr.bf16.mxu0 0
      %2338 = vmatpush2.bf16.msra.mxu0 0
      %2339 = vmatprep.mubr.bf16.mxu0 0
      %2340 = vmatmul.mubr.bf16.gmra.mxu0 %v2305
      %v2341 = vpop.f32.mrf.mxu0
      %v2342 = vadd.f32 0.0, %v2341
      %v2343 = vpop.f32.mrf.mxu0
      %v2344 = vpop.f32.mrf.mxu0
      %v2345 = vpop.f32.mrf.mxu0
      %2346 = vdwg.mxu0
      %v2347 = vadd.f32 %v2301, %v2342
      %v2348 = vmax.f32 %v2347, 0.0
      %v2349 = vpack.c.bf16 %v2348, %v2348
      %2350 = vst.msk [vmem:[%s230 + $0xc] sm:$0xf] %vm1788, %v2349
      %v2351 = vld [vmem:[#allocation2 + $0x24] sm:$0xff]
      %v2352 = vpack.c.bf16 %v2351, %v2351
      %v2354 = vsel %vm1452, %v2352, 0
      %2356 = vmatprep.subr.bf16.mxu0 0
      %2357 = vmatpush1.bf16.msra.mxu0 0
      %2358 = vmatprep.subr.bf16.mxu0 0
      %2359 = vmatpush1.bf16.msra.mxu0 0
      %2360 = vmatprep.subr.bf16.mxu0 0
      %2361 = vmatpush1.bf16.msra.mxu0 0
      %2362 = vmatprep.subr.bf16.mxu0 0
      %2363 = vmatpush1.bf16.msra.mxu0 0
      %2364 = vmatprep.subr.bf16.mxu0 0
      %2365 = vmatpush1.bf16.msra.mxu0 %v1521
      %2366 = vmatprep.subr.bf16.mxu0 0
      %2367 = vmatpush1.bf16.msra.mxu0 %v1520
      %2368 = vmatprep.subr.bf16.mxu0 0
      %2369 = vmatpush1.bf16.msra.mxu0 %v1519
      %2370 = vmatprep.subr.bf16.mxu0 0
      %2371 = vmatpush1.bf16.msra.mxu0 %v1518
      %2372 = vmatprep.subr.bf16.mxu0 0
      %2373 = vmatpush2.bf16.msra.mxu0 0
      %2374 = vmatprep.subr.bf16.mxu0 0
      %2375 = vmatpush2.bf16.msra.mxu0 0
      %2376 = vmatprep.subr.bf16.mxu0 0
      %2377 = vmatpush2.bf16.msra.mxu0 0
      %2378 = vmatprep.subr.bf16.mxu0 0
      %2379 = vmatpush2.bf16.msra.mxu0 0
      %2380 = vmatprep.subr.bf16.mxu0 0
      %2381 = vmatpush2.bf16.msra.mxu0 0
      %2382 = vmatprep.subr.bf16.mxu0 0
      %2383 = vmatpush2.bf16.msra.mxu0 0
      %2384 = vmatprep.subr.bf16.mxu0 0
      %2385 = vmatpush2.bf16.msra.mxu0 0
      %2386 = vmatprep.subr.bf16.mxu0 0
      %2387 = vmatpush2.bf16.msra.mxu0 0
      %2388 = vmatprep.mubr.bf16.mxu0 0
      %2389 = vmatmul.mubr.bf16.gmra.mxu0 %v2354
      %v2390 = vpop.f32.mrf.mxu0
      %v2391 = vadd.f32 0.0, %v2390
      %v2392 = vpop.f32.mrf.mxu0
      %v2393 = vpop.f32.mrf.mxu0
      %v2394 = vpop.f32.mrf.mxu0
      %2395 = vdwg.mxu0
      %v2396 = vadd.f32 %v1573, %v2391
      %v2397 = vld [vmem:[#allocation2 + $0x25] sm:$0xff]
      %v2398 = vpack.c.bf16 %v2397, %v2397
      %v2400 = vsel %vm1452, %v2398, 0
      %2402 = vmatprep.subr.bf16.mxu0 0
      %2403 = vmatpush1.bf16.msra.mxu0 0
      %2404 = vmatprep.subr.bf16.mxu0 0
      %2405 = vmatpush1.bf16.msra.mxu0 0
      %2406 = vmatprep.subr.bf16.mxu0 0
      %2407 = vmatpush1.bf16.msra.mxu0 0
      %2408 = vmatprep.subr.bf16.mxu0 0
      %2409 = vmatpush1.bf16.msra.mxu0 0
      %2410 = vmatprep.subr.bf16.mxu0 0
      %2411 = vmatpush1.bf16.msra.mxu0 %v1597
      %2412 = vmatprep.subr.bf16.mxu0 0
      %2413 = vmatpush1.bf16.msra.mxu0 %v1596
      %2414 = vmatprep.subr.bf16.mxu0 0
      %2415 = vmatpush1.bf16.msra.mxu0 %v1595
      %2416 = vmatprep.subr.bf16.mxu0 0
      %2417 = vmatpush1.bf16.msra.mxu0 %v1594
      %2418 = vmatprep.subr.bf16.mxu0 0
      %2419 = vmatpush2.bf16.msra.mxu0 0
      %2420 = vmatprep.subr.bf16.mxu0 0
      %2421 = vmatpush2.bf16.msra.mxu0 0
      %2422 = vmatprep.subr.bf16.mxu0 0
      %2423 = vmatpush2.bf16.msra.mxu0 0
      %2424 = vmatprep.subr.bf16.mxu0 0
      %2425 = vmatpush2.bf16.msra.mxu0 0
      %2426 = vmatprep.subr.bf16.mxu0 0
      %2427 = vmatpush2.bf16.msra.mxu0 0
      %2428 = vmatprep.subr.bf16.mxu0 0
      %2429 = vmatpush2.bf16.msra.mxu0 0
      %2430 = vmatprep.subr.bf16.mxu0 0
      %2431 = vmatpush2.bf16.msra.mxu0 0
      %2432 = vmatprep.subr.bf16.mxu0 0
      %2433 = vmatpush2.bf16.msra.mxu0 0
      %2434 = vmatprep.mubr.bf16.mxu0 0
      %2435 = vmatmul.mubr.bf16.gmra.mxu0 %v2400
      %v2436 = vpop.f32.mrf.mxu0
      %v2437 = vadd.f32 0.0, %v2436
      %v2438 = vpop.f32.mrf.mxu0
      %v2439 = vpop.f32.mrf.mxu0
      %v2440 = vpop.f32.mrf.mxu0
      %2441 = vdwg.mxu0
      %v2442 = vadd.f32 %v2396, %v2437
      %v2443 = vld [vmem:[#allocation2 + $0x2d] sm:$0xff]
      %v2444 = vpack.c.bf16 %v2443, %v2443
      %v2446 = vsel %vm1452, %v2444, 0
      %2448 = vmatprep.subr.bf16.mxu0 0
      %2449 = vmatpush1.bf16.msra.mxu0 0
      %2450 = vmatprep.subr.bf16.mxu0 0
      %2451 = vmatpush1.bf16.msra.mxu0 0
      %2452 = vmatprep.subr.bf16.mxu0 0
      %2453 = vmatpush1.bf16.msra.mxu0 0
      %2454 = vmatprep.subr.bf16.mxu0 0
      %2455 = vmatpush1.bf16.msra.mxu0 0
      %2456 = vmatprep.subr.bf16.mxu0 0
      %2457 = vmatpush1.bf16.msra.mxu0 %v1667
      %2458 = vmatprep.subr.bf16.mxu0 0
      %2459 = vmatpush1.bf16.msra.mxu0 %v1666
      %2460 = vmatprep.subr.bf16.mxu0 0
      %2461 = vmatpush1.bf16.msra.mxu0 %v1665
      %2462 = vmatprep.subr.bf16.mxu0 0
      %2463 = vmatpush1.bf16.msra.mxu0 %v1664
      %2464 = vmatprep.subr.bf16.mxu0 0
      %2465 = vmatpush2.bf16.msra.mxu0 0
      %2466 = vmatprep.subr.bf16.mxu0 0
      %2467 = vmatpush2.bf16.msra.mxu0 0
      %2468 = vmatprep.subr.bf16.mxu0 0
      %2469 = vmatpush2.bf16.msra.mxu0 0
      %2470 = vmatprep.subr.bf16.mxu0 0
      %2471 = vmatpush2.bf16.msra.mxu0 0
      %2472 = vmatprep.subr.bf16.mxu0 0
      %2473 = vmatpush2.bf16.msra.mxu0 0
      %2474 = vmatprep.subr.bf16.mxu0 0
      %2475 = vmatpush2.bf16.msra.mxu0 0
      %2476 = vmatprep.subr.bf16.mxu0 0
      %2477 = vmatpush2.bf16.msra.mxu0 0
      %2478 = vmatprep.subr.bf16.mxu0 0
      %2479 = vmatpush2.bf16.msra.mxu0 0
      %2480 = vmatprep.mubr.bf16.mxu0 0
      %2481 = vmatmul.mubr.bf16.gmra.mxu0 %v2446
      %v2482 = vpop.f32.mrf.mxu0
      %v2483 = vadd.f32 0.0, %v2482
      %v2484 = vpop.f32.mrf.mxu0
      %v2485 = vpop.f32.mrf.mxu0
      %v2486 = vpop.f32.mrf.mxu0
      %2487 = vdwg.mxu0
      %v2488 = vadd.f32 %v2442, %v2483
      %v2489 = vld [vmem:[#allocation2 + $0x2e] sm:$0xff]
      %v2490 = vpack.c.bf16 %v2489, %v2489
      %v2492 = vsel %vm1452, %v2490, 0
      %2494 = vmatprep.subr.bf16.mxu0 0
      %2495 = vmatpush1.bf16.msra.mxu0 0
      %2496 = vmatprep.subr.bf16.mxu0 0
      %2497 = vmatpush1.bf16.msra.mxu0 0
      %2498 = vmatprep.subr.bf16.mxu0 0
      %2499 = vmatpush1.bf16.msra.mxu0 0
      %2500 = vmatprep.subr.bf16.mxu0 0
      %2501 = vmatpush1.bf16.msra.mxu0 0
      %2502 = vmatprep.subr.bf16.mxu0 0
      %2503 = vmatpush1.bf16.msra.mxu0 %v1737
      %2504 = vmatprep.subr.bf16.mxu0 0
      %2505 = vmatpush1.bf16.msra.mxu0 %v1736
      %2506 = vmatprep.subr.bf16.mxu0 0
      %2507 = vmatpush1.bf16.msra.mxu0 %v1735
      %2508 = vmatprep.subr.bf16.mxu0 0
      %2509 = vmatpush1.bf16.msra.mxu0 %v1734
      %2510 = vmatprep.subr.bf16.mxu0 0
      %2511 = vmatpush2.bf16.msra.mxu0 0
      %2512 = vmatprep.subr.bf16.mxu0 0
      %2513 = vmatpush2.bf16.msra.mxu0 0
      %2514 = vmatprep.subr.bf16.mxu0 0
      %2515 = vmatpush2.bf16.msra.mxu0 0
      %2516 = vmatprep.subr.bf16.mxu0 0
      %2517 = vmatpush2.bf16.msra.mxu0 0
      %2518 = vmatprep.subr.bf16.mxu0 0
      %2519 = vmatpush2.bf16.msra.mxu0 0
      %2520 = vmatprep.subr.bf16.mxu0 0
      %2521 = vmatpush2.bf16.msra.mxu0 0
      %2522 = vmatprep.subr.bf16.mxu0 0
      %2523 = vmatpush2.bf16.msra.mxu0 0
      %2524 = vmatprep.subr.bf16.mxu0 0
      %2525 = vmatpush2.bf16.msra.mxu0 0
      %2526 = vmatprep.mubr.bf16.mxu0 0
      %2527 = vmatmul.mubr.bf16.gmra.mxu0 %v2492
      %v2528 = vpop.f32.mrf.mxu0
      %v2529 = vadd.f32 0.0, %v2528
      %v2530 = vpop.f32.mrf.mxu0
      %v2531 = vpop.f32.mrf.mxu0
      %v2532 = vpop.f32.mrf.mxu0
      %2533 = vdwg.mxu0
      %v2534 = vadd.f32 %v2488, %v2529
      %v2535 = vmax.f32 %v2534, 0.0
      %v2536 = vpack.c.bf16 %v2535, %v2535
      %2537 = vst.msk [vmem:[%s230 + $0x10] sm:$0xf] %vm1788, %v2536
      %v2538 = vld [vmem:[#allocation2 + $0x2d] sm:$0xff]
      %v2539 = vpack.c.bf16 %v2538, %v2538
      %v2541 = vsel %vm1452, %v2539, 0
      %2543 = vmatprep.subr.bf16.mxu0 0
      %2544 = vmatpush1.bf16.msra.mxu0 0
      %2545 = vmatprep.subr.bf16.mxu0 0
      %2546 = vmatpush1.bf16.msra.mxu0 0
      %2547 = vmatprep.subr.bf16.mxu0 0
      %2548 = vmatpush1.bf16.msra.mxu0 0
      %2549 = vmatprep.subr.bf16.mxu0 0
      %2550 = vmatpush1.bf16.msra.mxu0 0
      %2551 = vmatprep.subr.bf16.mxu0 0
      %2552 = vmatpush1.bf16.msra.mxu0 %v1521
      %2553 = vmatprep.subr.bf16.mxu0 0
      %2554 = vmatpush1.bf16.msra.mxu0 %v1520
      %2555 = vmatprep.subr.bf16.mxu0 0
      %2556 = vmatpush1.bf16.msra.mxu0 %v1519
      %2557 = vmatprep.subr.bf16.mxu0 0
      %2558 = vmatpush1.bf16.msra.mxu0 %v1518
      %2559 = vmatprep.subr.bf16.mxu0 0
      %2560 = vmatpush2.bf16.msra.mxu0 0
      %2561 = vmatprep.subr.bf16.mxu0 0
      %2562 = vmatpush2.bf16.msra.mxu0 0
      %2563 = vmatprep.subr.bf16.mxu0 0
      %2564 = vmatpush2.bf16.msra.mxu0 0
      %2565 = vmatprep.subr.bf16.mxu0 0
      %2566 = vmatpush2.bf16.msra.mxu0 0
      %2567 = vmatprep.subr.bf16.mxu0 0
      %2568 = vmatpush2.bf16.msra.mxu0 0
      %2569 = vmatprep.subr.bf16.mxu0 0
      %2570 = vmatpush2.bf16.msra.mxu0 0
      %2571 = vmatprep.subr.bf16.mxu0 0
      %2572 = vmatpush2.bf16.msra.mxu0 0
      %2573 = vmatprep.subr.bf16.mxu0 0
      %2574 = vmatpush2.bf16.msra.mxu0 0
      %2575 = vmatprep.mubr.bf16.mxu0 0
      %2576 = vmatmul.mubr.bf16.gmra.mxu0 %v2541
      %v2577 = vpop.f32.mrf.mxu0
      %v2578 = vadd.f32 0.0, %v2577
      %v2579 = vpop.f32.mrf.mxu0
      %v2580 = vpop.f32.mrf.mxu0
      %v2581 = vpop.f32.mrf.mxu0
      %2582 = vdwg.mxu0
      %v2583 = vadd.f32 %v1573, %v2578
      %v2584 = vld [vmem:[#allocation2 + $0x2e] sm:$0xff]
      %v2585 = vpack.c.bf16 %v2584, %v2584
      %v2587 = vsel %vm1452, %v2585, 0
      %2589 = vmatprep.subr.bf16.mxu0 0
      %2590 = vmatpush1.bf16.msra.mxu0 0
      %2591 = vmatprep.subr.bf16.mxu0 0
      %2592 = vmatpush1.bf16.msra.mxu0 0
      %2593 = vmatprep.subr.bf16.mxu0 0
      %2594 = vmatpush1.bf16.msra.mxu0 0
      %2595 = vmatprep.subr.bf16.mxu0 0
      %2596 = vmatpush1.bf16.msra.mxu0 0
      %2597 = vmatprep.subr.bf16.mxu0 0
      %2598 = vmatpush1.bf16.msra.mxu0 %v1597
      %2599 = vmatprep.subr.bf16.mxu0 0
      %2600 = vmatpush1.bf16.msra.mxu0 %v1596
      %2601 = vmatprep.subr.bf16.mxu0 0
      %2602 = vmatpush1.bf16.msra.mxu0 %v1595
      %2603 = vmatprep.subr.bf16.mxu0 0
      %2604 = vmatpush1.bf16.msra.mxu0 %v1594
      %2605 = vmatprep.subr.bf16.mxu0 0
      %2606 = vmatpush2.bf16.msra.mxu0 0
      %2607 = vmatprep.subr.bf16.mxu0 0
      %2608 = vmatpush2.bf16.msra.mxu0 0
      %2609 = vmatprep.subr.bf16.mxu0 0
      %2610 = vmatpush2.bf16.msra.mxu0 0
      %2611 = vmatprep.subr.bf16.mxu0 0
      %2612 = vmatpush2.bf16.msra.mxu0 0
      %2613 = vmatprep.subr.bf16.mxu0 0
      %2614 = vmatpush2.bf16.msra.mxu0 0
      %2615 = vmatprep.subr.bf16.mxu0 0
      %2616 = vmatpush2.bf16.msra.mxu0 0
      %2617 = vmatprep.subr.bf16.mxu0 0
      %2618 = vmatpush2.bf16.msra.mxu0 0
      %2619 = vmatprep.subr.bf16.mxu0 0
      %2620 = vmatpush2.bf16.msra.mxu0 0
      %2621 = vmatprep.mubr.bf16.mxu0 0
      %2622 = vmatmul.mubr.bf16.gmra.mxu0 %v2587
      %v2623 = vpop.f32.mrf.mxu0
      %v2624 = vadd.f32 0.0, %v2623
      %v2625 = vpop.f32.mrf.mxu0
      %v2626 = vpop.f32.mrf.mxu0
      %v2627 = vpop.f32.mrf.mxu0
      %2628 = vdwg.mxu0
      %v2629 = vadd.f32 %v2583, %v2624
      %v2630 = vld [vmem:[#allocation2 + $0x36] sm:$0xff]
      %v2631 = vpack.c.bf16 %v2630, %v2630
      %v2633 = vsel %vm1452, %v2631, 0
      %2635 = vmatprep.subr.bf16.mxu0 0
      %2636 = vmatpush1.bf16.msra.mxu0 0
      %2637 = vmatprep.subr.bf16.mxu0 0
      %2638 = vmatpush1.bf16.msra.mxu0 0
      %2639 = vmatprep.subr.bf16.mxu0 0
      %2640 = vmatpush1.bf16.msra.mxu0 0
      %2641 = vmatprep.subr.bf16.mxu0 0
      %2642 = vmatpush1.bf16.msra.mxu0 0
      %2643 = vmatprep.subr.bf16.mxu0 0
      %2644 = vmatpush1.bf16.msra.mxu0 %v1667
      %2645 = vmatprep.subr.bf16.mxu0 0
      %2646 = vmatpush1.bf16.msra.mxu0 %v1666
      %2647 = vmatprep.subr.bf16.mxu0 0
      %2648 = vmatpush1.bf16.msra.mxu0 %v1665
      %2649 = vmatprep.subr.bf16.mxu0 0
      %2650 = vmatpush1.bf16.msra.mxu0 %v1664
      %2651 = vmatprep.subr.bf16.mxu0 0
      %2652 = vmatpush2.bf16.msra.mxu0 0
      %2653 = vmatprep.subr.bf16.mxu0 0
      %2654 = vmatpush2.bf16.msra.mxu0 0
      %2655 = vmatprep.subr.bf16.mxu0 0
      %2656 = vmatpush2.bf16.msra.mxu0 0
      %2657 = vmatprep.subr.bf16.mxu0 0
      %2658 = vmatpush2.bf16.msra.mxu0 0
      %2659 = vmatprep.subr.bf16.mxu0 0
      %2660 = vmatpush2.bf16.msra.mxu0 0
      %2661 = vmatprep.subr.bf16.mxu0 0
      %2662 = vmatpush2.bf16.msra.mxu0 0
      %2663 = vmatprep.subr.bf16.mxu0 0
      %2664 = vmatpush2.bf16.msra.mxu0 0
      %2665 = vmatprep.subr.bf16.mxu0 0
      %2666 = vmatpush2.bf16.msra.mxu0 0
      %2667 = vmatprep.mubr.bf16.mxu0 0
      %2668 = vmatmul.mubr.bf16.gmra.mxu0 %v2633
      %v2669 = vpop.f32.mrf.mxu0
      %v2670 = vadd.f32 0.0, %v2669
      %v2671 = vpop.f32.mrf.mxu0
      %v2672 = vpop.f32.mrf.mxu0
      %v2673 = vpop.f32.mrf.mxu0
      %2674 = vdwg.mxu0
      %v2675 = vadd.f32 %v2629, %v2670
      %v2676 = vld [vmem:[#allocation2 + $0x37] sm:$0xff]
      %v2677 = vpack.c.bf16 %v2676, %v2676
      %v2679 = vsel %vm1452, %v2677, 0
      %2681 = vmatprep.subr.bf16.mxu0 0
      %2682 = vmatpush1.bf16.msra.mxu0 0
      %2683 = vmatprep.subr.bf16.mxu0 0
      %2684 = vmatpush1.bf16.msra.mxu0 0
      %2685 = vmatprep.subr.bf16.mxu0 0
      %2686 = vmatpush1.bf16.msra.mxu0 0
      %2687 = vmatprep.subr.bf16.mxu0 0
      %2688 = vmatpush1.bf16.msra.mxu0 0
      %2689 = vmatprep.subr.bf16.mxu0 0
      %2690 = vmatpush1.bf16.msra.mxu0 %v1737
      %2691 = vmatprep.subr.bf16.mxu0 0
      %2692 = vmatpush1.bf16.msra.mxu0 %v1736
      %2693 = vmatprep.subr.bf16.mxu0 0
      %2694 = vmatpush1.bf16.msra.mxu0 %v1735
      %2695 = vmatprep.subr.bf16.mxu0 0
      %2696 = vmatpush1.bf16.msra.mxu0 %v1734
      %2697 = vmatprep.subr.bf16.mxu0 0
      %2698 = vmatpush2.bf16.msra.mxu0 0
      %2699 = vmatprep.subr.bf16.mxu0 0
      %2700 = vmatpush2.bf16.msra.mxu0 0
      %2701 = vmatprep.subr.bf16.mxu0 0
      %2702 = vmatpush2.bf16.msra.mxu0 0
      %2703 = vmatprep.subr.bf16.mxu0 0
      %2704 = vmatpush2.bf16.msra.mxu0 0
      %2705 = vmatprep.subr.bf16.mxu0 0
      %2706 = vmatpush2.bf16.msra.mxu0 0
      %2707 = vmatprep.subr.bf16.mxu0 0
      %2708 = vmatpush2.bf16.msra.mxu0 0
      %2709 = vmatprep.subr.bf16.mxu0 0
      %2710 = vmatpush2.bf16.msra.mxu0 0
      %2711 = vmatprep.subr.bf16.mxu0 0
      %2712 = vmatpush2.bf16.msra.mxu0 0
      %2713 = vmatprep.mubr.bf16.mxu0 0
      %2714 = vmatmul.mubr.bf16.gmra.mxu0 %v2679
      %v2715 = vpop.f32.mrf.mxu0
      %v2716 = vadd.f32 0.0, %v2715
      %v2717 = vpop.f32.mrf.mxu0
      %v2718 = vpop.f32.mrf.mxu0
      %v2719 = vpop.f32.mrf.mxu0
      %2720 = vdwg.mxu0
      %v2721 = vadd.f32 %v2675, %v2716
      %v2722 = vmax.f32 %v2721, 0.0
      %v2723 = vpack.c.bf16 %v2722, %v2722
      %2724 = vst.msk [vmem:[%s230 + $0x14] sm:$0xf] %vm1788, %v2723
      %v2725 = vld [vmem:[#allocation2 + $0x36] sm:$0xff]
      %v2726 = vpack.c.bf16 %v2725, %v2725
      %v2728 = vsel %vm1452, %v2726, 0
      %2730 = vmatprep.subr.bf16.mxu0 0
      %2731 = vmatpush1.bf16.msra.mxu0 0
      %2732 = vmatprep.subr.bf16.mxu0 0
      %2733 = vmatpush1.bf16.msra.mxu0 0
      %2734 = vmatprep.subr.bf16.mxu0 0
      %2735 = vmatpush1.bf16.msra.mxu0 0
      %2736 = vmatprep.subr.bf16.mxu0 0
      %2737 = vmatpush1.bf16.msra.mxu0 0
      %2738 = vmatprep.subr.bf16.mxu0 0
      %2739 = vmatpush1.bf16.msra.mxu0 %v1521
      %2740 = vmatprep.subr.bf16.mxu0 0
      %2741 = vmatpush1.bf16.msra.mxu0 %v1520
      %2742 = vmatprep.subr.bf16.mxu0 0
      %2743 = vmatpush1.bf16.msra.mxu0 %v1519
      %2744 = vmatprep.subr.bf16.mxu0 0
      %2745 = vmatpush1.bf16.msra.mxu0 %v1518
      %2746 = vmatprep.subr.bf16.mxu0 0
      %2747 = vmatpush2.bf16.msra.mxu0 0
      %2748 = vmatprep.subr.bf16.mxu0 0
      %2749 = vmatpush2.bf16.msra.mxu0 0
      %2750 = vmatprep.subr.bf16.mxu0 0
      %2751 = vmatpush2.bf16.msra.mxu0 0
      %2752 = vmatprep.subr.bf16.mxu0 0
      %2753 = vmatpush2.bf16.msra.mxu0 0
      %2754 = vmatprep.subr.bf16.mxu0 0
      %2755 = vmatpush2.bf16.msra.mxu0 0
      %2756 = vmatprep.subr.bf16.mxu0 0
      %2757 = vmatpush2.bf16.msra.mxu0 0
      %2758 = vmatprep.subr.bf16.mxu0 0
      %2759 = vmatpush2.bf16.msra.mxu0 0
      %2760 = vmatprep.subr.bf16.mxu0 0
      %2761 = vmatpush2.bf16.msra.mxu0 0
      %2762 = vmatprep.mubr.bf16.mxu0 0
      %2763 = vmatmul.mubr.bf16.gmra.mxu0 %v2728
      %v2764 = vpop.f32.mrf.mxu0
      %v2765 = vadd.f32 0.0, %v2764
      %v2766 = vpop.f32.mrf.mxu0
      %v2767 = vpop.f32.mrf.mxu0
      %v2768 = vpop.f32.mrf.mxu0
      %2769 = vdwg.mxu0
      %v2770 = vadd.f32 %v1573, %v2765
      %v2771 = vld [vmem:[#allocation2 + $0x37] sm:$0xff]
      %v2772 = vpack.c.bf16 %v2771, %v2771
      %v2774 = vsel %vm1452, %v2772, 0
      %2776 = vmatprep.subr.bf16.mxu0 0
      %2777 = vmatpush1.bf16.msra.mxu0 0
      %2778 = vmatprep.subr.bf16.mxu0 0
      %2779 = vmatpush1.bf16.msra.mxu0 0
      %2780 = vmatprep.subr.bf16.mxu0 0
      %2781 = vmatpush1.bf16.msra.mxu0 0
      %2782 = vmatprep.subr.bf16.mxu0 0
      %2783 = vmatpush1.bf16.msra.mxu0 0
      %2784 = vmatprep.subr.bf16.mxu0 0
      %2785 = vmatpush1.bf16.msra.mxu0 %v1597
      %2786 = vmatprep.subr.bf16.mxu0 0
      %2787 = vmatpush1.bf16.msra.mxu0 %v1596
      %2788 = vmatprep.subr.bf16.mxu0 0
      %2789 = vmatpush1.bf16.msra.mxu0 %v1595
      %2790 = vmatprep.subr.bf16.mxu0 0
      %2791 = vmatpush1.bf16.msra.mxu0 %v1594
      %2792 = vmatprep.subr.bf16.mxu0 0
      %2793 = vmatpush2.bf16.msra.mxu0 0
      %2794 = vmatprep.subr.bf16.mxu0 0
      %2795 = vmatpush2.bf16.msra.mxu0 0
      %2796 = vmatprep.subr.bf16.mxu0 0
      %2797 = vmatpush2.bf16.msra.mxu0 0
      %2798 = vmatprep.subr.bf16.mxu0 0
      %2799 = vmatpush2.bf16.msra.mxu0 0
      %2800 = vmatprep.subr.bf16.mxu0 0
      %2801 = vmatpush2.bf16.msra.mxu0 0
      %2802 = vmatprep.subr.bf16.mxu0 0
      %2803 = vmatpush2.bf16.msra.mxu0 0
      %2804 = vmatprep.subr.bf16.mxu0 0
      %2805 = vmatpush2.bf16.msra.mxu0 0
      %2806 = vmatprep.subr.bf16.mxu0 0
      %2807 = vmatpush2.bf16.msra.mxu0 0
      %2808 = vmatprep.mubr.bf16.mxu0 0
      %2809 = vmatmul.mubr.bf16.gmra.mxu0 %v2774
      %v2810 = vpop.f32.mrf.mxu0
      %v2811 = vadd.f32 0.0, %v2810
      %v2812 = vpop.f32.mrf.mxu0
      %v2813 = vpop.f32.mrf.mxu0
      %v2814 = vpop.f32.mrf.mxu0
      %2815 = vdwg.mxu0
      %v2816 = vadd.f32 %v2770, %v2811
      %v2817 = vld [vmem:[#allocation2 + $0x3f] sm:$0xff]
      %v2818 = vpack.c.bf16 %v2817, %v2817
      %v2820 = vsel %vm1452, %v2818, 0
      %2822 = vmatprep.subr.bf16.mxu0 0
      %2823 = vmatpush1.bf16.msra.mxu0 0
      %2824 = vmatprep.subr.bf16.mxu0 0
      %2825 = vmatpush1.bf16.msra.mxu0 0
      %2826 = vmatprep.subr.bf16.mxu0 0
      %2827 = vmatpush1.bf16.msra.mxu0 0
      %2828 = vmatprep.subr.bf16.mxu0 0
      %2829 = vmatpush1.bf16.msra.mxu0 0
      %2830 = vmatprep.subr.bf16.mxu0 0
      %2831 = vmatpush1.bf16.msra.mxu0 %v1667
      %2832 = vmatprep.subr.bf16.mxu0 0
      %2833 = vmatpush1.bf16.msra.mxu0 %v1666
      %2834 = vmatprep.subr.bf16.mxu0 0
      %2835 = vmatpush1.bf16.msra.mxu0 %v1665
      %2836 = vmatprep.subr.bf16.mxu0 0
      %2837 = vmatpush1.bf16.msra.mxu0 %v1664
      %2838 = vmatprep.subr.bf16.mxu0 0
      %2839 = vmatpush2.bf16.msra.mxu0 0
      %2840 = vmatprep.subr.bf16.mxu0 0
      %2841 = vmatpush2.bf16.msra.mxu0 0
      %2842 = vmatprep.subr.bf16.mxu0 0
      %2843 = vmatpush2.bf16.msra.mxu0 0
      %2844 = vmatprep.subr.bf16.mxu0 0
      %2845 = vmatpush2.bf16.msra.mxu0 0
      %2846 = vmatprep.subr.bf16.mxu0 0
      %2847 = vmatpush2.bf16.msra.mxu0 0
      %2848 = vmatprep.subr.bf16.mxu0 0
      %2849 = vmatpush2.bf16.msra.mxu0 0
      %2850 = vmatprep.subr.bf16.mxu0 0
      %2851 = vmatpush2.bf16.msra.mxu0 0
      %2852 = vmatprep.subr.bf16.mxu0 0
      %2853 = vmatpush2.bf16.msra.mxu0 0
      %2854 = vmatprep.mubr.bf16.mxu0 0
      %2855 = vmatmul.mubr.bf16.gmra.mxu0 %v2820
      %v2856 = vpop.f32.mrf.mxu0
      %v2857 = vadd.f32 0.0, %v2856
      %v2858 = vpop.f32.mrf.mxu0
      %v2859 = vpop.f32.mrf.mxu0
      %v2860 = vpop.f32.mrf.mxu0
      %2861 = vdwg.mxu0
      %v2862 = vadd.f32 %v2816, %v2857
      %v2863 = vld [vmem:[#allocation2 + $0x40] sm:$0xff]
      %v2864 = vpack.c.bf16 %v2863, %v2863
      %v2866 = vsel %vm1452, %v2864, 0
      %2868 = vmatprep.subr.bf16.mxu0 0
      %2869 = vmatpush1.bf16.msra.mxu0 0
      %2870 = vmatprep.subr.bf16.mxu0 0
      %2871 = vmatpush1.bf16.msra.mxu0 0
      %2872 = vmatprep.subr.bf16.mxu0 0
      %2873 = vmatpush1.bf16.msra.mxu0 0
      %2874 = vmatprep.subr.bf16.mxu0 0
      %2875 = vmatpush1.bf16.msra.mxu0 0
      %2876 = vmatprep.subr.bf16.mxu0 0
      %2877 = vmatpush1.bf16.msra.mxu0 %v1737
      %2878 = vmatprep.subr.bf16.mxu0 0
      %2879 = vmatpush1.bf16.msra.mxu0 %v1736
      %2880 = vmatprep.subr.bf16.mxu0 0
      %2881 = vmatpush1.bf16.msra.mxu0 %v1735
      %2882 = vmatprep.subr.bf16.mxu0 0
      %2883 = vmatpush1.bf16.msra.mxu0 %v1734
      %2884 = vmatprep.subr.bf16.mxu0 0
      %2885 = vmatpush2.bf16.msra.mxu0 0
      %2886 = vmatprep.subr.bf16.mxu0 0
      %2887 = vmatpush2.bf16.msra.mxu0 0
      %2888 = vmatprep.subr.bf16.mxu0 0
      %2889 = vmatpush2.bf16.msra.mxu0 0
      %2890 = vmatprep.subr.bf16.mxu0 0
      %2891 = vmatpush2.bf16.msra.mxu0 0
      %2892 = vmatprep.subr.bf16.mxu0 0
      %2893 = vmatpush2.bf16.msra.mxu0 0
      %2894 = vmatprep.subr.bf16.mxu0 0
      %2895 = vmatpush2.bf16.msra.mxu0 0
      %2896 = vmatprep.subr.bf16.mxu0 0
      %2897 = vmatpush2.bf16.msra.mxu0 0
      %2898 = vmatprep.subr.bf16.mxu0 0
      %2899 = vmatpush2.bf16.msra.mxu0 0
      %2900 = vmatprep.mubr.bf16.mxu0 0
      %2901 = vmatmul.mubr.bf16.gmra.mxu0 %v2866
      %v2902 = vpop.f32.mrf.mxu0
      %v2903 = vadd.f32 0.0, %v2902
      %v2904 = vpop.f32.mrf.mxu0
      %v2905 = vpop.f32.mrf.mxu0
      %v2906 = vpop.f32.mrf.mxu0
      %2907 = vdwg.mxu0
      %v2908 = vadd.f32 %v2862, %v2903
      %v2909 = vmax.f32 %v2908, 0.0
      %v2910 = vpack.c.bf16 %v2909, %v2909
      %2911 = vst.msk [vmem:[%s230 + $0x18] sm:$0xf] %vm1788, %v2910
      %v2912 = vld [vmem:[#allocation2 + $0x3f] sm:$0xff]
      %v2913 = vpack.c.bf16 %v2912, %v2912
      %v2915 = vsel %vm1452, %v2913, 0
      %2917 = vmatprep.subr.bf16.mxu0 0
      %2918 = vmatpush1.bf16.msra.mxu0 0
      %2919 = vmatprep.subr.bf16.mxu0 0
      %2920 = vmatpush1.bf16.msra.mxu0 0
      %2921 = vmatprep.subr.bf16.mxu0 0
      %2922 = vmatpush1.bf16.msra.mxu0 0
      %2923 = vmatprep.subr.bf16.mxu0 0
      %2924 = vmatpush1.bf16.msra.mxu0 0
      %2925 = vmatprep.subr.bf16.mxu0 0
      %2926 = vmatpush1.bf16.msra.mxu0 %v1521
      %2927 = vmatprep.subr.bf16.mxu0 0
      %2928 = vmatpush1.bf16.msra.mxu0 %v1520
      %2929 = vmatprep.subr.bf16.mxu0 0
      %2930 = vmatpush1.bf16.msra.mxu0 %v1519
      %2931 = vmatprep.subr.bf16.mxu0 0
      %2932 = vmatpush1.bf16.msra.mxu0 %v1518
      %2933 = vmatprep.subr.bf16.mxu0 0
      %2934 = vmatpush2.bf16.msra.mxu0 0
      %2935 = vmatprep.subr.bf16.mxu0 0
      %2936 = vmatpush2.bf16.msra.mxu0 0
      %2937 = vmatprep.subr.bf16.mxu0 0
      %2938 = vmatpush2.bf16.msra.mxu0 0
      %2939 = vmatprep.subr.bf16.mxu0 0
      %2940 = vmatpush2.bf16.msra.mxu0 0
      %2941 = vmatprep.subr.bf16.mxu0 0
      %2942 = vmatpush2.bf16.msra.mxu0 0
      %2943 = vmatprep.subr.bf16.mxu0 0
      %2944 = vmatpush2.bf16.msra.mxu0 0
      %2945 = vmatprep.subr.bf16.mxu0 0
      %2946 = vmatpush2.bf16.msra.mxu0 0
      %2947 = vmatprep.subr.bf16.mxu0 0
      %2948 = vmatpush2.bf16.msra.mxu0 0
      %2949 = vmatprep.mubr.bf16.mxu0 0
      %2950 = vmatmul.mubr.bf16.gmra.mxu0 %v2915
      %v2951 = vpop.f32.mrf.mxu0
      %v2952 = vadd.f32 0.0, %v2951
      %v2953 = vpop.f32.mrf.mxu0
      %v2954 = vpop.f32.mrf.mxu0
      %v2955 = vpop.f32.mrf.mxu0
      %2956 = vdwg.mxu0
      %v2957 = vadd.f32 %v1573, %v2952
      %v2958 = vld [vmem:[#allocation2 + $0x40] sm:$0xff]
      %v2959 = vpack.c.bf16 %v2958, %v2958
      %v2961 = vsel %vm1452, %v2959, 0
      %2963 = vmatprep.subr.bf16.mxu0 0
      %2964 = vmatpush1.bf16.msra.mxu0 0
      %2965 = vmatprep.subr.bf16.mxu0 0
      %2966 = vmatpush1.bf16.msra.mxu0 0
      %2967 = vmatprep.subr.bf16.mxu0 0
      %2968 = vmatpush1.bf16.msra.mxu0 0
      %2969 = vmatprep.subr.bf16.mxu0 0
      %2970 = vmatpush1.bf16.msra.mxu0 0
      %2971 = vmatprep.subr.bf16.mxu0 0
      %2972 = vmatpush1.bf16.msra.mxu0 %v1597
      %2973 = vmatprep.subr.bf16.mxu0 0
      %2974 = vmatpush1.bf16.msra.mxu0 %v1596
      %2975 = vmatprep.subr.bf16.mxu0 0
      %2976 = vmatpush1.bf16.msra.mxu0 %v1595
      %2977 = vmatprep.subr.bf16.mxu0 0
      %2978 = vmatpush1.bf16.msra.mxu0 %v1594
      %2979 = vmatprep.subr.bf16.mxu0 0
      %2980 = vmatpush2.bf16.msra.mxu0 0
      %2981 = vmatprep.subr.bf16.mxu0 0
      %2982 = vmatpush2.bf16.msra.mxu0 0
      %2983 = vmatprep.subr.bf16.mxu0 0
      %2984 = vmatpush2.bf16.msra.mxu0 0
      %2985 = vmatprep.subr.bf16.mxu0 0
      %2986 = vmatpush2.bf16.msra.mxu0 0
      %2987 = vmatprep.subr.bf16.mxu0 0
      %2988 = vmatpush2.bf16.msra.mxu0 0
      %2989 = vmatprep.subr.bf16.mxu0 0
      %2990 = vmatpush2.bf16.msra.mxu0 0
      %2991 = vmatprep.subr.bf16.mxu0 0
      %2992 = vmatpush2.bf16.msra.mxu0 0
      %2993 = vmatprep.subr.bf16.mxu0 0
      %2994 = vmatpush2.bf16.msra.mxu0 0
      %2995 = vmatprep.mubr.bf16.mxu0 0
      %2996 = vmatmul.mubr.bf16.gmra.mxu0 %v2961
      %v2997 = vpop.f32.mrf.mxu0
      %v2998 = vadd.f32 0.0, %v2997
      %v2999 = vpop.f32.mrf.mxu0
      %v3000 = vpop.f32.mrf.mxu0
      %v3001 = vpop.f32.mrf.mxu0
      %3002 = vdwg.mxu0
      %v3003 = vadd.f32 %v2957, %v2998
      %v3004 = vld [vmem:[#allocation2 + $0x48] sm:$0xff]
      %v3005 = vpack.c.bf16 %v3004, %v3004
      %v3007 = vsel %vm1452, %v3005, 0
      %3009 = vmatprep.subr.bf16.mxu0 0
      %3010 = vmatpush1.bf16.msra.mxu0 0
      %3011 = vmatprep.subr.bf16.mxu0 0
      %3012 = vmatpush1.bf16.msra.mxu0 0
      %3013 = vmatprep.subr.bf16.mxu0 0
      %3014 = vmatpush1.bf16.msra.mxu0 0
      %3015 = vmatprep.subr.bf16.mxu0 0
      %3016 = vmatpush1.bf16.msra.mxu0 0
      %3017 = vmatprep.subr.bf16.mxu0 0
      %3018 = vmatpush1.bf16.msra.mxu0 %v1667
      %3019 = vmatprep.subr.bf16.mxu0 0
      %3020 = vmatpush1.bf16.msra.mxu0 %v1666
      %3021 = vmatprep.subr.bf16.mxu0 0
      %3022 = vmatpush1.bf16.msra.mxu0 %v1665
      %3023 = vmatprep.subr.bf16.mxu0 0
      %3024 = vmatpush1.bf16.msra.mxu0 %v1664
      %3025 = vmatprep.subr.bf16.mxu0 0
      %3026 = vmatpush2.bf16.msra.mxu0 0
      %3027 = vmatprep.subr.bf16.mxu0 0
      %3028 = vmatpush2.bf16.msra.mxu0 0
      %3029 = vmatprep.subr.bf16.mxu0 0
      %3030 = vmatpush2.bf16.msra.mxu0 0
      %3031 = vmatprep.subr.bf16.mxu0 0
      %3032 = vmatpush2.bf16.msra.mxu0 0
      %3033 = vmatprep.subr.bf16.mxu0 0
      %3034 = vmatpush2.bf16.msra.mxu0 0
      %3035 = vmatprep.subr.bf16.mxu0 0
      %3036 = vmatpush2.bf16.msra.mxu0 0
      %3037 = vmatprep.subr.bf16.mxu0 0
      %3038 = vmatpush2.bf16.msra.mxu0 0
      %3039 = vmatprep.subr.bf16.mxu0 0
      %3040 = vmatpush2.bf16.msra.mxu0 0
      %3041 = vmatprep.mubr.bf16.mxu0 0
      %3042 = vmatmul.mubr.bf16.gmra.mxu0 %v3007
      %v3043 = vpop.f32.mrf.mxu0
      %v3044 = vadd.f32 0.0, %v3043
      %v3045 = vpop.f32.mrf.mxu0
      %v3046 = vpop.f32.mrf.mxu0
      %v3047 = vpop.f32.mrf.mxu0
      %3048 = vdwg.mxu0
      %v3049 = vadd.f32 %v3003, %v3044
      %v3050 = vld [vmem:[#allocation2 + $0x49] sm:$0xff]
      %v3051 = vpack.c.bf16 %v3050, %v3050
      %v3053 = vsel %vm1452, %v3051, 0
      %3055 = vmatprep.subr.bf16.mxu0 0
      %3056 = vmatpush1.bf16.msra.mxu0 0
      %3057 = vmatprep.subr.bf16.mxu0 0
      %3058 = vmatpush1.bf16.msra.mxu0 0
      %3059 = vmatprep.subr.bf16.mxu0 0
      %3060 = vmatpush1.bf16.msra.mxu0 0
      %3061 = vmatprep.subr.bf16.mxu0 0
      %3062 = vmatpush1.bf16.msra.mxu0 0
      %3063 = vmatprep.subr.bf16.mxu0 0
      %3064 = vmatpush1.bf16.msra.mxu0 %v1737
      %3065 = vmatprep.subr.bf16.mxu0 0
      %3066 = vmatpush1.bf16.msra.mxu0 %v1736
      %3067 = vmatprep.subr.bf16.mxu0 0
      %3068 = vmatpush1.bf16.msra.mxu0 %v1735
      %3069 = vmatprep.subr.bf16.mxu0 0
      %3070 = vmatpush1.bf16.msra.mxu0 %v1734
      %3071 = vmatprep.subr.bf16.mxu0 0
      %3072 = vmatpush2.bf16.msra.mxu0 0
      %3073 = vmatprep.subr.bf16.mxu0 0
      %3074 = vmatpush2.bf16.msra.mxu0 0
      %3075 = vmatprep.subr.bf16.mxu0 0
      %3076 = vmatpush2.bf16.msra.mxu0 0
      %3077 = vmatprep.subr.bf16.mxu0 0
      %3078 = vmatpush2.bf16.msra.mxu0 0
      %3079 = vmatprep.subr.bf16.mxu0 0
      %3080 = vmatpush2.bf16.msra.mxu0 0
      %3081 = vmatprep.subr.bf16.mxu0 0
      %3082 = vmatpush2.bf16.msra.mxu0 0
      %3083 = vmatprep.subr.bf16.mxu0 0
      %3084 = vmatpush2.bf16.msra.mxu0 0
      %3085 = vmatprep.subr.bf16.mxu0 0
      %3086 = vmatpush2.bf16.msra.mxu0 0
      %3087 = vmatprep.mubr.bf16.mxu0 0
      %3088 = vmatmul.mubr.bf16.gmra.mxu0 %v3053
      %v3089 = vpop.f32.mrf.mxu0
      %v3090 = vadd.f32 0.0, %v3089
      %v3091 = vpop.f32.mrf.mxu0
      %v3092 = vpop.f32.mrf.mxu0
      %v3093 = vpop.f32.mrf.mxu0
      %3094 = vdwg.mxu0
      %v3095 = vadd.f32 %v3049, %v3090
      %v3096 = vmax.f32 %v3095, 0.0
      %v3097 = vpack.c.bf16 %v3096, %v3096
      %3098 = vst.msk [vmem:[%s230 + $0x1c] sm:$0xf] %vm1788, %v3097
      %p3099 = scmp.lt.s32.totalorder %s22, 1
      %s3100 = scalar_select %p3099, %s22, 1
      %s3101 = smul.addr %s3100, 8
      %s3102 = smul.addr %s3101, 4
      %s3103 = scalar_lea.vmem %s6, %s3102
      // Predicated region
      $region41: #{value_network_forward.6} parent=39 // pred_check
        %p3104 = pneg %p150
      $region42: #{value_network_forward.6} parent=39 // pred_check_branch
        %3106 = sbr.rel (%p3104) target = $region44
      $region43: #{value_network_forward.6} parent=39 // pred_region
        _
      $region44: #{value_network_forward.6} parent=39 // pred_fallthru
        _
    $region40: #{value_network_forward.6} parent=5 // pred_fallthru
      _
    %p3107 = scmp.le.s32.totalorder 2, %s17
    // Predicated region
    $region45: #{value_network_forward.6} parent=5 // pred_check
      %p3108 = pneg %p3107
    $region46: #{value_network_forward.6} parent=5 // pred_check_branch
      %3110 = sbr.rel (%p3108) target = $region48
    $region47: #{value_network_forward.6} parent=5 // pred_region
      %s3111 = ssub.s32 %s17, 2
      // Predicated region
      $region49: #{value_network_forward.6} parent=47 // pred_check
        %p3112 = pneg %p156
      $region50: #{value_network_forward.6} parent=47 // pred_check_branch
        %3114 = sbr.rel (%p3112) target = $region52
      $region51: #{value_network_forward.6} parent=47 // pred_region
        %p3115 = scmp.lt.s32.totalorder %s23, 1
        %s3116 = scalar_select %p3115, %s23, 1
        %s3117 = smul.addr %s3116, 8
        %s3118 = smul.addr %s3117, 4
        %s3119 = scalar_lea.vmem %s6, %s3118
      $region52: #{value_network_forward.6} parent=47 // pred_fallthru
        _
    $region48: #{value_network_forward.6} parent=5 // pred_fallthru
      _
  $region6: #{value_network_forward.6} parent=0 // loop_footer
    %s21 = sadd.s32 1, %s17
  $region7: #{value_network_forward.6} parent=0 // loop_footer_branch
    %16 = sbr.rel target = $region3
  $region8: #{value_network_forward.6} parent=0 // loop_exit
    _

// kernel: value_network_forward.5
$region0: #{value_network_forward.5}
  #allocation0 [shape = 'u32[]', space=smem, size = 0x4, offset = 0x4, fixed_abs, tag = 'smem constant byte address 0x4 - core index']
  #allocation1 [shape = 'u32[144,128]{1,0:T(1,128)}', space=vmem, size = 0x12000, scoped, tag = 'internal scratch']
  #allocation2 [shape = 'f32[1,1]{1,0:T(1,128)S(1)}', space=vmem, size = 0x200, scoped, tag = 'scoped memory for value_network_forward.5']
  %s0 = inlined_call_operand.vmem [shape: bf16[2,4096], index: 0, kind: input, shape index: {}]
  %s1 = inlined_call_operand.vmem [shape: bf16[4096,32], index: 1, kind: input, shape index: {}]
  %s2 = inlined_call_operand.vmem [shape: f32[1,32], index: 2, kind: input, shape index: {}]
  %s3 = inlined_call_operand.vmem [shape: bf16[32,32], index: 3, kind: input, shape index: {}]
  %s4 = inlined_call_operand.vmem [shape: f32[1,32], index: 4, kind: input, shape index: {}]
  %s5 = inlined_call_operand.vmem [shape: f32[1,32], index: 5, kind: input, shape index: {}]
  %s6 = inlined_call_operand.<no memory space> [shape: f32[1,1], index: 6, kind: input, shape index: {}]
  %s7 = inlined_call_operand.vmem [shape: f32[2,1], index: 7, kind: output, shape index: {}]
  %s8 = sld [smem:[#allocation0]]
  $region38: #{value_network_forward.5} parent=0
    _
  %s10 = ssub.s32 1, %s8
  %s11 = scalar_select 0, %s10, %s8
  %v12 = vstv %s6
  %13 = vst [vmem:[#allocation2] sm:$0x1] %v12
  // Predicated region
  $region2: #{value_network_forward.5} parent=0 // pred_check
    _
  $region3: #{value_network_forward.5} parent=0 // pred_check_branch
    %15 = sbr.rel (0) target = $region5
  $region4: #{value_network_forward.5} parent=0 // pred_region
    _
  $region5: #{value_network_forward.5} parent=0 // pred_fallthru
    _
  // Predicated region
  $region6: #{value_network_forward.5} parent=0 // pred_check
    _
  $region7: #{value_network_forward.5} parent=0 // pred_check_branch
    %17 = sbr.rel (0) target = $region9
  $region8: #{value_network_forward.5} parent=0 // pred_region
    _
  $region9: #{value_network_forward.5} parent=0 // pred_fallthru
    _
  // Predicated region
  $region10: #{value_network_forward.5} parent=0 // pred_check
    _
  $region11: #{value_network_forward.5} parent=0 // pred_check_branch
    %19 = sbr.rel (0) target = $region13
  $region12: #{value_network_forward.5} parent=0 // pred_region
    _
  $region13: #{value_network_forward.5} parent=0 // pred_fallthru
    _
  // Predicated region
  $region14: #{value_network_forward.5} parent=0 // pred_check
    _
  $region15: #{value_network_forward.5} parent=0 // pred_check_branch
    %21 = sbr.rel (0) target = $region17
  $region16: #{value_network_forward.5} parent=0 // pred_region
    _
  $region17: #{value_network_forward.5} parent=0 // pred_fallthru
    _
  // Predicated region
  $region18: #{value_network_forward.5} parent=0 // pred_check
    _
  $region19: #{value_network_forward.5} parent=0 // pred_check_branch
    %23 = sbr.rel (0) target = $region21
  $region20: #{value_network_forward.5} parent=0 // pred_region
    _
  $region21: #{value_network_forward.5} parent=0 // pred_fallthru
    _
  // Predicated region
  $region22: #{value_network_forward.5} parent=0 // pred_check
    _
  $region23: #{value_network_forward.5} parent=0 // pred_check_branch
    %25 = sbr.rel (0) target = $region25
  $region24: #{value_network_forward.5} parent=0 // pred_region
    _
  $region25: #{value_network_forward.5} parent=0 // pred_fallthru
    _
  // Predicated region
  $region26: #{value_network_forward.5} parent=0 // pred_check
    _
  $region27: #{value_network_forward.5} parent=0 // pred_check_branch
    %27 = sbr.rel (0) target = $region29
  $region28: #{value_network_forward.5} parent=0 // pred_region
    _
  $region29: #{value_network_forward.5} parent=0 // pred_fallthru
    _
  %v29 = vld [vmem:[%s0] sm:$0xff]
  %v30 = vld [vmem:[%s0 + $0x8] sm:$0xff]
  %v31 = vld [vmem:[%s0 + $0x10] sm:$0xff]
  %v32 = vld [vmem:[%s0 + $0x18] sm:$0xff]
  %v33 = vld [vmem:[%s1] sm:$0xf]
  %v34 = vld [vmem:[%s1 + $0x4] sm:$0xf]
  %v35 = vld [vmem:[%s1 + $0x8] sm:$0xf]
  %v36 = vld [vmem:[%s1 + $0xc] sm:$0xf]
  %v37 = vld [vmem:[%s1 + $0x10] sm:$0xf]
  %v38 = vld [vmem:[%s1 + $0x14] sm:$0xf]
  %v39 = vld [vmem:[%s1 + $0x18] sm:$0xf]
  %v40 = vld [vmem:[%s1 + $0x1c] sm:$0xf]
  %v41 = vld [vmem:[%s1 + $0x20] sm:$0xf]
  %v42 = vld [vmem:[%s1 + $0x24] sm:$0xf]
  %v43 = vld [vmem:[%s1 + $0x28] sm:$0xf]
  %v44 = vld [vmem:[%s1 + $0x2c] sm:$0xf]
  %v45 = vld [vmem:[%s1 + $0x30] sm:$0xf]
  %v46 = vld [vmem:[%s1 + $0x34] sm:$0xf]
  %v47 = vld [vmem:[%s1 + $0x38] sm:$0xf]
  %v48 = vld [vmem:[%s1 + $0x3c] sm:$0xf]
  %v49 = vld [vmem:[%s1 + $0x40] sm:$0xf]
  %v50 = vld [vmem:[%s1 + $0x44] sm:$0xf]
  %v51 = vld [vmem:[%s1 + $0x48] sm:$0xf]
  %v52 = vld [vmem:[%s1 + $0x4c] sm:$0xf]
  %v53 = vld [vmem:[%s1 + $0x50] sm:$0xf]
  %v54 = vld [vmem:[%s1 + $0x54] sm:$0xf]
  %v55 = vld [vmem:[%s1 + $0x58] sm:$0xf]
  %v56 = vld [vmem:[%s1 + $0x5c] sm:$0xf]
  %v57 = vld [vmem:[%s1 + $0x60] sm:$0xf]
  %v58 = vld [vmem:[%s1 + $0x64] sm:$0xf]
  %v59 = vld [vmem:[%s1 + $0x68] sm:$0xf]
  %v60 = vld [vmem:[%s1 + $0x6c] sm:$0xf]
  %v61 = vld [vmem:[%s1 + $0x70] sm:$0xf]
  %v62 = vld [vmem:[%s1 + $0x74] sm:$0xf]
  %v63 = vld [vmem:[%s1 + $0x78] sm:$0xf]
  %v64 = vld [vmem:[%s1 + $0x7c] sm:$0xf]
  %v65 = vld [vmem:[%s1 + $0x80] sm:$0xf]
  %v66 = vld [vmem:[%s1 + $0x84] sm:$0xf]
  %v67 = vld [vmem:[%s1 + $0x88] sm:$0xf]
  %v68 = vld [vmem:[%s1 + $0x8c] sm:$0xf]
  %v69 = vld [vmem:[%s1 + $0x90] sm:$0xf]
  %v70 = vld [vmem:[%s1 + $0x94] sm:$0xf]
  %v71 = vld [vmem:[%s1 + $0x98] sm:$0xf]
  %v72 = vld [vmem:[%s1 + $0x9c] sm:$0xf]
  %v73 = vld [vmem:[%s1 + $0xa0] sm:$0xf]
  %v74 = vld [vmem:[%s1 + $0xa4] sm:$0xf]
  %v75 = vld [vmem:[%s1 + $0xa8] sm:$0xf]
  %v76 = vld [vmem:[%s1 + $0xac] sm:$0xf]
  %v77 = vld [vmem:[%s1 + $0xb0] sm:$0xf]
  %v78 = vld [vmem:[%s1 + $0xb4] sm:$0xf]
  %v79 = vld [vmem:[%s1 + $0xb8] sm:$0xf]
  %v80 = vld [vmem:[%s1 + $0xbc] sm:$0xf]
  %v81 = vld [vmem:[%s1 + $0xc0] sm:$0xf]
  %v82 = vld [vmem:[%s1 + $0xc4] sm:$0xf]
  %v83 = vld [vmem:[%s1 + $0xc8] sm:$0xf]
  %v84 = vld [vmem:[%s1 + $0xcc] sm:$0xf]
  %v85 = vld [vmem:[%s1 + $0xd0] sm:$0xf]
  %v86 = vld [vmem:[%s1 + $0xd4] sm:$0xf]
  %v87 = vld [vmem:[%s1 + $0xd8] sm:$0xf]
  %v88 = vld [vmem:[%s1 + $0xdc] sm:$0xf]
  %v89 = vld [vmem:[%s1 + $0xe0] sm:$0xf]
  %v90 = vld [vmem:[%s1 + $0xe4] sm:$0xf]
  %v91 = vld [vmem:[%s1 + $0xe8] sm:$0xf]
  %v92 = vld [vmem:[%s1 + $0xec] sm:$0xf]
  %v93 = vld [vmem:[%s1 + $0xf0] sm:$0xf]
  %v94 = vld [vmem:[%s1 + $0xf4] sm:$0xf]
  %v95 = vld [vmem:[%s1 + $0xf8] sm:$0xf]
  %v96 = vld [vmem:[%s1 + $0xfc] sm:$0xf]
  %v97 = vld [vmem:[%s1 + $0x100] sm:$0xf]
  %v98 = vld [vmem:[%s1 + $0x104] sm:$0xf]
  %v99 = vld [vmem:[%s1 + $0x108] sm:$0xf]
  %v100 = vld [vmem:[%s1 + $0x10c] sm:$0xf]
  %v101 = vld [vmem:[%s1 + $0x110] sm:$0xf]
  %v102 = vld [vmem:[%s1 + $0x114] sm:$0xf]
  %v103 = vld [vmem:[%s1 + $0x118] sm:$0xf]
  %v104 = vld [vmem:[%s1 + $0x11c] sm:$0xf]
  %v105 = vld [vmem:[%s1 + $0x120] sm:$0xf]
  %v106 = vld [vmem:[%s1 + $0x124] sm:$0xf]
  %v107 = vld [vmem:[%s1 + $0x128] sm:$0xf]
  %v108 = vld [vmem:[%s1 + $0x12c] sm:$0xf]
  %v109 = vld [vmem:[%s1 + $0x130] sm:$0xf]
  %v110 = vld [vmem:[%s1 + $0x134] sm:$0xf]
  %v111 = vld [vmem:[%s1 + $0x138] sm:$0xf]
  %v112 = vld [vmem:[%s1 + $0x13c] sm:$0xf]
  %v113 = vld [vmem:[%s1 + $0x140] sm:$0xf]
  %v114 = vld [vmem:[%s1 + $0x144] sm:$0xf]
  %v115 = vld [vmem:[%s1 + $0x148] sm:$0xf]
  %v116 = vld [vmem:[%s1 + $0x14c] sm:$0xf]
  %v117 = vld [vmem:[%s1 + $0x150] sm:$0xf]
  %v118 = vld [vmem:[%s1 + $0x154] sm:$0xf]
  %v119 = vld [vmem:[%s1 + $0x158] sm:$0xf]
  %v120 = vld [vmem:[%s1 + $0x15c] sm:$0xf]
  %v121 = vld [vmem:[%s1 + $0x160] sm:$0xf]
  %v122 = vld [vmem:[%s1 + $0x164] sm:$0xf]
  %v123 = vld [vmem:[%s1 + $0x168] sm:$0xf]
  %v124 = vld [vmem:[%s1 + $0x16c] sm:$0xf]
  %v125 = vld [vmem:[%s1 + $0x170] sm:$0xf]
  %v126 = vld [vmem:[%s1 + $0x174] sm:$0xf]
  %v127 = vld [vmem:[%s1 + $0x178] sm:$0xf]
  %v128 = vld [vmem:[%s1 + $0x17c] sm:$0xf]
  %v129 = vld [vmem:[%s1 + $0x180] sm:$0xf]
  %v130 = vld [vmem:[%s1 + $0x184] sm:$0xf]
  %v131 = vld [vmem:[%s1 + $0x188] sm:$0xf]
  %v132 = vld [vmem:[%s1 + $0x18c] sm:$0xf]
  %v133 = vld [vmem:[%s1 + $0x190] sm:$0xf]
  %v134 = vld [vmem:[%s1 + $0x194] sm:$0xf]
  %v135 = vld [vmem:[%s1 + $0x198] sm:$0xf]
  %v136 = vld [vmem:[%s1 + $0x19c] sm:$0xf]
  %v137 = vld [vmem:[%s1 + $0x1a0] sm:$0xf]
  %v138 = vld [vmem:[%s1 + $0x1a4] sm:$0xf]
  %v139 = vld [vmem:[%s1 + $0x1a8] sm:$0xf]
  %v140 = vld [vmem:[%s1 + $0x1ac] sm:$0xf]
  %v141 = vld [vmem:[%s1 + $0x1b0] sm:$0xf]
  %v142 = vld [vmem:[%s1 + $0x1b4] sm:$0xf]
  %v143 = vld [vmem:[%s1 + $0x1b8] sm:$0xf]
  %v144 = vld [vmem:[%s1 + $0x1bc] sm:$0xf]
  %v145 = vld [vmem:[%s1 + $0x1c0] sm:$0xf]
  %v146 = vld [vmem:[%s1 + $0x1c4] sm:$0xf]
  %v147 = vld [vmem:[%s1 + $0x1c8] sm:$0xf]
  %v148 = vld [vmem:[%s1 + $0x1cc] sm:$0xf]
  %v149 = vld [vmem:[%s1 + $0x1d0] sm:$0xf]
  %v150 = vld [vmem:[%s1 + $0x1d4] sm:$0xf]
  %v151 = vld [vmem:[%s1 + $0x1d8] sm:$0xf]
  %v152 = vld [vmem:[%s1 + $0x1dc] sm:$0xf]
  %v153 = vld [vmem:[%s1 + $0x1e0] sm:$0xf]
  %v154 = vld [vmem:[%s1 + $0x1e4] sm:$0xf]
  %v155 = vld [vmem:[%s1 + $0x1e8] sm:$0xf]
  %v156 = vld [vmem:[%s1 + $0x1ec] sm:$0xf]
  %v157 = vld [vmem:[%s1 + $0x1f0] sm:$0xf]
  %v158 = vld [vmem:[%s1 + $0x1f4] sm:$0xf]
  %v159 = vld [vmem:[%s1 + $0x1f8] sm:$0xf]
  %v160 = vld [vmem:[%s1 + $0x1fc] sm:$0xf]
  %v161 = vld [vmem:[%s1 + $0x200] sm:$0xf]
  %v162 = vld [vmem:[%s1 + $0x204] sm:$0xf]
  %v163 = vld [vmem:[%s1 + $0x208] sm:$0xf]
  %v164 = vld [vmem:[%s1 + $0x20c] sm:$0xf]
  %v165 = vld [vmem:[%s1 + $0x210] sm:$0xf]
  %v166 = vld [vmem:[%s1 + $0x214] sm:$0xf]
  %v167 = vld [vmem:[%s1 + $0x218] sm:$0xf]
  %v168 = vld [vmem:[%s1 + $0x21c] sm:$0xf]
  %v169 = vld [vmem:[%s1 + $0x220] sm:$0xf]
  %v170 = vld [vmem:[%s1 + $0x224] sm:$0xf]
  %v171 = vld [vmem:[%s1 + $0x228] sm:$0xf]
  %v172 = vld [vmem:[%s1 + $0x22c] sm:$0xf]
  %v173 = vld [vmem:[%s1 + $0x230] sm:$0xf]
  %v174 = vld [vmem:[%s1 + $0x234] sm:$0xf]
  %v175 = vld [vmem:[%s1 + $0x238] sm:$0xf]
  %v176 = vld [vmem:[%s1 + $0x23c] sm:$0xf]
  %v177 = vld [vmem:[%s1 + $0x240] sm:$0xf]
  %v178 = vld [vmem:[%s1 + $0x244] sm:$0xf]
  %v179 = vld [vmem:[%s1 + $0x248] sm:$0xf]
  %v180 = vld [vmem:[%s1 + $0x24c] sm:$0xf]
  %v181 = vld [vmem:[%s1 + $0x250] sm:$0xf]
  %v182 = vld [vmem:[%s1 + $0x254] sm:$0xf]
  %v183 = vld [vmem:[%s1 + $0x258] sm:$0xf]
  %v184 = vld [vmem:[%s1 + $0x25c] sm:$0xf]
  %v185 = vld [vmem:[%s1 + $0x260] sm:$0xf]
  %v186 = vld [vmem:[%s1 + $0x264] sm:$0xf]
  %v187 = vld [vmem:[%s1 + $0x268] sm:$0xf]
  %v188 = vld [vmem:[%s1 + $0x26c] sm:$0xf]
  %v189 = vld [vmem:[%s1 + $0x270] sm:$0xf]
  %v190 = vld [vmem:[%s1 + $0x274] sm:$0xf]
  %v191 = vld [vmem:[%s1 + $0x278] sm:$0xf]
  %v192 = vld [vmem:[%s1 + $0x27c] sm:$0xf]
  %v193 = vld [vmem:[%s1 + $0x280] sm:$0xf]
  %v194 = vld [vmem:[%s1 + $0x284] sm:$0xf]
  %v195 = vld [vmem:[%s1 + $0x288] sm:$0xf]
  %v196 = vld [vmem:[%s1 + $0x28c] sm:$0xf]
  %v197 = vld [vmem:[%s1 + $0x290] sm:$0xf]
  %v198 = vld [vmem:[%s1 + $0x294] sm:$0xf]
  %v199 = vld [vmem:[%s1 + $0x298] sm:$0xf]
  %v200 = vld [vmem:[%s1 + $0x29c] sm:$0xf]
  %v201 = vld [vmem:[%s1 + $0x2a0] sm:$0xf]
  %v202 = vld [vmem:[%s1 + $0x2a4] sm:$0xf]
  %v203 = vld [vmem:[%s1 + $0x2a8] sm:$0xf]
  %v204 = vld [vmem:[%s1 + $0x2ac] sm:$0xf]
  %v205 = vld [vmem:[%s1 + $0x2b0] sm:$0xf]
  %v206 = vld [vmem:[%s1 + $0x2b4] sm:$0xf]
  %v207 = vld [vmem:[%s1 + $0x2b8] sm:$0xf]
  %v208 = vld [vmem:[%s1 + $0x2bc] sm:$0xf]
  %v209 = vld [vmem:[%s1 + $0x2c0] sm:$0xf]
  %v210 = vld [vmem:[%s1 + $0x2c4] sm:$0xf]
  %v211 = vld [vmem:[%s1 + $0x2c8] sm:$0xf]
  %v212 = vld [vmem:[%s1 + $0x2cc] sm:$0xf]
  %v213 = vld [vmem:[%s1 + $0x2d0] sm:$0xf]
  %v214 = vld [vmem:[%s1 + $0x2d4] sm:$0xf]
  %v215 = vld [vmem:[%s1 + $0x2d8] sm:$0xf]
  %v216 = vld [vmem:[%s1 + $0x2dc] sm:$0xf]
  %v217 = vld [vmem:[%s1 + $0x2e0] sm:$0xf]
  %v218 = vld [vmem:[%s1 + $0x2e4] sm:$0xf]
  %v219 = vld [vmem:[%s1 + $0x2e8] sm:$0xf]
  %v220 = vld [vmem:[%s1 + $0x2ec] sm:$0xf]
  %v221 = vld [vmem:[%s1 + $0x2f0] sm:$0xf]
  %v222 = vld [vmem:[%s1 + $0x2f4] sm:$0xf]
  %v223 = vld [vmem:[%s1 + $0x2f8] sm:$0xf]
  %v224 = vld [vmem:[%s1 + $0x2fc] sm:$0xf]
  %v225 = vld [vmem:[%s1 + $0x300] sm:$0xf]
  %v226 = vld [vmem:[%s1 + $0x304] sm:$0xf]
  %v227 = vld [vmem:[%s1 + $0x308] sm:$0xf]
  %v228 = vld [vmem:[%s1 + $0x30c] sm:$0xf]
  %v229 = vld [vmem:[%s1 + $0x310] sm:$0xf]
  %v230 = vld [vmem:[%s1 + $0x314] sm:$0xf]
  %v231 = vld [vmem:[%s1 + $0x318] sm:$0xf]
  %v232 = vld [vmem:[%s1 + $0x31c] sm:$0xf]
  %v233 = vld [vmem:[%s1 + $0x320] sm:$0xf]
  %v234 = vld [vmem:[%s1 + $0x324] sm:$0xf]
  %v235 = vld [vmem:[%s1 + $0x328] sm:$0xf]
  %v236 = vld [vmem:[%s1 + $0x32c] sm:$0xf]
  %v237 = vld [vmem:[%s1 + $0x330] sm:$0xf]
  %v238 = vld [vmem:[%s1 + $0x334] sm:$0xf]
  %v239 = vld [vmem:[%s1 + $0x338] sm:$0xf]
  %v240 = vld [vmem:[%s1 + $0x33c] sm:$0xf]
  %v241 = vld [vmem:[%s1 + $0x340] sm:$0xf]
  %v242 = vld [vmem:[%s1 + $0x344] sm:$0xf]
  %v243 = vld [vmem:[%s1 + $0x348] sm:$0xf]
  %v244 = vld [vmem:[%s1 + $0x34c] sm:$0xf]
  %v245 = vld [vmem:[%s1 + $0x350] sm:$0xf]
  %v246 = vld [vmem:[%s1 + $0x354] sm:$0xf]
  %v247 = vld [vmem:[%s1 + $0x358] sm:$0xf]
  %v248 = vld [vmem:[%s1 + $0x35c] sm:$0xf]
  %v249 = vld [vmem:[%s1 + $0x360] sm:$0xf]
  %v250 = vld [vmem:[%s1 + $0x364] sm:$0xf]
  %v251 = vld [vmem:[%s1 + $0x368] sm:$0xf]
  %v252 = vld [vmem:[%s1 + $0x36c] sm:$0xf]
  %v253 = vld [vmem:[%s1 + $0x370] sm:$0xf]
  %v254 = vld [vmem:[%s1 + $0x374] sm:$0xf]
  %v255 = vld [vmem:[%s1 + $0x378] sm:$0xf]
  %v256 = vld [vmem:[%s1 + $0x37c] sm:$0xf]
  %v257 = vld [vmem:[%s1 + $0x380] sm:$0xf]
  %v258 = vld [vmem:[%s1 + $0x384] sm:$0xf]
  %v259 = vld [vmem:[%s1 + $0x388] sm:$0xf]
  %v260 = vld [vmem:[%s1 + $0x38c] sm:$0xf]
  %v261 = vld [vmem:[%s1 + $0x390] sm:$0xf]
  %v262 = vld [vmem:[%s1 + $0x394] sm:$0xf]
  %v263 = vld [vmem:[%s1 + $0x398] sm:$0xf]
  %v264 = vld [vmem:[%s1 + $0x39c] sm:$0xf]
  %v265 = vld [vmem:[%s1 + $0x3a0] sm:$0xf]
  %v266 = vld [vmem:[%s1 + $0x3a4] sm:$0xf]
  %v267 = vld [vmem:[%s1 + $0x3a8] sm:$0xf]
  %v268 = vld [vmem:[%s1 + $0x3ac] sm:$0xf]
  %v269 = vld [vmem:[%s1 + $0x3b0] sm:$0xf]
  %v270 = vld [vmem:[%s1 + $0x3b4] sm:$0xf]
  %v271 = vld [vmem:[%s1 + $0x3b8] sm:$0xf]
  %v272 = vld [vmem:[%s1 + $0x3bc] sm:$0xf]
  %v273 = vld [vmem:[%s1 + $0x3c0] sm:$0xf]
  %v274 = vld [vmem:[%s1 + $0x3c4] sm:$0xf]
  %v275 = vld [vmem:[%s1 + $0x3c8] sm:$0xf]
  %v276 = vld [vmem:[%s1 + $0x3cc] sm:$0xf]
  %v277 = vld [vmem:[%s1 + $0x3d0] sm:$0xf]
  %v278 = vld [vmem:[%s1 + $0x3d4] sm:$0xf]
  %v279 = vld [vmem:[%s1 + $0x3d8] sm:$0xf]
  %v280 = vld [vmem:[%s1 + $0x3dc] sm:$0xf]
  %v281 = vld [vmem:[%s1 + $0x3e0] sm:$0xf]
  %v282 = vld [vmem:[%s1 + $0x3e4] sm:$0xf]
  %v283 = vld [vmem:[%s1 + $0x3e8] sm:$0xf]
  %v284 = vld [vmem:[%s1 + $0x3ec] sm:$0xf]
  %v285 = vld [vmem:[%s1 + $0x3f0] sm:$0xf]
  %v286 = vld [vmem:[%s1 + $0x3f4] sm:$0xf]
  %v287 = vld [vmem:[%s1 + $0x3f8] sm:$0xf]
  %v288 = vld [vmem:[%s1 + $0x3fc] sm:$0xf]
  %v289 = vld [vmem:[%s1 + $0x400] sm:$0xf]
  %v290 = vld [vmem:[%s1 + $0x404] sm:$0xf]
  %v291 = vld [vmem:[%s1 + $0x408] sm:$0xf]
  %v292 = vld [vmem:[%s1 + $0x40c] sm:$0xf]
  %v293 = vld [vmem:[%s1 + $0x410] sm:$0xf]
  %v294 = vld [vmem:[%s1 + $0x414] sm:$0xf]
  %v295 = vld [vmem:[%s1 + $0x418] sm:$0xf]
  %v296 = vld [vmem:[%s1 + $0x41c] sm:$0xf]
  %v297 = vld [vmem:[%s1 + $0x420] sm:$0xf]
  %v298 = vld [vmem:[%s1 + $0x424] sm:$0xf]
  %v299 = vld [vmem:[%s1 + $0x428] sm:$0xf]
  %v300 = vld [vmem:[%s1 + $0x42c] sm:$0xf]
  %v301 = vld [vmem:[%s1 + $0x430] sm:$0xf]
  %v302 = vld [vmem:[%s1 + $0x434] sm:$0xf]
  %v303 = vld [vmem:[%s1 + $0x438] sm:$0xf]
  %v304 = vld [vmem:[%s1 + $0x43c] sm:$0xf]
  %v305 = vld [vmem:[%s1 + $0x440] sm:$0xf]
  %v306 = vld [vmem:[%s1 + $0x444] sm:$0xf]
  %v307 = vld [vmem:[%s1 + $0x448] sm:$0xf]
  %v308 = vld [vmem:[%s1 + $0x44c] sm:$0xf]
  %v309 = vld [vmem:[%s1 + $0x450] sm:$0xf]
  %v310 = vld [vmem:[%s1 + $0x454] sm:$0xf]
  %v311 = vld [vmem:[%s1 + $0x458] sm:$0xf]
  %v312 = vld [vmem:[%s1 + $0x45c] sm:$0xf]
  %v313 = vld [vmem:[%s1 + $0x460] sm:$0xf]
  %v314 = vld [vmem:[%s1 + $0x464] sm:$0xf]
  %v315 = vld [vmem:[%s1 + $0x468] sm:$0xf]
  %v316 = vld [vmem:[%s1 + $0x46c] sm:$0xf]
  %v317 = vld [vmem:[%s1 + $0x470] sm:$0xf]
  %v318 = vld [vmem:[%s1 + $0x474] sm:$0xf]
  %v319 = vld [vmem:[%s1 + $0x478] sm:$0xf]
  %v320 = vld [vmem:[%s1 + $0x47c] sm:$0xf]
  %v321 = vld [vmem:[%s1 + $0x480] sm:$0xf]
  %v322 = vld [vmem:[%s1 + $0x484] sm:$0xf]
  %v323 = vld [vmem:[%s1 + $0x488] sm:$0xf]
  %v324 = vld [vmem:[%s1 + $0x48c] sm:$0xf]
  %v325 = vld [vmem:[%s1 + $0x490] sm:$0xf]
  %v326 = vld [vmem:[%s1 + $0x494] sm:$0xf]
  %v327 = vld [vmem:[%s1 + $0x498] sm:$0xf]
  %v328 = vld [vmem:[%s1 + $0x49c] sm:$0xf]
  %v329 = vld [vmem:[%s1 + $0x4a0] sm:$0xf]
  %v330 = vld [vmem:[%s1 + $0x4a4] sm:$0xf]
  %v331 = vld [vmem:[%s1 + $0x4a8] sm:$0xf]
  %v332 = vld [vmem:[%s1 + $0x4ac] sm:$0xf]
  %v333 = vld [vmem:[%s1 + $0x4b0] sm:$0xf]
  %v334 = vld [vmem:[%s1 + $0x4b4] sm:$0xf]
  %v335 = vld [vmem:[%s1 + $0x4b8] sm:$0xf]
  %v336 = vld [vmem:[%s1 + $0x4bc] sm:$0xf]
  %v337 = vld [vmem:[%s1 + $0x4c0] sm:$0xf]
  %v338 = vld [vmem:[%s1 + $0x4c4] sm:$0xf]
  %v339 = vld [vmem:[%s1 + $0x4c8] sm:$0xf]
  %v340 = vld [vmem:[%s1 + $0x4cc] sm:$0xf]
  %v341 = vld [vmem:[%s1 + $0x4d0] sm:$0xf]
  %v342 = vld [vmem:[%s1 + $0x4d4] sm:$0xf]
  %v343 = vld [vmem:[%s1 + $0x4d8] sm:$0xf]
  %v344 = vld [vmem:[%s1 + $0x4dc] sm:$0xf]
  %v345 = vld [vmem:[%s1 + $0x4e0] sm:$0xf]
  %v346 = vld [vmem:[%s1 + $0x4e4] sm:$0xf]
  %v347 = vld [vmem:[%s1 + $0x4e8] sm:$0xf]
  %v348 = vld [vmem:[%s1 + $0x4ec] sm:$0xf]
  %v349 = vld [vmem:[%s1 + $0x4f0] sm:$0xf]
  %v350 = vld [vmem:[%s1 + $0x4f4] sm:$0xf]
  %v351 = vld [vmem:[%s1 + $0x4f8] sm:$0xf]
  %v352 = vld [vmem:[%s1 + $0x4fc] sm:$0xf]
  %v353 = vld [vmem:[%s1 + $0x500] sm:$0xf]
  %v354 = vld [vmem:[%s1 + $0x504] sm:$0xf]
  %v355 = vld [vmem:[%s1 + $0x508] sm:$0xf]
  %v356 = vld [vmem:[%s1 + $0x50c] sm:$0xf]
  %v357 = vld [vmem:[%s1 + $0x510] sm:$0xf]
  %v358 = vld [vmem:[%s1 + $0x514] sm:$0xf]
  %v359 = vld [vmem:[%s1 + $0x518] sm:$0xf]
  %v360 = vld [vmem:[%s1 + $0x51c] sm:$0xf]
  %v361 = vld [vmem:[%s1 + $0x520] sm:$0xf]
  %v362 = vld [vmem:[%s1 + $0x524] sm:$0xf]
  %v363 = vld [vmem:[%s1 + $0x528] sm:$0xf]
  %v364 = vld [vmem:[%s1 + $0x52c] sm:$0xf]
  %v365 = vld [vmem:[%s1 + $0x530] sm:$0xf]
  %v366 = vld [vmem:[%s1 + $0x534] sm:$0xf]
  %v367 = vld [vmem:[%s1 + $0x538] sm:$0xf]
  %v368 = vld [vmem:[%s1 + $0x53c] sm:$0xf]
  %v369 = vld [vmem:[%s1 + $0x540] sm:$0xf]
  %v370 = vld [vmem:[%s1 + $0x544] sm:$0xf]
  %v371 = vld [vmem:[%s1 + $0x548] sm:$0xf]
  %v372 = vld [vmem:[%s1 + $0x54c] sm:$0xf]
  %v373 = vld [vmem:[%s1 + $0x550] sm:$0xf]
  %v374 = vld [vmem:[%s1 + $0x554] sm:$0xf]
  %v375 = vld [vmem:[%s1 + $0x558] sm:$0xf]
  %v376 = vld [vmem:[%s1 + $0x55c] sm:$0xf]
  %v377 = vld [vmem:[%s1 + $0x560] sm:$0xf]
  %v378 = vld [vmem:[%s1 + $0x564] sm:$0xf]
  %v379 = vld [vmem:[%s1 + $0x568] sm:$0xf]
  %v380 = vld [vmem:[%s1 + $0x56c] sm:$0xf]
  %v381 = vld [vmem:[%s1 + $0x570] sm:$0xf]
  %v382 = vld [vmem:[%s1 + $0x574] sm:$0xf]
  %v383 = vld [vmem:[%s1 + $0x578] sm:$0xf]
  %v384 = vld [vmem:[%s1 + $0x57c] sm:$0xf]
  %v385 = vld [vmem:[%s1 + $0x580] sm:$0xf]
  %v386 = vld [vmem:[%s1 + $0x584] sm:$0xf]
  %v387 = vld [vmem:[%s1 + $0x588] sm:$0xf]
  %v388 = vld [vmem:[%s1 + $0x58c] sm:$0xf]
  %v389 = vld [vmem:[%s1 + $0x590] sm:$0xf]
  %v390 = vld [vmem:[%s1 + $0x594] sm:$0xf]
  %v391 = vld [vmem:[%s1 + $0x598] sm:$0xf]
  %v392 = vld [vmem:[%s1 + $0x59c] sm:$0xf]
  %v393 = vld [vmem:[%s1 + $0x5a0] sm:$0xf]
  %v394 = vld [vmem:[%s1 + $0x5a4] sm:$0xf]
  %v395 = vld [vmem:[%s1 + $0x5a8] sm:$0xf]
  %v396 = vld [vmem:[%s1 + $0x5ac] sm:$0xf]
  %v397 = vld [vmem:[%s1 + $0x5b0] sm:$0xf]
  %v398 = vld [vmem:[%s1 + $0x5b4] sm:$0xf]
  %v399 = vld [vmem:[%s1 + $0x5b8] sm:$0xf]
  %v400 = vld [vmem:[%s1 + $0x5bc] sm:$0xf]
  %v401 = vld [vmem:[%s1 + $0x5c0] sm:$0xf]
  %v402 = vld [vmem:[%s1 + $0x5c4] sm:$0xf]
  %v403 = vld [vmem:[%s1 + $0x5c8] sm:$0xf]
  %v404 = vld [vmem:[%s1 + $0x5cc] sm:$0xf]
  %v405 = vld [vmem:[%s1 + $0x5d0] sm:$0xf]
  %v406 = vld [vmem:[%s1 + $0x5d4] sm:$0xf]
  %v407 = vld [vmem:[%s1 + $0x5d8] sm:$0xf]
  %v408 = vld [vmem:[%s1 + $0x5dc] sm:$0xf]
  %v409 = vld [vmem:[%s1 + $0x5e0] sm:$0xf]
  %v410 = vld [vmem:[%s1 + $0x5e4] sm:$0xf]
  %v411 = vld [vmem:[%s1 + $0x5e8] sm:$0xf]
  %v412 = vld [vmem:[%s1 + $0x5ec] sm:$0xf]
  %v413 = vld [vmem:[%s1 + $0x5f0] sm:$0xf]
  %v414 = vld [vmem:[%s1 + $0x5f4] sm:$0xf]
  %v415 = vld [vmem:[%s1 + $0x5f8] sm:$0xf]
  %v416 = vld [vmem:[%s1 + $0x5fc] sm:$0xf]
  %v417 = vld [vmem:[%s1 + $0x600] sm:$0xf]
  %v418 = vld [vmem:[%s1 + $0x604] sm:$0xf]
  %v419 = vld [vmem:[%s1 + $0x608] sm:$0xf]
  %v420 = vld [vmem:[%s1 + $0x60c] sm:$0xf]
  %v421 = vld [vmem:[%s1 + $0x610] sm:$0xf]
  %v422 = vld [vmem:[%s1 + $0x614] sm:$0xf]
  %v423 = vld [vmem:[%s1 + $0x618] sm:$0xf]
  %v424 = vld [vmem:[%s1 + $0x61c] sm:$0xf]
  %v425 = vld [vmem:[%s1 + $0x620] sm:$0xf]
  %v426 = vld [vmem:[%s1 + $0x624] sm:$0xf]
  %v427 = vld [vmem:[%s1 + $0x628] sm:$0xf]
  %v428 = vld [vmem:[%s1 + $0x62c] sm:$0xf]
  %v429 = vld [vmem:[%s1 + $0x630] sm:$0xf]
  %v430 = vld [vmem:[%s1 + $0x634] sm:$0xf]
  %v431 = vld [vmem:[%s1 + $0x638] sm:$0xf]
  %v432 = vld [vmem:[%s1 + $0x63c] sm:$0xf]
  %v433 = vld [vmem:[%s1 + $0x640] sm:$0xf]
  %v434 = vld [vmem:[%s1 + $0x644] sm:$0xf]
  %v435 = vld [vmem:[%s1 + $0x648] sm:$0xf]
  %v436 = vld [vmem:[%s1 + $0x64c] sm:$0xf]
  %v437 = vld [vmem:[%s1 + $0x650] sm:$0xf]
  %v438 = vld [vmem:[%s1 + $0x654] sm:$0xf]
  %v439 = vld [vmem:[%s1 + $0x658] sm:$0xf]
  %v440 = vld [vmem:[%s1 + $0x65c] sm:$0xf]
  %v441 = vld [vmem:[%s1 + $0x660] sm:$0xf]
  %v442 = vld [vmem:[%s1 + $0x664] sm:$0xf]
  %v443 = vld [vmem:[%s1 + $0x668] sm:$0xf]
  %v444 = vld [vmem:[%s1 + $0x66c] sm:$0xf]
  %v445 = vld [vmem:[%s1 + $0x670] sm:$0xf]
  %v446 = vld [vmem:[%s1 + $0x674] sm:$0xf]
  %v447 = vld [vmem:[%s1 + $0x678] sm:$0xf]
  %v448 = vld [vmem:[%s1 + $0x67c] sm:$0xf]
  %v449 = vld [vmem:[%s1 + $0x680] sm:$0xf]
  %v450 = vld [vmem:[%s1 + $0x684] sm:$0xf]
  %v451 = vld [vmem:[%s1 + $0x688] sm:$0xf]
  %v452 = vld [vmem:[%s1 + $0x68c] sm:$0xf]
  %v453 = vld [vmem:[%s1 + $0x690] sm:$0xf]
  %v454 = vld [vmem:[%s1 + $0x694] sm:$0xf]
  %v455 = vld [vmem:[%s1 + $0x698] sm:$0xf]
  %v456 = vld [vmem:[%s1 + $0x69c] sm:$0xf]
  %v457 = vld [vmem:[%s1 + $0x6a0] sm:$0xf]
  %v458 = vld [vmem:[%s1 + $0x6a4] sm:$0xf]
  %v459 = vld [vmem:[%s1 + $0x6a8] sm:$0xf]
  %v460 = vld [vmem:[%s1 + $0x6ac] sm:$0xf]
  %v461 = vld [vmem:[%s1 + $0x6b0] sm:$0xf]
  %v462 = vld [vmem:[%s1 + $0x6b4] sm:$0xf]
  %v463 = vld [vmem:[%s1 + $0x6b8] sm:$0xf]
  %v464 = vld [vmem:[%s1 + $0x6bc] sm:$0xf]
  %v465 = vld [vmem:[%s1 + $0x6c0] sm:$0xf]
  %v466 = vld [vmem:[%s1 + $0x6c4] sm:$0xf]
  %v467 = vld [vmem:[%s1 + $0x6c8] sm:$0xf]
  %v468 = vld [vmem:[%s1 + $0x6cc] sm:$0xf]
  %v469 = vld [vmem:[%s1 + $0x6d0] sm:$0xf]
  %v470 = vld [vmem:[%s1 + $0x6d4] sm:$0xf]
  %v471 = vld [vmem:[%s1 + $0x6d8] sm:$0xf]
  %v472 = vld [vmem:[%s1 + $0x6dc] sm:$0xf]
  %v473 = vld [vmem:[%s1 + $0x6e0] sm:$0xf]
  %v474 = vld [vmem:[%s1 + $0x6e4] sm:$0xf]
  %v475 = vld [vmem:[%s1 + $0x6e8] sm:$0xf]
  %v476 = vld [vmem:[%s1 + $0x6ec] sm:$0xf]
  %v477 = vld [vmem:[%s1 + $0x6f0] sm:$0xf]
  %v478 = vld [vmem:[%s1 + $0x6f4] sm:$0xf]
  %v479 = vld [vmem:[%s1 + $0x6f8] sm:$0xf]
  %v480 = vld [vmem:[%s1 + $0x6fc] sm:$0xf]
  %v481 = vld [vmem:[%s1 + $0x700] sm:$0xf]
  %v482 = vld [vmem:[%s1 + $0x704] sm:$0xf]
  %v483 = vld [vmem:[%s1 + $0x708] sm:$0xf]
  %v484 = vld [vmem:[%s1 + $0x70c] sm:$0xf]
  %v485 = vld [vmem:[%s1 + $0x710] sm:$0xf]
  %v486 = vld [vmem:[%s1 + $0x714] sm:$0xf]
  %v487 = vld [vmem:[%s1 + $0x718] sm:$0xf]
  %v488 = vld [vmem:[%s1 + $0x71c] sm:$0xf]
  %v489 = vld [vmem:[%s1 + $0x720] sm:$0xf]
  %v490 = vld [vmem:[%s1 + $0x724] sm:$0xf]
  %v491 = vld [vmem:[%s1 + $0x728] sm:$0xf]
  %v492 = vld [vmem:[%s1 + $0x72c] sm:$0xf]
  %v493 = vld [vmem:[%s1 + $0x730] sm:$0xf]
  %v494 = vld [vmem:[%s1 + $0x734] sm:$0xf]
  %v495 = vld [vmem:[%s1 + $0x738] sm:$0xf]
  %v496 = vld [vmem:[%s1 + $0x73c] sm:$0xf]
  %v497 = vld [vmem:[%s1 + $0x740] sm:$0xf]
  %v498 = vld [vmem:[%s1 + $0x744] sm:$0xf]
  %v499 = vld [vmem:[%s1 + $0x748] sm:$0xf]
  %v500 = vld [vmem:[%s1 + $0x74c] sm:$0xf]
  %v501 = vld [vmem:[%s1 + $0x750] sm:$0xf]
  %v502 = vld [vmem:[%s1 + $0x754] sm:$0xf]
  %v503 = vld [vmem:[%s1 + $0x758] sm:$0xf]
  %v504 = vld [vmem:[%s1 + $0x75c] sm:$0xf]
  %v505 = vld [vmem:[%s1 + $0x760] sm:$0xf]
  %v506 = vld [vmem:[%s1 + $0x764] sm:$0xf]
  %v507 = vld [vmem:[%s1 + $0x768] sm:$0xf]
  %v508 = vld [vmem:[%s1 + $0x76c] sm:$0xf]
  %v509 = vld [vmem:[%s1 + $0x770] sm:$0xf]
  %v510 = vld [vmem:[%s1 + $0x774] sm:$0xf]
  %v511 = vld [vmem:[%s1 + $0x778] sm:$0xf]
  %v512 = vld [vmem:[%s1 + $0x77c] sm:$0xf]
  %v513 = vld [vmem:[%s1 + $0x780] sm:$0xf]
  %v514 = vld [vmem:[%s1 + $0x784] sm:$0xf]
  %v515 = vld [vmem:[%s1 + $0x788] sm:$0xf]
  %v516 = vld [vmem:[%s1 + $0x78c] sm:$0xf]
  %v517 = vld [vmem:[%s1 + $0x790] sm:$0xf]
  %v518 = vld [vmem:[%s1 + $0x794] sm:$0xf]
  %v519 = vld [vmem:[%s1 + $0x798] sm:$0xf]
  %v520 = vld [vmem:[%s1 + $0x79c] sm:$0xf]
  %v521 = vld [vmem:[%s1 + $0x7a0] sm:$0xf]
  %v522 = vld [vmem:[%s1 + $0x7a4] sm:$0xf]
  %v523 = vld [vmem:[%s1 + $0x7a8] sm:$0xf]
  %v524 = vld [vmem:[%s1 + $0x7ac] sm:$0xf]
  %v525 = vld [vmem:[%s1 + $0x7b0] sm:$0xf]
  %v526 = vld [vmem:[%s1 + $0x7b4] sm:$0xf]
  %v527 = vld [vmem:[%s1 + $0x7b8] sm:$0xf]
  %v528 = vld [vmem:[%s1 + $0x7bc] sm:$0xf]
  %v529 = vld [vmem:[%s1 + $0x7c0] sm:$0xf]
  %v530 = vld [vmem:[%s1 + $0x7c4] sm:$0xf]
  %v531 = vld [vmem:[%s1 + $0x7c8] sm:$0xf]
  %v532 = vld [vmem:[%s1 + $0x7cc] sm:$0xf]
  %v533 = vld [vmem:[%s1 + $0x7d0] sm:$0xf]
  %v534 = vld [vmem:[%s1 + $0x7d4] sm:$0xf]
  %v535 = vld [vmem:[%s1 + $0x7d8] sm:$0xf]
  %v536 = vld [vmem:[%s1 + $0x7dc] sm:$0xf]
  %v537 = vld [vmem:[%s1 + $0x7e0] sm:$0xf]
  %v538 = vld [vmem:[%s1 + $0x7e4] sm:$0xf]
  %v539 = vld [vmem:[%s1 + $0x7e8] sm:$0xf]
  %v540 = vld [vmem:[%s1 + $0x7ec] sm:$0xf]
  %v541 = vld [vmem:[%s1 + $0x7f0] sm:$0xf]
  %v542 = vld [vmem:[%s1 + $0x7f4] sm:$0xf]
  %v543 = vld [vmem:[%s1 + $0x7f8] sm:$0xf]
  %v544 = vld [vmem:[%s1 + $0x7fc] sm:$0xf]
  %v545 = vld [vmem:[%s2] sm:$0x1]
  %v547 = vlaneseq
  %v548 = vshrl.u32 %v547, 7
  %v549 = vsub.s32 0, %v548
  %v550 = vrot.slane %v545, %v549
  %v556 = vcombine.high %v29, %v29
  %v558 = vunpack.c.l.s4 1966171168
  %v559 = vunpack.c.0.s8 %v558
  %v560 = vlaneseq
  %v561 = vshrl.u32 %v560, 7
  %v562 = vsub.s32 %v559, %v561
  %v563 = vrot.slane %v29, %v562
  %v565 = vunpack.c.l.s4 1966171168
  %v566 = vunpack.c.0.s8 %v565
  %v567 = vlaneseq
  %v568 = vshrl.u32 %v567, 7
  %v569 = vsub.s32 %v566, %v568
  %v570 = vrot.slane %v556, %v569
  %v571 = vcombine.high %v563, %v563
  %v572 = vcombine.high %v570, %v570
  %v574 = vunpack.c.l.s4 1966171168
  %v575 = vunpack.c.0.s8 %v574
  %v576 = vlaneseq
  %v577 = vshrl.u32 %v576, 7
  %v578 = vsub.s32 %v575, %v577
  %v579 = vrot.slane %v563, %v578
  %v581 = vunpack.c.l.s4 1966171168
  %v582 = vunpack.c.0.s8 %v581
  %v583 = vlaneseq
  %v584 = vshrl.u32 %v583, 7
  %v585 = vsub.s32 %v582, %v584
  %v586 = vrot.slane %v570, %v585
  %v588 = vunpack.c.l.s4 1966171168
  %v589 = vunpack.c.0.s8 %v588
  %v590 = vlaneseq
  %v591 = vshrl.u32 %v590, 7
  %v592 = vsub.s32 %v589, %v591
  %v593 = vrot.slane %v571, %v592
  %v595 = vunpack.c.l.s4 1966171168
  %v596 = vunpack.c.0.s8 %v595
  %v597 = vlaneseq
  %v598 = vshrl.u32 %v597, 7
  %v599 = vsub.s32 %v596, %v598
  %v600 = vrot.slane %v572, %v599
  %v601 = vcombine.high %v579, %v579
  %v602 = vcombine.high %v586, %v586
  %v603 = vcombine.high %v593, %v593
  %v604 = vcombine.high %v600, %v600
  %v605 = vcombine.high %v30, %v30
  %v607 = vunpack.c.l.s4 1966171168
  %v608 = vunpack.c.0.s8 %v607
  %v609 = vlaneseq
  %v610 = vshrl.u32 %v609, 7
  %v611 = vsub.s32 %v608, %v610
  %v612 = vrot.slane %v30, %v611
  %v614 = vunpack.c.l.s4 1966171168
  %v615 = vunpack.c.0.s8 %v614
  %v616 = vlaneseq
  %v617 = vshrl.u32 %v616, 7
  %v618 = vsub.s32 %v615, %v617
  %v619 = vrot.slane %v605, %v618
  %v620 = vcombine.high %v612, %v612
  %v621 = vcombine.high %v619, %v619
  %v623 = vunpack.c.l.s4 1966171168
  %v624 = vunpack.c.0.s8 %v623
  %v625 = vlaneseq
  %v626 = vshrl.u32 %v625, 7
  %v627 = vsub.s32 %v624, %v626
  %v628 = vrot.slane %v612, %v627
  %v630 = vunpack.c.l.s4 1966171168
  %v631 = vunpack.c.0.s8 %v630
  %v632 = vlaneseq
  %v633 = vshrl.u32 %v632, 7
  %v634 = vsub.s32 %v631, %v633
  %v635 = vrot.slane %v619, %v634
  %v637 = vunpack.c.l.s4 1966171168
  %v638 = vunpack.c.0.s8 %v637
  %v639 = vlaneseq
  %v640 = vshrl.u32 %v639, 7
  %v641 = vsub.s32 %v638, %v640
  %v642 = vrot.slane %v620, %v641
  %v644 = vunpack.c.l.s4 1966171168
  %v645 = vunpack.c.0.s8 %v644
  %v646 = vlaneseq
  %v647 = vshrl.u32 %v646, 7
  %v648 = vsub.s32 %v645, %v647
  %v649 = vrot.slane %v621, %v648
  %v650 = vcombine.high %v628, %v628
  %v651 = vcombine.high %v635, %v635
  %v652 = vcombine.high %v642, %v642
  %v653 = vcombine.high %v649, %v649
  %v654 = vcombine.high %v31, %v31
  %v656 = vunpack.c.l.s4 1966171168
  %v657 = vunpack.c.0.s8 %v656
  %v658 = vlaneseq
  %v659 = vshrl.u32 %v658, 7
  %v660 = vsub.s32 %v657, %v659
  %v661 = vrot.slane %v31, %v660
  %v663 = vunpack.c.l.s4 1966171168
  %v664 = vunpack.c.0.s8 %v663
  %v665 = vlaneseq
  %v666 = vshrl.u32 %v665, 7
  %v667 = vsub.s32 %v664, %v666
  %v668 = vrot.slane %v654, %v667
  %v669 = vcombine.high %v661, %v661
  %v670 = vcombine.high %v668, %v668
  %v672 = vunpack.c.l.s4 1966171168
  %v673 = vunpack.c.0.s8 %v672
  %v674 = vlaneseq
  %v675 = vshrl.u32 %v674, 7
  %v676 = vsub.s32 %v673, %v675
  %v677 = vrot.slane %v661, %v676
  %v679 = vunpack.c.l.s4 1966171168
  %v680 = vunpack.c.0.s8 %v679
  %v681 = vlaneseq
  %v682 = vshrl.u32 %v681, 7
  %v683 = vsub.s32 %v680, %v682
  %v684 = vrot.slane %v668, %v683
  %v686 = vunpack.c.l.s4 1966171168
  %v687 = vunpack.c.0.s8 %v686
  %v688 = vlaneseq
  %v689 = vshrl.u32 %v688, 7
  %v690 = vsub.s32 %v687, %v689
  %v691 = vrot.slane %v669, %v690
  %v693 = vunpack.c.l.s4 1966171168
  %v694 = vunpack.c.0.s8 %v693
  %v695 = vlaneseq
  %v696 = vshrl.u32 %v695, 7
  %v697 = vsub.s32 %v694, %v696
  %v698 = vrot.slane %v670, %v697
  %v699 = vcombine.high %v677, %v677
  %v700 = vcombine.high %v684, %v684
  %v701 = vcombine.high %v691, %v691
  %v702 = vcombine.high %v698, %v698
  %v703 = vcombine.high %v32, %v32
  %v705 = vunpack.c.l.s4 1966171168
  %v706 = vunpack.c.0.s8 %v705
  %v707 = vlaneseq
  %v708 = vshrl.u32 %v707, 7
  %v709 = vsub.s32 %v706, %v708
  %v710 = vrot.slane %v32, %v709
  %v712 = vunpack.c.l.s4 1966171168
  %v713 = vunpack.c.0.s8 %v712
  %v714 = vlaneseq
  %v715 = vshrl.u32 %v714, 7
  %v716 = vsub.s32 %v713, %v715
  %v717 = vrot.slane %v703, %v716
  %v718 = vcombine.high %v710, %v710
  %v719 = vcombine.high %v717, %v717
  %v721 = vunpack.c.l.s4 1966171168
  %v722 = vunpack.c.0.s8 %v721
  %v723 = vlaneseq
  %v724 = vshrl.u32 %v723, 7
  %v725 = vsub.s32 %v722, %v724
  %v726 = vrot.slane %v710, %v725
  %v728 = vunpack.c.l.s4 1966171168
  %v729 = vunpack.c.0.s8 %v728
  %v730 = vlaneseq
  %v731 = vshrl.u32 %v730, 7
  %v732 = vsub.s32 %v729, %v731
  %v733 = vrot.slane %v717, %v732
  %v735 = vunpack.c.l.s4 1966171168
  %v736 = vunpack.c.0.s8 %v735
  %v737 = vlaneseq
  %v738 = vshrl.u32 %v737, 7
  %v739 = vsub.s32 %v736, %v738
  %v740 = vrot.slane %v718, %v739
  %v742 = vunpack.c.l.s4 1966171168
  %v743 = vunpack.c.0.s8 %v742
  %v744 = vlaneseq
  %v745 = vshrl.u32 %v744, 7
  %v746 = vsub.s32 %v743, %v745
  %v747 = vrot.slane %v719, %v746
  %v748 = vcombine.high %v726, %v726
  %v749 = vcombine.high %v733, %v733
  %v750 = vcombine.high %v740, %v740
  %v751 = vcombine.high %v747, %v747
  %v1296 = vunpack.c.l.b16 %v33
  %v1297 = vunpack.c.l.b16 %v34
  %v1298 = vunpack.c.l.b16 %v35
  %v1299 = vunpack.c.l.b16 %v36
  %v1300 = vunpack.c.l.b16 %v37
  %v1301 = vunpack.c.l.b16 %v38
  %v1302 = vunpack.c.l.b16 %v39
  %v1303 = vunpack.c.l.b16 %v40
  %v1304 = vunpack.c.l.b16 %v41
  %v1305 = vunpack.c.l.b16 %v42
  %v1306 = vunpack.c.l.b16 %v43
  %v1307 = vunpack.c.l.b16 %v44
  %v1308 = vunpack.c.l.b16 %v45
  %v1309 = vunpack.c.l.b16 %v46
  %v1310 = vunpack.c.l.b16 %v47
  %v1311 = vunpack.c.l.b16 %v48
  %v1312 = vunpack.c.l.b16 %v49
  %v1313 = vunpack.c.l.b16 %v50
  %v1314 = vunpack.c.l.b16 %v51
  %v1315 = vunpack.c.l.b16 %v52
  %v1316 = vunpack.c.l.b16 %v53
  %v1317 = vunpack.c.l.b16 %v54
  %v1318 = vunpack.c.l.b16 %v55
  %v1319 = vunpack.c.l.b16 %v56
  %v1320 = vunpack.c.l.b16 %v57
  %v1321 = vunpack.c.l.b16 %v58
  %v1322 = vunpack.c.l.b16 %v59
  %v1323 = vunpack.c.l.b16 %v60
  %v1324 = vunpack.c.l.b16 %v61
  %v1325 = vunpack.c.l.b16 %v62
  %v1326 = vunpack.c.l.b16 %v63
  %v1327 = vunpack.c.l.b16 %v64
  %v1328 = vunpack.c.l.b16 %v65
  %v1329 = vunpack.c.l.b16 %v66
  %v1330 = vunpack.c.l.b16 %v67
  %v1331 = vunpack.c.l.b16 %v68
  %v1332 = vunpack.c.l.b16 %v69
  %v1333 = vunpack.c.l.b16 %v70
  %v1334 = vunpack.c.l.b16 %v71
  %v1335 = vunpack.c.l.b16 %v72
  %v1336 = vunpack.c.l.b16 %v73
  %v1337 = vunpack.c.l.b16 %v74
  %v1338 = vunpack.c.l.b16 %v75
  %v1339 = vunpack.c.l.b16 %v76
  %v1340 = vunpack.c.l.b16 %v77
  %v1341 = vunpack.c.l.b16 %v78
  %v1342 = vunpack.c.l.b16 %v79
  %v1343 = vunpack.c.l.b16 %v80
  %v1344 = vunpack.c.l.b16 %v81
  %v1345 = vunpack.c.l.b16 %v82
  %v1346 = vunpack.c.l.b16 %v83
  %v1347 = vunpack.c.l.b16 %v84
  %v1348 = vunpack.c.l.b16 %v85
  %v1349 = vunpack.c.l.b16 %v86
  %v1350 = vunpack.c.l.b16 %v87
  %v1351 = vunpack.c.l.b16 %v88
  %v1352 = vunpack.c.l.b16 %v89
  %v1353 = vunpack.c.l.b16 %v90
  %v1354 = vunpack.c.l.b16 %v91
  %v1355 = vunpack.c.l.b16 %v92
  %v1356 = vunpack.c.l.b16 %v93
  %v1357 = vunpack.c.l.b16 %v94
  %v1358 = vunpack.c.l.b16 %v95
  %v1359 = vunpack.c.l.b16 %v96
  %v1360 = vunpack.c.l.b16 %v97
  %v1361 = vunpack.c.l.b16 %v98
  %v1362 = vunpack.c.l.b16 %v99
  %v1363 = vunpack.c.l.b16 %v100
  %v1364 = vunpack.c.l.b16 %v101
  %v1365 = vunpack.c.l.b16 %v102
  %v1366 = vunpack.c.l.b16 %v103
  %v1367 = vunpack.c.l.b16 %v104
  %v1368 = vunpack.c.l.b16 %v105
  %v1369 = vunpack.c.l.b16 %v106
  %v1370 = vunpack.c.l.b16 %v107
  %v1371 = vunpack.c.l.b16 %v108
  %v1372 = vunpack.c.l.b16 %v109
  %v1373 = vunpack.c.l.b16 %v110
  %v1374 = vunpack.c.l.b16 %v111
  %v1375 = vunpack.c.l.b16 %v112
  %v1376 = vunpack.c.l.b16 %v113
  %v1377 = vunpack.c.l.b16 %v114
  %v1378 = vunpack.c.l.b16 %v115
  %v1379 = vunpack.c.l.b16 %v116
  %v1380 = vunpack.c.l.b16 %v117
  %v1381 = vunpack.c.l.b16 %v118
  %v1382 = vunpack.c.l.b16 %v119
  %v1383 = vunpack.c.l.b16 %v120
  %v1384 = vunpack.c.l.b16 %v121
  %v1385 = vunpack.c.l.b16 %v122
  %v1386 = vunpack.c.l.b16 %v123
  %v1387 = vunpack.c.l.b16 %v124
  %v1388 = vunpack.c.l.b16 %v125
  %v1389 = vunpack.c.l.b16 %v126
  %v1390 = vunpack.c.l.b16 %v127
  %v1391 = vunpack.c.l.b16 %v128
  %v1392 = vunpack.c.l.b16 %v129
  %v1393 = vunpack.c.l.b16 %v130
  %v1394 = vunpack.c.l.b16 %v131
  %v1395 = vunpack.c.l.b16 %v132
  %v1396 = vunpack.c.l.b16 %v133
  %v1397 = vunpack.c.l.b16 %v134
  %v1398 = vunpack.c.l.b16 %v135
  %v1399 = vunpack.c.l.b16 %v136
  %v1400 = vunpack.c.l.b16 %v137
  %v1401 = vunpack.c.l.b16 %v138
  %v1402 = vunpack.c.l.b16 %v139
  %v1403 = vunpack.c.l.b16 %v140
  %v1404 = vunpack.c.l.b16 %v141
  %v1405 = vunpack.c.l.b16 %v142
  %v1406 = vunpack.c.l.b16 %v143
  %v1407 = vunpack.c.l.b16 %v144
  %v1408 = vunpack.c.l.b16 %v145
  %v1409 = vunpack.c.l.b16 %v146
  %v1410 = vunpack.c.l.b16 %v147
  %v1411 = vunpack.c.l.b16 %v148
  %v1412 = vunpack.c.l.b16 %v149
  %v1413 = vunpack.c.l.b16 %v150
  %v1414 = vunpack.c.l.b16 %v151
  %v1415 = vunpack.c.l.b16 %v152
  %v1416 = vunpack.c.l.b16 %v153
  %v1417 = vunpack.c.l.b16 %v154
  %v1418 = vunpack.c.l.b16 %v155
  %v1419 = vunpack.c.l.b16 %v156
  %v1420 = vunpack.c.l.b16 %v157
  %v1421 = vunpack.c.l.b16 %v158
  %v1422 = vunpack.c.l.b16 %v159
  %v1423 = vunpack.c.l.b16 %v160
  %v1424 = vunpack.c.l.b16 %v161
  %v1425 = vunpack.c.l.b16 %v162
  %v1426 = vunpack.c.l.b16 %v163
  %v1427 = vunpack.c.l.b16 %v164
  %v1428 = vunpack.c.l.b16 %v165
  %v1429 = vunpack.c.l.b16 %v166
  %v1430 = vunpack.c.l.b16 %v167
  %v1431 = vunpack.c.l.b16 %v168
  %v1432 = vunpack.c.l.b16 %v169
  %v1433 = vunpack.c.l.b16 %v170
  %v1434 = vunpack.c.l.b16 %v171
  %v1435 = vunpack.c.l.b16 %v172
  %v1436 = vunpack.c.l.b16 %v173
  %v1437 = vunpack.c.l.b16 %v174
  %v1438 = vunpack.c.l.b16 %v175
  %v1439 = vunpack.c.l.b16 %v176
  %v1440 = vunpack.c.l.b16 %v177
  %v1441 = vunpack.c.l.b16 %v178
  %v1442 = vunpack.c.l.b16 %v179
  %v1443 = vunpack.c.l.b16 %v180
  %v1444 = vunpack.c.l.b16 %v181
  %v1445 = vunpack.c.l.b16 %v182
  %v1446 = vunpack.c.l.b16 %v183
  %v1447 = vunpack.c.l.b16 %v184
  %v1448 = vunpack.c.l.b16 %v185
  %v1449 = vunpack.c.l.b16 %v186
  %v1450 = vunpack.c.l.b16 %v187
  %v1451 = vunpack.c.l.b16 %v188
  %v1452 = vunpack.c.l.b16 %v189
  %v1453 = vunpack.c.l.b16 %v190
  %v1454 = vunpack.c.l.b16 %v191
  %v1455 = vunpack.c.l.b16 %v192
  %v1456 = vunpack.c.l.b16 %v193
  %v1457 = vunpack.c.l.b16 %v194
  %v1458 = vunpack.c.l.b16 %v195
  %v1459 = vunpack.c.l.b16 %v196
  %v1460 = vunpack.c.l.b16 %v197
  %v1461 = vunpack.c.l.b16 %v198
  %v1462 = vunpack.c.l.b16 %v199
  %v1463 = vunpack.c.l.b16 %v200
  %v1464 = vunpack.c.l.b16 %v201
  %v1465 = vunpack.c.l.b16 %v202
  %v1466 = vunpack.c.l.b16 %v203
  %v1467 = vunpack.c.l.b16 %v204
  %v1468 = vunpack.c.l.b16 %v205
  %v1469 = vunpack.c.l.b16 %v206
  %v1470 = vunpack.c.l.b16 %v207
  %v1471 = vunpack.c.l.b16 %v208
  %v1472 = vunpack.c.l.b16 %v209
  %v1473 = vunpack.c.l.b16 %v210
  %v1474 = vunpack.c.l.b16 %v211
  %v1475 = vunpack.c.l.b16 %v212
  %v1476 = vunpack.c.l.b16 %v213
  %v1477 = vunpack.c.l.b16 %v214
  %v1478 = vunpack.c.l.b16 %v215
  %v1479 = vunpack.c.l.b16 %v216
  %v1480 = vunpack.c.l.b16 %v217
  %v1481 = vunpack.c.l.b16 %v218
  %v1482 = vunpack.c.l.b16 %v219
  %v1483 = vunpack.c.l.b16 %v220
  %v1484 = vunpack.c.l.b16 %v221
  %v1485 = vunpack.c.l.b16 %v222
  %v1486 = vunpack.c.l.b16 %v223
  %v1487 = vunpack.c.l.b16 %v224
  %v1488 = vunpack.c.l.b16 %v225
  %v1489 = vunpack.c.l.b16 %v226
  %v1490 = vunpack.c.l.b16 %v227
  %v1491 = vunpack.c.l.b16 %v228
  %v1492 = vunpack.c.l.b16 %v229
  %v1493 = vunpack.c.l.b16 %v230
  %v1494 = vunpack.c.l.b16 %v231
  %v1495 = vunpack.c.l.b16 %v232
  %v1496 = vunpack.c.l.b16 %v233
  %v1497 = vunpack.c.l.b16 %v234
  %v1498 = vunpack.c.l.b16 %v235
  %v1499 = vunpack.c.l.b16 %v236
  %v1500 = vunpack.c.l.b16 %v237
  %v1501 = vunpack.c.l.b16 %v238
  %v1502 = vunpack.c.l.b16 %v239
  %v1503 = vunpack.c.l.b16 %v240
  %v1504 = vunpack.c.l.b16 %v241
  %v1505 = vunpack.c.l.b16 %v242
  %v1506 = vunpack.c.l.b16 %v243
  %v1507 = vunpack.c.l.b16 %v244
  %v1508 = vunpack.c.l.b16 %v245
  %v1509 = vunpack.c.l.b16 %v246
  %v1510 = vunpack.c.l.b16 %v247
  %v1511 = vunpack.c.l.b16 %v248
  %v1512 = vunpack.c.l.b16 %v249
  %v1513 = vunpack.c.l.b16 %v250
  %v1514 = vunpack.c.l.b16 %v251
  %v1515 = vunpack.c.l.b16 %v252
  %v1516 = vunpack.c.l.b16 %v253
  %v1517 = vunpack.c.l.b16 %v254
  %v1518 = vunpack.c.l.b16 %v255
  %v1519 = vunpack.c.l.b16 %v256
  %v1520 = vunpack.c.l.b16 %v257
  %v1521 = vunpack.c.l.b16 %v258
  %v1522 = vunpack.c.l.b16 %v259
  %v1523 = vunpack.c.l.b16 %v260
  %v1524 = vunpack.c.l.b16 %v261
  %v1525 = vunpack.c.l.b16 %v262
  %v1526 = vunpack.c.l.b16 %v263
  %v1527 = vunpack.c.l.b16 %v264
  %v1528 = vunpack.c.l.b16 %v265
  %v1529 = vunpack.c.l.b16 %v266
  %v1530 = vunpack.c.l.b16 %v267
  %v1531 = vunpack.c.l.b16 %v268
  %v1532 = vunpack.c.l.b16 %v269
  %v1533 = vunpack.c.l.b16 %v270
  %v1534 = vunpack.c.l.b16 %v271
  %v1535 = vunpack.c.l.b16 %v272
  %v1536 = vunpack.c.l.b16 %v273
  %v1537 = vunpack.c.l.b16 %v274
  %v1538 = vunpack.c.l.b16 %v275
  %v1539 = vunpack.c.l.b16 %v276
  %v1540 = vunpack.c.l.b16 %v277
  %v1541 = vunpack.c.l.b16 %v278
  %v1542 = vunpack.c.l.b16 %v279
  %v1543 = vunpack.c.l.b16 %v280
  %v1544 = vunpack.c.l.b16 %v281
  %v1545 = vunpack.c.l.b16 %v282
  %v1546 = vunpack.c.l.b16 %v283
  %v1547 = vunpack.c.l.b16 %v284
  %v1548 = vunpack.c.l.b16 %v285
  %v1549 = vunpack.c.l.b16 %v286
  %v1550 = vunpack.c.l.b16 %v287
  %v1551 = vunpack.c.l.b16 %v288
  %v1552 = vunpack.c.l.b16 %v289
  %v1553 = vunpack.c.l.b16 %v290
  %v1554 = vunpack.c.l.b16 %v291
  %v1555 = vunpack.c.l.b16 %v292
  %v1556 = vunpack.c.l.b16 %v293
  %v1557 = vunpack.c.l.b16 %v294
  %v1558 = vunpack.c.l.b16 %v295
  %v1559 = vunpack.c.l.b16 %v296
  %v1560 = vunpack.c.l.b16 %v297
  %v1561 = vunpack.c.l.b16 %v298
  %v1562 = vunpack.c.l.b16 %v299
  %v1563 = vunpack.c.l.b16 %v300
  %v1564 = vunpack.c.l.b16 %v301
  %v1565 = vunpack.c.l.b16 %v302
  %v1566 = vunpack.c.l.b16 %v303
  %v1567 = vunpack.c.l.b16 %v304
  %v1568 = vunpack.c.l.b16 %v305
  %v1569 = vunpack.c.l.b16 %v306
  %v1570 = vunpack.c.l.b16 %v307
  %v1571 = vunpack.c.l.b16 %v308
  %v1572 = vunpack.c.l.b16 %v309
  %v1573 = vunpack.c.l.b16 %v310
  %v1574 = vunpack.c.l.b16 %v311
  %v1575 = vunpack.c.l.b16 %v312
  %v1576 = vunpack.c.l.b16 %v313
  %v1577 = vunpack.c.l.b16 %v314
  %v1578 = vunpack.c.l.b16 %v315
  %v1579 = vunpack.c.l.b16 %v316
  %v1580 = vunpack.c.l.b16 %v317
  %v1581 = vunpack.c.l.b16 %v318
  %v1582 = vunpack.c.l.b16 %v319
  %v1583 = vunpack.c.l.b16 %v320
  %v1584 = vunpack.c.l.b16 %v321
  %v1585 = vunpack.c.l.b16 %v322
  %v1586 = vunpack.c.l.b16 %v323
  %v1587 = vunpack.c.l.b16 %v324
  %v1588 = vunpack.c.l.b16 %v325
  %v1589 = vunpack.c.l.b16 %v326
  %v1590 = vunpack.c.l.b16 %v327
  %v1591 = vunpack.c.l.b16 %v328
  %v1592 = vunpack.c.l.b16 %v329
  %v1593 = vunpack.c.l.b16 %v330
  %v1594 = vunpack.c.l.b16 %v331
  %v1595 = vunpack.c.l.b16 %v332
  %v1596 = vunpack.c.l.b16 %v333
  %v1597 = vunpack.c.l.b16 %v334
  %v1598 = vunpack.c.l.b16 %v335
  %v1599 = vunpack.c.l.b16 %v336
  %v1600 = vunpack.c.l.b16 %v337
  %v1601 = vunpack.c.l.b16 %v338
  %v1602 = vunpack.c.l.b16 %v339
  %v1603 = vunpack.c.l.b16 %v340
  %v1604 = vunpack.c.l.b16 %v341
  %v1605 = vunpack.c.l.b16 %v342
  %v1606 = vunpack.c.l.b16 %v343
  %v1607 = vunpack.c.l.b16 %v344
  %v1608 = vunpack.c.l.b16 %v345
  %v1609 = vunpack.c.l.b16 %v346
  %v1610 = vunpack.c.l.b16 %v347
  %v1611 = vunpack.c.l.b16 %v348
  %v1612 = vunpack.c.l.b16 %v349
  %v1613 = vunpack.c.l.b16 %v350
  %v1614 = vunpack.c.l.b16 %v351
  %v1615 = vunpack.c.l.b16 %v352
  %v1616 = vunpack.c.l.b16 %v353
  %v1617 = vunpack.c.l.b16 %v354
  %v1618 = vunpack.c.l.b16 %v355
  %v1619 = vunpack.c.l.b16 %v356
  %v1620 = vunpack.c.l.b16 %v357
  %v1621 = vunpack.c.l.b16 %v358
  %v1622 = vunpack.c.l.b16 %v359
  %v1623 = vunpack.c.l.b16 %v360
  %v1624 = vunpack.c.l.b16 %v361
  %v1625 = vunpack.c.l.b16 %v362
  %v1626 = vunpack.c.l.b16 %v363
  %v1627 = vunpack.c.l.b16 %v364
  %v1628 = vunpack.c.l.b16 %v365
  %v1629 = vunpack.c.l.b16 %v366
  %v1630 = vunpack.c.l.b16 %v367
  %v1631 = vunpack.c.l.b16 %v368
  %v1632 = vunpack.c.l.b16 %v369
  %v1633 = vunpack.c.l.b16 %v370
  %v1634 = vunpack.c.l.b16 %v371
  %v1635 = vunpack.c.l.b16 %v372
  %v1636 = vunpack.c.l.b16 %v373
  %v1637 = vunpack.c.l.b16 %v374
  %v1638 = vunpack.c.l.b16 %v375
  %v1639 = vunpack.c.l.b16 %v376
  %v1640 = vunpack.c.l.b16 %v377
  %v1641 = vunpack.c.l.b16 %v378
  %v1642 = vunpack.c.l.b16 %v379
  %v1643 = vunpack.c.l.b16 %v380
  %v1644 = vunpack.c.l.b16 %v381
  %v1645 = vunpack.c.l.b16 %v382
  %v1646 = vunpack.c.l.b16 %v383
  %v1647 = vunpack.c.l.b16 %v384
  %v1648 = vunpack.c.l.b16 %v385
  %v1649 = vunpack.c.l.b16 %v386
  %v1650 = vunpack.c.l.b16 %v387
  %v1651 = vunpack.c.l.b16 %v388
  %v1652 = vunpack.c.l.b16 %v389
  %v1653 = vunpack.c.l.b16 %v390
  %v1654 = vunpack.c.l.b16 %v391
  %v1655 = vunpack.c.l.b16 %v392
  %v1656 = vunpack.c.l.b16 %v393
  %v1657 = vunpack.c.l.b16 %v394
  %v1658 = vunpack.c.l.b16 %v395
  %v1659 = vunpack.c.l.b16 %v396
  %v1660 = vunpack.c.l.b16 %v397
  %v1661 = vunpack.c.l.b16 %v398
  %v1662 = vunpack.c.l.b16 %v399
  %v1663 = vunpack.c.l.b16 %v400
  %v1664 = vunpack.c.l.b16 %v401
  %v1665 = vunpack.c.l.b16 %v402
  %v1666 = vunpack.c.l.b16 %v403
  %v1667 = vunpack.c.l.b16 %v404
  %v1668 = vunpack.c.l.b16 %v405
  %v1669 = vunpack.c.l.b16 %v406
  %v1670 = vunpack.c.l.b16 %v407
  %v1671 = vunpack.c.l.b16 %v408
  %v1672 = vunpack.c.l.b16 %v409
  %v1673 = vunpack.c.l.b16 %v410
  %v1674 = vunpack.c.l.b16 %v411
  %v1675 = vunpack.c.l.b16 %v412
  %v1676 = vunpack.c.l.b16 %v413
  %v1677 = vunpack.c.l.b16 %v414
  %v1678 = vunpack.c.l.b16 %v415
  %v1679 = vunpack.c.l.b16 %v416
  %v1680 = vunpack.c.l.b16 %v417
  %v1681 = vunpack.c.l.b16 %v418
  %v1682 = vunpack.c.l.b16 %v419
  %v1683 = vunpack.c.l.b16 %v420
  %v1684 = vunpack.c.l.b16 %v421
  %v1685 = vunpack.c.l.b16 %v422
  %v1686 = vunpack.c.l.b16 %v423
  %v1687 = vunpack.c.l.b16 %v424
  %v1688 = vunpack.c.l.b16 %v425
  %v1689 = vunpack.c.l.b16 %v426
  %v1690 = vunpack.c.l.b16 %v427
  %v1691 = vunpack.c.l.b16 %v428
  %v1692 = vunpack.c.l.b16 %v429
  %v1693 = vunpack.c.l.b16 %v430
  %v1694 = vunpack.c.l.b16 %v431
  %v1695 = vunpack.c.l.b16 %v432
  %v1696 = vunpack.c.l.b16 %v433
  %v1697 = vunpack.c.l.b16 %v434
  %v1698 = vunpack.c.l.b16 %v435
  %v1699 = vunpack.c.l.b16 %v436
  %v1700 = vunpack.c.l.b16 %v437
  %v1701 = vunpack.c.l.b16 %v438
  %v1702 = vunpack.c.l.b16 %v439
  %v1703 = vunpack.c.l.b16 %v440
  %v1704 = vunpack.c.l.b16 %v441
  %v1705 = vunpack.c.l.b16 %v442
  %v1706 = vunpack.c.l.b16 %v443
  %v1707 = vunpack.c.l.b16 %v444
  %v1708 = vunpack.c.l.b16 %v445
  %v1709 = vunpack.c.l.b16 %v446
  %v1710 = vunpack.c.l.b16 %v447
  %v1711 = vunpack.c.l.b16 %v448
  %v1712 = vunpack.c.l.b16 %v449
  %v1713 = vunpack.c.l.b16 %v450
  %v1714 = vunpack.c.l.b16 %v451
  %v1715 = vunpack.c.l.b16 %v452
  %v1716 = vunpack.c.l.b16 %v453
  %v1717 = vunpack.c.l.b16 %v454
  %v1718 = vunpack.c.l.b16 %v455
  %v1719 = vunpack.c.l.b16 %v456
  %v1720 = vunpack.c.l.b16 %v457
  %v1721 = vunpack.c.l.b16 %v458
  %v1722 = vunpack.c.l.b16 %v459
  %v1723 = vunpack.c.l.b16 %v460
  %v1724 = vunpack.c.l.b16 %v461
  %v1725 = vunpack.c.l.b16 %v462
  %v1726 = vunpack.c.l.b16 %v463
  %v1727 = vunpack.c.l.b16 %v464
  %v1728 = vunpack.c.l.b16 %v465
  %v1729 = vunpack.c.l.b16 %v466
  %v1730 = vunpack.c.l.b16 %v467
  %v1731 = vunpack.c.l.b16 %v468
  %v1732 = vunpack.c.l.b16 %v469
  %v1733 = vunpack.c.l.b16 %v470
  %v1734 = vunpack.c.l.b16 %v471
  %v1735 = vunpack.c.l.b16 %v472
  %v1736 = vunpack.c.l.b16 %v473
  %v1737 = vunpack.c.l.b16 %v474
  %v1738 = vunpack.c.l.b16 %v475
  %v1739 = vunpack.c.l.b16 %v476
  %v1740 = vunpack.c.l.b16 %v477
  %v1741 = vunpack.c.l.b16 %v478
  %v1742 = vunpack.c.l.b16 %v479
  %v1743 = vunpack.c.l.b16 %v480
  %v1744 = vunpack.c.l.b16 %v481
  %v1745 = vunpack.c.l.b16 %v482
  %v1746 = vunpack.c.l.b16 %v483
  %v1747 = vunpack.c.l.b16 %v484
  %v1748 = vunpack.c.l.b16 %v485
  %v1749 = vunpack.c.l.b16 %v486
  %v1750 = vunpack.c.l.b16 %v487
  %v1751 = vunpack.c.l.b16 %v488
  %v1752 = vunpack.c.l.b16 %v489
  %v1753 = vunpack.c.l.b16 %v490
  %v1754 = vunpack.c.l.b16 %v491
  %v1755 = vunpack.c.l.b16 %v492
  %v1756 = vunpack.c.l.b16 %v493
  %v1757 = vunpack.c.l.b16 %v494
  %v1758 = vunpack.c.l.b16 %v495
  %v1759 = vunpack.c.l.b16 %v496
  %v1760 = vunpack.c.l.b16 %v497
  %v1761 = vunpack.c.l.b16 %v498
  %v1762 = vunpack.c.l.b16 %v499
  %v1763 = vunpack.c.l.b16 %v500
  %v1764 = vunpack.c.l.b16 %v501
  %v1765 = vunpack.c.l.b16 %v502
  %v1766 = vunpack.c.l.b16 %v503
  %v1767 = vunpack.c.l.b16 %v504
  %v1768 = vunpack.c.l.b16 %v505
  %v1769 = vunpack.c.l.b16 %v506
  %v1770 = vunpack.c.l.b16 %v507
  %v1771 = vunpack.c.l.b16 %v508
  %v1772 = vunpack.c.l.b16 %v509
  %v1773 = vunpack.c.l.b16 %v510
  %v1774 = vunpack.c.l.b16 %v511
  %v1775 = vunpack.c.l.b16 %v512
  %v1776 = vunpack.c.l.b16 %v513
  %v1777 = vunpack.c.l.b16 %v514
  %v1778 = vunpack.c.l.b16 %v515
  %v1779 = vunpack.c.l.b16 %v516
  %v1780 = vunpack.c.l.b16 %v517
  %v1781 = vunpack.c.l.b16 %v518
  %v1782 = vunpack.c.l.b16 %v519
  %v1783 = vunpack.c.l.b16 %v520
  %v1784 = vunpack.c.l.b16 %v521
  %v1785 = vunpack.c.l.b16 %v522
  %v1786 = vunpack.c.l.b16 %v523
  %v1787 = vunpack.c.l.b16 %v524
  %v1788 = vunpack.c.l.b16 %v525
  %v1789 = vunpack.c.l.b16 %v526
  %v1790 = vunpack.c.l.b16 %v527
  %v1791 = vunpack.c.l.b16 %v528
  %v1792 = vunpack.c.l.b16 %v529
  %v1793 = vunpack.c.l.b16 %v530
  %v1794 = vunpack.c.l.b16 %v531
  %v1795 = vunpack.c.l.b16 %v532
  %v1796 = vunpack.c.l.b16 %v533
  %v1797 = vunpack.c.l.b16 %v534
  %v1798 = vunpack.c.l.b16 %v535
  %v1799 = vunpack.c.l.b16 %v536
  %v1800 = vunpack.c.l.b16 %v537
  %v1801 = vunpack.c.l.b16 %v538
  %v1802 = vunpack.c.l.b16 %v539
  %v1803 = vunpack.c.l.b16 %v540
  %v1804 = vunpack.c.l.b16 %v541
  %v1805 = vunpack.c.l.b16 %v542
  %v1806 = vunpack.c.l.b16 %v543
  %v1807 = vunpack.c.l.b16 %v544
  %v1808 = vpack.c.b16 %v1297, %v1296
  %v1809 = vpack.c.b16 %v1299, %v1298
  %v1810 = vpack.c.b16 %v1301, %v1300
  %v1811 = vpack.c.b16 %v1303, %v1302
  %v1812 = vpack.c.b16 %v1305, %v1304
  %v1813 = vpack.c.b16 %v1307, %v1306
  %v1814 = vpack.c.b16 %v1309, %v1308
  %v1815 = vpack.c.b16 %v1311, %v1310
  %v1816 = vpack.c.b16 %v1313, %v1312
  %v1817 = vpack.c.b16 %v1315, %v1314
  %v1818 = vpack.c.b16 %v1317, %v1316
  %v1819 = vpack.c.b16 %v1319, %v1318
  %v1820 = vpack.c.b16 %v1321, %v1320
  %v1821 = vpack.c.b16 %v1323, %v1322
  %v1822 = vpack.c.b16 %v1325, %v1324
  %v1823 = vpack.c.b16 %v1327, %v1326
  %v1824 = vpack.c.b16 %v1329, %v1328
  %v1825 = vpack.c.b16 %v1331, %v1330
  %v1826 = vpack.c.b16 %v1333, %v1332
  %v1827 = vpack.c.b16 %v1335, %v1334
  %v1828 = vpack.c.b16 %v1337, %v1336
  %v1829 = vpack.c.b16 %v1339, %v1338
  %v1830 = vpack.c.b16 %v1341, %v1340
  %v1831 = vpack.c.b16 %v1343, %v1342
  %v1832 = vpack.c.b16 %v1345, %v1344
  %v1833 = vpack.c.b16 %v1347, %v1346
  %v1834 = vpack.c.b16 %v1349, %v1348
  %v1835 = vpack.c.b16 %v1351, %v1350
  %v1836 = vpack.c.b16 %v1353, %v1352
  %v1837 = vpack.c.b16 %v1355, %v1354
  %v1838 = vpack.c.b16 %v1357, %v1356
  %v1839 = vpack.c.b16 %v1359, %v1358
  %v1840 = vpack.c.b16 %v1361, %v1360
  %v1841 = vpack.c.b16 %v1363, %v1362
  %v1842 = vpack.c.b16 %v1365, %v1364
  %v1843 = vpack.c.b16 %v1367, %v1366
  %v1844 = vpack.c.b16 %v1369, %v1368
  %v1845 = vpack.c.b16 %v1371, %v1370
  %v1846 = vpack.c.b16 %v1373, %v1372
  %v1847 = vpack.c.b16 %v1375, %v1374
  %v1848 = vpack.c.b16 %v1377, %v1376
  %v1849 = vpack.c.b16 %v1379, %v1378
  %v1850 = vpack.c.b16 %v1381, %v1380
  %v1851 = vpack.c.b16 %v1383, %v1382
  %v1852 = vpack.c.b16 %v1385, %v1384
  %v1853 = vpack.c.b16 %v1387, %v1386
  %v1854 = vpack.c.b16 %v1389, %v1388
  %v1855 = vpack.c.b16 %v1391, %v1390
  %v1856 = vpack.c.b16 %v1393, %v1392
  %v1857 = vpack.c.b16 %v1395, %v1394
  %v1858 = vpack.c.b16 %v1397, %v1396
  %v1859 = vpack.c.b16 %v1399, %v1398
  %v1860 = vpack.c.b16 %v1401, %v1400
  %v1861 = vpack.c.b16 %v1403, %v1402
  %v1862 = vpack.c.b16 %v1405, %v1404
  %v1863 = vpack.c.b16 %v1407, %v1406
  %v1864 = vpack.c.b16 %v1409, %v1408
  %v1865 = vpack.c.b16 %v1411, %v1410
  %v1866 = vpack.c.b16 %v1413, %v1412
  %v1867 = vpack.c.b16 %v1415, %v1414
  %v1868 = vpack.c.b16 %v1417, %v1416
  %v1869 = vpack.c.b16 %v1419, %v1418
  %v1870 = vpack.c.b16 %v1421, %v1420
  %v1871 = vpack.c.b16 %v1423, %v1422
  %v1872 = vpack.c.b16 %v1425, %v1424
  %v1873 = vpack.c.b16 %v1427, %v1426
  %v1874 = vpack.c.b16 %v1429, %v1428
  %v1875 = vpack.c.b16 %v1431, %v1430
  %v1876 = vpack.c.b16 %v1433, %v1432
  %v1877 = vpack.c.b16 %v1435, %v1434
  %v1878 = vpack.c.b16 %v1437, %v1436
  %v1879 = vpack.c.b16 %v1439, %v1438
  %v1880 = vpack.c.b16 %v1441, %v1440
  %v1881 = vpack.c.b16 %v1443, %v1442
  %v1882 = vpack.c.b16 %v1445, %v1444
  %v1883 = vpack.c.b16 %v1447, %v1446
  %v1884 = vpack.c.b16 %v1449, %v1448
  %v1885 = vpack.c.b16 %v1451, %v1450
  %v1886 = vpack.c.b16 %v1453, %v1452
  %v1887 = vpack.c.b16 %v1455, %v1454
  %v1888 = vpack.c.b16 %v1457, %v1456
  %v1889 = vpack.c.b16 %v1459, %v1458
  %v1890 = vpack.c.b16 %v1461, %v1460
  %v1891 = vpack.c.b16 %v1463, %v1462
  %v1892 = vpack.c.b16 %v1465, %v1464
  %v1893 = vpack.c.b16 %v1467, %v1466
  %v1894 = vpack.c.b16 %v1469, %v1468
  %v1895 = vpack.c.b16 %v1471, %v1470
  %v1896 = vpack.c.b16 %v1473, %v1472
  %v1897 = vpack.c.b16 %v1475, %v1474
  %v1898 = vpack.c.b16 %v1477, %v1476
  %v1899 = vpack.c.b16 %v1479, %v1478
  %v1900 = vpack.c.b16 %v1481, %v1480
  %v1901 = vpack.c.b16 %v1483, %v1482
  %v1902 = vpack.c.b16 %v1485, %v1484
  %v1903 = vpack.c.b16 %v1487, %v1486
  %v1904 = vpack.c.b16 %v1489, %v1488
  %v1905 = vpack.c.b16 %v1491, %v1490
  %v1906 = vpack.c.b16 %v1493, %v1492
  %v1907 = vpack.c.b16 %v1495, %v1494
  %v1908 = vpack.c.b16 %v1497, %v1496
  %v1909 = vpack.c.b16 %v1499, %v1498
  %v1910 = vpack.c.b16 %v1501, %v1500
  %v1911 = vpack.c.b16 %v1503, %v1502
  %v1912 = vpack.c.b16 %v1505, %v1504
  %v1913 = vpack.c.b16 %v1507, %v1506
  %v1914 = vpack.c.b16 %v1509, %v1508
  %v1915 = vpack.c.b16 %v1511, %v1510
  %v1916 = vpack.c.b16 %v1513, %v1512
  %v1917 = vpack.c.b16 %v1515, %v1514
  %v1918 = vpack.c.b16 %v1517, %v1516
  %v1919 = vpack.c.b16 %v1519, %v1518
  %v1920 = vpack.c.b16 %v1521, %v1520
  %v1921 = vpack.c.b16 %v1523, %v1522
  %v1922 = vpack.c.b16 %v1525, %v1524
  %v1923 = vpack.c.b16 %v1527, %v1526
  %v1924 = vpack.c.b16 %v1529, %v1528
  %v1925 = vpack.c.b16 %v1531, %v1530
  %v1926 = vpack.c.b16 %v1533, %v1532
  %v1927 = vpack.c.b16 %v1535, %v1534
  %v1928 = vpack.c.b16 %v1537, %v1536
  %v1929 = vpack.c.b16 %v1539, %v1538
  %v1930 = vpack.c.b16 %v1541, %v1540
  %v1931 = vpack.c.b16 %v1543, %v1542
  %v1932 = vpack.c.b16 %v1545, %v1544
  %v1933 = vpack.c.b16 %v1547, %v1546
  %v1934 = vpack.c.b16 %v1549, %v1548
  %v1935 = vpack.c.b16 %v1551, %v1550
  %v1936 = vpack.c.b16 %v1553, %v1552
  %v1937 = vpack.c.b16 %v1555, %v1554
  %v1938 = vpack.c.b16 %v1557, %v1556
  %v1939 = vpack.c.b16 %v1559, %v1558
  %v1940 = vpack.c.b16 %v1561, %v1560
  %v1941 = vpack.c.b16 %v1563, %v1562
  %v1942 = vpack.c.b16 %v1565, %v1564
  %v1943 = vpack.c.b16 %v1567, %v1566
  %v1944 = vpack.c.b16 %v1569, %v1568
  %v1945 = vpack.c.b16 %v1571, %v1570
  %v1946 = vpack.c.b16 %v1573, %v1572
  %v1947 = vpack.c.b16 %v1575, %v1574
  %v1948 = vpack.c.b16 %v1577, %v1576
  %v1949 = vpack.c.b16 %v1579, %v1578
  %v1950 = vpack.c.b16 %v1581, %v1580
  %v1951 = vpack.c.b16 %v1583, %v1582
  %v1952 = vpack.c.b16 %v1585, %v1584
  %v1953 = vpack.c.b16 %v1587, %v1586
  %v1954 = vpack.c.b16 %v1589, %v1588
  %v1955 = vpack.c.b16 %v1591, %v1590
  %v1956 = vpack.c.b16 %v1593, %v1592
  %v1957 = vpack.c.b16 %v1595, %v1594
  %v1958 = vpack.c.b16 %v1597, %v1596
  %v1959 = vpack.c.b16 %v1599, %v1598
  %v1960 = vpack.c.b16 %v1601, %v1600
  %v1961 = vpack.c.b16 %v1603, %v1602
  %v1962 = vpack.c.b16 %v1605, %v1604
  %v1963 = vpack.c.b16 %v1607, %v1606
  %v1964 = vpack.c.b16 %v1609, %v1608
  %v1965 = vpack.c.b16 %v1611, %v1610
  %v1966 = vpack.c.b16 %v1613, %v1612
  %v1967 = vpack.c.b16 %v1615, %v1614
  %v1968 = vpack.c.b16 %v1617, %v1616
  %v1969 = vpack.c.b16 %v1619, %v1618
  %v1970 = vpack.c.b16 %v1621, %v1620
  %v1971 = vpack.c.b16 %v1623, %v1622
  %v1972 = vpack.c.b16 %v1625, %v1624
  %v1973 = vpack.c.b16 %v1627, %v1626
  %v1974 = vpack.c.b16 %v1629, %v1628
  %v1975 = vpack.c.b16 %v1631, %v1630
  %v1976 = vpack.c.b16 %v1633, %v1632
  %v1977 = vpack.c.b16 %v1635, %v1634
  %v1978 = vpack.c.b16 %v1637, %v1636
  %v1979 = vpack.c.b16 %v1639, %v1638
  %v1980 = vpack.c.b16 %v1641, %v1640
  %v1981 = vpack.c.b16 %v1643, %v1642
  %v1982 = vpack.c.b16 %v1645, %v1644
  %v1983 = vpack.c.b16 %v1647, %v1646
  %v1984 = vpack.c.b16 %v1649, %v1648
  %v1985 = vpack.c.b16 %v1651, %v1650
  %v1986 = vpack.c.b16 %v1653, %v1652
  %v1987 = vpack.c.b16 %v1655, %v1654
  %v1988 = vpack.c.b16 %v1657, %v1656
  %v1989 = vpack.c.b16 %v1659, %v1658
  %v1990 = vpack.c.b16 %v1661, %v1660
  %v1991 = vpack.c.b16 %v1663, %v1662
  %v1992 = vpack.c.b16 %v1665, %v1664
  %v1993 = vpack.c.b16 %v1667, %v1666
  %v1994 = vpack.c.b16 %v1669, %v1668
  %v1995 = vpack.c.b16 %v1671, %v1670
  %v1996 = vpack.c.b16 %v1673, %v1672
  %v1997 = vpack.c.b16 %v1675, %v1674
  %v1998 = vpack.c.b16 %v1677, %v1676
  %v1999 = vpack.c.b16 %v1679, %v1678
  %v2000 = vpack.c.b16 %v1681, %v1680
  %v2001 = vpack.c.b16 %v1683, %v1682
  %v2002 = vpack.c.b16 %v1685, %v1684
  %v2003 = vpack.c.b16 %v1687, %v1686
  %v2004 = vpack.c.b16 %v1689, %v1688
  %v2005 = vpack.c.b16 %v1691, %v1690
  %v2006 = vpack.c.b16 %v1693, %v1692
  %v2007 = vpack.c.b16 %v1695, %v1694
  %v2008 = vpack.c.b16 %v1697, %v1696
  %v2009 = vpack.c.b16 %v1699, %v1698
  %v2010 = vpack.c.b16 %v1701, %v1700
  %v2011 = vpack.c.b16 %v1703, %v1702
  %v2012 = vpack.c.b16 %v1705, %v1704
  %v2013 = vpack.c.b16 %v1707, %v1706
  %v2014 = vpack.c.b16 %v1709, %v1708
  %v2015 = vpack.c.b16 %v1711, %v1710
  %v2016 = vpack.c.b16 %v1713, %v1712
  %v2017 = vpack.c.b16 %v1715, %v1714
  %v2018 = vpack.c.b16 %v1717, %v1716
  %v2019 = vpack.c.b16 %v1719, %v1718
  %v2020 = vpack.c.b16 %v1721, %v1720
  %v2021 = vpack.c.b16 %v1723, %v1722
  %v2022 = vpack.c.b16 %v1725, %v1724
  %v2023 = vpack.c.b16 %v1727, %v1726
  %v2024 = vpack.c.b16 %v1729, %v1728
  %v2025 = vpack.c.b16 %v1731, %v1730
  %v2026 = vpack.c.b16 %v1733, %v1732
  %v2027 = vpack.c.b16 %v1735, %v1734
  %v2028 = vpack.c.b16 %v1737, %v1736
  %v2029 = vpack.c.b16 %v1739, %v1738
  %v2030 = vpack.c.b16 %v1741, %v1740
  %v2031 = vpack.c.b16 %v1743, %v1742
  %v2032 = vpack.c.b16 %v1745, %v1744
  %v2033 = vpack.c.b16 %v1747, %v1746
  %v2034 = vpack.c.b16 %v1749, %v1748
  %v2035 = vpack.c.b16 %v1751, %v1750
  %v2036 = vpack.c.b16 %v1753, %v1752
  %v2037 = vpack.c.b16 %v1755, %v1754
  %v2038 = vpack.c.b16 %v1757, %v1756
  %v2039 = vpack.c.b16 %v1759, %v1758
  %v2040 = vpack.c.b16 %v1761, %v1760
  %v2041 = vpack.c.b16 %v1763, %v1762
  %v2042 = vpack.c.b16 %v1765, %v1764
  %v2043 = vpack.c.b16 %v1767, %v1766
  %v2044 = vpack.c.b16 %v1769, %v1768
  %v2045 = vpack.c.b16 %v1771, %v1770
  %v2046 = vpack.c.b16 %v1773, %v1772
  %v2047 = vpack.c.b16 %v1775, %v1774
  %v2048 = vpack.c.b16 %v1777, %v1776
  %v2049 = vpack.c.b16 %v1779, %v1778
  %v2050 = vpack.c.b16 %v1781, %v1780
  %v2051 = vpack.c.b16 %v1783, %v1782
  %v2052 = vpack.c.b16 %v1785, %v1784
  %v2053 = vpack.c.b16 %v1787, %v1786
  %v2054 = vpack.c.b16 %v1789, %v1788
  %v2055 = vpack.c.b16 %v1791, %v1790
  %v2056 = vpack.c.b16 %v1793, %v1792
  %v2057 = vpack.c.b16 %v1795, %v1794
  %v2058 = vpack.c.b16 %v1797, %v1796
  %v2059 = vpack.c.b16 %v1799, %v1798
  %v2060 = vpack.c.b16 %v1801, %v1800
  %v2061 = vpack.c.b16 %v1803, %v1802
  %v2062 = vpack.c.b16 %v1805, %v1804
  %v2063 = vpack.c.b16 %v1807, %v1806
  %2320 = vmatprep.subr.bf16.mxu0 0
  %2321 = vmatpush1.bf16.msra.mxu0 %v1815
  %2322 = vmatprep.subr.bf16.mxu0 0
  %2323 = vmatpush1.bf16.msra.mxu0 %v1814
  %2324 = vmatprep.subr.bf16.mxu0 0
  %2325 = vmatpush1.bf16.msra.mxu0 %v1813
  %2326 = vmatprep.subr.bf16.mxu0 0
  %2327 = vmatpush1.bf16.msra.mxu0 %v1812
  %2328 = vmatprep.subr.bf16.mxu0 0
  %2329 = vmatpush1.bf16.msra.mxu0 %v1811
  %2330 = vmatprep.subr.bf16.mxu0 0
  %2331 = vmatpush1.bf16.msra.mxu0 %v1810
  %2332 = vmatprep.subr.bf16.mxu0 0
  %2333 = vmatpush1.bf16.msra.mxu0 %v1809
  %2334 = vmatprep.subr.bf16.mxu0 0
  %2335 = vmatpush1.bf16.msra.mxu0 %v1808
  %2336 = vmatprep.subr.bf16.mxu0 0
  %2337 = vmatpush2.bf16.msra.mxu0 %v1823
  %2338 = vmatprep.subr.bf16.mxu0 0
  %2339 = vmatpush2.bf16.msra.mxu0 %v1822
  %2340 = vmatprep.subr.bf16.mxu0 0
  %2341 = vmatpush2.bf16.msra.mxu0 %v1821
  %2342 = vmatprep.subr.bf16.mxu0 0
  %2343 = vmatpush2.bf16.msra.mxu0 %v1820
  %2344 = vmatprep.subr.bf16.mxu0 0
  %2345 = vmatpush2.bf16.msra.mxu0 %v1819
  %2346 = vmatprep.subr.bf16.mxu0 0
  %2347 = vmatpush2.bf16.msra.mxu0 %v1818
  %2348 = vmatprep.subr.bf16.mxu0 0
  %2349 = vmatpush2.bf16.msra.mxu0 %v1817
  %2350 = vmatprep.subr.bf16.mxu0 0
  %2351 = vmatpush2.bf16.msra.mxu0 %v1816
  %2352 = vmatprep.mubr.bf16.mxu0 %v593
  %2353 = vmatmul.mubr.bf16.gmra.mxu0 %v579
  %v2354 = vpop.f32.mrf.mxu0
  %v2355 = vadd.f32 %v550, %v2354
  %v2356 = vpop.f32.mrf.mxu0
  %v2357 = vpop.f32.mrf.mxu0
  %v2358 = vpop.f32.mrf.mxu0
  %2359 = vdwg.mxu0
  %2360 = vmatprep.subr.bf16.mxu0 0
  %2361 = vmatpush1.bf16.msra.mxu0 %v1831
  %2362 = vmatprep.subr.bf16.mxu0 0
  %2363 = vmatpush1.bf16.msra.mxu0 %v1830
  %2364 = vmatprep.subr.bf16.mxu0 0
  %2365 = vmatpush1.bf16.msra.mxu0 %v1829
  %2366 = vmatprep.subr.bf16.mxu0 0
  %2367 = vmatpush1.bf16.msra.mxu0 %v1828
  %2368 = vmatprep.subr.bf16.mxu0 0
  %2369 = vmatpush1.bf16.msra.mxu0 %v1827
  %2370 = vmatprep.subr.bf16.mxu0 0
  %2371 = vmatpush1.bf16.msra.mxu0 %v1826
  %2372 = vmatprep.subr.bf16.mxu0 0
  %2373 = vmatpush1.bf16.msra.mxu0 %v1825
  %2374 = vmatprep.subr.bf16.mxu0 0
  %2375 = vmatpush1.bf16.msra.mxu0 %v1824
  %2376 = vmatprep.subr.bf16.mxu0 0
  %2377 = vmatpush2.bf16.msra.mxu0 %v1839
  %2378 = vmatprep.subr.bf16.mxu0 0
  %2379 = vmatpush2.bf16.msra.mxu0 %v1838
  %2380 = vmatprep.subr.bf16.mxu0 0
  %2381 = vmatpush2.bf16.msra.mxu0 %v1837
  %2382 = vmatprep.subr.bf16.mxu0 0
  %2383 = vmatpush2.bf16.msra.mxu0 %v1836
  %2384 = vmatprep.subr.bf16.mxu0 0
  %2385 = vmatpush2.bf16.msra.mxu0 %v1835
  %2386 = vmatprep.subr.bf16.mxu0 0
  %2387 = vmatpush2.bf16.msra.mxu0 %v1834
  %2388 = vmatprep.subr.bf16.mxu0 0
  %2389 = vmatpush2.bf16.msra.mxu0 %v1833
  %2390 = vmatprep.subr.bf16.mxu0 0
  %2391 = vmatpush2.bf16.msra.mxu0 %v1832
  %2392 = vmatprep.mubr.bf16.mxu0 %v603
  %2393 = vmatmul.mubr.bf16.gmra.mxu0 %v601
  %v2394 = vpop.f32.mrf.mxu0
  %v2395 = vadd.f32 %v2355, %v2394
  %v2396 = vpop.f32.mrf.mxu0
  %v2397 = vpop.f32.mrf.mxu0
  %v2398 = vpop.f32.mrf.mxu0
  %2399 = vdwg.mxu0
  %2400 = vmatprep.subr.bf16.mxu0 0
  %2401 = vmatpush1.bf16.msra.mxu0 %v1847
  %2402 = vmatprep.subr.bf16.mxu0 0
  %2403 = vmatpush1.bf16.msra.mxu0 %v1846
  %2404 = vmatprep.subr.bf16.mxu0 0
  %2405 = vmatpush1.bf16.msra.mxu0 %v1845
  %2406 = vmatprep.subr.bf16.mxu0 0
  %2407 = vmatpush1.bf16.msra.mxu0 %v1844
  %2408 = vmatprep.subr.bf16.mxu0 0
  %2409 = vmatpush1.bf16.msra.mxu0 %v1843
  %2410 = vmatprep.subr.bf16.mxu0 0
  %2411 = vmatpush1.bf16.msra.mxu0 %v1842
  %2412 = vmatprep.subr.bf16.mxu0 0
  %2413 = vmatpush1.bf16.msra.mxu0 %v1841
  %2414 = vmatprep.subr.bf16.mxu0 0
  %2415 = vmatpush1.bf16.msra.mxu0 %v1840
  %2416 = vmatprep.subr.bf16.mxu0 0
  %2417 = vmatpush2.bf16.msra.mxu0 %v1855
  %2418 = vmatprep.subr.bf16.mxu0 0
  %2419 = vmatpush2.bf16.msra.mxu0 %v1854
  %2420 = vmatprep.subr.bf16.mxu0 0
  %2421 = vmatpush2.bf16.msra.mxu0 %v1853
  %2422 = vmatprep.subr.bf16.mxu0 0
  %2423 = vmatpush2.bf16.msra.mxu0 %v1852
  %2424 = vmatprep.subr.bf16.mxu0 0
  %2425 = vmatpush2.bf16.msra.mxu0 %v1851
  %2426 = vmatprep.subr.bf16.mxu0 0
  %2427 = vmatpush2.bf16.msra.mxu0 %v1850
  %2428 = vmatprep.subr.bf16.mxu0 0
  %2429 = vmatpush2.bf16.msra.mxu0 %v1849
  %2430 = vmatprep.subr.bf16.mxu0 0
  %2431 = vmatpush2.bf16.msra.mxu0 %v1848
  %2432 = vmatprep.mubr.bf16.mxu0 %v600
  %2433 = vmatmul.mubr.bf16.gmra.mxu0 %v586
  %v2434 = vpop.f32.mrf.mxu0
  %v2435 = vadd.f32 %v2395, %v2434
  %v2436 = vpop.f32.mrf.mxu0
  %v2437 = vpop.f32.mrf.mxu0
  %v2438 = vpop.f32.mrf.mxu0
  %2439 = vdwg.mxu0
  %2440 = vmatprep.subr.bf16.mxu0 0
  %2441 = vmatpush1.bf16.msra.mxu0 %v1863
  %2442 = vmatprep.subr.bf16.mxu0 0
  %2443 = vmatpush1.bf16.msra.mxu0 %v1862
  %2444 = vmatprep.subr.bf16.mxu0 0
  %2445 = vmatpush1.bf16.msra.mxu0 %v1861
  %2446 = vmatprep.subr.bf16.mxu0 0
  %2447 = vmatpush1.bf16.msra.mxu0 %v1860
  %2448 = vmatprep.subr.bf16.mxu0 0
  %2449 = vmatpush1.bf16.msra.mxu0 %v1859
  %2450 = vmatprep.subr.bf16.mxu0 0
  %2451 = vmatpush1.bf16.msra.mxu0 %v1858
  %2452 = vmatprep.subr.bf16.mxu0 0
  %2453 = vmatpush1.bf16.msra.mxu0 %v1857
  %2454 = vmatprep.subr.bf16.mxu0 0
  %2455 = vmatpush1.bf16.msra.mxu0 %v1856
  %2456 = vmatprep.subr.bf16.mxu0 0
  %2457 = vmatpush2.bf16.msra.mxu0 %v1871
  %2458 = vmatprep.subr.bf16.mxu0 0
  %2459 = vmatpush2.bf16.msra.mxu0 %v1870
  %2460 = vmatprep.subr.bf16.mxu0 0
  %2461 = vmatpush2.bf16.msra.mxu0 %v1869
  %2462 = vmatprep.subr.bf16.mxu0 0
  %2463 = vmatpush2.bf16.msra.mxu0 %v1868
  %2464 = vmatprep.subr.bf16.mxu0 0
  %2465 = vmatpush2.bf16.msra.mxu0 %v1867
  %2466 = vmatprep.subr.bf16.mxu0 0
  %2467 = vmatpush2.bf16.msra.mxu0 %v1866
  %2468 = vmatprep.subr.bf16.mxu0 0
  %2469 = vmatpush2.bf16.msra.mxu0 %v1865
  %2470 = vmatprep.subr.bf16.mxu0 0
  %2471 = vmatpush2.bf16.msra.mxu0 %v1864
  %2472 = vmatprep.mubr.bf16.mxu0 %v604
  %2473 = vmatmul.mubr.bf16.gmra.mxu0 %v602
  %v2474 = vpop.f32.mrf.mxu0
  %v2475 = vadd.f32 %v2435, %v2474
  %v2476 = vpop.f32.mrf.mxu0
  %v2477 = vpop.f32.mrf.mxu0
  %v2478 = vpop.f32.mrf.mxu0
  %2479 = vdwg.mxu0
  %2480 = vmatprep.subr.bf16.mxu0 0
  %2481 = vmatpush1.bf16.msra.mxu0 %v1879
  %2482 = vmatprep.subr.bf16.mxu0 0
  %2483 = vmatpush1.bf16.msra.mxu0 %v1878
  %2484 = vmatprep.subr.bf16.mxu0 0
  %2485 = vmatpush1.bf16.msra.mxu0 %v1877
  %2486 = vmatprep.subr.bf16.mxu0 0
  %2487 = vmatpush1.bf16.msra.mxu0 %v1876
  %2488 = vmatprep.subr.bf16.mxu0 0
  %2489 = vmatpush1.bf16.msra.mxu0 %v1875
  %2490 = vmatprep.subr.bf16.mxu0 0
  %2491 = vmatpush1.bf16.msra.mxu0 %v1874
  %2492 = vmatprep.subr.bf16.mxu0 0
  %2493 = vmatpush1.bf16.msra.mxu0 %v1873
  %2494 = vmatprep.subr.bf16.mxu0 0
  %2495 = vmatpush1.bf16.msra.mxu0 %v1872
  %2496 = vmatprep.subr.bf16.mxu0 0
  %2497 = vmatpush2.bf16.msra.mxu0 %v1887
  %2498 = vmatprep.subr.bf16.mxu0 0
  %2499 = vmatpush2.bf16.msra.mxu0 %v1886
  %2500 = vmatprep.subr.bf16.mxu0 0
  %2501 = vmatpush2.bf16.msra.mxu0 %v1885
  %2502 = vmatprep.subr.bf16.mxu0 0
  %2503 = vmatpush2.bf16.msra.mxu0 %v1884
  %2504 = vmatprep.subr.bf16.mxu0 0
  %2505 = vmatpush2.bf16.msra.mxu0 %v1883
  %2506 = vmatprep.subr.bf16.mxu0 0
  %2507 = vmatpush2.bf16.msra.mxu0 %v1882
  %2508 = vmatprep.subr.bf16.mxu0 0
  %2509 = vmatpush2.bf16.msra.mxu0 %v1881
  %2510 = vmatprep.subr.bf16.mxu0 0
  %2511 = vmatpush2.bf16.msra.mxu0 %v1880
  %2512 = vmatprep.mubr.bf16.mxu0 %v642
  %2513 = vmatmul.mubr.bf16.gmra.mxu0 %v628
  %v2514 = vpop.f32.mrf.mxu0
  %v2515 = vadd.f32 %v2475, %v2514
  %v2516 = vpop.f32.mrf.mxu0
  %v2517 = vpop.f32.mrf.mxu0
  %v2518 = vpop.f32.mrf.mxu0
  %2519 = vdwg.mxu0
  %2520 = vmatprep.subr.bf16.mxu0 0
  %2521 = vmatpush1.bf16.msra.mxu0 %v1895
  %2522 = vmatprep.subr.bf16.mxu0 0
  %2523 = vmatpush1.bf16.msra.mxu0 %v1894
  %2524 = vmatprep.subr.bf16.mxu0 0
  %2525 = vmatpush1.bf16.msra.mxu0 %v1893
  %2526 = vmatprep.subr.bf16.mxu0 0
  %2527 = vmatpush1.bf16.msra.mxu0 %v1892
  %2528 = vmatprep.subr.bf16.mxu0 0
  %2529 = vmatpush1.bf16.msra.mxu0 %v1891
  %2530 = vmatprep.subr.bf16.mxu0 0
  %2531 = vmatpush1.bf16.msra.mxu0 %v1890
  %2532 = vmatprep.subr.bf16.mxu0 0
  %2533 = vmatpush1.bf16.msra.mxu0 %v1889
  %2534 = vmatprep.subr.bf16.mxu0 0
  %2535 = vmatpush1.bf16.msra.mxu0 %v1888
  %2536 = vmatprep.subr.bf16.mxu0 0
  %2537 = vmatpush2.bf16.msra.mxu0 %v1903
  %2538 = vmatprep.subr.bf16.mxu0 0
  %2539 = vmatpush2.bf16.msra.mxu0 %v1902
  %2540 = vmatprep.subr.bf16.mxu0 0
  %2541 = vmatpush2.bf16.msra.mxu0 %v1901
  %2542 = vmatprep.subr.bf16.mxu0 0
  %2543 = vmatpush2.bf16.msra.mxu0 %v1900
  %2544 = vmatprep.subr.bf16.mxu0 0
  %2545 = vmatpush2.bf16.msra.mxu0 %v1899
  %2546 = vmatprep.subr.bf16.mxu0 0
  %2547 = vmatpush2.bf16.msra.mxu0 %v1898
  %2548 = vmatprep.subr.bf16.mxu0 0
  %2549 = vmatpush2.bf16.msra.mxu0 %v1897
  %2550 = vmatprep.subr.bf16.mxu0 0
  %2551 = vmatpush2.bf16.msra.mxu0 %v1896
  %2552 = vmatprep.mubr.bf16.mxu0 %v652
  %2553 = vmatmul.mubr.bf16.gmra.mxu0 %v650
  %v2554 = vpop.f32.mrf.mxu0
  %v2555 = vadd.f32 %v2515, %v2554
  %v2556 = vpop.f32.mrf.mxu0
  %v2557 = vpop.f32.mrf.mxu0
  %v2558 = vpop.f32.mrf.mxu0
  %2559 = vdwg.mxu0
  %2560 = vmatprep.subr.bf16.mxu0 0
  %2561 = vmatpush1.bf16.msra.mxu0 %v1911
  %2562 = vmatprep.subr.bf16.mxu0 0
  %2563 = vmatpush1.bf16.msra.mxu0 %v1910
  %2564 = vmatprep.subr.bf16.mxu0 0
  %2565 = vmatpush1.bf16.msra.mxu0 %v1909
  %2566 = vmatprep.subr.bf16.mxu0 0
  %2567 = vmatpush1.bf16.msra.mxu0 %v1908
  %2568 = vmatprep.subr.bf16.mxu0 0
  %2569 = vmatpush1.bf16.msra.mxu0 %v1907
  %2570 = vmatprep.subr.bf16.mxu0 0
  %2571 = vmatpush1.bf16.msra.mxu0 %v1906
  %2572 = vmatprep.subr.bf16.mxu0 0
  %2573 = vmatpush1.bf16.msra.mxu0 %v1905
  %2574 = vmatprep.subr.bf16.mxu0 0
  %2575 = vmatpush1.bf16.msra.mxu0 %v1904
  %2576 = vmatprep.subr.bf16.mxu0 0
  %2577 = vmatpush2.bf16.msra.mxu0 %v1919
  %2578 = vmatprep.subr.bf16.mxu0 0
  %2579 = vmatpush2.bf16.msra.mxu0 %v1918
  %2580 = vmatprep.subr.bf16.mxu0 0
  %2581 = vmatpush2.bf16.msra.mxu0 %v1917
  %2582 = vmatprep.subr.bf16.mxu0 0
  %2583 = vmatpush2.bf16.msra.mxu0 %v1916
  %2584 = vmatprep.subr.bf16.mxu0 0
  %2585 = vmatpush2.bf16.msra.mxu0 %v1915
  %2586 = vmatprep.subr.bf16.mxu0 0
  %2587 = vmatpush2.bf16.msra.mxu0 %v1914
  %2588 = vmatprep.subr.bf16.mxu0 0
  %2589 = vmatpush2.bf16.msra.mxu0 %v1913
  %2590 = vmatprep.subr.bf16.mxu0 0
  %2591 = vmatpush2.bf16.msra.mxu0 %v1912
  %2592 = vmatprep.mubr.bf16.mxu0 %v649
  %2593 = vmatmul.mubr.bf16.gmra.mxu0 %v635
  %v2594 = vpop.f32.mrf.mxu0
  %v2595 = vadd.f32 %v2555, %v2594
  %v2596 = vpop.f32.mrf.mxu0
  %v2597 = vpop.f32.mrf.mxu0
  %v2598 = vpop.f32.mrf.mxu0
  %2599 = vdwg.mxu0
  %2600 = vmatprep.subr.bf16.mxu0 0
  %2601 = vmatpush1.bf16.msra.mxu0 %v1927
  %2602 = vmatprep.subr.bf16.mxu0 0
  %2603 = vmatpush1.bf16.msra.mxu0 %v1926
  %2604 = vmatprep.subr.bf16.mxu0 0
  %2605 = vmatpush1.bf16.msra.mxu0 %v1925
  %2606 = vmatprep.subr.bf16.mxu0 0
  %2607 = vmatpush1.bf16.msra.mxu0 %v1924
  %2608 = vmatprep.subr.bf16.mxu0 0
  %2609 = vmatpush1.bf16.msra.mxu0 %v1923
  %2610 = vmatprep.subr.bf16.mxu0 0
  %2611 = vmatpush1.bf16.msra.mxu0 %v1922
  %2612 = vmatprep.subr.bf16.mxu0 0
  %2613 = vmatpush1.bf16.msra.mxu0 %v1921
  %2614 = vmatprep.subr.bf16.mxu0 0
  %2615 = vmatpush1.bf16.msra.mxu0 %v1920
  %2616 = vmatprep.subr.bf16.mxu0 0
  %2617 = vmatpush2.bf16.msra.mxu0 %v1935
  %2618 = vmatprep.subr.bf16.mxu0 0
  %2619 = vmatpush2.bf16.msra.mxu0 %v1934
  %2620 = vmatprep.subr.bf16.mxu0 0
  %2621 = vmatpush2.bf16.msra.mxu0 %v1933
  %2622 = vmatprep.subr.bf16.mxu0 0
  %2623 = vmatpush2.bf16.msra.mxu0 %v1932
  %2624 = vmatprep.subr.bf16.mxu0 0
  %2625 = vmatpush2.bf16.msra.mxu0 %v1931
  %2626 = vmatprep.subr.bf16.mxu0 0
  %2627 = vmatpush2.bf16.msra.mxu0 %v1930
  %2628 = vmatprep.subr.bf16.mxu0 0
  %2629 = vmatpush2.bf16.msra.mxu0 %v1929
  %2630 = vmatprep.subr.bf16.mxu0 0
  %2631 = vmatpush2.bf16.msra.mxu0 %v1928
  %2632 = vmatprep.mubr.bf16.mxu0 %v653
  %2633 = vmatmul.mubr.bf16.gmra.mxu0 %v651
  %v2634 = vpop.f32.mrf.mxu0
  %v2635 = vadd.f32 %v2595, %v2634
  %v2636 = vpop.f32.mrf.mxu0
  %v2637 = vpop.f32.mrf.mxu0
  %v2638 = vpop.f32.mrf.mxu0
  %2639 = vdwg.mxu0
  %2640 = vmatprep.subr.bf16.mxu0 0
  %2641 = vmatpush1.bf16.msra.mxu0 %v1943
  %2642 = vmatprep.subr.bf16.mxu0 0
  %2643 = vmatpush1.bf16.msra.mxu0 %v1942
  %2644 = vmatprep.subr.bf16.mxu0 0
  %2645 = vmatpush1.bf16.msra.mxu0 %v1941
  %2646 = vmatprep.subr.bf16.mxu0 0
  %2647 = vmatpush1.bf16.msra.mxu0 %v1940
  %2648 = vmatprep.subr.bf16.mxu0 0
  %2649 = vmatpush1.bf16.msra.mxu0 %v1939
  %2650 = vmatprep.subr.bf16.mxu0 0
  %2651 = vmatpush1.bf16.msra.mxu0 %v1938
  %2652 = vmatprep.subr.bf16.mxu0 0
  %2653 = vmatpush1.bf16.msra.mxu0 %v1937
  %2654 = vmatprep.subr.bf16.mxu0 0
  %2655 = vmatpush1.bf16.msra.mxu0 %v1936
  %2656 = vmatprep.subr.bf16.mxu0 0
  %2657 = vmatpush2.bf16.msra.mxu0 %v1951
  %2658 = vmatprep.subr.bf16.mxu0 0
  %2659 = vmatpush2.bf16.msra.mxu0 %v1950
  %2660 = vmatprep.subr.bf16.mxu0 0
  %2661 = vmatpush2.bf16.msra.mxu0 %v1949
  %2662 = vmatprep.subr.bf16.mxu0 0
  %2663 = vmatpush2.bf16.msra.mxu0 %v1948
  %2664 = vmatprep.subr.bf16.mxu0 0
  %2665 = vmatpush2.bf16.msra.mxu0 %v1947
  %2666 = vmatprep.subr.bf16.mxu0 0
  %2667 = vmatpush2.bf16.msra.mxu0 %v1946
  %2668 = vmatprep.subr.bf16.mxu0 0
  %2669 = vmatpush2.bf16.msra.mxu0 %v1945
  %2670 = vmatprep.subr.bf16.mxu0 0
  %2671 = vmatpush2.bf16.msra.mxu0 %v1944
  %2672 = vmatprep.mubr.bf16.mxu0 %v691
  %2673 = vmatmul.mubr.bf16.gmra.mxu0 %v677
  %v2674 = vpop.f32.mrf.mxu0
  %v2675 = vadd.f32 %v2635, %v2674
  %v2676 = vpop.f32.mrf.mxu0
  %v2677 = vpop.f32.mrf.mxu0
  %v2678 = vpop.f32.mrf.mxu0
  %2679 = vdwg.mxu0
  %2680 = vmatprep.subr.bf16.mxu0 0
  %2681 = vmatpush1.bf16.msra.mxu0 %v1959
  %2682 = vmatprep.subr.bf16.mxu0 0
  %2683 = vmatpush1.bf16.msra.mxu0 %v1958
  %2684 = vmatprep.subr.bf16.mxu0 0
  %2685 = vmatpush1.bf16.msra.mxu0 %v1957
  %2686 = vmatprep.subr.bf16.mxu0 0
  %2687 = vmatpush1.bf16.msra.mxu0 %v1956
  %2688 = vmatprep.subr.bf16.mxu0 0
  %2689 = vmatpush1.bf16.msra.mxu0 %v1955
  %2690 = vmatprep.subr.bf16.mxu0 0
  %2691 = vmatpush1.bf16.msra.mxu0 %v1954
  %2692 = vmatprep.subr.bf16.mxu0 0
  %2693 = vmatpush1.bf16.msra.mxu0 %v1953
  %2694 = vmatprep.subr.bf16.mxu0 0
  %2695 = vmatpush1.bf16.msra.mxu0 %v1952
  %2696 = vmatprep.subr.bf16.mxu0 0
  %2697 = vmatpush2.bf16.msra.mxu0 %v1967
  %2698 = vmatprep.subr.bf16.mxu0 0
  %2699 = vmatpush2.bf16.msra.mxu0 %v1966
  %2700 = vmatprep.subr.bf16.mxu0 0
  %2701 = vmatpush2.bf16.msra.mxu0 %v1965
  %2702 = vmatprep.subr.bf16.mxu0 0
  %2703 = vmatpush2.bf16.msra.mxu0 %v1964
  %2704 = vmatprep.subr.bf16.mxu0 0
  %2705 = vmatpush2.bf16.msra.mxu0 %v1963
  %2706 = vmatprep.subr.bf16.mxu0 0
  %2707 = vmatpush2.bf16.msra.mxu0 %v1962
  %2708 = vmatprep.subr.bf16.mxu0 0
  %2709 = vmatpush2.bf16.msra.mxu0 %v1961
  %2710 = vmatprep.subr.bf16.mxu0 0
  %2711 = vmatpush2.bf16.msra.mxu0 %v1960
  %2712 = vmatprep.mubr.bf16.mxu0 %v701
  %2713 = vmatmul.mubr.bf16.gmra.mxu0 %v699
  %v2714 = vpop.f32.mrf.mxu0
  %v2715 = vadd.f32 %v2675, %v2714
  %v2716 = vpop.f32.mrf.mxu0
  %v2717 = vpop.f32.mrf.mxu0
  %v2718 = vpop.f32.mrf.mxu0
  %2719 = vdwg.mxu0
  %2720 = vmatprep.subr.bf16.mxu0 0
  %2721 = vmatpush1.bf16.msra.mxu0 %v1975
  %2722 = vmatprep.subr.bf16.mxu0 0
  %2723 = vmatpush1.bf16.msra.mxu0 %v1974
  %2724 = vmatprep.subr.bf16.mxu0 0
  %2725 = vmatpush1.bf16.msra.mxu0 %v1973
  %2726 = vmatprep.subr.bf16.mxu0 0
  %2727 = vmatpush1.bf16.msra.mxu0 %v1972
  %2728 = vmatprep.subr.bf16.mxu0 0
  %2729 = vmatpush1.bf16.msra.mxu0 %v1971
  %2730 = vmatprep.subr.bf16.mxu0 0
  %2731 = vmatpush1.bf16.msra.mxu0 %v1970
  %2732 = vmatprep.subr.bf16.mxu0 0
  %2733 = vmatpush1.bf16.msra.mxu0 %v1969
  %2734 = vmatprep.subr.bf16.mxu0 0
  %2735 = vmatpush1.bf16.msra.mxu0 %v1968
  %2736 = vmatprep.subr.bf16.mxu0 0
  %2737 = vmatpush2.bf16.msra.mxu0 %v1983
  %2738 = vmatprep.subr.bf16.mxu0 0
  %2739 = vmatpush2.bf16.msra.mxu0 %v1982
  %2740 = vmatprep.subr.bf16.mxu0 0
  %2741 = vmatpush2.bf16.msra.mxu0 %v1981
  %2742 = vmatprep.subr.bf16.mxu0 0
  %2743 = vmatpush2.bf16.msra.mxu0 %v1980
  %2744 = vmatprep.subr.bf16.mxu0 0
  %2745 = vmatpush2.bf16.msra.mxu0 %v1979
  %2746 = vmatprep.subr.bf16.mxu0 0
  %2747 = vmatpush2.bf16.msra.mxu0 %v1978
  %2748 = vmatprep.subr.bf16.mxu0 0
  %2749 = vmatpush2.bf16.msra.mxu0 %v1977
  %2750 = vmatprep.subr.bf16.mxu0 0
  %2751 = vmatpush2.bf16.msra.mxu0 %v1976
  %2752 = vmatprep.mubr.bf16.mxu0 %v698
  %2753 = vmatmul.mubr.bf16.gmra.mxu0 %v684
  %v2754 = vpop.f32.mrf.mxu0
  %v2755 = vadd.f32 %v2715, %v2754
  %v2756 = vpop.f32.mrf.mxu0
  %v2757 = vpop.f32.mrf.mxu0
  %v2758 = vpop.f32.mrf.mxu0
  %2759 = vdwg.mxu0
  %2760 = vmatprep.subr.bf16.mxu0 0
  %2761 = vmatpush1.bf16.msra.mxu0 %v1991
  %2762 = vmatprep.subr.bf16.mxu0 0
  %2763 = vmatpush1.bf16.msra.mxu0 %v1990
  %2764 = vmatprep.subr.bf16.mxu0 0
  %2765 = vmatpush1.bf16.msra.mxu0 %v1989
  %2766 = vmatprep.subr.bf16.mxu0 0
  %2767 = vmatpush1.bf16.msra.mxu0 %v1988
  %2768 = vmatprep.subr.bf16.mxu0 0
  %2769 = vmatpush1.bf16.msra.mxu0 %v1987
  %2770 = vmatprep.subr.bf16.mxu0 0
  %2771 = vmatpush1.bf16.msra.mxu0 %v1986
  %2772 = vmatprep.subr.bf16.mxu0 0
  %2773 = vmatpush1.bf16.msra.mxu0 %v1985
  %2774 = vmatprep.subr.bf16.mxu0 0
  %2775 = vmatpush1.bf16.msra.mxu0 %v1984
  %2776 = vmatprep.subr.bf16.mxu0 0
  %2777 = vmatpush2.bf16.msra.mxu0 %v1999
  %2778 = vmatprep.subr.bf16.mxu0 0
  %2779 = vmatpush2.bf16.msra.mxu0 %v1998
  %2780 = vmatprep.subr.bf16.mxu0 0
  %2781 = vmatpush2.bf16.msra.mxu0 %v1997
  %2782 = vmatprep.subr.bf16.mxu0 0
  %2783 = vmatpush2.bf16.msra.mxu0 %v1996
  %2784 = vmatprep.subr.bf16.mxu0 0
  %2785 = vmatpush2.bf16.msra.mxu0 %v1995
  %2786 = vmatprep.subr.bf16.mxu0 0
  %2787 = vmatpush2.bf16.msra.mxu0 %v1994
  %2788 = vmatprep.subr.bf16.mxu0 0
  %2789 = vmatpush2.bf16.msra.mxu0 %v1993
  %2790 = vmatprep.subr.bf16.mxu0 0
  %2791 = vmatpush2.bf16.msra.mxu0 %v1992
  %2792 = vmatprep.mubr.bf16.mxu0 %v702
  %2793 = vmatmul.mubr.bf16.gmra.mxu0 %v700
  %v2794 = vpop.f32.mrf.mxu0
  %v2795 = vadd.f32 %v2755, %v2794
  %v2796 = vpop.f32.mrf.mxu0
  %v2797 = vpop.f32.mrf.mxu0
  %v2798 = vpop.f32.mrf.mxu0
  %2799 = vdwg.mxu0
  %2800 = vmatprep.subr.bf16.mxu0 0
  %2801 = vmatpush1.bf16.msra.mxu0 %v2007
  %2802 = vmatprep.subr.bf16.mxu0 0
  %2803 = vmatpush1.bf16.msra.mxu0 %v2006
  %2804 = vmatprep.subr.bf16.mxu0 0
  %2805 = vmatpush1.bf16.msra.mxu0 %v2005
  %2806 = vmatprep.subr.bf16.mxu0 0
  %2807 = vmatpush1.bf16.msra.mxu0 %v2004
  %2808 = vmatprep.subr.bf16.mxu0 0
  %2809 = vmatpush1.bf16.msra.mxu0 %v2003
  %2810 = vmatprep.subr.bf16.mxu0 0
  %2811 = vmatpush1.bf16.msra.mxu0 %v2002
  %2812 = vmatprep.subr.bf16.mxu0 0
  %2813 = vmatpush1.bf16.msra.mxu0 %v2001
  %2814 = vmatprep.subr.bf16.mxu0 0
  %2815 = vmatpush1.bf16.msra.mxu0 %v2000
  %2816 = vmatprep.subr.bf16.mxu0 0
  %2817 = vmatpush2.bf16.msra.mxu0 %v2015
  %2818 = vmatprep.subr.bf16.mxu0 0
  %2819 = vmatpush2.bf16.msra.mxu0 %v2014
  %2820 = vmatprep.subr.bf16.mxu0 0
  %2821 = vmatpush2.bf16.msra.mxu0 %v2013
  %2822 = vmatprep.subr.bf16.mxu0 0
  %2823 = vmatpush2.bf16.msra.mxu0 %v2012
  %2824 = vmatprep.subr.bf16.mxu0 0
  %2825 = vmatpush2.bf16.msra.mxu0 %v2011
  %2826 = vmatprep.subr.bf16.mxu0 0
  %2827 = vmatpush2.bf16.msra.mxu0 %v2010
  %2828 = vmatprep.subr.bf16.mxu0 0
  %2829 = vmatpush2.bf16.msra.mxu0 %v2009
  %2830 = vmatprep.subr.bf16.mxu0 0
  %2831 = vmatpush2.bf16.msra.mxu0 %v2008
  %2832 = vmatprep.mubr.bf16.mxu0 %v740
  %2833 = vmatmul.mubr.bf16.gmra.mxu0 %v726
  %v2834 = vpop.f32.mrf.mxu0
  %v2835 = vadd.f32 %v2795, %v2834
  %v2836 = vpop.f32.mrf.mxu0
  %v2837 = vpop.f32.mrf.mxu0
  %v2838 = vpop.f32.mrf.mxu0
  %2839 = vdwg.mxu0
  %2840 = vmatprep.subr.bf16.mxu0 0
  %2841 = vmatpush1.bf16.msra.mxu0 %v2023
  %2842 = vmatprep.subr.bf16.mxu0 0
  %2843 = vmatpush1.bf16.msra.mxu0 %v2022
  %2844 = vmatprep.subr.bf16.mxu0 0
  %2845 = vmatpush1.bf16.msra.mxu0 %v2021
  %2846 = vmatprep.subr.bf16.mxu0 0
  %2847 = vmatpush1.bf16.msra.mxu0 %v2020
  %2848 = vmatprep.subr.bf16.mxu0 0
  %2849 = vmatpush1.bf16.msra.mxu0 %v2019
  %2850 = vmatprep.subr.bf16.mxu0 0
  %2851 = vmatpush1.bf16.msra.mxu0 %v2018
  %2852 = vmatprep.subr.bf16.mxu0 0
  %2853 = vmatpush1.bf16.msra.mxu0 %v2017
  %2854 = vmatprep.subr.bf16.mxu0 0
  %2855 = vmatpush1.bf16.msra.mxu0 %v2016
  %2856 = vmatprep.subr.bf16.mxu0 0
  %2857 = vmatpush2.bf16.msra.mxu0 %v2031
  %2858 = vmatprep.subr.bf16.mxu0 0
  %2859 = vmatpush2.bf16.msra.mxu0 %v2030
  %2860 = vmatprep.subr.bf16.mxu0 0
  %2861 = vmatpush2.bf16.msra.mxu0 %v2029
  %2862 = vmatprep.subr.bf16.mxu0 0
  %2863 = vmatpush2.bf16.msra.mxu0 %v2028
  %2864 = vmatprep.subr.bf16.mxu0 0
  %2865 = vmatpush2.bf16.msra.mxu0 %v2027
  %2866 = vmatprep.subr.bf16.mxu0 0
  %2867 = vmatpush2.bf16.msra.mxu0 %v2026
  %2868 = vmatprep.subr.bf16.mxu0 0
  %2869 = vmatpush2.bf16.msra.mxu0 %v2025
  %2870 = vmatprep.subr.bf16.mxu0 0
  %2871 = vmatpush2.bf16.msra.mxu0 %v2024
  %2872 = vmatprep.mubr.bf16.mxu0 %v750
  %2873 = vmatmul.mubr.bf16.gmra.mxu0 %v748
  %v2874 = vpop.f32.mrf.mxu0
  %v2875 = vadd.f32 %v2835, %v2874
  %v2876 = vpop.f32.mrf.mxu0
  %v2877 = vpop.f32.mrf.mxu0
  %v2878 = vpop.f32.mrf.mxu0
  %2879 = vdwg.mxu0
  %2880 = vmatprep.subr.bf16.mxu0 0
  %2881 = vmatpush1.bf16.msra.mxu0 %v2039
  %2882 = vmatprep.subr.bf16.mxu0 0
  %2883 = vmatpush1.bf16.msra.mxu0 %v2038
  %2884 = vmatprep.subr.bf16.mxu0 0
  %2885 = vmatpush1.bf16.msra.mxu0 %v2037
  %2886 = vmatprep.subr.bf16.mxu0 0
  %2887 = vmatpush1.bf16.msra.mxu0 %v2036
  %2888 = vmatprep.subr.bf16.mxu0 0
  %2889 = vmatpush1.bf16.msra.mxu0 %v2035
  %2890 = vmatprep.subr.bf16.mxu0 0
  %2891 = vmatpush1.bf16.msra.mxu0 %v2034
  %2892 = vmatprep.subr.bf16.mxu0 0
  %2893 = vmatpush1.bf16.msra.mxu0 %v2033
  %2894 = vmatprep.subr.bf16.mxu0 0
  %2895 = vmatpush1.bf16.msra.mxu0 %v2032
  %2896 = vmatprep.subr.bf16.mxu0 0
  %2897 = vmatpush2.bf16.msra.mxu0 %v2047
  %2898 = vmatprep.subr.bf16.mxu0 0
  %2899 = vmatpush2.bf16.msra.mxu0 %v2046
  %2900 = vmatprep.subr.bf16.mxu0 0
  %2901 = vmatpush2.bf16.msra.mxu0 %v2045
  %2902 = vmatprep.subr.bf16.mxu0 0
  %2903 = vmatpush2.bf16.msra.mxu0 %v2044
  %2904 = vmatprep.subr.bf16.mxu0 0
  %2905 = vmatpush2.bf16.msra.mxu0 %v2043
  %2906 = vmatprep.subr.bf16.mxu0 0
  %2907 = vmatpush2.bf16.msra.mxu0 %v2042
  %2908 = vmatprep.subr.bf16.mxu0 0
  %2909 = vmatpush2.bf16.msra.mxu0 %v2041
  %2910 = vmatprep.subr.bf16.mxu0 0
  %2911 = vmatpush2.bf16.msra.mxu0 %v2040
  %2912 = vmatprep.mubr.bf16.mxu0 %v747
  %2913 = vmatmul.mubr.bf16.gmra.mxu0 %v733
  %v2914 = vpop.f32.mrf.mxu0
  %v2915 = vadd.f32 %v2875, %v2914
  %v2916 = vpop.f32.mrf.mxu0
  %v2917 = vpop.f32.mrf.mxu0
  %v2918 = vpop.f32.mrf.mxu0
  %2919 = vdwg.mxu0
  %2920 = vmatprep.subr.bf16.mxu0 0
  %2921 = vmatpush1.bf16.msra.mxu0 %v2055
  %2922 = vmatprep.subr.bf16.mxu0 0
  %2923 = vmatpush1.bf16.msra.mxu0 %v2054
  %2924 = vmatprep.subr.bf16.mxu0 0
  %2925 = vmatpush1.bf16.msra.mxu0 %v2053
  %2926 = vmatprep.subr.bf16.mxu0 0
  %2927 = vmatpush1.bf16.msra.mxu0 %v2052
  %2928 = vmatprep.subr.bf16.mxu0 0
  %2929 = vmatpush1.bf16.msra.mxu0 %v2051
  %2930 = vmatprep.subr.bf16.mxu0 0
  %2931 = vmatpush1.bf16.msra.mxu0 %v2050
  %2932 = vmatprep.subr.bf16.mxu0 0
  %2933 = vmatpush1.bf16.msra.mxu0 %v2049
  %2934 = vmatprep.subr.bf16.mxu0 0
  %2935 = vmatpush1.bf16.msra.mxu0 %v2048
  %2936 = vmatprep.subr.bf16.mxu0 0
  %2937 = vmatpush2.bf16.msra.mxu0 %v2063
  %2938 = vmatprep.subr.bf16.mxu0 0
  %2939 = vmatpush2.bf16.msra.mxu0 %v2062
  %2940 = vmatprep.subr.bf16.mxu0 0
  %2941 = vmatpush2.bf16.msra.mxu0 %v2061
  %2942 = vmatprep.subr.bf16.mxu0 0
  %2943 = vmatpush2.bf16.msra.mxu0 %v2060
  %2944 = vmatprep.subr.bf16.mxu0 0
  %2945 = vmatpush2.bf16.msra.mxu0 %v2059
  %2946 = vmatprep.subr.bf16.mxu0 0
  %2947 = vmatpush2.bf16.msra.mxu0 %v2058
  %2948 = vmatprep.subr.bf16.mxu0 0
  %2949 = vmatpush2.bf16.msra.mxu0 %v2057
  %2950 = vmatprep.subr.bf16.mxu0 0
  %2951 = vmatpush2.bf16.msra.mxu0 %v2056
  %2952 = vmatprep.mubr.bf16.mxu0 %v751
  %2953 = vmatmul.mubr.bf16.gmra.mxu0 %v749
  %v2954 = vpop.f32.mrf.mxu0
  %v2955 = vadd.f32 %v2915, %v2954
  %v2956 = vpop.f32.mrf.mxu0
  %v2957 = vpop.f32.mrf.mxu0
  %v2958 = vpop.f32.mrf.mxu0
  %2959 = vdwg.mxu0
  %v2960 = vmax.f32 %v2955, 0.0
  %v2961 = vpack.c.bf16 %v2960, %v2960
  %v2962 = vld [vmem:[%s3] sm:$0xf]
  %v2963 = vld [vmem:[%s3 + $0x4] sm:$0xf]
  %v2964 = vld [vmem:[%s3 + $0x8] sm:$0xf]
  %v2965 = vld [vmem:[%s3 + $0xc] sm:$0xf]
  %v2966 = vld [vmem:[%s4] sm:$0x1]
  %v2968 = vlaneseq
  %v2969 = vshrl.u32 %v2968, 7
  %v2970 = vsub.s32 0, %v2969
  %v2971 = vrot.slane %v2966, %v2970
  %v2977 = vunpack.c.l.b16 %v2962
  %v2978 = vunpack.c.l.b16 %v2963
  %v2979 = vunpack.c.l.b16 %v2964
  %v2980 = vunpack.c.l.b16 %v2965
  %v2981 = vpack.c.b16 %v2978, %v2977
  %v2982 = vpack.c.b16 %v2980, %v2979
  %vm2985 = vcmask 261120
  %v2987 = vsel %vm2985, %v2961, 0
  %2989 = vmatprep.subr.bf16.mxu0 0
  %2990 = vmatpush1.bf16.msra.mxu0 0
  %2991 = vmatprep.subr.bf16.mxu0 0
  %2992 = vmatpush1.bf16.msra.mxu0 0
  %2993 = vmatprep.subr.bf16.mxu0 0
  %2994 = vmatpush1.bf16.msra.mxu0 0
  %2995 = vmatprep.subr.bf16.mxu0 0
  %2996 = vmatpush1.bf16.msra.mxu0 0
  %2997 = vmatprep.subr.bf16.mxu0 0
  %2998 = vmatpush1.bf16.msra.mxu0 0
  %2999 = vmatprep.subr.bf16.mxu0 0
  %3000 = vmatpush1.bf16.msra.mxu0 0
  %3001 = vmatprep.subr.bf16.mxu0 0
  %3002 = vmatpush1.bf16.msra.mxu0 %v2982
  %3003 = vmatprep.subr.bf16.mxu0 0
  %3004 = vmatpush1.bf16.msra.mxu0 %v2981
  %3005 = vmatprep.subr.bf16.mxu0 0
  %3006 = vmatpush2.bf16.msra.mxu0 0
  %3007 = vmatprep.subr.bf16.mxu0 0
  %3008 = vmatpush2.bf16.msra.mxu0 0
  %3009 = vmatprep.subr.bf16.mxu0 0
  %3010 = vmatpush2.bf16.msra.mxu0 0
  %3011 = vmatprep.subr.bf16.mxu0 0
  %3012 = vmatpush2.bf16.msra.mxu0 0
  %3013 = vmatprep.subr.bf16.mxu0 0
  %3014 = vmatpush2.bf16.msra.mxu0 0
  %3015 = vmatprep.subr.bf16.mxu0 0
  %3016 = vmatpush2.bf16.msra.mxu0 0
  %3017 = vmatprep.subr.bf16.mxu0 0
  %3018 = vmatpush2.bf16.msra.mxu0 0
  %3019 = vmatprep.subr.bf16.mxu0 0
  %3020 = vmatpush2.bf16.msra.mxu0 0
  %3021 = vmatprep.mubr.bf16.mxu0 0
  %3022 = vmatmul.mubr.bf16.gmra.mxu0 %v2987
  %v3023 = vpop.f32.mrf.mxu0
  %v3024 = vadd.f32 %v2971, %v3023
  %v3025 = vpop.f32.mrf.mxu0
  %v3026 = vpop.f32.mrf.mxu0
  %v3027 = vpop.f32.mrf.mxu0
  %3028 = vdwg.mxu0
  %v3029 = vmax.f32 %v3024, 0.0
  %v3030 = vld [vmem:[%s5] sm:$0x1]
  %v3032 = vlaneseq
  %v3033 = vshrl.u32 %v3032, 7
  %v3034 = vsub.s32 0, %v3033
  %v3035 = vrot.slane %v3030, %v3034
  %v3037 = vmul.f32 %v3029, %v3035
  %vm3038 = vcmask 254976
  %v3039 = vsel %vm3038, %v3037, 0.0
  %3040 = vadd.xlane.f32.xlu0 %v3039
  %v3041 = vpop.xlane.xlu0 %3040
  %v3042 = vld [vmem:[#allocation2] sm:$0x1]
  %v3044 = vlaneseq
  %v3045 = vshrl.u32 %v3044, 7
  %v3046 = vsub.s32 0, %v3045
  %v3047 = vrot.slane %v3042, %v3046
  %v3049 = vadd.f32 %v3041, %v3047
  %vm3050 = vcmask 1024
  %3051 = vst.msk [vmem:[%s7] sm:$0x3] %vm3050, %v3049
  // Predicated region
  $region30: #{value_network_forward.5} parent=0 // pred_check
    _
  $region31: #{value_network_forward.5} parent=0 // pred_check_branch
    %3053 = sbr.rel (0) target = $region33
  $region32: #{value_network_forward.5} parent=0 // pred_region
    _
  $region33: #{value_network_forward.5} parent=0 // pred_fallthru
    _
  // Predicated region
  $region34: #{value_network_forward.5} parent=0 // pred_check
    _
  $region35: #{value_network_forward.5} parent=0 // pred_check_branch
    %3055 = sbr.rel (0) target = $region37
  $region36: #{value_network_forward.5} parent=0 // pred_region
    _
  $region37: #{value_network_forward.5} parent=0 // pred_fallthru
    _

</llo_original>
